<compile_context>
chip_gen: v7x
topology: tpu7x:2x2x1
jax: 0.10.0
libtpu: 0.0.40
codegen_flags: <defaults>
</compile_context>

<pallas_src>
import functools

import jax
import jax.numpy as jnp
from jax.experimental import pallas as pl
from jax.experimental.pallas import tpu as pltpu

LANES = 128
KH = KW = 5          # both convs are 5x5
C1, C2 = 32, 64      # conv output channels
HID = 256            # fc hidden width
EMB = 2              # embedding size
FC1_TK = 16384       # fc1 contraction tile (4 MB bf16 weight blocks)


def _round_up(x, m):
    return (x + m - 1) // m * m


# ----------------------------------------------------------------------------
# conv1: pool-phase im2col matmul + bias + PReLU + 2x2 max, one kernel
# ----------------------------------------------------------------------------
def _conv1_kernel(x0_ref, x1_ref, x2_ref, x3_ref, w_ref, b_ref, a_ref, o_ref):
    """Each x*_ref holds the im2col rows of one 2x2-pool phase; pooled = max."""
    w = w_ref[...]
    b = b_ref[...]
    alpha = a_ref[0]

    def act(xr):
        y = jnp.dot(xr[...], w, preferred_element_type=jnp.float32) + b
        return jnp.where(y > 0, y, alpha * y)

    o_ref[...] = jnp.maximum(
        jnp.maximum(act(x0_ref), act(x1_ref)),
        jnp.maximum(act(x2_ref), act(x3_ref)),
    ).astype(o_ref.dtype)


def conv_prelu_pool_c1(xb, wmat, bvec, alpha, tm=4096):
    """(B,H,W) single channel -> pooled NHWC (B,Hp,Wp,32) bf16."""
    B, H, W = xb.shape
    Ho, Wo = H - KH + 1, W - KW + 1
    Hp, Wp = Ho // 2, Wo // 2
    M, K = B * Hp * Wp, KH * KW

    # One im2col matrix per position in the 2x2 pooling window, all in
    # (b, hp, wp) row order, so the elementwise max over the four activations
    # is exactly MaxPool2d(2, stride=2).  Slice ends are exact (never past the
    # array bound).
    # TODO(synk): fold this patch extraction into the kernel (halo-style,
    # Cin=1) to drop the 4x(M,25) intermediates; conv1 is a minor cost overall.
    phases = []
    for a in range(2):
        for c in range(2):
            taps = [
                xb[:, a + ki: a + ki + 2 * Hp - 1: 2,
                      c + kj: c + kj + 2 * Wp - 1: 2]
                for ki in range(KH) for kj in range(KW)
            ]
            phases.append(jnp.stack(taps, axis=-1).reshape(M, K))

    tm = max(8, min(tm, _round_up(M, 8)))
    out = pl.pallas_call(
        _conv1_kernel,
        out_shape=jax.ShapeDtypeStruct((M, C1), jnp.bfloat16),
        grid=(pl.cdiv(M, tm),),
        in_specs=[pl.BlockSpec((tm, K), lambda i: (i, 0)) for _ in range(4)]
        + [
            pl.BlockSpec((K, C1), lambda i: (0, 0)),
            pl.BlockSpec((1, C1), lambda i: (0, 0)),
            pl.BlockSpec(memory_space=pltpu.MemorySpace.SMEM),
        ],
        out_specs=pl.BlockSpec((tm, C1), lambda i: (i, 0)),
        compiler_params=pltpu.CompilerParams(
            dimension_semantics=("parallel",),
            vmem_limit_bytes=32 * 1024 * 1024),
    )(*phases, wmat, bvec, alpha)
    return out.reshape(B, Hp, Wp, C1)


# ----------------------------------------------------------------------------
# conv2: fused halo conv + bias + PReLU + 2x2 max-pool (no HBM im2col)
# ----------------------------------------------------------------------------
def _conv2_kernel(x_ref, w_ref, b_ref, a_ref, o_ref, vrow_ref, *,
                  tp, wo, wp, hp, cin, cout):
    pb = pl.program_id(1)
    bias = b_ref[...]
    alpha = a_ref[0]
    # Loop-invariant per-ki weight slabs (KW*Cin, Cout), sublane-aligned slices.
    wks = [w_ref[ki * KW * cin:(ki + 1) * KW * cin, :] for ki in range(KH)]

    def conv_row(r):
        acc = jnp.zeros((wo, cout), jnp.float32)
        for ki in range(KH):
            # (Wo, KW*Cin) operand: the KW shifted tap slabs are read straight
            # from the input ref and concatenated along the contraction dim,
            # giving KH deep-K MXU dots per conv row instead of KH*KW K=Cin
            # dots with VPU accumulation.
            a_op = jnp.concatenate(
                [x_ref[0, r + ki, kj:kj + wo, :] for kj in range(KW)], axis=-1)
            acc = acc + jnp.dot(a_op, wks[ki],
                                preferred_element_type=jnp.float32)
        y = acc + bias
        return jnp.where(y > 0, y, alpha * y)

    def body(t, carry):
        # Pooled output row; clamped so tail blocks recompute the last valid
        # row (their out-of-range output rows are dropped on write-back).
        p = jnp.minimum(pb * tp + t, hp - 1)
        r0 = 2 * p
        # 2x2 max-pool fully in VMEM: vertical max, then stride-2 horizontal.
        vrow_ref[...] = jnp.maximum(conv_row(r0), conv_row(r0 + 1))
        pooled = jnp.maximum(vrow_ref[pl.ds(0, wp, stride=2), :],
                             vrow_ref[pl.ds(1, wp, stride=2), :])
        o_ref[0, t, :, :] = pooled.astype(o_ref.dtype)
        return carry

    jax.lax.fori_loop(0, tp, body, 0)


def conv_prelu_pool_c2(x_nhwc, wmat, bvec, alpha, tp=8):
    """NHWC (B,H1,W1,32) -> pooled NHWC (B,Hp,Wp,64) bf16."""
    B, H1, W1, Cin = x_nhwc.shape
    Kdim, Cout = wmat.shape
    Ho, Wo = H1 - KH + 1, W1 - KW + 1
    Hp, Wp = Ho // 2, Wo // 2
    tp = max(1, min(tp, Hp))

    kern = functools.partial(_conv2_kernel, tp=tp, wo=Wo, wp=Wp, hp=Hp,
                             cin=Cin, cout=Cout)
    return pl.pallas_call(
        kern,
        out_shape=jax.ShapeDtypeStruct((B, Hp, Wp, Cout), jnp.bfloat16),
        grid=(B, pl.cdiv(Hp, tp)),
        in_specs=[
            pl.BlockSpec((1, H1, W1, Cin), lambda b, p: (b, 0, 0, 0)),
            pl.BlockSpec((Kdim, Cout), lambda b, p: (0, 0)),
            pl.BlockSpec((1, Cout), lambda b, p: (0, 0)),
            pl.BlockSpec(memory_space=pltpu.MemorySpace.SMEM),
        ],
        out_specs=pl.BlockSpec((1, tp, Wp, Cout), lambda b, p: (b, p, 0, 0)),
        scratch_shapes=[pltpu.VMEM((Wo, Cout), jnp.float32)],
        compiler_params=pltpu.CompilerParams(
            dimension_semantics=("parallel", "parallel"),
            vmem_limit_bytes=48 * 1024 * 1024),
    )(x_nhwc, wmat, bvec, alpha)


# ----------------------------------------------------------------------------
# fc1 + PReLU: K streamed in 16K tiles, N split into 128-lane parallel blocks
# ----------------------------------------------------------------------------
def _fc1_kernel(x_ref, w_ref, b_ref, a_ref, o_ref, acc_ref):
    k = pl.program_id(1)

    @pl.when(k == 0)
    def _():
        acc_ref[...] = jnp.zeros_like(acc_ref)

    acc_ref[...] += jnp.dot(x_ref[...], w_ref[...],
                            preferred_element_type=jnp.float32)

    @pl.when(k == pl.num_programs(1) - 1)
    def _():
        h = acc_ref[...] + b_ref[...]
        o_ref[...] = jnp.where(h > 0, h, a_ref[0] * h).astype(o_ref.dtype)


def fc1_layer(feat, w1, b1, alpha, tn=LANES):
    B, D = feat.shape
    Dp, H1 = w1.shape
    if Dp != D:                      # weight rows were zero-padded at prep time
        feat = jnp.pad(feat, ((0, 0), (0, Dp - D)))
    tk = min(FC1_TK, Dp)
    nk, nn = Dp // tk, H1 // tn
    return pl.pallas_call(
        _fc1_kernel,
        out_shape=jax.ShapeDtypeStruct((B, H1), jnp.bfloat16),
        grid=(nn, nk),
        in_specs=[
            pl.BlockSpec((B, tk), lambda n, k: (0, k)),
            pl.BlockSpec((tk, tn), lambda n, k: (k, n)),
            pl.BlockSpec((1, tn), lambda n, k: (0, n)),
            pl.BlockSpec(memory_space=pltpu.MemorySpace.SMEM),
        ],
        out_specs=pl.BlockSpec((B, tn), lambda n, k: (0, n)),
        scratch_shapes=[pltpu.VMEM((B, tn), jnp.float32)],
        compiler_params=pltpu.CompilerParams(
            dimension_semantics=("parallel", "arbitrary"),
            vmem_limit_bytes=32 * 1024 * 1024),
    )(feat, w1, b1, alpha)


# ----------------------------------------------------------------------------
# fc2 -> PReLU -> fc3 head (tiny, VMEM resident, single grid step)
# ----------------------------------------------------------------------------
def _fc_head_kernel(h_ref, w2_ref, b2_ref, w3_ref, b3_ref, a_ref, o_ref):
    z = jnp.dot(h_ref[...], w2_ref[...],
                preferred_element_type=jnp.float32) + b2_ref[...]
    z = jnp.where(z > 0, z, a_ref[0] * z)
    o_ref[...] = jnp.dot(z.astype(jnp.bfloat16), w3_ref[...],
                         preferred_element_type=jnp.float32) + b3_ref[...]


def fc_head(h, w2, b2, w3, b3, alpha):
    B, H1 = h.shape
    H2, N3 = w3.shape
    return pl.pallas_call(
        _fc_head_kernel,
        out_shape=jax.ShapeDtypeStruct((B, N3), jnp.float32),
        grid=(1,),
        in_specs=[
            pl.BlockSpec((B, H1), lambda i: (0, 0)),
            pl.BlockSpec(w2.shape, lambda i: (0, 0)),
            pl.BlockSpec((1, w2.shape[1]), lambda i: (0, 0)),
            pl.BlockSpec((H2, N3), lambda i: (0, 0)),
            pl.BlockSpec((1, N3), lambda i: (0, 0)),
            pl.BlockSpec(memory_space=pltpu.MemorySpace.SMEM),
        ],
        out_specs=pl.BlockSpec((B, N3), lambda i: (0, 0)),
    )(h, w2, b2, w3, b3, alpha)


# ----------------------------------------------------------------------------
# Parameters
# ----------------------------------------------------------------------------
def init_params(key, conv_out_size):
    def uniform(k, shape, fan_in):
        bound = 1.0 / jnp.sqrt(float(fan_in))
        return jax.random.uniform(k, shape, jnp.float32, -bound, bound)

    ks = jax.random.split(key, 10)
    return {
        "conv1_w": uniform(ks[0], (C1, 1, KH, KW), 1 * KH * KW),
        "conv1_b": uniform(ks[1], (C1,), 1 * KH * KW),
        "conv2_w": uniform(ks[2], (C2, C1, KH, KW), C1 * KH * KW),
        "conv2_b": uniform(ks[3], (C2,), C1 * KH * KW),
        "fc1_w": uniform(ks[4], (conv_out_size, HID), conv_out_size),  # (in, out)
        "fc1_b": uniform(ks[5], (HID,), conv_out_size),
        "fc2_w": uniform(ks[6], (HID, HID), HID),
        "fc2_b": uniform(ks[7], (HID,), HID),
        "fc3_w": uniform(ks[8], (HID, EMB), HID),
        "fc3_b": uniform(ks[9], (EMB,), HID),
        # nn.PReLU() default: one shared slope initialised to 0.25
        "a1": jnp.full((1,), 0.25, jnp.float32),
        "a2": jnp.full((1,), 0.25, jnp.float32),
        "a3": jnp.full((1,), 0.25, jnp.float32),
        "a4": jnp.full((1,), 0.25, jnp.float32),
    }


def prepare_params(params, input_hw):
    """One-time (outside jit) conversion into kernel-ready operands:
    bf16 casts, lane padding, fc1-K padding and the NCHW->NHWC row permutation
    of fc1_w.  Keeps the per-call forward free of weight reformatting."""
    H, W = input_hw
    H1, W1 = (H - KH + 1) // 2, (W - KW + 1) // 2
    Hp2, Wp2 = (H1 - KH + 1) // 2, (W1 - KW + 1) // 2

    c1w = jnp.transpose(params["conv1_w"][:, 0], (1, 2, 0)).reshape(KH * KW, C1)
    c2w = jnp.transpose(params["conv2_w"], (2, 3, 1, 0)).reshape(KH * KW * C1, C2)

    D = C2 * Hp2 * Wp2
    assert params["fc1_w"].shape[0] == D
    # rows: NCHW-flatten order -> NHWC-flatten order, then pad K to the tile.
    w1 = params["fc1_w"].reshape(C2, Hp2, Wp2, HID)
    w1 = jnp.transpose(w1, (1, 2, 0, 3)).reshape(D, HID)
    tk = min(FC1_TK, _round_up(D, 128))
    Dp = _round_up(D, tk)
    w1 = jnp.pad(w1, ((0, Dp - D), (0, 0)))

    w3 = jnp.pad(params["fc3_w"], ((0, 0), (0, LANES - EMB)))
    b3 = jnp.pad(params["fc3_b"], (0, LANES - EMB))

    return {
        "c1_w": c1w.astype(jnp.bfloat16),
        "c1_b": params["conv1_b"].astype(jnp.float32).reshape(1, C1),
        "a1": params["a1"].astype(jnp.float32),
        "c2_w": c2w.astype(jnp.bfloat16),
        "c2_b": params["conv2_b"].astype(jnp.float32).reshape(1, C2),
        "a2": params["a2"].astype(jnp.float32),
        "fc1_w": w1.astype(jnp.bfloat16),
        "fc1_b": params["fc1_b"].astype(jnp.float32).reshape(1, HID),
        "a3": params["a3"].astype(jnp.float32),
        "fc2_w": params["fc2_w"].astype(jnp.bfloat16),
        "fc2_b": params["fc2_b"].astype(jnp.float32).reshape(1, HID),
        "a4": params["a4"].astype(jnp.float32),
        "fc3_w": w3.astype(jnp.bfloat16),
        "fc3_b": b3.astype(jnp.float32).reshape(1, LANES),
    }


# ----------------------------------------------------------------------------
# Forward pass
# ----------------------------------------------------------------------------
def embedding_net_forward(prepped, x_nchw, conv2_tp=8):
    B = x_nchw.shape[0]
    xb = x_nchw[:, 0, :, :].astype(jnp.bfloat16)                  # (B, H, W)

    y1 = conv_prelu_pool_c1(xb, prepped["c1_w"], prepped["c1_b"], prepped["a1"])
    y2 = conv_prelu_pool_c2(y1, prepped["c2_w"], prepped["c2_b"], prepped["a2"],
                            tp=conv2_tp)

    # NHWC flatten is a plain reshape: fc1_w rows were permuted at prep time.
    feat = y2.reshape(B, -1)

    h = fc1_layer(feat, prepped["fc1_w"], prepped["fc1_b"], prepped["a3"])
    out = fc_head(h, prepped["fc2_w"], prepped["fc2_b"],
                  prepped["fc3_w"], prepped["fc3_b"], prepped["a4"])
    return out[:, :EMB]


# ----------------------------------------------------------------------------
# Pure-JAX reference (mirrors PyTorch NCHW semantics) for a sanity check
# ----------------------------------------------------------------------------
def reference_forward(params, x):
    def prelu(v, a):
        return jnp.where(v > 0, v, a * v)

    def block(v, w, b, a):
        v = jax.lax.conv_general_dilated(
            v, w, (1, 1), "VALID", dimension_numbers=("NCHW", "OIHW", "NCHW"))
        v = prelu(v + b[None, :, None, None], a[0])
        B, C, H, W = v.shape
        return v.reshape(B, C, H // 2, 2, W // 2, 2).max(axis=(3, 5))

    y = block(x, params["conv1_w"], params["conv1_b"], params["a1"])
    y = block(y, params["conv2_w"], params["conv2_b"], params["a2"])
    y = y.reshape(y.shape[0], -1)
    y = prelu(y @ params["fc1_w"] + params["fc1_b"], params["a3"][0])
    y = prelu(y @ params["fc2_w"] + params["fc2_b"], params["a4"][0])
    return y @ params["fc3_w"] + params["fc3_b"]


# ----------------------------------------------------------------------------
if __name__ == "__main__":
    # Small shapes consistent with the module's forward (grayscale NCHW); the
    # real module uses 360x360 and derives conv_out_size from the conv output,
    # which we do the same way here.
    def run_case(B, H, W, conv2_tp=8):
        h1, w1 = (H - 4) // 2, (W - 4) // 2
        h2, w2 = (h1 - 4) // 2, (w1 - 4) // 2
        conv_out_size = C2 * h2 * w2

        key = jax.random.PRNGKey(0)
        k_x, k_p = jax.random.split(key)
        x = jax.random.normal(k_x, (B, 1, H, W), jnp.float32)
        params = init_params(k_p, conv_out_size)
        prepped = prepare_params(params, (H, W))      # one-time, outside jit

        fwd = jax.jit(functools.partial(embedding_net_forward,
                                        conv2_tp=conv2_tp))
        out = jax.block_until_ready(fwd(prepped, x))
        assert out.shape == (B, EMB), out.shape

        ref = jax.block_until_ready(reference_forward(params, x))
        # bf16 MXU operands (f32 accumulation) -> looser tolerance than pure f32
        assert jnp.allclose(out, ref, rtol=3e-2, atol=3e-2), (out, ref)

    run_case(2, 28, 28)                 # evenly tiled conv2 pooled rows
    run_case(1, 36, 36, conv2_tp=4)     # Hp=6, tp=4 -> exercises tail block
    print("KERNEL_OK")
</pallas_src>

<mosaic_0001>
module attributes {stable_mosaic.version = 11 : i64} {
  func.func @_conv1_kernel(%arg0: i32, %arg1: memref<288x25xbf16, #tpu.memory_space<vmem>>, %arg2: memref<288x25xbf16, #tpu.memory_space<vmem>>, %arg3: memref<288x25xbf16, #tpu.memory_space<vmem>>, %arg4: memref<288x25xbf16, #tpu.memory_space<vmem>>, %arg5: memref<25x32xbf16, #tpu.memory_space<vmem>>, %arg6: memref<1x32xf32, #tpu.memory_space<vmem>>, %arg7: memref<1xf32, #tpu.memory_space<smem>>, %arg8: memref<288x32xbf16, #tpu.memory_space<vmem>>) attributes {dimension_semantics = [#tpu.dimension_semantics<parallel>], iteration_bounds = array<i64: 1>, scalar_prefetch = 0 : i64, scratch_operands = 0 : i64, tpu.core_type = #tpu.core_type<tc>, window_params = [{transform_indices = @transform_0, window_bounds = array<i64: 288, 25>}, {transform_indices = @transform_1, window_bounds = array<i64: 288, 25>}, {transform_indices = @transform_2, window_bounds = array<i64: 288, 25>}, {transform_indices = @transform_3, window_bounds = array<i64: 288, 25>}, {pipeline_mode = #tpu.pipeline_mode<synchronous>, transform_indices = @transform_4, window_bounds = array<i64: 25, 32>}, {pipeline_mode = #tpu.pipeline_mode<synchronous>, transform_indices = @transform_5, window_bounds = array<i64: 1, 32>}, {transform_indices = @transform_6, window_bounds = array<i64: 1>}, {transform_indices = @transform_7, window_bounds = array<i64: 288, 32>}]} {
    %c0 = arith.constant 0 : index
    %c0_0 = arith.constant 0 : index
    %0 = vector.load %arg5[%c0, %c0_0] : memref<25x32xbf16, #tpu.memory_space<vmem>>, vector<25x32xbf16>
    %c0_1 = arith.constant 0 : index
    %c0_2 = arith.constant 0 : index
    %1 = vector.load %arg6[%c0_1, %c0_2] : memref<1x32xf32, #tpu.memory_space<vmem>>, vector<1x32xf32>
    %c0_3 = arith.constant 0 : index
    %2 = memref.load %arg7[%c0_3] : memref<1xf32, #tpu.memory_space<smem>>
    %c0_4 = arith.constant 0 : index
    %c0_5 = arith.constant 0 : index
    %3 = vector.load %arg1[%c0_4, %c0_5] : memref<288x25xbf16, #tpu.memory_space<vmem>>, vector<288x25xbf16>
    %cst = arith.constant dense<0.000000e+00> : vector<288x32xf32>
    %4 = tpu.matmul %3, %0, %cst {dimension_numbers = #tpu.dot_dimension_numbers<[1], [0], [0], [1], [0, 0, 1, 1], [], []>} : vector<288x25xbf16>, vector<25x32xbf16>, vector<288x32xf32> -> vector<288x32xf32>
    %5 = vector.broadcast %1 : vector<1x32xf32> to vector<288x32xf32>
    %6 = arith.addf %4, %5 : vector<288x32xf32>
    %cst_6 = arith.constant 0.000000e+00 : f32
    %7 = vector.broadcast %cst_6 : f32 to vector<288x32xf32>
    %8 = arith.cmpf ogt, %6, %7 : vector<288x32xf32>
    %9 = vector.broadcast %2 : f32 to vector<288x32xf32>
    %10 = arith.mulf %9, %6 : vector<288x32xf32>
    %11 = arith.select %8, %6, %10 : vector<288x32xi1>, vector<288x32xf32>
    %c0_7 = arith.constant 0 : index
    %c0_8 = arith.constant 0 : index
    %12 = vector.load %arg2[%c0_7, %c0_8] : memref<288x25xbf16, #tpu.memory_space<vmem>>, vector<288x25xbf16>
    %cst_9 = arith.constant dense<0.000000e+00> : vector<288x32xf32>
    %13 = tpu.matmul %12, %0, %cst_9 {dimension_numbers = #tpu.dot_dimension_numbers<[1], [0], [0], [1], [0, 0, 1, 1], [], []>} : vector<288x25xbf16>, vector<25x32xbf16>, vector<288x32xf32> -> vector<288x32xf32>
    %14 = vector.broadcast %1 : vector<1x32xf32> to vector<288x32xf32>
    %15 = arith.addf %13, %14 : vector<288x32xf32>
    %cst_10 = arith.constant 0.000000e+00 : f32
    %16 = vector.broadcast %cst_10 : f32 to vector<288x32xf32>
    %17 = arith.cmpf ogt, %15, %16 : vector<288x32xf32>
    %18 = vector.broadcast %2 : f32 to vector<288x32xf32>
    %19 = arith.mulf %18, %15 : vector<288x32xf32>
    %20 = arith.select %17, %15, %19 : vector<288x32xi1>, vector<288x32xf32>
    %21 = arith.maximumf %11, %20 : vector<288x32xf32>
    %c0_11 = arith.constant 0 : index
    %c0_12 = arith.constant 0 : index
    %22 = vector.load %arg3[%c0_11, %c0_12] : memref<288x25xbf16, #tpu.memory_space<vmem>>, vector<288x25xbf16>
    %cst_13 = arith.constant dense<0.000000e+00> : vector<288x32xf32>
    %23 = tpu.matmul %22, %0, %cst_13 {dimension_numbers = #tpu.dot_dimension_numbers<[1], [0], [0], [1], [0, 0, 1, 1], [], []>} : vector<288x25xbf16>, vector<25x32xbf16>, vector<288x32xf32> -> vector<288x32xf32>
    %24 = vector.broadcast %1 : vector<1x32xf32> to vector<288x32xf32>
    %25 = arith.addf %23, %24 : vector<288x32xf32>
    %cst_14 = arith.constant 0.000000e+00 : f32
    %26 = vector.broadcast %cst_14 : f32 to vector<288x32xf32>
    %27 = arith.cmpf ogt, %25, %26 : vector<288x32xf32>
    %28 = vector.broadcast %2 : f32 to vector<288x32xf32>
    %29 = arith.mulf %28, %25 : vector<288x32xf32>
    %30 = arith.select %27, %25, %29 : vector<288x32xi1>, vector<288x32xf32>
    %c0_15 = arith.constant 0 : index
    %c0_16 = arith.constant 0 : index
    %31 = vector.load %arg4[%c0_15, %c0_16] : memref<288x25xbf16, #tpu.memory_space<vmem>>, vector<288x25xbf16>
    %cst_17 = arith.constant dense<0.000000e+00> : vector<288x32xf32>
    %32 = tpu.matmul %31, %0, %cst_17 {dimension_numbers = #tpu.dot_dimension_numbers<[1], [0], [0], [1], [0, 0, 1, 1], [], []>} : vector<288x25xbf16>, vector<25x32xbf16>, vector<288x32xf32> -> vector<288x32xf32>
    %33 = vector.broadcast %1 : vector<1x32xf32> to vector<288x32xf32>
    %34 = arith.addf %32, %33 : vector<288x32xf32>
    %cst_18 = arith.constant 0.000000e+00 : f32
    %35 = vector.broadcast %cst_18 : f32 to vector<288x32xf32>
    %36 = arith.cmpf ogt, %34, %35 : vector<288x32xf32>
    %37 = vector.broadcast %2 : f32 to vector<288x32xf32>
    %38 = arith.mulf %37, %34 : vector<288x32xf32>
    %39 = arith.select %36, %34, %38 : vector<288x32xi1>, vector<288x32xf32>
    %40 = arith.maximumf %30, %39 : vector<288x32xf32>
    %41 = arith.maximumf %21, %40 : vector<288x32xf32>
    %42 = arith.truncf %41 : vector<288x32xf32> to vector<288x32xbf16>
    %c0_19 = arith.constant 0 : index
    %c0_20 = arith.constant 0 : index
    %43 = vector.load %arg8[%c0_19, %c0_20] : memref<288x32xbf16, #tpu.memory_space<vmem>>, vector<288x32xbf16>
    tpu.vector_store %arg8[%c0_19, %c0_20], %42 {strides = array<i32>} : memref<288x32xbf16, #tpu.memory_space<vmem>>, vector<288x32xbf16>,
    return
  }
  func.func @transform_0(%arg0: i32) -> (i32, i32) {
    %c0_i32 = arith.constant 0 : i32
    %c0_i32_0 = arith.constant 0 : i32
    return %arg0, %c0_i32 : i32, i32
  }
  func.func @transform_1(%arg0: i32) -> (i32, i32) {
    %c0_i32 = arith.constant 0 : i32
    %c0_i32_0 = arith.constant 0 : i32
    return %arg0, %c0_i32 : i32, i32
  }
  func.func @transform_2(%arg0: i32) -> (i32, i32) {
    %c0_i32 = arith.constant 0 : i32
    %c0_i32_0 = arith.constant 0 : i32
    return %arg0, %c0_i32 : i32, i32
  }
  func.func @transform_3(%arg0: i32) -> (i32, i32) {
    %c0_i32 = arith.constant 0 : i32
    %c0_i32_0 = arith.constant 0 : i32
    return %arg0, %c0_i32 : i32, i32
  }
  func.func @transform_4(%arg0: i32) -> (i32, i32) {
    %c0_i32 = arith.constant 0 : i32
    %c0_i32_0 = arith.constant 0 : i32
    %c0_i32_1 = arith.constant 0 : i32
    return %c0_i32, %c0_i32_0 : i32, i32
  }
  func.func @transform_5(%arg0: i32) -> (i32, i32) {
    %c0_i32 = arith.constant 0 : i32
    %c0_i32_0 = arith.constant 0 : i32
    %c0_i32_1 = arith.constant 0 : i32
    return %c0_i32, %c0_i32_0 : i32, i32
  }
  func.func @transform_6(%arg0: i32) -> i32 {
    %c0_i32 = arith.constant 0 : i32
    %c0_i32_0 = arith.constant 0 : i32
    return %c0_i32 : i32
  }
  func.func @transform_7(%arg0: i32) -> (i32, i32) {
    %c0_i32 = arith.constant 0 : i32
    %c0_i32_0 = arith.constant 0 : i32
    return %arg0, %c0_i32 : i32, i32
  }
}

module attributes {stable_mosaic.version = 11 : i64} {
  func.func @_fc1_kernel(%arg0: i32, %arg1: i32, %arg2: memref<2x1024xbf16, #tpu.memory_space<vmem>>, %arg3: memref<1024x128xbf16, #tpu.memory_space<vmem>>, %arg4: memref<1x128xf32, #tpu.memory_space<vmem>>, %arg5: memref<1xf32, #tpu.memory_space<smem>>, %arg6: memref<2x128xbf16, #tpu.memory_space<vmem>>, %arg7: memref<2x128xf32, #tpu.memory_space<vmem>>) attributes {dimension_semantics = [#tpu.dimension_semantics<parallel>, #tpu.dimension_semantics<arbitrary>], iteration_bounds = array<i64: 2, 1>, scalar_prefetch = 0 : i64, scratch_operands = 1 : i64, tpu.core_type = #tpu.core_type<tc>, window_params = [{transform_indices = @transform_0, window_bounds = array<i64: 2, 1024>}, {transform_indices = @transform_1, window_bounds = array<i64: 1024, 128>}, {transform_indices = @transform_2, window_bounds = array<i64: 1, 128>}, {transform_indices = @transform_3, window_bounds = array<i64: 1>}, {transform_indices = @transform_4, window_bounds = array<i64: 2, 128>}]} {
    %c0_i32 = arith.constant 0 : i32
    %0 = arith.cmpi eq, %arg1, %c0_i32 : i32
    %1 = arith.extui %0 : i1 to i32
    %c0_i32_0 = arith.constant 0 : i32
    %2 = arith.cmpi ne, %1, %c0_i32_0 : i32
    scf.if %2 {
      %cst_10 = arith.constant 0.000000e+00 : f32
      %12 = vector.broadcast %cst_10 : f32 to vector<2x128xf32>
      %c0_11 = arith.constant 0 : index
      %c0_12 = arith.constant 0 : index
      %13 = vector.load %arg7[%c0_11, %c0_12] : memref<2x128xf32, #tpu.memory_space<vmem>>, vector<2x128xf32>
      tpu.vector_store %arg7[%c0_11, %c0_12], %12 {strides = array<i32>} : memref<2x128xf32, #tpu.memory_space<vmem>>, vector<2x128xf32>,
    } else {
    }
    %c0 = arith.constant 0 : index
    %c0_1 = arith.constant 0 : index
    %3 = vector.load %arg7[%c0, %c0_1] : memref<2x128xf32, #tpu.memory_space<vmem>>, vector<2x128xf32>
    %c0_2 = arith.constant 0 : index
    %c0_3 = arith.constant 0 : index
    %4 = vector.load %arg2[%c0_2, %c0_3] : memref<2x1024xbf16, #tpu.memory_space<vmem>>, vector<2x1024xbf16>
    %c0_4 = arith.constant 0 : index
    %c0_5 = arith.constant 0 : index
    %5 = vector.load %arg3[%c0_4, %c0_5] : memref<1024x128xbf16, #tpu.memory_space<vmem>>, vector<1024x128xbf16>
    %cst = arith.constant dense<0.000000e+00> : vector<2x128xf32>
    %6 = tpu.matmul %4, %5, %cst {dimension_numbers = #tpu.dot_dimension_numbers<[1], [0], [0], [1], [0, 0, 1, 1], [], []>} : vector<2x1024xbf16>, vector<1024x128xbf16>, vector<2x128xf32> -> vector<2x128xf32>
    %7 = arith.addf %3, %6 : vector<2x128xf32>
    %c0_6 = arith.constant 0 : index
    %c0_7 = arith.constant 0 : index
    %8 = vector.load %arg7[%c0_6, %c0_7] : memref<2x128xf32, #tpu.memory_space<vmem>>, vector<2x128xf32>
    tpu.vector_store %arg7[%c0_6, %c0_7], %7 {strides = array<i32>} : memref<2x128xf32, #tpu.memory_space<vmem>>, vector<2x128xf32>,
    %c0_i32_8 = arith.constant 0 : i32
    %9 = arith.cmpi eq, %arg1, %c0_i32_8 : i32
    %10 = arith.extui %9 : i1 to i32
    %c0_i32_9 = arith.constant 0 : i32
    %11 = arith.cmpi ne, %10, %c0_i32_9 : i32
    scf.if %11 {
      %c0_10 = arith.constant 0 : index
      %c0_11 = arith.constant 0 : index
      %12 = vector.load %arg7[%c0_10, %c0_11] : memref<2x128xf32, #tpu.memory_space<vmem>>, vector<2x128xf32>
      %c0_12 = arith.constant 0 : index
      %c0_13 = arith.constant 0 : index
      %13 = vector.load %arg4[%c0_12, %c0_13] : memref<1x128xf32, #tpu.memory_space<vmem>>, vector<1x128xf32>
      %14 = vector.broadcast %13 : vector<1x128xf32> to vector<2x128xf32>
      %15 = arith.addf %12, %14 : vector<2x128xf32>
      %cst_14 = arith.constant 0.000000e+00 : f32
      %16 = vector.broadcast %cst_14 : f32 to vector<2x128xf32>
      %17 = arith.cmpf ogt, %15, %16 : vector<2x128xf32>
      %c0_15 = arith.constant 0 : index
      %18 = memref.load %arg5[%c0_15] : memref<1xf32, #tpu.memory_space<smem>>
      %19 = vector.broadcast %18 : f32 to vector<2x128xf32>
      %20 = arith.mulf %19, %15 : vector<2x128xf32>
      %21 = arith.select %17, %15, %20 : vector<2x128xi1>, vector<2x128xf32>
      %22 = arith.truncf %21 : vector<2x128xf32> to vector<2x128xbf16>
      %c0_16 = arith.constant 0 : index
      %c0_17 = arith.constant 0 : index
      %23 = vector.load %arg6[%c0_16, %c0_17] : memref<2x128xbf16, #tpu.memory_space<vmem>>, vector<2x128xbf16>
      tpu.vector_store %arg6[%c0_16, %c0_17], %22 {strides = array<i32>} : memref<2x128xbf16, #tpu.memory_space<vmem>>, vector<2x128xbf16>,
    } else {
    }
    return
  }
  func.func @transform_0(%arg0: i32, %arg1: i32) -> (i32, i32) {
    %c0_i32 = arith.constant 0 : i32
    %c0_i32_0 = arith.constant 0 : i32
    return %c0_i32, %arg1 : i32, i32
  }
  func.func @transform_1(%arg0: i32, %arg1: i32) -> (i32, i32) {
    %c0_i32 = arith.constant 0 : i32
    return %arg1, %arg0 : i32, i32
  }
  func.func @transform_2(%arg0: i32, %arg1: i32) -> (i32, i32) {
    %c0_i32 = arith.constant 0 : i32
    %c0_i32_0 = arith.constant 0 : i32
    return %c0_i32, %arg0 : i32, i32
  }
  func.func @transform_3(%arg0: i32, %arg1: i32) -> i32 {
    %c0_i32 = arith.constant 0 : i32
    %c0_i32_0 = arith.constant 0 : i32
    return %c0_i32 : i32
  }
  func.func @transform_4(%arg0: i32, %arg1: i32) -> (i32, i32) {
    %c0_i32 = arith.constant 0 : i32
    %c0_i32_0 = arith.constant 0 : i32
    return %c0_i32, %arg0 : i32, i32
  }
}

module attributes {stable_mosaic.version = 11 : i64} {
  func.func @_conv2_kernel(%arg0: i32, %arg1: i32, %arg2: memref<1x12x12x32xbf16, #tpu.memory_space<vmem>>, %arg3: memref<800x64xbf16, #tpu.memory_space<vmem>>, %arg4: memref<1x64xf32, #tpu.memory_space<vmem>>, %arg5: memref<1xf32, #tpu.memory_space<smem>>, %arg6: memref<1x4x4x64xbf16, #tpu.memory_space<vmem>>, %arg7: memref<8x64xf32, #tpu.memory_space<vmem>>) attributes {dimension_semantics = [#tpu.dimension_semantics<parallel>, #tpu.dimension_semantics<parallel>], iteration_bounds = array<i64: 2, 1>, scalar_prefetch = 0 : i64, scratch_operands = 1 : i64, tpu.core_type = #tpu.core_type<tc>, window_params = [{transform_indices = @transform_0, window_bounds = array<i64: 1, 12, 12, 32>}, {pipeline_mode = #tpu.pipeline_mode<synchronous>, transform_indices = @transform_1, window_bounds = array<i64: 800, 64>}, {pipeline_mode = #tpu.pipeline_mode<synchronous>, transform_indices = @transform_2, window_bounds = array<i64: 1, 64>}, {transform_indices = @transform_3, window_bounds = array<i64: 1>}, {transform_indices = @transform_4, window_bounds = array<i64: 1, 4, 4, 64>}]} {
    %c0 = arith.constant 0 : index
    %c0_0 = arith.constant 0 : index
    %0 = vector.load %arg4[%c0, %c0_0] : memref<1x64xf32, #tpu.memory_space<vmem>>, vector<1x64xf32>
    %c0_1 = arith.constant 0 : index
    %1 = memref.load %arg5[%c0_1] : memref<1xf32, #tpu.memory_space<smem>>
    %c0_2 = arith.constant 0 : index
    %c0_3 = arith.constant 0 : index
    %2 = vector.load %arg3[%c0_2, %c0_3] : memref<800x64xbf16, #tpu.memory_space<vmem>>, vector<160x64xbf16>
    %c160 = arith.constant 160 : index
    %c0_4 = arith.constant 0 : index
    %3 = vector.load %arg3[%c160, %c0_4] : memref<800x64xbf16, #tpu.memory_space<vmem>>, vector<160x64xbf16>
    %c320 = arith.constant 320 : index
    %c0_5 = arith.constant 0 : index
    %4 = vector.load %arg3[%c320, %c0_5] : memref<800x64xbf16, #tpu.memory_space<vmem>>, vector<160x64xbf16>
    %c480 = arith.constant 480 : index
    %c0_6 = arith.constant 0 : index
    %5 = vector.load %arg3[%c480, %c0_6] : memref<800x64xbf16, #tpu.memory_space<vmem>>, vector<160x64xbf16>
    %c640 = arith.constant 640 : index
    %c0_7 = arith.constant 0 : index
    %6 = vector.load %arg3[%c640, %c0_7] : memref<800x64xbf16, #tpu.memory_space<vmem>>, vector<160x64xbf16>
    %c0_i32 = arith.constant 0 : i32
    %c4_i32 = arith.constant 4 : i32
    %7 = arith.addi %c0_i32, %c4_i32 : i32
    %c1_i32 = arith.constant 1 : i32
    scf.for %arg8 = %c0_i32 to %7 step %c1_i32  : i32 {
      %c4_i32_9 = arith.constant 4 : i32
      %8 = arith.muli %arg1, %c4_i32_9 : i32
      %9 = arith.addi %8, %arg8 : i32
      %c3_i32 = arith.constant 3 : i32
      %10 = arith.minsi %9, %c3_i32 : i32
      %c2_i32 = arith.constant 2 : i32
      %11 = arith.muli %c2_i32, %10 : i32
      %cst = arith.constant 0.000000e+00 : f32
      %12 = vector.broadcast %cst : f32 to vector<8x64xf32>
      %c0_i32_10 = arith.constant 0 : i32
      %13 = arith.addi %11, %c0_i32_10 : i32
      %c0_11 = arith.constant 0 : index
      %14 = arith.index_cast %13 : i32 to index
      %c0_12 = arith.constant 0 : index
      %c0_13 = arith.constant 0 : index
      %15 = vector.load %arg2[%c0_11, %14, %c0_12, %c0_13] : memref<1x12x12x32xbf16, #tpu.memory_space<vmem>>, vector<1x1x8x32xbf16>
      %16 = vector.shape_cast %15 : vector<1x1x8x32xbf16> to vector<8x32xbf16>
      %c0_i32_14 = arith.constant 0 : i32
      %17 = arith.addi %11, %c0_i32_14 : i32
      %c0_15 = arith.constant 0 : index
      %18 = arith.index_cast %17 : i32 to index
      %c1 = arith.constant 1 : index
      %c0_16 = arith.constant 0 : index
      %19 = vector.load %arg2[%c0_15, %18, %c1, %c0_16] : memref<1x12x12x32xbf16, #tpu.memory_space<vmem>>, vector<1x1x8x32xbf16>
      %20 = vector.shape_cast %19 : vector<1x1x8x32xbf16> to vector<8x32xbf16>
      %c0_i32_17 = arith.constant 0 : i32
      %21 = arith.addi %11, %c0_i32_17 : i32
      %c0_18 = arith.constant 0 : index
      %22 = arith.index_cast %21 : i32 to index
      %c2 = arith.constant 2 : index
      %c0_19 = arith.constant 0 : index
      %23 = vector.load %arg2[%c0_18, %22, %c2, %c0_19] : memref<1x12x12x32xbf16, #tpu.memory_space<vmem>>, vector<1x1x8x32xbf16>
      %24 = vector.shape_cast %23 : vector<1x1x8x32xbf16> to vector<8x32xbf16>
      %c0_i32_20 = arith.constant 0 : i32
      %25 = arith.addi %11, %c0_i32_20 : i32
      %c0_21 = arith.constant 0 : index
      %26 = arith.index_cast %25 : i32 to index
      %c3 = arith.constant 3 : index
      %c0_22 = arith.constant 0 : index
      %27 = vector.load %arg2[%c0_21, %26, %c3, %c0_22] : memref<1x12x12x32xbf16, #tpu.memory_space<vmem>>, vector<1x1x8x32xbf16>
      %28 = vector.shape_cast %27 : vector<1x1x8x32xbf16> to vector<8x32xbf16>
      %c0_i32_23 = arith.constant 0 : i32
      %29 = arith.addi %11, %c0_i32_23 : i32
      %c0_24 = arith.constant 0 : index
      %30 = arith.index_cast %29 : i32 to index
      %c4 = arith.constant 4 : index
      %c0_25 = arith.constant 0 : index
      %31 = vector.load %arg2[%c0_24, %30, %c4, %c0_25] : memref<1x12x12x32xbf16, #tpu.memory_space<vmem>>, vector<1x1x8x32xbf16>
      %32 = vector.shape_cast %31 : vector<1x1x8x32xbf16> to vector<8x32xbf16>
      %33 = tpu.concatenate %16, %20, %24, %28, %32 in 1 : vector<8x32xbf16>, vector<8x32xbf16>, vector<8x32xbf16>, vector<8x32xbf16>, vector<8x32xbf16> -> vector<8x160xbf16>
      %cst_26 = arith.constant dense<0.000000e+00> : vector<8x64xf32>
      %34 = tpu.matmul %33, %2, %cst_26 {dimension_numbers = #tpu.dot_dimension_numbers<[1], [0], [0], [1], [0, 0, 1, 1], [], []>} : vector<8x160xbf16>, vector<160x64xbf16>, vector<8x64xf32> -> vector<8x64xf32>
      %35 = arith.addf %12, %34 : vector<8x64xf32>
      %c1_i32_27 = arith.constant 1 : i32
      %36 = arith.addi %11, %c1_i32_27 : i32
      %c0_28 = arith.constant 0 : index
      %37 = arith.index_cast %36 : i32 to index
      %c0_29 = arith.constant 0 : index
      %c0_30 = arith.constant 0 : index
      %38 = vector.load %arg2[%c0_28, %37, %c0_29, %c0_30] : memref<1x12x12x32xbf16, #tpu.memory_space<vmem>>, vector<1x1x8x32xbf16>
      %39 = vector.shape_cast %38 : vector<1x1x8x32xbf16> to vector<8x32xbf16>
      %c1_i32_31 = arith.constant 1 : i32
      %40 = arith.addi %11, %c1_i32_31 : i32
      %c0_32 = arith.constant 0 : index
      %41 = arith.index_cast %40 : i32 to index
      %c1_33 = arith.constant 1 : index
      %c0_34 = arith.constant 0 : index
      %42 = vector.load %arg2[%c0_32, %41, %c1_33, %c0_34] : memref<1x12x12x32xbf16, #tpu.memory_space<vmem>>, vector<1x1x8x32xbf16>
      %43 = vector.shape_cast %42 : vector<1x1x8x32xbf16> to vector<8x32xbf16>
      %c1_i32_35 = arith.constant 1 : i32
      %44 = arith.addi %11, %c1_i32_35 : i32
      %c0_36 = arith.constant 0 : index
      %45 = arith.index_cast %44 : i32 to index
      %c2_37 = arith.constant 2 : index
      %c0_38 = arith.constant 0 : index
      %46 = vector.load %arg2[%c0_36, %45, %c2_37, %c0_38] : memref<1x12x12x32xbf16, #tpu.memory_space<vmem>>, vector<1x1x8x32xbf16>
      %47 = vector.shape_cast %46 : vector<1x1x8x32xbf16> to vector<8x32xbf16>
      %c1_i32_39 = arith.constant 1 : i32
      %48 = arith.addi %11, %c1_i32_39 : i32
      %c0_40 = arith.constant 0 : index
      %49 = arith.index_cast %48 : i32 to index
      %c3_41 = arith.constant 3 : index
      %c0_42 = arith.constant 0 : index
      %50 = vector.load %arg2[%c0_40, %49, %c3_41, %c0_42] : memref<1x12x12x32xbf16, #tpu.memory_space<vmem>>, vector<1x1x8x32xbf16>
      %51 = vector.shape_cast %50 : vector<1x1x8x32xbf16> to vector<8x32xbf16>
      %c1_i32_43 = arith.constant 1 : i32
      %52 = arith.addi %11, %c1_i32_43 : i32
      %c0_44 = arith.constant 0 : index
      %53 = arith.index_cast %52 : i32 to index
      %c4_45 = arith.constant 4 : index
      %c0_46 = arith.constant 0 : index
      %54 = vector.load %arg2[%c0_44, %53, %c4_45, %c0_46] : memref<1x12x12x32xbf16, #tpu.memory_space<vmem>>, vector<1x1x8x32xbf16>
      %55 = vector.shape_cast %54 : vector<1x1x8x32xbf16> to vector<8x32xbf16>
      %56 = tpu.concatenate %39, %43, %47, %51, %55 in 1 : vector<8x32xbf16>, vector<8x32xbf16>, vector<8x32xbf16>, vector<8x32xbf16>, vector<8x32xbf16> -> vector<8x160xbf16>
      %cst_47 = arith.constant dense<0.000000e+00> : vector<8x64xf32>
      %57 = tpu.matmul %56, %3, %cst_47 {dimension_numbers = #tpu.dot_dimension_numbers<[1], [0], [0], [1], [0, 0, 1, 1], [], []>} : vector<8x160xbf16>, vector<160x64xbf16>, vector<8x64xf32> -> vector<8x64xf32>
      %58 = arith.addf %35, %57 : vector<8x64xf32>
      %c2_i32_48 = arith.constant 2 : i32
      %59 = arith.addi %11, %c2_i32_48 : i32
      %c0_49 = arith.constant 0 : index
      %60 = arith.index_cast %59 : i32 to index
      %c0_50 = arith.constant 0 : index
      %c0_51 = arith.constant 0 : index
      %61 = vector.load %arg2[%c0_49, %60, %c0_50, %c0_51] : memref<1x12x12x32xbf16, #tpu.memory_space<vmem>>, vector<1x1x8x32xbf16>
      %62 = vector.shape_cast %61 : vector<1x1x8x32xbf16> to vector<8x32xbf16>
      %c2_i32_52 = arith.constant 2 : i32
      %63 = arith.addi %11, %c2_i32_52 : i32
      %c0_53 = arith.constant 0 : index
      %64 = arith.index_cast %63 : i32 to index
      %c1_54 = arith.constant 1 : index
      %c0_55 = arith.constant 0 : index
      %65 = vector.load %arg2[%c0_53, %64, %c1_54, %c0_55] : memref<1x12x12x32xbf16, #tpu.memory_space<vmem>>, vector<1x1x8x32xbf16>
      %66 = vector.shape_cast %65 : vector<1x1x8x32xbf16> to vector<8x32xbf16>
      %c2_i32_56 = arith.constant 2 : i32
      %67 = arith.addi %11, %c2_i32_56 : i32
      %c0_57 = arith.constant 0 : index
      %68 = arith.index_cast %67 : i32 to index
      %c2_58 = arith.constant 2 : index
      %c0_59 = arith.constant 0 : index
      %69 = vector.load %arg2[%c0_57, %68, %c2_58, %c0_59] : memref<1x12x12x32xbf16, #tpu.memory_space<vmem>>, vector<1x1x8x32xbf16>
      %70 = vector.shape_cast %69 : vector<1x1x8x32xbf16> to vector<8x32xbf16>
      %c2_i32_60 = arith.constant 2 : i32
      %71 = arith.addi %11, %c2_i32_60 : i32
      %c0_61 = arith.constant 0 : index
      %72 = arith.index_cast %71 : i32 to index
      %c3_62 = arith.constant 3 : index
      %c0_63 = arith.constant 0 : index
      %73 = vector.load %arg2[%c0_61, %72, %c3_62, %c0_63] : memref<1x12x12x32xbf16, #tpu.memory_space<vmem>>, vector<1x1x8x32xbf16>
      %74 = vector.shape_cast %73 : vector<1x1x8x32xbf16> to vector<8x32xbf16>
      %c2_i32_64 = arith.constant 2 : i32
      %75 = arith.addi %11, %c2_i32_64 : i32
      %c0_65 = arith.constant 0 : index
      %76 = arith.index_cast %75 : i32 to index
      %c4_66 = arith.constant 4 : index
      %c0_67 = arith.constant 0 : index
      %77 = vector.load %arg2[%c0_65, %76, %c4_66, %c0_67] : memref<1x12x12x32xbf16, #tpu.memory_space<vmem>>, vector<1x1x8x32xbf16>
      %78 = vector.shape_cast %77 : vector<1x1x8x32xbf16> to vector<8x32xbf16>
      %79 = tpu.concatenate %62, %66, %70, %74, %78 in 1 : vector<8x32xbf16>, vector<8x32xbf16>, vector<8x32xbf16>, vector<8x32xbf16>, vector<8x32xbf16> -> vector<8x160xbf16>
      %cst_68 = arith.constant dense<0.000000e+00> : vector<8x64xf32>
      %80 = tpu.matmul %79, %4, %cst_68 {dimension_numbers = #tpu.dot_dimension_numbers<[1], [0], [0], [1], [0, 0, 1, 1], [], []>} : vector<8x160xbf16>, vector<160x64xbf16>, vector<8x64xf32> -> vector<8x64xf32>
      %81 = arith.addf %58, %80 : vector<8x64xf32>
      %c3_i32_69 = arith.constant 3 : i32
      %82 = arith.addi %11, %c3_i32_69 : i32
      %c0_70 = arith.constant 0 : index
      %83 = arith.index_cast %82 : i32 to index
      %c0_71 = arith.constant 0 : index
      %c0_72 = arith.constant 0 : index
      %84 = vector.load %arg2[%c0_70, %83, %c0_71, %c0_72] : memref<1x12x12x32xbf16, #tpu.memory_space<vmem>>, vector<1x1x8x32xbf16>
      %85 = vector.shape_cast %84 : vector<1x1x8x32xbf16> to vector<8x32xbf16>
      %c3_i32_73 = arith.constant 3 : i32
      %86 = arith.addi %11, %c3_i32_73 : i32
      %c0_74 = arith.constant 0 : index
      %87 = arith.index_cast %86 : i32 to index
      %c1_75 = arith.constant 1 : index
      %c0_76 = arith.constant 0 : index
      %88 = vector.load %arg2[%c0_74, %87, %c1_75, %c0_76] : memref<1x12x12x32xbf16, #tpu.memory_space<vmem>>, vector<1x1x8x32xbf16>
      %89 = vector.shape_cast %88 : vector<1x1x8x32xbf16> to vector<8x32xbf16>
      %c3_i32_77 = arith.constant 3 : i32
      %90 = arith.addi %11, %c3_i32_77 : i32
      %c0_78 = arith.constant 0 : index
      %91 = arith.index_cast %90 : i32 to index
      %c2_79 = arith.constant 2 : index
      %c0_80 = arith.constant 0 : index
      %92 = vector.load %arg2[%c0_78, %91, %c2_79, %c0_80] : memref<1x12x12x32xbf16, #tpu.memory_space<vmem>>, vector<1x1x8x32xbf16>
      %93 = vector.shape_cast %92 : vector<1x1x8x32xbf16> to vector<8x32xbf16>
      %c3_i32_81 = arith.constant 3 : i32
      %94 = arith.addi %11, %c3_i32_81 : i32
      %c0_82 = arith.constant 0 : index
      %95 = arith.index_cast %94 : i32 to index
      %c3_83 = arith.constant 3 : index
      %c0_84 = arith.constant 0 : index
      %96 = vector.load %arg2[%c0_82, %95, %c3_83, %c0_84] : memref<1x12x12x32xbf16, #tpu.memory_space<vmem>>, vector<1x1x8x32xbf16>
      %97 = vector.shape_cast %96 : vector<1x1x8x32xbf16> to vector<8x32xbf16>
      %c3_i32_85 = arith.constant 3 : i32
      %98 = arith.addi %11, %c3_i32_85 : i32
      %c0_86 = arith.constant 0 : index
      %99 = arith.index_cast %98 : i32 to index
      %c4_87 = arith.constant 4 : index
      %c0_88 = arith.constant 0 : index
      %100 = vector.load %arg2[%c0_86, %99, %c4_87, %c0_88] : memref<1x12x12x32xbf16, #tpu.memory_space<vmem>>, vector<1x1x8x32xbf16>
      %101 = vector.shape_cast %100 : vector<1x1x8x32xbf16> to vector<8x32xbf16>
      %102 = tpu.concatenate %85, %89, %93, %97, %101 in 1 : vector<8x32xbf16>, vector<8x32xbf16>, vector<8x32xbf16>, vector<8x32xbf16>, vector<8x32xbf16> -> vector<8x160xbf16>
      %cst_89 = arith.constant dense<0.000000e+00> : vector<8x64xf32>
      %103 = tpu.matmul %102, %5, %cst_89 {dimension_numbers = #tpu.dot_dimension_numbers<[1], [0], [0], [1], [0, 0, 1, 1], [], []>} : vector<8x160xbf16>, vector<160x64xbf16>, vector<8x64xf32> -> vector<8x64xf32>
      %104 = arith.addf %81, %103 : vector<8x64xf32>
      %c4_i32_90 = arith.constant 4 : i32
      %105 = arith.addi %11, %c4_i32_90 : i32
      %c0_91 = arith.constant 0 : index
      %106 = arith.index_cast %105 : i32 to index
      %c0_92 = arith.constant 0 : index
      %c0_93 = arith.constant 0 : index
      %107 = vector.load %arg2[%c0_91, %106, %c0_92, %c0_93] : memref<1x12x12x32xbf16, #tpu.memory_space<vmem>>, vector<1x1x8x32xbf16>
      %108 = vector.shape_cast %107 : vector<1x1x8x32xbf16> to vector<8x32xbf16>
      %c4_i32_94 = arith.constant 4 : i32
      %109 = arith.addi %11, %c4_i32_94 : i32
      %c0_95 = arith.constant 0 : index
      %110 = arith.index_cast %109 : i32 to index
      %c1_96 = arith.constant 1 : index
      %c0_97 = arith.constant 0 : index
      %111 = vector.load %arg2[%c0_95, %110, %c1_96, %c0_97] : memref<1x12x12x32xbf16, #tpu.memory_space<vmem>>, vector<1x1x8x32xbf16>
      %112 = vector.shape_cast %111 : vector<1x1x8x32xbf16> to vector<8x32xbf16>
      %c4_i32_98 = arith.constant 4 : i32
      %113 = arith.addi %11, %c4_i32_98 : i32
      %c0_99 = arith.constant 0 : index
      %114 = arith.index_cast %113 : i32 to index
      %c2_100 = arith.constant 2 : index
      %c0_101 = arith.constant 0 : index
      %115 = vector.load %arg2[%c0_99, %114, %c2_100, %c0_101] : memref<1x12x12x32xbf16, #tpu.memory_space<vmem>>, vector<1x1x8x32xbf16>
      %116 = vector.shape_cast %115 : vector<1x1x8x32xbf16> to vector<8x32xbf16>
      %c4_i32_102 = arith.constant 4 : i32
      %117 = arith.addi %11, %c4_i32_102 : i32
      %c0_103 = arith.constant 0 : index
      %118 = arith.index_cast %117 : i32 to index
      %c3_104 = arith.constant 3 : index
      %c0_105 = arith.constant 0 : index
      %119 = vector.load %arg2[%c0_103, %118, %c3_104, %c0_105] : memref<1x12x12x32xbf16, #tpu.memory_space<vmem>>, vector<1x1x8x32xbf16>
      %120 = vector.shape_cast %119 : vector<1x1x8x32xbf16> to vector<8x32xbf16>
      %c4_i32_106 = arith.constant 4 : i32
      %121 = arith.addi %11, %c4_i32_106 : i32
      %c0_107 = arith.constant 0 : index
      %122 = arith.index_cast %121 : i32 to index
      %c4_108 = arith.constant 4 : index
      %c0_109 = arith.constant 0 : index
      %123 = vector.load %arg2[%c0_107, %122, %c4_108, %c0_109] : memref<1x12x12x32xbf16, #tpu.memory_space<vmem>>, vector<1x1x8x32xbf16>
      %124 = vector.shape_cast %123 : vector<1x1x8x32xbf16> to vector<8x32xbf16>
      %125 = tpu.concatenate %108, %112, %116, %120, %124 in 1 : vector<8x32xbf16>, vector<8x32xbf16>, vector<8x32xbf16>, vector<8x32xbf16>, vector<8x32xbf16> -> vector<8x160xbf16>
      %cst_110 = arith.constant dense<0.000000e+00> : vector<8x64xf32>
      %126 = tpu.matmul %125, %6, %cst_110 {dimension_numbers = #tpu.dot_dimension_numbers<[1], [0], [0], [1], [0, 0, 1, 1], [], []>} : vector<8x160xbf16>, vector<160x64xbf16>, vector<8x64xf32> -> vector<8x64xf32>
      %127 = arith.addf %104, %126 : vector<8x64xf32>
      %128 = vector.broadcast %0 : vector<1x64xf32> to vector<8x64xf32>
      %129 = arith.addf %127, %128 : vector<8x64xf32>
      %cst_111 = arith.constant 0.000000e+00 : f32
      %130 = vector.broadcast %cst_111 : f32 to vector<8x64xf32>
      %131 = arith.cmpf ogt, %129, %130 : vector<8x64xf32>
      %132 = vector.broadcast %1 : f32 to vector<8x64xf32>
      %133 = arith.mulf %132, %129 : vector<8x64xf32>
      %134 = arith.select %131, %129, %133 : vector<8x64xi1>, vector<8x64xf32>
      %c1_i32_112 = arith.constant 1 : i32
      %135 = arith.addi %11, %c1_i32_112 : i32
      %cst_113 = arith.constant 0.000000e+00 : f32
      %136 = vector.broadcast %cst_113 : f32 to vector<8x64xf32>
      %c0_i32_114 = arith.constant 0 : i32
      %137 = arith.addi %135, %c0_i32_114 : i32
      %c0_115 = arith.constant 0 : index
      %138 = arith.index_cast %137 : i32 to index
      %c0_116 = arith.constant 0 : index
      %c0_117 = arith.constant 0 : index
      %139 = vector.load %arg2[%c0_115, %138, %c0_116, %c0_117] : memref<1x12x12x32xbf16, #tpu.memory_space<vmem>>, vector<1x1x8x32xbf16>
      %140 = vector.shape_cast %139 : vector<1x1x8x32xbf16> to vector<8x32xbf16>
      %c0_i32_118 = arith.constant 0 : i32
      %141 = arith.addi %135, %c0_i32_118 : i32
      %c0_119 = arith.constant 0 : index
      %142 = arith.index_cast %141 : i32 to index
      %c1_120 = arith.constant 1 : index
      %c0_121 = arith.constant 0 : index
      %143 = vector.load %arg2[%c0_119, %142, %c1_120, %c0_121] : memref<1x12x12x32xbf16, #tpu.memory_space<vmem>>, vector<1x1x8x32xbf16>
      %144 = vector.shape_cast %143 : vector<1x1x8x32xbf16> to vector<8x32xbf16>
      %c0_i32_122 = arith.constant 0 : i32
      %145 = arith.addi %135, %c0_i32_122 : i32
      %c0_123 = arith.constant 0 : index
      %146 = arith.index_cast %145 : i32 to index
      %c2_124 = arith.constant 2 : index
      %c0_125 = arith.constant 0 : index
      %147 = vector.load %arg2[%c0_123, %146, %c2_124, %c0_125] : memref<1x12x12x32xbf16, #tpu.memory_space<vmem>>, vector<1x1x8x32xbf16>
      %148 = vector.shape_cast %147 : vector<1x1x8x32xbf16> to vector<8x32xbf16>
      %c0_i32_126 = arith.constant 0 : i32
      %149 = arith.addi %135, %c0_i32_126 : i32
      %c0_127 = arith.constant 0 : index
      %150 = arith.index_cast %149 : i32 to index
      %c3_128 = arith.constant 3 : index
      %c0_129 = arith.constant 0 : index
      %151 = vector.load %arg2[%c0_127, %150, %c3_128, %c0_129] : memref<1x12x12x32xbf16, #tpu.memory_space<vmem>>, vector<1x1x8x32xbf16>
      %152 = vector.shape_cast %151 : vector<1x1x8x32xbf16> to vector<8x32xbf16>
      %c0_i32_130 = arith.constant 0 : i32
      %153 = arith.addi %135, %c0_i32_130 : i32
      %c0_131 = arith.constant 0 : index
      %154 = arith.index_cast %153 : i32 to index
      %c4_132 = arith.constant 4 : index
      %c0_133 = arith.constant 0 : index
      %155 = vector.load %arg2[%c0_131, %154, %c4_132, %c0_133] : memref<1x12x12x32xbf16, #tpu.memory_space<vmem>>, vector<1x1x8x32xbf16>
      %156 = vector.shape_cast %155 : vector<1x1x8x32xbf16> to vector<8x32xbf16>
      %157 = tpu.concatenate %140, %144, %148, %152, %156 in 1 : vector<8x32xbf16>, vector<8x32xbf16>, vector<8x32xbf16>, vector<8x32xbf16>, vector<8x32xbf16> -> vector<8x160xbf16>
      %cst_134 = arith.constant dense<0.000000e+00> : vector<8x64xf32>
      %158 = tpu.matmul %157, %2, %cst_134 {dimension_numbers = #tpu.dot_dimension_numbers<[1], [0], [0], [1], [0, 0, 1, 1], [], []>} : vector<8x160xbf16>, vector<160x64xbf16>, vector<8x64xf32> -> vector<8x64xf32>
      %159 = arith.addf %136, %158 : vector<8x64xf32>
      %c1_i32_135 = arith.constant 1 : i32
      %160 = arith.addi %135, %c1_i32_135 : i32
      %c0_136 = arith.constant 0 : index
      %161 = arith.index_cast %160 : i32 to index
      %c0_137 = arith.constant 0 : index
      %c0_138 = arith.constant 0 : index
      %162 = vector.load %arg2[%c0_136, %161, %c0_137, %c0_138] : memref<1x12x12x32xbf16, #tpu.memory_space<vmem>>, vector<1x1x8x32xbf16>
      %163 = vector.shape_cast %162 : vector<1x1x8x32xbf16> to vector<8x32xbf16>
      %c1_i32_139 = arith.constant 1 : i32
      %164 = arith.addi %135, %c1_i32_139 : i32
      %c0_140 = arith.constant 0 : index
      %165 = arith.index_cast %164 : i32 to index
      %c1_141 = arith.constant 1 : index
      %c0_142 = arith.constant 0 : index
      %166 = vector.load %arg2[%c0_140, %165, %c1_141, %c0_142] : memref<1x12x12x32xbf16, #tpu.memory_space<vmem>>, vector<1x1x8x32xbf16>
      %167 = vector.shape_cast %166 : vector<1x1x8x32xbf16> to vector<8x32xbf16>
      %c1_i32_143 = arith.constant 1 : i32
      %168 = arith.addi %135, %c1_i32_143 : i32
      %c0_144 = arith.constant 0 : index
      %169 = arith.index_cast %168 : i32 to index
      %c2_145 = arith.constant 2 : index
      %c0_146 = arith.constant 0 : index
      %170 = vector.load %arg2[%c0_144, %169, %c2_145, %c0_146] : memref<1x12x12x32xbf16, #tpu.memory_space<vmem>>, vector<1x1x8x32xbf16>
      %171 = vector.shape_cast %170 : vector<1x1x8x32xbf16> to vector<8x32xbf16>
      %c1_i32_147 = arith.constant 1 : i32
      %172 = arith.addi %135, %c1_i32_147 : i32
      %c0_148 = arith.constant 0 : index
      %173 = arith.index_cast %172 : i32 to index
      %c3_149 = arith.constant 3 : index
      %c0_150 = arith.constant 0 : index
      %174 = vector.load %arg2[%c0_148, %173, %c3_149, %c0_150] : memref<1x12x12x32xbf16, #tpu.memory_space<vmem>>, vector<1x1x8x32xbf16>
      %175 = vector.shape_cast %174 : vector<1x1x8x32xbf16> to vector<8x32xbf16>
      %c1_i32_151 = arith.constant 1 : i32
      %176 = arith.addi %135, %c1_i32_151 : i32
      %c0_152 = arith.constant 0 : index
      %177 = arith.index_cast %176 : i32 to index
      %c4_153 = arith.constant 4 : index
      %c0_154 = arith.constant 0 : index
      %178 = vector.load %arg2[%c0_152, %177, %c4_153, %c0_154] : memref<1x12x12x32xbf16, #tpu.memory_space<vmem>>, vector<1x1x8x32xbf16>
      %179 = vector.shape_cast %178 : vector<1x1x8x32xbf16> to vector<8x32xbf16>
      %180 = tpu.concatenate %163, %167, %171, %175, %179 in 1 : vector<8x32xbf16>, vector<8x32xbf16>, vector<8x32xbf16>, vector<8x32xbf16>, vector<8x32xbf16> -> vector<8x160xbf16>
      %cst_155 = arith.constant dense<0.000000e+00> : vector<8x64xf32>
      %181 = tpu.matmul %180, %3, %cst_155 {dimension_numbers = #tpu.dot_dimension_numbers<[1], [0], [0], [1], [0, 0, 1, 1], [], []>} : vector<8x160xbf16>, vector<160x64xbf16>, vector<8x64xf32> -> vector<8x64xf32>
      %182 = arith.addf %159, %181 : vector<8x64xf32>
      %c2_i32_156 = arith.constant 2 : i32
      %183 = arith.addi %135, %c2_i32_156 : i32
      %c0_157 = arith.constant 0 : index
      %184 = arith.index_cast %183 : i32 to index
      %c0_158 = arith.constant 0 : index
      %c0_159 = arith.constant 0 : index
      %185 = vector.load %arg2[%c0_157, %184, %c0_158, %c0_159] : memref<1x12x12x32xbf16, #tpu.memory_space<vmem>>, vector<1x1x8x32xbf16>
      %186 = vector.shape_cast %185 : vector<1x1x8x32xbf16> to vector<8x32xbf16>
      %c2_i32_160 = arith.constant 2 : i32
      %187 = arith.addi %135, %c2_i32_160 : i32
      %c0_161 = arith.constant 0 : index
      %188 = arith.index_cast %187 : i32 to index
      %c1_162 = arith.constant 1 : index
      %c0_163 = arith.constant 0 : index
      %189 = vector.load %arg2[%c0_161, %188, %c1_162, %c0_163] : memref<1x12x12x32xbf16, #tpu.memory_space<vmem>>, vector<1x1x8x32xbf16>
      %190 = vector.shape_cast %189 : vector<1x1x8x32xbf16> to vector<8x32xbf16>
      %c2_i32_164 = arith.constant 2 : i32
      %191 = arith.addi %135, %c2_i32_164 : i32
      %c0_165 = arith.constant 0 : index
      %192 = arith.index_cast %191 : i32 to index
      %c2_166 = arith.constant 2 : index
      %c0_167 = arith.constant 0 : index
      %193 = vector.load %arg2[%c0_165, %192, %c2_166, %c0_167] : memref<1x12x12x32xbf16, #tpu.memory_space<vmem>>, vector<1x1x8x32xbf16>
      %194 = vector.shape_cast %193 : vector<1x1x8x32xbf16> to vector<8x32xbf16>
      %c2_i32_168 = arith.constant 2 : i32
      %195 = arith.addi %135, %c2_i32_168 : i32
      %c0_169 = arith.constant 0 : index
      %196 = arith.index_cast %195 : i32 to index
      %c3_170 = arith.constant 3 : index
      %c0_171 = arith.constant 0 : index
      %197 = vector.load %arg2[%c0_169, %196, %c3_170, %c0_171] : memref<1x12x12x32xbf16, #tpu.memory_space<vmem>>, vector<1x1x8x32xbf16>
      %198 = vector.shape_cast %197 : vector<1x1x8x32xbf16> to vector<8x32xbf16>
      %c2_i32_172 = arith.constant 2 : i32
      %199 = arith.addi %135, %c2_i32_172 : i32
      %c0_173 = arith.constant 0 : index
      %200 = arith.index_cast %199 : i32 to index
      %c4_174 = arith.constant 4 : index
      %c0_175 = arith.constant 0 : index
      %201 = vector.load %arg2[%c0_173, %200, %c4_174, %c0_175] : memref<1x12x12x32xbf16, #tpu.memory_space<vmem>>, vector<1x1x8x32xbf16>
      %202 = vector.shape_cast %201 : vector<1x1x8x32xbf16> to vector<8x32xbf16>
      %203 = tpu.concatenate %186, %190, %194, %198, %202 in 1 : vector<8x32xbf16>, vector<8x32xbf16>, vector<8x32xbf16>, vector<8x32xbf16>, vector<8x32xbf16> -> vector<8x160xbf16>
      %cst_176 = arith.constant dense<0.000000e+00> : vector<8x64xf32>
      %204 = tpu.matmul %203, %4, %cst_176 {dimension_numbers = #tpu.dot_dimension_numbers<[1], [0], [0], [1], [0, 0, 1, 1], [], []>} : vector<8x160xbf16>, vector<160x64xbf16>, vector<8x64xf32> -> vector<8x64xf32>
      %205 = arith.addf %182, %204 : vector<8x64xf32>
      %c3_i32_177 = arith.constant 3 : i32
      %206 = arith.addi %135, %c3_i32_177 : i32
      %c0_178 = arith.constant 0 : index
      %207 = arith.index_cast %206 : i32 to index
      %c0_179 = arith.constant 0 : index
      %c0_180 = arith.constant 0 : index
      %208 = vector.load %arg2[%c0_178, %207, %c0_179, %c0_180] : memref<1x12x12x32xbf16, #tpu.memory_space<vmem>>, vector<1x1x8x32xbf16>
      %209 = vector.shape_cast %208 : vector<1x1x8x32xbf16> to vector<8x32xbf16>
      %c3_i32_181 = arith.constant 3 : i32
      %210 = arith.addi %135, %c3_i32_181 : i32
      %c0_182 = arith.constant 0 : index
      %211 = arith.index_cast %210 : i32 to index
      %c1_183 = arith.constant 1 : index
      %c0_184 = arith.constant 0 : index
      %212 = vector.load %arg2[%c0_182, %211, %c1_183, %c0_184] : memref<1x12x12x32xbf16, #tpu.memory_space<vmem>>, vector<1x1x8x32xbf16>
      %213 = vector.shape_cast %212 : vector<1x1x8x32xbf16> to vector<8x32xbf16>
      %c3_i32_185 = arith.constant 3 : i32
      %214 = arith.addi %135, %c3_i32_185 : i32
      %c0_186 = arith.constant 0 : index
      %215 = arith.index_cast %214 : i32 to index
      %c2_187 = arith.constant 2 : index
      %c0_188 = arith.constant 0 : index
      %216 = vector.load %arg2[%c0_186, %215, %c2_187, %c0_188] : memref<1x12x12x32xbf16, #tpu.memory_space<vmem>>, vector<1x1x8x32xbf16>
      %217 = vector.shape_cast %216 : vector<1x1x8x32xbf16> to vector<8x32xbf16>
      %c3_i32_189 = arith.constant 3 : i32
      %218 = arith.addi %135, %c3_i32_189 : i32
      %c0_190 = arith.constant 0 : index
      %219 = arith.index_cast %218 : i32 to index
      %c3_191 = arith.constant 3 : index
      %c0_192 = arith.constant 0 : index
      %220 = vector.load %arg2[%c0_190, %219, %c3_191, %c0_192] : memref<1x12x12x32xbf16, #tpu.memory_space<vmem>>, vector<1x1x8x32xbf16>
      %221 = vector.shape_cast %220 : vector<1x1x8x32xbf16> to vector<8x32xbf16>
      %c3_i32_193 = arith.constant 3 : i32
      %222 = arith.addi %135, %c3_i32_193 : i32
      %c0_194 = arith.constant 0 : index
      %223 = arith.index_cast %222 : i32 to index
      %c4_195 = arith.constant 4 : index
      %c0_196 = arith.constant 0 : index
      %224 = vector.load %arg2[%c0_194, %223, %c4_195, %c0_196] : memref<1x12x12x32xbf16, #tpu.memory_space<vmem>>, vector<1x1x8x32xbf16>
      %225 = vector.shape_cast %224 : vector<1x1x8x32xbf16> to vector<8x32xbf16>
      %226 = tpu.concatenate %209, %213, %217, %221, %225 in 1 : vector<8x32xbf16>, vector<8x32xbf16>, vector<8x32xbf16>, vector<8x32xbf16>, vector<8x32xbf16> -> vector<8x160xbf16>
      %cst_197 = arith.constant dense<0.000000e+00> : vector<8x64xf32>
      %227 = tpu.matmul %226, %5, %cst_197 {dimension_numbers = #tpu.dot_dimension_numbers<[1], [0], [0], [1], [0, 0, 1, 1], [], []>} : vector<8x160xbf16>, vector<160x64xbf16>, vector<8x64xf32> -> vector<8x64xf32>
      %228 = arith.addf %205, %227 : vector<8x64xf32>
      %c4_i32_198 = arith.constant 4 : i32
      %229 = arith.addi %135, %c4_i32_198 : i32
      %c0_199 = arith.constant 0 : index
      %230 = arith.index_cast %229 : i32 to index
      %c0_200 = arith.constant 0 : index
      %c0_201 = arith.constant 0 : index
      %231 = vector.load %arg2[%c0_199, %230, %c0_200, %c0_201] : memref<1x12x12x32xbf16, #tpu.memory_space<vmem>>, vector<1x1x8x32xbf16>
      %232 = vector.shape_cast %231 : vector<1x1x8x32xbf16> to vector<8x32xbf16>
      %c4_i32_202 = arith.constant 4 : i32
      %233 = arith.addi %135, %c4_i32_202 : i32
      %c0_203 = arith.constant 0 : index
      %234 = arith.index_cast %233 : i32 to index
      %c1_204 = arith.constant 1 : index
      %c0_205 = arith.constant 0 : index
      %235 = vector.load %arg2[%c0_203, %234, %c1_204, %c0_205] : memref<1x12x12x32xbf16, #tpu.memory_space<vmem>>, vector<1x1x8x32xbf16>
      %236 = vector.shape_cast %235 : vector<1x1x8x32xbf16> to vector<8x32xbf16>
      %c4_i32_206 = arith.constant 4 : i32
      %237 = arith.addi %135, %c4_i32_206 : i32
      %c0_207 = arith.constant 0 : index
      %238 = arith.index_cast %237 : i32 to index
      %c2_208 = arith.constant 2 : index
      %c0_209 = arith.constant 0 : index
      %239 = vector.load %arg2[%c0_207, %238, %c2_208, %c0_209] : memref<1x12x12x32xbf16, #tpu.memory_space<vmem>>, vector<1x1x8x32xbf16>
      %240 = vector.shape_cast %239 : vector<1x1x8x32xbf16> to vector<8x32xbf16>
      %c4_i32_210 = arith.constant 4 : i32
      %241 = arith.addi %135, %c4_i32_210 : i32
      %c0_211 = arith.constant 0 : index
      %242 = arith.index_cast %241 : i32 to index
      %c3_212 = arith.constant 3 : index
      %c0_213 = arith.constant 0 : index
      %243 = vector.load %arg2[%c0_211, %242, %c3_212, %c0_213] : memref<1x12x12x32xbf16, #tpu.memory_space<vmem>>, vector<1x1x8x32xbf16>
      %244 = vector.shape_cast %243 : vector<1x1x8x32xbf16> to vector<8x32xbf16>
      %c4_i32_214 = arith.constant 4 : i32
      %245 = arith.addi %135, %c4_i32_214 : i32
      %c0_215 = arith.constant 0 : index
      %246 = arith.index_cast %245 : i32 to index
      %c4_216 = arith.constant 4 : index
      %c0_217 = arith.constant 0 : index
      %247 = vector.load %arg2[%c0_215, %246, %c4_216, %c0_217] : memref<1x12x12x32xbf16, #tpu.memory_space<vmem>>, vector<1x1x8x32xbf16>
      %248 = vector.shape_cast %247 : vector<1x1x8x32xbf16> to vector<8x32xbf16>
      %249 = tpu.concatenate %232, %236, %240, %244, %248 in 1 : vector<8x32xbf16>, vector<8x32xbf16>, vector<8x32xbf16>, vector<8x32xbf16>, vector<8x32xbf16> -> vector<8x160xbf16>
      %cst_218 = arith.constant dense<0.000000e+00> : vector<8x64xf32>
      %250 = tpu.matmul %249, %6, %cst_218 {dimension_numbers = #tpu.dot_dimension_numbers<[1], [0], [0], [1], [0, 0, 1, 1], [], []>} : vector<8x160xbf16>, vector<160x64xbf16>, vector<8x64xf32> -> vector<8x64xf32>
      %251 = arith.addf %228, %250 : vector<8x64xf32>
      %252 = vector.broadcast %0 : vector<1x64xf32> to vector<8x64xf32>
      %253 = arith.addf %251, %252 : vector<8x64xf32>
      %cst_219 = arith.constant 0.000000e+00 : f32
      %254 = vector.broadcast %cst_219 : f32 to vector<8x64xf32>
      %255 = arith.cmpf ogt, %253, %254 : vector<8x64xf32>
      %256 = vector.broadcast %1 : f32 to vector<8x64xf32>
      %257 = arith.mulf %256, %253 : vector<8x64xf32>
      %258 = arith.select %255, %253, %257 : vector<8x64xi1>, vector<8x64xf32>
      %259 = arith.maximumf %134, %258 : vector<8x64xf32>
      %c0_220 = arith.constant 0 : index
      %c0_221 = arith.constant 0 : index
      %260 = vector.load %arg7[%c0_220, %c0_221] : memref<8x64xf32, #tpu.memory_space<vmem>>, vector<8x64xf32>
      tpu.vector_store %arg7[%c0_220, %c0_221], %259 {strides = array<i32>} : memref<8x64xf32, #tpu.memory_space<vmem>>, vector<8x64xf32>,
      %c0_222 = arith.constant 0 : index
      %c0_223 = arith.constant 0 : index
      %261 = tpu.strided_load %arg7[%c0_222, %c0_223] {strides = array<i32: 2, 1>} : memref<8x64xf32, #tpu.memory_space<vmem>>, vector<4x64xf32>
      %c1_224 = arith.constant 1 : index
      %c0_225 = arith.constant 0 : index
      %262 = tpu.strided_load %arg7[%c1_224, %c0_225] {strides = array<i32: 2, 1>} : memref<8x64xf32, #tpu.memory_space<vmem>>, vector<4x64xf32>
      %263 = arith.maximumf %261, %262 : vector<4x64xf32>
      %264 = arith.truncf %263 : vector<4x64xf32> to vector<4x64xbf16>
      %c0_226 = arith.constant 0 : index
      %265 = arith.index_cast %arg8 : i32 to index
      %c0_227 = arith.constant 0 : index
      %c0_228 = arith.constant 0 : index
      %266 = vector.load %arg6[%c0_226, %265, %c0_227, %c0_228] : memref<1x4x4x64xbf16, #tpu.memory_space<vmem>>, vector<1x1x4x64xbf16>
      %267 = vector.shape_cast %266 : vector<1x1x4x64xbf16> to vector<4x64xbf16>
      %268 = vector.shape_cast %264 : vector<4x64xbf16> to vector<1x1x4x64xbf16>
      tpu.vector_store %arg6[%c0_226, %265, %c0_227, %c0_228], %268 {strides = array<i32>} : memref<1x4x4x64xbf16, #tpu.memory_space<vmem>>, vector<1x1x4x64xbf16>,
    }
    %c4_i32_8 = arith.constant 4 : i32
    return
  }
  func.func @transform_0(%arg0: i32, %arg1: i32) -> (i32, i32, i32, i32) {
    %c0_i32 = arith.constant 0 : i32
    %c0_i32_0 = arith.constant 0 : i32
    %c0_i32_1 = arith.constant 0 : i32
    %c0_i32_2 = arith.constant 0 : i32
    return %arg0, %c0_i32, %c0_i32_0, %c0_i32_1 : i32, i32, i32, i32
  }
  func.func @transform_1(%arg0: i32, %arg1: i32) -> (i32, i32) {
    %c0_i32 = arith.constant 0 : i32
    %c0_i32_0 = arith.constant 0 : i32
    %c0_i32_1 = arith.constant 0 : i32
    return %c0_i32, %c0_i32_0 : i32, i32
  }
  func.func @transform_2(%arg0: i32, %arg1: i32) -> (i32, i32) {
    %c0_i32 = arith.constant 0 : i32
    %c0_i32_0 = arith.constant 0 : i32
    %c0_i32_1 = arith.constant 0 : i32
    return %c0_i32, %c0_i32_0 : i32, i32
  }
  func.func @transform_3(%arg0: i32, %arg1: i32) -> i32 {
    %c0_i32 = arith.constant 0 : i32
    %c0_i32_0 = arith.constant 0 : i32
    return %c0_i32 : i32
  }
  func.func @transform_4(%arg0: i32, %arg1: i32) -> (i32, i32, i32, i32) {
    %c0_i32 = arith.constant 0 : i32
    %c0_i32_0 = arith.constant 0 : i32
    %c0_i32_1 = arith.constant 0 : i32
    return %arg0, %arg1, %c0_i32, %c0_i32_0 : i32, i32, i32, i32
  }
}

module attributes {stable_mosaic.version = 11 : i64} {
  func.func @_fc_head_kernel(%arg0: i32, %arg1: memref<2x256xbf16, #tpu.memory_space<vmem>>, %arg2: memref<256x256xbf16, #tpu.memory_space<vmem>>, %arg3: memref<1x256xf32, #tpu.memory_space<vmem>>, %arg4: memref<256x128xbf16, #tpu.memory_space<vmem>>, %arg5: memref<1x128xf32, #tpu.memory_space<vmem>>, %arg6: memref<1xf32, #tpu.memory_space<smem>>, %arg7: memref<2x128xf32, #tpu.memory_space<vmem>>) attributes {dimension_semantics = [#tpu.dimension_semantics<arbitrary>], iteration_bounds = array<i64: 1>, scalar_prefetch = 0 : i64, scratch_operands = 0 : i64, tpu.core_type = #tpu.core_type<tc>, window_params = [{pipeline_mode = #tpu.pipeline_mode<synchronous>, transform_indices = @transform_0, window_bounds = array<i64: 2, 256>}, {pipeline_mode = #tpu.pipeline_mode<synchronous>, transform_indices = @transform_1, window_bounds = array<i64: 256, 256>}, {pipeline_mode = #tpu.pipeline_mode<synchronous>, transform_indices = @transform_2, window_bounds = array<i64: 1, 256>}, {pipeline_mode = #tpu.pipeline_mode<synchronous>, transform_indices = @transform_3, window_bounds = array<i64: 256, 128>}, {pipeline_mode = #tpu.pipeline_mode<synchronous>, transform_indices = @transform_4, window_bounds = array<i64: 1, 128>}, {transform_indices = @transform_5, window_bounds = array<i64: 1>}, {pipeline_mode = #tpu.pipeline_mode<synchronous>, transform_indices = @transform_6, window_bounds = array<i64: 2, 128>}]} {
    %c0 = arith.constant 0 : index
    %c0_0 = arith.constant 0 : index
    %0 = vector.load %arg1[%c0, %c0_0] : memref<2x256xbf16, #tpu.memory_space<vmem>>, vector<2x256xbf16>
    %c0_1 = arith.constant 0 : index
    %c0_2 = arith.constant 0 : index
    %1 = vector.load %arg2[%c0_1, %c0_2] : memref<256x256xbf16, #tpu.memory_space<vmem>>, vector<256x256xbf16>
    %cst = arith.constant dense<0.000000e+00> : vector<2x256xf32>
    %2 = tpu.matmul %0, %1, %cst {dimension_numbers = #tpu.dot_dimension_numbers<[1], [0], [0], [1], [0, 0, 1, 1], [], []>} : vector<2x256xbf16>, vector<256x256xbf16>, vector<2x256xf32> -> vector<2x256xf32>
    %c0_3 = arith.constant 0 : index
    %c0_4 = arith.constant 0 : index
    %3 = vector.load %arg3[%c0_3, %c0_4] : memref<1x256xf32, #tpu.memory_space<vmem>>, vector<1x256xf32>
    %4 = vector.broadcast %3 : vector<1x256xf32> to vector<2x256xf32>
    %5 = arith.addf %2, %4 : vector<2x256xf32>
    %cst_5 = arith.constant 0.000000e+00 : f32
    %6 = vector.broadcast %cst_5 : f32 to vector<2x256xf32>
    %7 = arith.cmpf ogt, %5, %6 : vector<2x256xf32>
    %c0_6 = arith.constant 0 : index
    %8 = memref.load %arg6[%c0_6] : memref<1xf32, #tpu.memory_space<smem>>
    %9 = vector.broadcast %8 : f32 to vector<2x256xf32>
    %10 = arith.mulf %9, %5 : vector<2x256xf32>
    %11 = arith.select %7, %5, %10 : vector<2x256xi1>, vector<2x256xf32>
    %12 = arith.truncf %11 : vector<2x256xf32> to vector<2x256xbf16>
    %c0_7 = arith.constant 0 : index
    %c0_8 = arith.constant 0 : index
    %13 = vector.load %arg4[%c0_7, %c0_8] : memref<256x128xbf16, #tpu.memory_space<vmem>>, vector<256x128xbf16>
    %cst_9 = arith.constant dense<0.000000e+00> : vector<2x128xf32>
    %14 = tpu.matmul %12, %13, %cst_9 {dimension_numbers = #tpu.dot_dimension_numbers<[1], [0], [0], [1], [0, 0, 1, 1], [], []>} : vector<2x256xbf16>, vector<256x128xbf16>, vector<2x128xf32> -> vector<2x128xf32>
    %c0_10 = arith.constant 0 : index
    %c0_11 = arith.constant 0 : index
    %15 = vector.load %arg5[%c0_10, %c0_11] : memref<1x128xf32, #tpu.memory_space<vmem>>, vector<1x128xf32>
    %16 = vector.broadcast %15 : vector<1x128xf32> to vector<2x128xf32>
    %17 = arith.addf %14, %16 : vector<2x128xf32>
    %c0_12 = arith.constant 0 : index
    %c0_13 = arith.constant 0 : index
    %18 = vector.load %arg7[%c0_12, %c0_13] : memref<2x128xf32, #tpu.memory_space<vmem>>, vector<2x128xf32>
    tpu.vector_store %arg7[%c0_12, %c0_13], %17 {strides = array<i32>} : memref<2x128xf32, #tpu.memory_space<vmem>>, vector<2x128xf32>,
    return
  }
  func.func @transform_0(%arg0: i32) -> (i32, i32) {
    %c0_i32 = arith.constant 0 : i32
    %c0_i32_0 = arith.constant 0 : i32
    %c0_i32_1 = arith.constant 0 : i32
    return %c0_i32, %c0_i32_0 : i32, i32
  }
  func.func @transform_1(%arg0: i32) -> (i32, i32) {
    %c0_i32 = arith.constant 0 : i32
    %c0_i32_0 = arith.constant 0 : i32
    %c0_i32_1 = arith.constant 0 : i32
    return %c0_i32, %c0_i32_0 : i32, i32
  }
  func.func @transform_2(%arg0: i32) -> (i32, i32) {
    %c0_i32 = arith.constant 0 : i32
    %c0_i32_0 = arith.constant 0 : i32
    %c0_i32_1 = arith.constant 0 : i32
    return %c0_i32, %c0_i32_0 : i32, i32
  }
  func.func @transform_3(%arg0: i32) -> (i32, i32) {
    %c0_i32 = arith.constant 0 : i32
    %c0_i32_0 = arith.constant 0 : i32
    %c0_i32_1 = arith.constant 0 : i32
    return %c0_i32, %c0_i32_0 : i32, i32
  }
  func.func @transform_4(%arg0: i32) -> (i32, i32) {
    %c0_i32 = arith.constant 0 : i32
    %c0_i32_0 = arith.constant 0 : i32
    %c0_i32_1 = arith.constant 0 : i32
    return %c0_i32, %c0_i32_0 : i32, i32
  }
  func.func @transform_5(%arg0: i32) -> i32 {
    %c0_i32 = arith.constant 0 : i32
    %c0_i32_0 = arith.constant 0 : i32
    return %c0_i32 : i32
  }
  func.func @transform_6(%arg0: i32) -> (i32, i32) {
    %c0_i32 = arith.constant 0 : i32
    %c0_i32_0 = arith.constant 0 : i32
    %c0_i32_1 = arith.constant 0 : i32
    return %c0_i32, %c0_i32_0 : i32, i32
  }
}

</mosaic_0001>

<llo_original>
// kernel: embedding_net_forward.6
$region0: #{embedding_net_forward.6}
  #allocation0 [shape = 'u32[]', space=smem, size = 0x4, offset = 0x4, fixed_abs, tag = 'smem constant byte address 0x4 - core index']
  #allocation1 [shape = 'u32[144,128]{1,0:T(1,128)}', space=vmem, size = 0x12000, scoped, tag = 'internal scratch']
  #allocation2 [shape = 'f32[2,128]{1,0:T(2,128)}', space=vmem, size = 0x400, scoped, tag = 'scratch operand']
  #allocation3 [shape = 'f32[1]{0:T(128)S(6)}', space=smem, size = 0x200, scoped, tag = 'scoped memory for embedding_net_forward.6']
  %s0 = inlined_call_operand.vmem [shape: bf16[2,1024], index: 0, kind: input, shape index: {}]
  %s1 = inlined_call_operand.vmem [shape: bf16[1024,256], index: 1, kind: input, shape index: {}]
  %s2 = inlined_call_operand.vmem [shape: f32[1,256], index: 2, kind: input, shape index: {}]
  %s3 = inlined_call_operand.<no memory space> [shape: f32[1], index: 3, kind: input, shape index: {}]
  %s4 = inlined_call_operand.vmem [shape: bf16[2,256], index: 4, kind: output, shape index: {}]
  %s5 = sld [smem:[#allocation0]]
  $region98: #{embedding_net_forward.6} parent=0
    _
  %s7 = ssub.s32 1, %s5
  %s8 = scalar_select 0, %s7, %s5
  %9 = sst [smem:[#allocation3]] %s3
  $region1: #{embedding_net_forward.6} parent=0
    #allocation4 [shape = 'u8[524288]{0}', space=vmem, size = 0x80000, scoped, tag = 'input window, operand 1']
    loop: start=0, step=1, limit=4
    $region2: #{embedding_net_forward.6} parent=1 // loop_pre_header
      _
    $region3: #{embedding_net_forward.6} parent=1 // loop_header
      %s11 = sphi 0, %s15
      %p12 = scmp.ge.s32.totalorder %s11, 4
      %s18 = sphi 0, %s30
      %s19 = sphi 0, %s26
      %s20 = sphi 0, %s18
      %s21 = sphi 0, %s19
      %s22 = sphi 0, %s20
      %s23 = sphi 0, %s21
      %s33 = sphi 0, %s35
      %s36 = sphi 0, %s33
      %s37 = sphi 0, %s36
      %s53 = sphi 0, %s37
      %s61 = sphi 0, %s63
      %s64 = sphi 0, %s61
      %s65 = sphi 0, %s64
      %s81 = sphi 0, %s65
      %s87 = sphi 0, %s89
      %s90 = sphi 0, %s87
      %s91 = sphi 0, %s90
      %s107 = sphi 0, %s91
      %s111 = sphi 0, %s111
      %s113 = sphi 0, %s111
      %s114 = sphi 0, %s113
      %s128 = sphi 0, %s114
      %s134 = sphi 0, %s136
      %s137 = sphi 0, %s134
      %s138 = sphi 0, %s137
      %s154 = sphi 0, %s138
    $region4: #{embedding_net_forward.6} parent=1 // loop_header_branch
      %14 = sbr.rel (%p12) target = $region8
    $region5: #{embedding_net_forward.6} parent=1 // loop_body
      %s16 = ssub.s32 %s11, 1
      %s17 = ssub.s32 %s11, 2
      %s24 = sadd.s32 1, %s19
      %p25 = scmp.ge.s32.totalorder %s24, 1
      %s26 = scalar_select %p25, 0, %s24
      %s27 = sadd.s32 1, %s18
      %s28 = scalar_select %p25, %s27, %s18
      %p29 = scmp.ge.s32.totalorder %s28, 2
      %s30 = scalar_select %p29, 0, %s28
      %s31 = ssub.s32 %s19, %s26
      %p32 = scmp.eq.s32.totalorder %s31, 0
      %s34 = sadd.s32 %s33, 1
      %s35 = scalar_select %p32, %s33, %s34
      %p38 = pneg %p32
      %p39 = scmp.eq.s32.totalorder %s11, 1
      %p40 = por %p38, %p39
      %p41 = scmp.ne.s32.totalorder %s33, %s36
      %p42 = scmp.eq.s32.totalorder %s11, 0
      %p43 = por %p41, %p42
      %p44 = scmp.ne.s32.totalorder %s33, %s36
      %p45 = scmp.eq.s32.totalorder %s16, 1
      %p46 = por %p44, %p45
      %p47 = scmp.ne.s32.totalorder %s36, %s37
      %p48 = scmp.eq.s32.totalorder %s16, 0
      %p49 = por %p47, %p48
      %p50 = scmp.ne.s32.totalorder %s36, %s37
      %p51 = scmp.eq.s32.totalorder %s17, 1
      %p52 = por %p50, %p51
      %p54 = scmp.ne.s32.totalorder %s37, %s53
      %p55 = scmp.eq.s32.totalorder %s17, 0
      %p56 = por %p54, %p55
      %s57 = ssub.s32 %s19, %s26
      %s58 = ssub.s32 %s18, %s30
      %s59 = sor.u32 %s57, %s58
      %p60 = scmp.eq.s32.totalorder %s59, 0
      %s62 = sadd.s32 %s61, 1
      %s63 = scalar_select %p60, %s61, %s62
      %p66 = pneg %p60
      %p67 = scmp.eq.s32.totalorder %s11, 1
      %p68 = por %p66, %p67
      %p69 = scmp.ne.s32.totalorder %s61, %s64
      %p70 = scmp.eq.s32.totalorder %s11, 0
      %p71 = por %p69, %p70
      %p72 = scmp.ne.s32.totalorder %s61, %s64
      %p73 = scmp.eq.s32.totalorder %s16, 1
      %p74 = por %p72, %p73
      %p75 = scmp.ne.s32.totalorder %s64, %s65
      %p76 = scmp.eq.s32.totalorder %s16, 0
      %p77 = por %p75, %p76
      %p78 = scmp.ne.s32.totalorder %s64, %s65
      %p79 = scmp.eq.s32.totalorder %s17, 1
      %p80 = por %p78, %p79
      %p82 = scmp.ne.s32.totalorder %s65, %s81
      %p83 = scmp.eq.s32.totalorder %s17, 0
      %p84 = por %p82, %p83
      %s85 = ssub.s32 %s18, %s30
      %p86 = scmp.eq.s32.totalorder %s85, 0
      %s88 = sadd.s32 %s87, 1
      %s89 = scalar_select %p86, %s87, %s88
      %p92 = pneg %p86
      %p93 = scmp.eq.s32.totalorder %s11, 1
      %p94 = por %p92, %p93
      %p95 = scmp.ne.s32.totalorder %s87, %s90
      %p96 = scmp.eq.s32.totalorder %s11, 0
      %p97 = por %p95, %p96
      %p98 = scmp.ne.s32.totalorder %s87, %s90
      %p99 = scmp.eq.s32.totalorder %s16, 1
      %p100 = por %p98, %p99
      %p101 = scmp.ne.s32.totalorder %s90, %s91
      %p102 = scmp.eq.s32.totalorder %s16, 0
      %p103 = por %p101, %p102
      %p104 = scmp.ne.s32.totalorder %s90, %s91
      %p105 = scmp.eq.s32.totalorder %s17, 1
      %p106 = por %p104, %p105
      %p108 = scmp.ne.s32.totalorder %s91, %s107
      %p109 = scmp.eq.s32.totalorder %s17, 0
      %p110 = por %p108, %p109
      %s112 = sadd.s32 %s111, 1
      %p115 = scmp.eq.s32.totalorder %s11, 1
      %p116 = scmp.ne.s32.totalorder %s111, %s113
      %p117 = scmp.eq.s32.totalorder %s11, 0
      %p118 = por %p116, %p117
      %p119 = scmp.ne.s32.totalorder %s111, %s113
      %p120 = scmp.eq.s32.totalorder %s16, 1
      %p121 = por %p119, %p120
      %p122 = scmp.ne.s32.totalorder %s113, %s114
      %p123 = scmp.eq.s32.totalorder %s16, 0
      %p124 = por %p122, %p123
      %p125 = scmp.ne.s32.totalorder %s113, %s114
      %p126 = scmp.eq.s32.totalorder %s17, 1
      %p127 = por %p125, %p126
      %p129 = scmp.ne.s32.totalorder %s114, %s128
      %p130 = scmp.eq.s32.totalorder %s17, 0
      %p131 = por %p129, %p130
      %s132 = ssub.s32 %s18, %s30
      %p133 = scmp.eq.s32.totalorder %s132, 0
      %s135 = sadd.s32 %s134, 1
      %s136 = scalar_select %p133, %s134, %s135
      %p139 = pneg %p133
      %p140 = scmp.eq.s32.totalorder %s11, 1
      %p141 = por %p139, %p140
      %p142 = scmp.ne.s32.totalorder %s134, %s137
      %p143 = scmp.eq.s32.totalorder %s11, 0
      %p144 = por %p142, %p143
      %p145 = scmp.ne.s32.totalorder %s134, %s137
      %p146 = scmp.eq.s32.totalorder %s16, 1
      %p147 = por %p145, %p146
      %p148 = scmp.ne.s32.totalorder %s137, %s138
      %p149 = scmp.eq.s32.totalorder %s16, 0
      %p150 = por %p148, %p149
      %p151 = scmp.ne.s32.totalorder %s137, %s138
      %p152 = scmp.eq.s32.totalorder %s17, 1
      %p153 = por %p151, %p152
      %p155 = scmp.ne.s32.totalorder %s138, %s154
      %p156 = scmp.eq.s32.totalorder %s17, 0
      %p157 = por %p155, %p156
      %p158 = scmp.le.s32.totalorder 1, %s11
      %p159 = scmp.lt.s32.totalorder %s11, 3
      %p160 = pnand %p158, %p159
      %p161 = pneg %p160
      // Predicated region
      $region9: #{embedding_net_forward.6} parent=5 // pred_check
        _
      $region10: #{embedding_net_forward.6} parent=5 // pred_check_branch
        %163 = sbr.rel (%p160) target = $region12
      $region11: #{embedding_net_forward.6} parent=5 // pred_region
        %s164 = ssub.s32 %s11, 1
        // Predicated region
        $region13: #{embedding_net_forward.6} parent=11 // pred_check
          %p165 = pneg %p49
        $region14: #{embedding_net_forward.6} parent=11 // pred_check_branch
          %167 = sbr.rel (%p165) target = $region16
        $region15: #{embedding_net_forward.6} parent=11 // pred_region
          %s168 = smul.u32 8, %s21
          %p169 = scmp.lt.s32.totalorder %s168, 7
          %s170 = scalar_select %p169, %s168, 7
          %s171 = scalar_lea.vmem %s0, %s170
          %s172 = smul.u32 8, %s21
        $region16: #{embedding_net_forward.6} parent=11 // pred_fallthru
          _
        // Predicated region
        $region17: #{embedding_net_forward.6} parent=11 // pred_check
          %p173 = pneg %p124
        $region18: #{embedding_net_forward.6} parent=11 // pred_check_branch
          %175 = sbr.rel (%p173) target = $region20
        $region19: #{embedding_net_forward.6} parent=11 // pred_region
          _
        $region20: #{embedding_net_forward.6} parent=11 // pred_fallthru
          _
      $region12: #{embedding_net_forward.6} parent=5 // pred_fallthru
        _
      %p176 = scmp.lt.s32.totalorder %s11, 2
      // Predicated region
      $region21: #{embedding_net_forward.6} parent=5 // pred_check
        %p177 = pneg %p176
      $region22: #{embedding_net_forward.6} parent=5 // pred_check_branch
        %179 = sbr.rel (%p177) target = $region24
      $region23: #{embedding_net_forward.6} parent=5 // pred_region
        // Predicated region
        $region25: #{embedding_net_forward.6} parent=23 // pred_check
          %p180 = pneg %p71
        $region26: #{embedding_net_forward.6} parent=23 // pred_check_branch
          %182 = sbr.rel (%p180) target = $region28
        $region27: #{embedding_net_forward.6} parent=23 // pred_region
          %s183 = sand.u32 %s61, 1
          %s184 = sand.u32 %s61, 1
          %s185 = smul.addr %s184, 512
          %s186 = scalar_lea.vmem [#allocation4], %s185
          %s187 = smul.u32 128, %s19
          %s188 = smul.addr %s187, 2
          %s189 = sadd.s32 %s18, %s188
          %s190 = smul.addr %s189, 4
          %s191 = scalar_lea.vmem %s1, %s190
          // Predicated region
          $region29: #{embedding_net_forward.6} parent=27 // pred_check
            _
          $region30: #{embedding_net_forward.6} parent=27 // pred_check_branch
            %193 = sbr.rel (0) target = $region32
          $region31: #{embedding_net_forward.6} parent=27 // pred_region
            // Predicated region
            $region33: #{embedding_net_forward.6} parent=31 // pred_check
              _
            $region34: #{embedding_net_forward.6} parent=31 // pred_check_branch
              %195 = sbr.rel target = $region36
            $region35: #{embedding_net_forward.6} parent=31 // pred_region
              // Predicated region
              $region48: #{embedding_net_forward.6} parent=35 // pred_check
                _
              $region49: #{embedding_net_forward.6} parent=35 // pred_check_branch
                %464 = sbr.rel (0) target = $region51
              $region50: #{embedding_net_forward.6} parent=35 // pred_region
                loop: start=0, step=1, limit=1
                $region52: #{embedding_net_forward.6} parent=50 // loop_pre_header
                  _
                $region53: #{embedding_net_forward.6} parent=50 // loop_header
                  %s466 = sphi 0, %s470
                  %p467 = scmp.ge.s32.totalorder %s466, 1
                  %s471 = sphi %s191, %s191
                  %s472 = sphi %s186, %s186
                $region54: #{embedding_net_forward.6} parent=50 // loop_header_branch
                  %469 = sbr.rel (%p467) target = $region58
                $region55: #{embedding_net_forward.6} parent=50 // loop_body
                  _
                $region56: #{embedding_net_forward.6} parent=50 // loop_footer
                  %s470 = sadd.s32 1, %s466
                $region57: #{embedding_net_forward.6} parent=50 // loop_footer_branch
                  %465 = sbr.rel target = $region53
                $region58: #{embedding_net_forward.6} parent=50 // loop_exit
                  _
                loop: start=0, step=1, limit=1
                $region59: #{embedding_net_forward.6} parent=50 // loop_pre_header
                  _
                $region60: #{embedding_net_forward.6} parent=50 // loop_header
                  %s475 = sphi 0, %s479
                  %p476 = scmp.ge.s32.totalorder %s475, 1
                  %s480 = sphi %s191, %s191
                  %s481 = sphi %s186, %s186
                $region61: #{embedding_net_forward.6} parent=50 // loop_header_branch
                  %478 = sbr.rel (%p476) target = $region65
                $region62: #{embedding_net_forward.6} parent=50 // loop_body
                  %v482 = vld [vmem:[%s480] sm:$0xf]
                  %483 = vst [vmem:[%s481] sm:$0xf] %v482
                  %v484 = vld [vmem:[%s480 + $0x8] sm:$0xf]
                  %485 = vst [vmem:[%s481 + $0x4] sm:$0xf] %v484
                  %v486 = vld [vmem:[%s480 + $0x10] sm:$0xf]
                  %487 = vst [vmem:[%s481 + $0x8] sm:$0xf] %v486
                  %v488 = vld [vmem:[%s480 + $0x18] sm:$0xf]
                  %489 = vst [vmem:[%s481 + $0xc] sm:$0xf] %v488
                  %v490 = vld [vmem:[%s480 + $0x20] sm:$0xf]
                  %491 = vst [vmem:[%s481 + $0x10] sm:$0xf] %v490
                  %v492 = vld [vmem:[%s480 + $0x28] sm:$0xf]
                  %493 = vst [vmem:[%s481 + $0x14] sm:$0xf] %v492
                  %v494 = vld [vmem:[%s480 + $0x30] sm:$0xf]
                  %495 = vst [vmem:[%s481 + $0x18] sm:$0xf] %v494
                  %v496 = vld [vmem:[%s480 + $0x38] sm:$0xf]
                  %497 = vst [vmem:[%s481 + $0x1c] sm:$0xf] %v496
                  %v498 = vld [vmem:[%s480 + $0x40] sm:$0xf]
                  %499 = vst [vmem:[%s481 + $0x20] sm:$0xf] %v498
                  %v500 = vld [vmem:[%s480 + $0x48] sm:$0xf]
                  %501 = vst [vmem:[%s481 + $0x24] sm:$0xf] %v500
                  %v502 = vld [vmem:[%s480 + $0x50] sm:$0xf]
                  %503 = vst [vmem:[%s481 + $0x28] sm:$0xf] %v502
                  %v504 = vld [vmem:[%s480 + $0x58] sm:$0xf]
                  %505 = vst [vmem:[%s481 + $0x2c] sm:$0xf] %v504
                  %v506 = vld [vmem:[%s480 + $0x60] sm:$0xf]
                  %507 = vst [vmem:[%s481 + $0x30] sm:$0xf] %v506
                  %v508 = vld [vmem:[%s480 + $0x68] sm:$0xf]
                  %509 = vst [vmem:[%s481 + $0x34] sm:$0xf] %v508
                  %v510 = vld [vmem:[%s480 + $0x70] sm:$0xf]
                  %511 = vst [vmem:[%s481 + $0x38] sm:$0xf] %v510
                  %v512 = vld [vmem:[%s480 + $0x78] sm:$0xf]
                  %513 = vst [vmem:[%s481 + $0x3c] sm:$0xf] %v512
                  %v514 = vld [vmem:[%s480 + $0x80] sm:$0xf]
                  %515 = vst [vmem:[%s481 + $0x40] sm:$0xf] %v514
                  %v516 = vld [vmem:[%s480 + $0x88] sm:$0xf]
                  %517 = vst [vmem:[%s481 + $0x44] sm:$0xf] %v516
                  %v518 = vld [vmem:[%s480 + $0x90] sm:$0xf]
                  %519 = vst [vmem:[%s481 + $0x48] sm:$0xf] %v518
                  %v520 = vld [vmem:[%s480 + $0x98] sm:$0xf]
                  %521 = vst [vmem:[%s481 + $0x4c] sm:$0xf] %v520
                  %v522 = vld [vmem:[%s480 + $0xa0] sm:$0xf]
                  %523 = vst [vmem:[%s481 + $0x50] sm:$0xf] %v522
                  %v524 = vld [vmem:[%s480 + $0xa8] sm:$0xf]
                  %525 = vst [vmem:[%s481 + $0x54] sm:$0xf] %v524
                  %v526 = vld [vmem:[%s480 + $0xb0] sm:$0xf]
                  %527 = vst [vmem:[%s481 + $0x58] sm:$0xf] %v526
                  %v528 = vld [vmem:[%s480 + $0xb8] sm:$0xf]
                  %529 = vst [vmem:[%s481 + $0x5c] sm:$0xf] %v528
                  %v530 = vld [vmem:[%s480 + $0xc0] sm:$0xf]
                  %531 = vst [vmem:[%s481 + $0x60] sm:$0xf] %v530
                  %v532 = vld [vmem:[%s480 + $0xc8] sm:$0xf]
                  %533 = vst [vmem:[%s481 + $0x64] sm:$0xf] %v532
                  %v534 = vld [vmem:[%s480 + $0xd0] sm:$0xf]
                  %535 = vst [vmem:[%s481 + $0x68] sm:$0xf] %v534
                  %v536 = vld [vmem:[%s480 + $0xd8] sm:$0xf]
                  %537 = vst [vmem:[%s481 + $0x6c] sm:$0xf] %v536
                  %v538 = vld [vmem:[%s480 + $0xe0] sm:$0xf]
                  %539 = vst [vmem:[%s481 + $0x70] sm:$0xf] %v538
                  %v540 = vld [vmem:[%s480 + $0xe8] sm:$0xf]
                  %541 = vst [vmem:[%s481 + $0x74] sm:$0xf] %v540
                  %v542 = vld [vmem:[%s480 + $0xf0] sm:$0xf]
                  %543 = vst [vmem:[%s481 + $0x78] sm:$0xf] %v542
                  %v544 = vld [vmem:[%s480 + $0xf8] sm:$0xf]
                  %545 = vst [vmem:[%s481 + $0x7c] sm:$0xf] %v544
                  %v546 = vld [vmem:[%s480 + $0x100] sm:$0xf]
                  %547 = vst [vmem:[%s481 + $0x80] sm:$0xf] %v546
                  %v548 = vld [vmem:[%s480 + $0x108] sm:$0xf]
                  %549 = vst [vmem:[%s481 + $0x84] sm:$0xf] %v548
                  %v550 = vld [vmem:[%s480 + $0x110] sm:$0xf]
                  %551 = vst [vmem:[%s481 + $0x88] sm:$0xf] %v550
                  %v552 = vld [vmem:[%s480 + $0x118] sm:$0xf]
                  %553 = vst [vmem:[%s481 + $0x8c] sm:$0xf] %v552
                  %v554 = vld [vmem:[%s480 + $0x120] sm:$0xf]
                  %555 = vst [vmem:[%s481 + $0x90] sm:$0xf] %v554
                  %v556 = vld [vmem:[%s480 + $0x128] sm:$0xf]
                  %557 = vst [vmem:[%s481 + $0x94] sm:$0xf] %v556
                  %v558 = vld [vmem:[%s480 + $0x130] sm:$0xf]
                  %559 = vst [vmem:[%s481 + $0x98] sm:$0xf] %v558
                  %v560 = vld [vmem:[%s480 + $0x138] sm:$0xf]
                  %561 = vst [vmem:[%s481 + $0x9c] sm:$0xf] %v560
                  %v562 = vld [vmem:[%s480 + $0x140] sm:$0xf]
                  %563 = vst [vmem:[%s481 + $0xa0] sm:$0xf] %v562
                  %v564 = vld [vmem:[%s480 + $0x148] sm:$0xf]
                  %565 = vst [vmem:[%s481 + $0xa4] sm:$0xf] %v564
                  %v566 = vld [vmem:[%s480 + $0x150] sm:$0xf]
                  %567 = vst [vmem:[%s481 + $0xa8] sm:$0xf] %v566
                  %v568 = vld [vmem:[%s480 + $0x158] sm:$0xf]
                  %569 = vst [vmem:[%s481 + $0xac] sm:$0xf] %v568
                  %v570 = vld [vmem:[%s480 + $0x160] sm:$0xf]
                  %571 = vst [vmem:[%s481 + $0xb0] sm:$0xf] %v570
                  %v572 = vld [vmem:[%s480 + $0x168] sm:$0xf]
                  %573 = vst [vmem:[%s481 + $0xb4] sm:$0xf] %v572
                  %v574 = vld [vmem:[%s480 + $0x170] sm:$0xf]
                  %575 = vst [vmem:[%s481 + $0xb8] sm:$0xf] %v574
                  %v576 = vld [vmem:[%s480 + $0x178] sm:$0xf]
                  %577 = vst [vmem:[%s481 + $0xbc] sm:$0xf] %v576
                  %v578 = vld [vmem:[%s480 + $0x180] sm:$0xf]
                  %579 = vst [vmem:[%s481 + $0xc0] sm:$0xf] %v578
                  %v580 = vld [vmem:[%s480 + $0x188] sm:$0xf]
                  %581 = vst [vmem:[%s481 + $0xc4] sm:$0xf] %v580
                  %v582 = vld [vmem:[%s480 + $0x190] sm:$0xf]
                  %583 = vst [vmem:[%s481 + $0xc8] sm:$0xf] %v582
                  %v584 = vld [vmem:[%s480 + $0x198] sm:$0xf]
                  %585 = vst [vmem:[%s481 + $0xcc] sm:$0xf] %v584
                  %v586 = vld [vmem:[%s480 + $0x1a0] sm:$0xf]
                  %587 = vst [vmem:[%s481 + $0xd0] sm:$0xf] %v586
                  %v588 = vld [vmem:[%s480 + $0x1a8] sm:$0xf]
                  %589 = vst [vmem:[%s481 + $0xd4] sm:$0xf] %v588
                  %v590 = vld [vmem:[%s480 + $0x1b0] sm:$0xf]
                  %591 = vst [vmem:[%s481 + $0xd8] sm:$0xf] %v590
                  %v592 = vld [vmem:[%s480 + $0x1b8] sm:$0xf]
                  %593 = vst [vmem:[%s481 + $0xdc] sm:$0xf] %v592
                  %v594 = vld [vmem:[%s480 + $0x1c0] sm:$0xf]
                  %595 = vst [vmem:[%s481 + $0xe0] sm:$0xf] %v594
                  %v596 = vld [vmem:[%s480 + $0x1c8] sm:$0xf]
                  %597 = vst [vmem:[%s481 + $0xe4] sm:$0xf] %v596
                  %v598 = vld [vmem:[%s480 + $0x1d0] sm:$0xf]
                  %599 = vst [vmem:[%s481 + $0xe8] sm:$0xf] %v598
                  %v600 = vld [vmem:[%s480 + $0x1d8] sm:$0xf]
                  %601 = vst [vmem:[%s481 + $0xec] sm:$0xf] %v600
                  %v602 = vld [vmem:[%s480 + $0x1e0] sm:$0xf]
                  %603 = vst [vmem:[%s481 + $0xf0] sm:$0xf] %v602
                  %v604 = vld [vmem:[%s480 + $0x1e8] sm:$0xf]
                  %605 = vst [vmem:[%s481 + $0xf4] sm:$0xf] %v604
                  %v606 = vld [vmem:[%s480 + $0x1f0] sm:$0xf]
                  %607 = vst [vmem:[%s481 + $0xf8] sm:$0xf] %v606
                  %v608 = vld [vmem:[%s480 + $0x1f8] sm:$0xf]
                  %609 = vst [vmem:[%s481 + $0xfc] sm:$0xf] %v608
                  %v610 = vld [vmem:[%s480 + $0x200] sm:$0xf]
                  %611 = vst [vmem:[%s481 + $0x100] sm:$0xf] %v610
                  %v612 = vld [vmem:[%s480 + $0x208] sm:$0xf]
                  %613 = vst [vmem:[%s481 + $0x104] sm:$0xf] %v612
                  %v614 = vld [vmem:[%s480 + $0x210] sm:$0xf]
                  %615 = vst [vmem:[%s481 + $0x108] sm:$0xf] %v614
                  %v616 = vld [vmem:[%s480 + $0x218] sm:$0xf]
                  %617 = vst [vmem:[%s481 + $0x10c] sm:$0xf] %v616
                  %v618 = vld [vmem:[%s480 + $0x220] sm:$0xf]
                  %619 = vst [vmem:[%s481 + $0x110] sm:$0xf] %v618
                  %v620 = vld [vmem:[%s480 + $0x228] sm:$0xf]
                  %621 = vst [vmem:[%s481 + $0x114] sm:$0xf] %v620
                  %v622 = vld [vmem:[%s480 + $0x230] sm:$0xf]
                  %623 = vst [vmem:[%s481 + $0x118] sm:$0xf] %v622
                  %v624 = vld [vmem:[%s480 + $0x238] sm:$0xf]
                  %625 = vst [vmem:[%s481 + $0x11c] sm:$0xf] %v624
                  %v626 = vld [vmem:[%s480 + $0x240] sm:$0xf]
                  %627 = vst [vmem:[%s481 + $0x120] sm:$0xf] %v626
                  %v628 = vld [vmem:[%s480 + $0x248] sm:$0xf]
                  %629 = vst [vmem:[%s481 + $0x124] sm:$0xf] %v628
                  %v630 = vld [vmem:[%s480 + $0x250] sm:$0xf]
                  %631 = vst [vmem:[%s481 + $0x128] sm:$0xf] %v630
                  %v632 = vld [vmem:[%s480 + $0x258] sm:$0xf]
                  %633 = vst [vmem:[%s481 + $0x12c] sm:$0xf] %v632
                  %v634 = vld [vmem:[%s480 + $0x260] sm:$0xf]
                  %635 = vst [vmem:[%s481 + $0x130] sm:$0xf] %v634
                  %v636 = vld [vmem:[%s480 + $0x268] sm:$0xf]
                  %637 = vst [vmem:[%s481 + $0x134] sm:$0xf] %v636
                  %v638 = vld [vmem:[%s480 + $0x270] sm:$0xf]
                  %639 = vst [vmem:[%s481 + $0x138] sm:$0xf] %v638
                  %v640 = vld [vmem:[%s480 + $0x278] sm:$0xf]
                  %641 = vst [vmem:[%s481 + $0x13c] sm:$0xf] %v640
                  %v642 = vld [vmem:[%s480 + $0x280] sm:$0xf]
                  %643 = vst [vmem:[%s481 + $0x140] sm:$0xf] %v642
                  %v644 = vld [vmem:[%s480 + $0x288] sm:$0xf]
                  %645 = vst [vmem:[%s481 + $0x144] sm:$0xf] %v644
                  %v646 = vld [vmem:[%s480 + $0x290] sm:$0xf]
                  %647 = vst [vmem:[%s481 + $0x148] sm:$0xf] %v646
                  %v648 = vld [vmem:[%s480 + $0x298] sm:$0xf]
                  %649 = vst [vmem:[%s481 + $0x14c] sm:$0xf] %v648
                  %v650 = vld [vmem:[%s480 + $0x2a0] sm:$0xf]
                  %651 = vst [vmem:[%s481 + $0x150] sm:$0xf] %v650
                  %v652 = vld [vmem:[%s480 + $0x2a8] sm:$0xf]
                  %653 = vst [vmem:[%s481 + $0x154] sm:$0xf] %v652
                  %v654 = vld [vmem:[%s480 + $0x2b0] sm:$0xf]
                  %655 = vst [vmem:[%s481 + $0x158] sm:$0xf] %v654
                  %v656 = vld [vmem:[%s480 + $0x2b8] sm:$0xf]
                  %657 = vst [vmem:[%s481 + $0x15c] sm:$0xf] %v656
                  %v658 = vld [vmem:[%s480 + $0x2c0] sm:$0xf]
                  %659 = vst [vmem:[%s481 + $0x160] sm:$0xf] %v658
                  %v660 = vld [vmem:[%s480 + $0x2c8] sm:$0xf]
                  %661 = vst [vmem:[%s481 + $0x164] sm:$0xf] %v660
                  %v662 = vld [vmem:[%s480 + $0x2d0] sm:$0xf]
                  %663 = vst [vmem:[%s481 + $0x168] sm:$0xf] %v662
                  %v664 = vld [vmem:[%s480 + $0x2d8] sm:$0xf]
                  %665 = vst [vmem:[%s481 + $0x16c] sm:$0xf] %v664
                  %v666 = vld [vmem:[%s480 + $0x2e0] sm:$0xf]
                  %667 = vst [vmem:[%s481 + $0x170] sm:$0xf] %v666
                  %v668 = vld [vmem:[%s480 + $0x2e8] sm:$0xf]
                  %669 = vst [vmem:[%s481 + $0x174] sm:$0xf] %v668
                  %v670 = vld [vmem:[%s480 + $0x2f0] sm:$0xf]
                  %671 = vst [vmem:[%s481 + $0x178] sm:$0xf] %v670
                  %v672 = vld [vmem:[%s480 + $0x2f8] sm:$0xf]
                  %673 = vst [vmem:[%s481 + $0x17c] sm:$0xf] %v672
                  %v674 = vld [vmem:[%s480 + $0x300] sm:$0xf]
                  %675 = vst [vmem:[%s481 + $0x180] sm:$0xf] %v674
                  %v676 = vld [vmem:[%s480 + $0x308] sm:$0xf]
                  %677 = vst [vmem:[%s481 + $0x184] sm:$0xf] %v676
                  %v678 = vld [vmem:[%s480 + $0x310] sm:$0xf]
                  %679 = vst [vmem:[%s481 + $0x188] sm:$0xf] %v678
                  %v680 = vld [vmem:[%s480 + $0x318] sm:$0xf]
                  %681 = vst [vmem:[%s481 + $0x18c] sm:$0xf] %v680
                  %v682 = vld [vmem:[%s480 + $0x320] sm:$0xf]
                  %683 = vst [vmem:[%s481 + $0x190] sm:$0xf] %v682
                  %v684 = vld [vmem:[%s480 + $0x328] sm:$0xf]
                  %685 = vst [vmem:[%s481 + $0x194] sm:$0xf] %v684
                  %v686 = vld [vmem:[%s480 + $0x330] sm:$0xf]
                  %687 = vst [vmem:[%s481 + $0x198] sm:$0xf] %v686
                  %v688 = vld [vmem:[%s480 + $0x338] sm:$0xf]
                  %689 = vst [vmem:[%s481 + $0x19c] sm:$0xf] %v688
                  %v690 = vld [vmem:[%s480 + $0x340] sm:$0xf]
                  %691 = vst [vmem:[%s481 + $0x1a0] sm:$0xf] %v690
                  %v692 = vld [vmem:[%s480 + $0x348] sm:$0xf]
                  %693 = vst [vmem:[%s481 + $0x1a4] sm:$0xf] %v692
                  %v694 = vld [vmem:[%s480 + $0x350] sm:$0xf]
                  %695 = vst [vmem:[%s481 + $0x1a8] sm:$0xf] %v694
                  %v696 = vld [vmem:[%s480 + $0x358] sm:$0xf]
                  %697 = vst [vmem:[%s481 + $0x1ac] sm:$0xf] %v696
                  %v698 = vld [vmem:[%s480 + $0x360] sm:$0xf]
                  %699 = vst [vmem:[%s481 + $0x1b0] sm:$0xf] %v698
                  %v700 = vld [vmem:[%s480 + $0x368] sm:$0xf]
                  %701 = vst [vmem:[%s481 + $0x1b4] sm:$0xf] %v700
                  %v702 = vld [vmem:[%s480 + $0x370] sm:$0xf]
                  %703 = vst [vmem:[%s481 + $0x1b8] sm:$0xf] %v702
                  %v704 = vld [vmem:[%s480 + $0x378] sm:$0xf]
                  %705 = vst [vmem:[%s481 + $0x1bc] sm:$0xf] %v704
                  %v706 = vld [vmem:[%s480 + $0x380] sm:$0xf]
                  %707 = vst [vmem:[%s481 + $0x1c0] sm:$0xf] %v706
                  %v708 = vld [vmem:[%s480 + $0x388] sm:$0xf]
                  %709 = vst [vmem:[%s481 + $0x1c4] sm:$0xf] %v708
                  %v710 = vld [vmem:[%s480 + $0x390] sm:$0xf]
                  %711 = vst [vmem:[%s481 + $0x1c8] sm:$0xf] %v710
                  %v712 = vld [vmem:[%s480 + $0x398] sm:$0xf]
                  %713 = vst [vmem:[%s481 + $0x1cc] sm:$0xf] %v712
                  %v714 = vld [vmem:[%s480 + $0x3a0] sm:$0xf]
                  %715 = vst [vmem:[%s481 + $0x1d0] sm:$0xf] %v714
                  %v716 = vld [vmem:[%s480 + $0x3a8] sm:$0xf]
                  %717 = vst [vmem:[%s481 + $0x1d4] sm:$0xf] %v716
                  %v718 = vld [vmem:[%s480 + $0x3b0] sm:$0xf]
                  %719 = vst [vmem:[%s481 + $0x1d8] sm:$0xf] %v718
                  %v720 = vld [vmem:[%s480 + $0x3b8] sm:$0xf]
                  %721 = vst [vmem:[%s481 + $0x1dc] sm:$0xf] %v720
                  %v722 = vld [vmem:[%s480 + $0x3c0] sm:$0xf]
                  %723 = vst [vmem:[%s481 + $0x1e0] sm:$0xf] %v722
                  %v724 = vld [vmem:[%s480 + $0x3c8] sm:$0xf]
                  %725 = vst [vmem:[%s481 + $0x1e4] sm:$0xf] %v724
                  %v726 = vld [vmem:[%s480 + $0x3d0] sm:$0xf]
                  %727 = vst [vmem:[%s481 + $0x1e8] sm:$0xf] %v726
                  %v728 = vld [vmem:[%s480 + $0x3d8] sm:$0xf]
                  %729 = vst [vmem:[%s481 + $0x1ec] sm:$0xf] %v728
                  %v730 = vld [vmem:[%s480 + $0x3e0] sm:$0xf]
                  %731 = vst [vmem:[%s481 + $0x1f0] sm:$0xf] %v730
                  %v732 = vld [vmem:[%s480 + $0x3e8] sm:$0xf]
                  %733 = vst [vmem:[%s481 + $0x1f4] sm:$0xf] %v732
                  %v734 = vld [vmem:[%s480 + $0x3f0] sm:$0xf]
                  %735 = vst [vmem:[%s481 + $0x1f8] sm:$0xf] %v734
                  %v736 = vld [vmem:[%s480 + $0x3f8] sm:$0xf]
                  %737 = vst [vmem:[%s481 + $0x1fc] sm:$0xf] %v736
                $region63: #{embedding_net_forward.6} parent=50 // loop_footer
                  %s479 = sadd.s32 1, %s475
                $region64: #{embedding_net_forward.6} parent=50 // loop_footer_branch
                  %474 = sbr.rel target = $region60
                $region65: #{embedding_net_forward.6} parent=50 // loop_exit
                  _
              $region51: #{embedding_net_forward.6} parent=35 // pred_fallthru
                _
            $region36: #{embedding_net_forward.6} parent=31 // pred_fallthru
              _
            // Predicated region
            $region37: #{embedding_net_forward.6} parent=31 // pred_check
              _
            $region38: #{embedding_net_forward.6} parent=31 // pred_check_branch
              %197 = sbr.rel (0) target = $region40
            $region39: #{embedding_net_forward.6} parent=31 // pred_region
              loop: start=0, step=1, limit=1
              $region41: #{embedding_net_forward.6} parent=39 // loop_pre_header
                _
              $region42: #{embedding_net_forward.6} parent=39 // loop_header
                %s200 = sphi 0, %s204
                %p201 = scmp.ge.s32.totalorder %s200, 1
                %s205 = sphi %s191, %s191
                %s206 = sphi %s186, %s186
              $region43: #{embedding_net_forward.6} parent=39 // loop_header_branch
                %203 = sbr.rel (%p201) target = $region47
              $region44: #{embedding_net_forward.6} parent=39 // loop_body
                %v207 = vld [vmem:[%s205] sm:$0xf]
                %208 = vst [vmem:[%s206] sm:$0xf] %v207
                %v209 = vld [vmem:[%s205 + $0x8] sm:$0xf]
                %210 = vst [vmem:[%s206 + $0x4] sm:$0xf] %v209
                %v211 = vld [vmem:[%s205 + $0x10] sm:$0xf]
                %212 = vst [vmem:[%s206 + $0x8] sm:$0xf] %v211
                %v213 = vld [vmem:[%s205 + $0x18] sm:$0xf]
                %214 = vst [vmem:[%s206 + $0xc] sm:$0xf] %v213
                %v215 = vld [vmem:[%s205 + $0x20] sm:$0xf]
                %216 = vst [vmem:[%s206 + $0x10] sm:$0xf] %v215
                %v217 = vld [vmem:[%s205 + $0x28] sm:$0xf]
                %218 = vst [vmem:[%s206 + $0x14] sm:$0xf] %v217
                %v219 = vld [vmem:[%s205 + $0x30] sm:$0xf]
                %220 = vst [vmem:[%s206 + $0x18] sm:$0xf] %v219
                %v221 = vld [vmem:[%s205 + $0x38] sm:$0xf]
                %222 = vst [vmem:[%s206 + $0x1c] sm:$0xf] %v221
                %v223 = vld [vmem:[%s205 + $0x40] sm:$0xf]
                %224 = vst [vmem:[%s206 + $0x20] sm:$0xf] %v223
                %v225 = vld [vmem:[%s205 + $0x48] sm:$0xf]
                %226 = vst [vmem:[%s206 + $0x24] sm:$0xf] %v225
                %v227 = vld [vmem:[%s205 + $0x50] sm:$0xf]
                %228 = vst [vmem:[%s206 + $0x28] sm:$0xf] %v227
                %v229 = vld [vmem:[%s205 + $0x58] sm:$0xf]
                %230 = vst [vmem:[%s206 + $0x2c] sm:$0xf] %v229
                %v231 = vld [vmem:[%s205 + $0x60] sm:$0xf]
                %232 = vst [vmem:[%s206 + $0x30] sm:$0xf] %v231
                %v233 = vld [vmem:[%s205 + $0x68] sm:$0xf]
                %234 = vst [vmem:[%s206 + $0x34] sm:$0xf] %v233
                %v235 = vld [vmem:[%s205 + $0x70] sm:$0xf]
                %236 = vst [vmem:[%s206 + $0x38] sm:$0xf] %v235
                %v237 = vld [vmem:[%s205 + $0x78] sm:$0xf]
                %238 = vst [vmem:[%s206 + $0x3c] sm:$0xf] %v237
                %v239 = vld [vmem:[%s205 + $0x80] sm:$0xf]
                %240 = vst [vmem:[%s206 + $0x40] sm:$0xf] %v239
                %v241 = vld [vmem:[%s205 + $0x88] sm:$0xf]
                %242 = vst [vmem:[%s206 + $0x44] sm:$0xf] %v241
                %v243 = vld [vmem:[%s205 + $0x90] sm:$0xf]
                %244 = vst [vmem:[%s206 + $0x48] sm:$0xf] %v243
                %v245 = vld [vmem:[%s205 + $0x98] sm:$0xf]
                %246 = vst [vmem:[%s206 + $0x4c] sm:$0xf] %v245
                %v247 = vld [vmem:[%s205 + $0xa0] sm:$0xf]
                %248 = vst [vmem:[%s206 + $0x50] sm:$0xf] %v247
                %v249 = vld [vmem:[%s205 + $0xa8] sm:$0xf]
                %250 = vst [vmem:[%s206 + $0x54] sm:$0xf] %v249
                %v251 = vld [vmem:[%s205 + $0xb0] sm:$0xf]
                %252 = vst [vmem:[%s206 + $0x58] sm:$0xf] %v251
                %v253 = vld [vmem:[%s205 + $0xb8] sm:$0xf]
                %254 = vst [vmem:[%s206 + $0x5c] sm:$0xf] %v253
                %v255 = vld [vmem:[%s205 + $0xc0] sm:$0xf]
                %256 = vst [vmem:[%s206 + $0x60] sm:$0xf] %v255
                %v257 = vld [vmem:[%s205 + $0xc8] sm:$0xf]
                %258 = vst [vmem:[%s206 + $0x64] sm:$0xf] %v257
                %v259 = vld [vmem:[%s205 + $0xd0] sm:$0xf]
                %260 = vst [vmem:[%s206 + $0x68] sm:$0xf] %v259
                %v261 = vld [vmem:[%s205 + $0xd8] sm:$0xf]
                %262 = vst [vmem:[%s206 + $0x6c] sm:$0xf] %v261
                %v263 = vld [vmem:[%s205 + $0xe0] sm:$0xf]
                %264 = vst [vmem:[%s206 + $0x70] sm:$0xf] %v263
                %v265 = vld [vmem:[%s205 + $0xe8] sm:$0xf]
                %266 = vst [vmem:[%s206 + $0x74] sm:$0xf] %v265
                %v267 = vld [vmem:[%s205 + $0xf0] sm:$0xf]
                %268 = vst [vmem:[%s206 + $0x78] sm:$0xf] %v267
                %v269 = vld [vmem:[%s205 + $0xf8] sm:$0xf]
                %270 = vst [vmem:[%s206 + $0x7c] sm:$0xf] %v269
                %v271 = vld [vmem:[%s205 + $0x100] sm:$0xf]
                %272 = vst [vmem:[%s206 + $0x80] sm:$0xf] %v271
                %v273 = vld [vmem:[%s205 + $0x108] sm:$0xf]
                %274 = vst [vmem:[%s206 + $0x84] sm:$0xf] %v273
                %v275 = vld [vmem:[%s205 + $0x110] sm:$0xf]
                %276 = vst [vmem:[%s206 + $0x88] sm:$0xf] %v275
                %v277 = vld [vmem:[%s205 + $0x118] sm:$0xf]
                %278 = vst [vmem:[%s206 + $0x8c] sm:$0xf] %v277
                %v279 = vld [vmem:[%s205 + $0x120] sm:$0xf]
                %280 = vst [vmem:[%s206 + $0x90] sm:$0xf] %v279
                %v281 = vld [vmem:[%s205 + $0x128] sm:$0xf]
                %282 = vst [vmem:[%s206 + $0x94] sm:$0xf] %v281
                %v283 = vld [vmem:[%s205 + $0x130] sm:$0xf]
                %284 = vst [vmem:[%s206 + $0x98] sm:$0xf] %v283
                %v285 = vld [vmem:[%s205 + $0x138] sm:$0xf]
                %286 = vst [vmem:[%s206 + $0x9c] sm:$0xf] %v285
                %v287 = vld [vmem:[%s205 + $0x140] sm:$0xf]
                %288 = vst [vmem:[%s206 + $0xa0] sm:$0xf] %v287
                %v289 = vld [vmem:[%s205 + $0x148] sm:$0xf]
                %290 = vst [vmem:[%s206 + $0xa4] sm:$0xf] %v289
                %v291 = vld [vmem:[%s205 + $0x150] sm:$0xf]
                %292 = vst [vmem:[%s206 + $0xa8] sm:$0xf] %v291
                %v293 = vld [vmem:[%s205 + $0x158] sm:$0xf]
                %294 = vst [vmem:[%s206 + $0xac] sm:$0xf] %v293
                %v295 = vld [vmem:[%s205 + $0x160] sm:$0xf]
                %296 = vst [vmem:[%s206 + $0xb0] sm:$0xf] %v295
                %v297 = vld [vmem:[%s205 + $0x168] sm:$0xf]
                %298 = vst [vmem:[%s206 + $0xb4] sm:$0xf] %v297
                %v299 = vld [vmem:[%s205 + $0x170] sm:$0xf]
                %300 = vst [vmem:[%s206 + $0xb8] sm:$0xf] %v299
                %v301 = vld [vmem:[%s205 + $0x178] sm:$0xf]
                %302 = vst [vmem:[%s206 + $0xbc] sm:$0xf] %v301
                %v303 = vld [vmem:[%s205 + $0x180] sm:$0xf]
                %304 = vst [vmem:[%s206 + $0xc0] sm:$0xf] %v303
                %v305 = vld [vmem:[%s205 + $0x188] sm:$0xf]
                %306 = vst [vmem:[%s206 + $0xc4] sm:$0xf] %v305
                %v307 = vld [vmem:[%s205 + $0x190] sm:$0xf]
                %308 = vst [vmem:[%s206 + $0xc8] sm:$0xf] %v307
                %v309 = vld [vmem:[%s205 + $0x198] sm:$0xf]
                %310 = vst [vmem:[%s206 + $0xcc] sm:$0xf] %v309
                %v311 = vld [vmem:[%s205 + $0x1a0] sm:$0xf]
                %312 = vst [vmem:[%s206 + $0xd0] sm:$0xf] %v311
                %v313 = vld [vmem:[%s205 + $0x1a8] sm:$0xf]
                %314 = vst [vmem:[%s206 + $0xd4] sm:$0xf] %v313
                %v315 = vld [vmem:[%s205 + $0x1b0] sm:$0xf]
                %316 = vst [vmem:[%s206 + $0xd8] sm:$0xf] %v315
                %v317 = vld [vmem:[%s205 + $0x1b8] sm:$0xf]
                %318 = vst [vmem:[%s206 + $0xdc] sm:$0xf] %v317
                %v319 = vld [vmem:[%s205 + $0x1c0] sm:$0xf]
                %320 = vst [vmem:[%s206 + $0xe0] sm:$0xf] %v319
                %v321 = vld [vmem:[%s205 + $0x1c8] sm:$0xf]
                %322 = vst [vmem:[%s206 + $0xe4] sm:$0xf] %v321
                %v323 = vld [vmem:[%s205 + $0x1d0] sm:$0xf]
                %324 = vst [vmem:[%s206 + $0xe8] sm:$0xf] %v323
                %v325 = vld [vmem:[%s205 + $0x1d8] sm:$0xf]
                %326 = vst [vmem:[%s206 + $0xec] sm:$0xf] %v325
                %v327 = vld [vmem:[%s205 + $0x1e0] sm:$0xf]
                %328 = vst [vmem:[%s206 + $0xf0] sm:$0xf] %v327
                %v329 = vld [vmem:[%s205 + $0x1e8] sm:$0xf]
                %330 = vst [vmem:[%s206 + $0xf4] sm:$0xf] %v329
                %v331 = vld [vmem:[%s205 + $0x1f0] sm:$0xf]
                %332 = vst [vmem:[%s206 + $0xf8] sm:$0xf] %v331
                %v333 = vld [vmem:[%s205 + $0x1f8] sm:$0xf]
                %334 = vst [vmem:[%s206 + $0xfc] sm:$0xf] %v333
                %v335 = vld [vmem:[%s205 + $0x200] sm:$0xf]
                %336 = vst [vmem:[%s206 + $0x100] sm:$0xf] %v335
                %v337 = vld [vmem:[%s205 + $0x208] sm:$0xf]
                %338 = vst [vmem:[%s206 + $0x104] sm:$0xf] %v337
                %v339 = vld [vmem:[%s205 + $0x210] sm:$0xf]
                %340 = vst [vmem:[%s206 + $0x108] sm:$0xf] %v339
                %v341 = vld [vmem:[%s205 + $0x218] sm:$0xf]
                %342 = vst [vmem:[%s206 + $0x10c] sm:$0xf] %v341
                %v343 = vld [vmem:[%s205 + $0x220] sm:$0xf]
                %344 = vst [vmem:[%s206 + $0x110] sm:$0xf] %v343
                %v345 = vld [vmem:[%s205 + $0x228] sm:$0xf]
                %346 = vst [vmem:[%s206 + $0x114] sm:$0xf] %v345
                %v347 = vld [vmem:[%s205 + $0x230] sm:$0xf]
                %348 = vst [vmem:[%s206 + $0x118] sm:$0xf] %v347
                %v349 = vld [vmem:[%s205 + $0x238] sm:$0xf]
                %350 = vst [vmem:[%s206 + $0x11c] sm:$0xf] %v349
                %v351 = vld [vmem:[%s205 + $0x240] sm:$0xf]
                %352 = vst [vmem:[%s206 + $0x120] sm:$0xf] %v351
                %v353 = vld [vmem:[%s205 + $0x248] sm:$0xf]
                %354 = vst [vmem:[%s206 + $0x124] sm:$0xf] %v353
                %v355 = vld [vmem:[%s205 + $0x250] sm:$0xf]
                %356 = vst [vmem:[%s206 + $0x128] sm:$0xf] %v355
                %v357 = vld [vmem:[%s205 + $0x258] sm:$0xf]
                %358 = vst [vmem:[%s206 + $0x12c] sm:$0xf] %v357
                %v359 = vld [vmem:[%s205 + $0x260] sm:$0xf]
                %360 = vst [vmem:[%s206 + $0x130] sm:$0xf] %v359
                %v361 = vld [vmem:[%s205 + $0x268] sm:$0xf]
                %362 = vst [vmem:[%s206 + $0x134] sm:$0xf] %v361
                %v363 = vld [vmem:[%s205 + $0x270] sm:$0xf]
                %364 = vst [vmem:[%s206 + $0x138] sm:$0xf] %v363
                %v365 = vld [vmem:[%s205 + $0x278] sm:$0xf]
                %366 = vst [vmem:[%s206 + $0x13c] sm:$0xf] %v365
                %v367 = vld [vmem:[%s205 + $0x280] sm:$0xf]
                %368 = vst [vmem:[%s206 + $0x140] sm:$0xf] %v367
                %v369 = vld [vmem:[%s205 + $0x288] sm:$0xf]
                %370 = vst [vmem:[%s206 + $0x144] sm:$0xf] %v369
                %v371 = vld [vmem:[%s205 + $0x290] sm:$0xf]
                %372 = vst [vmem:[%s206 + $0x148] sm:$0xf] %v371
                %v373 = vld [vmem:[%s205 + $0x298] sm:$0xf]
                %374 = vst [vmem:[%s206 + $0x14c] sm:$0xf] %v373
                %v375 = vld [vmem:[%s205 + $0x2a0] sm:$0xf]
                %376 = vst [vmem:[%s206 + $0x150] sm:$0xf] %v375
                %v377 = vld [vmem:[%s205 + $0x2a8] sm:$0xf]
                %378 = vst [vmem:[%s206 + $0x154] sm:$0xf] %v377
                %v379 = vld [vmem:[%s205 + $0x2b0] sm:$0xf]
                %380 = vst [vmem:[%s206 + $0x158] sm:$0xf] %v379
                %v381 = vld [vmem:[%s205 + $0x2b8] sm:$0xf]
                %382 = vst [vmem:[%s206 + $0x15c] sm:$0xf] %v381
                %v383 = vld [vmem:[%s205 + $0x2c0] sm:$0xf]
                %384 = vst [vmem:[%s206 + $0x160] sm:$0xf] %v383
                %v385 = vld [vmem:[%s205 + $0x2c8] sm:$0xf]
                %386 = vst [vmem:[%s206 + $0x164] sm:$0xf] %v385
                %v387 = vld [vmem:[%s205 + $0x2d0] sm:$0xf]
                %388 = vst [vmem:[%s206 + $0x168] sm:$0xf] %v387
                %v389 = vld [vmem:[%s205 + $0x2d8] sm:$0xf]
                %390 = vst [vmem:[%s206 + $0x16c] sm:$0xf] %v389
                %v391 = vld [vmem:[%s205 + $0x2e0] sm:$0xf]
                %392 = vst [vmem:[%s206 + $0x170] sm:$0xf] %v391
                %v393 = vld [vmem:[%s205 + $0x2e8] sm:$0xf]
                %394 = vst [vmem:[%s206 + $0x174] sm:$0xf] %v393
                %v395 = vld [vmem:[%s205 + $0x2f0] sm:$0xf]
                %396 = vst [vmem:[%s206 + $0x178] sm:$0xf] %v395
                %v397 = vld [vmem:[%s205 + $0x2f8] sm:$0xf]
                %398 = vst [vmem:[%s206 + $0x17c] sm:$0xf] %v397
                %v399 = vld [vmem:[%s205 + $0x300] sm:$0xf]
                %400 = vst [vmem:[%s206 + $0x180] sm:$0xf] %v399
                %v401 = vld [vmem:[%s205 + $0x308] sm:$0xf]
                %402 = vst [vmem:[%s206 + $0x184] sm:$0xf] %v401
                %v403 = vld [vmem:[%s205 + $0x310] sm:$0xf]
                %404 = vst [vmem:[%s206 + $0x188] sm:$0xf] %v403
                %v405 = vld [vmem:[%s205 + $0x318] sm:$0xf]
                %406 = vst [vmem:[%s206 + $0x18c] sm:$0xf] %v405
                %v407 = vld [vmem:[%s205 + $0x320] sm:$0xf]
                %408 = vst [vmem:[%s206 + $0x190] sm:$0xf] %v407
                %v409 = vld [vmem:[%s205 + $0x328] sm:$0xf]
                %410 = vst [vmem:[%s206 + $0x194] sm:$0xf] %v409
                %v411 = vld [vmem:[%s205 + $0x330] sm:$0xf]
                %412 = vst [vmem:[%s206 + $0x198] sm:$0xf] %v411
                %v413 = vld [vmem:[%s205 + $0x338] sm:$0xf]
                %414 = vst [vmem:[%s206 + $0x19c] sm:$0xf] %v413
                %v415 = vld [vmem:[%s205 + $0x340] sm:$0xf]
                %416 = vst [vmem:[%s206 + $0x1a0] sm:$0xf] %v415
                %v417 = vld [vmem:[%s205 + $0x348] sm:$0xf]
                %418 = vst [vmem:[%s206 + $0x1a4] sm:$0xf] %v417
                %v419 = vld [vmem:[%s205 + $0x350] sm:$0xf]
                %420 = vst [vmem:[%s206 + $0x1a8] sm:$0xf] %v419
                %v421 = vld [vmem:[%s205 + $0x358] sm:$0xf]
                %422 = vst [vmem:[%s206 + $0x1ac] sm:$0xf] %v421
                %v423 = vld [vmem:[%s205 + $0x360] sm:$0xf]
                %424 = vst [vmem:[%s206 + $0x1b0] sm:$0xf] %v423
                %v425 = vld [vmem:[%s205 + $0x368] sm:$0xf]
                %426 = vst [vmem:[%s206 + $0x1b4] sm:$0xf] %v425
                %v427 = vld [vmem:[%s205 + $0x370] sm:$0xf]
                %428 = vst [vmem:[%s206 + $0x1b8] sm:$0xf] %v427
                %v429 = vld [vmem:[%s205 + $0x378] sm:$0xf]
                %430 = vst [vmem:[%s206 + $0x1bc] sm:$0xf] %v429
                %v431 = vld [vmem:[%s205 + $0x380] sm:$0xf]
                %432 = vst [vmem:[%s206 + $0x1c0] sm:$0xf] %v431
                %v433 = vld [vmem:[%s205 + $0x388] sm:$0xf]
                %434 = vst [vmem:[%s206 + $0x1c4] sm:$0xf] %v433
                %v435 = vld [vmem:[%s205 + $0x390] sm:$0xf]
                %436 = vst [vmem:[%s206 + $0x1c8] sm:$0xf] %v435
                %v437 = vld [vmem:[%s205 + $0x398] sm:$0xf]
                %438 = vst [vmem:[%s206 + $0x1cc] sm:$0xf] %v437
                %v439 = vld [vmem:[%s205 + $0x3a0] sm:$0xf]
                %440 = vst [vmem:[%s206 + $0x1d0] sm:$0xf] %v439
                %v441 = vld [vmem:[%s205 + $0x3a8] sm:$0xf]
                %442 = vst [vmem:[%s206 + $0x1d4] sm:$0xf] %v441
                %v443 = vld [vmem:[%s205 + $0x3b0] sm:$0xf]
                %444 = vst [vmem:[%s206 + $0x1d8] sm:$0xf] %v443
                %v445 = vld [vmem:[%s205 + $0x3b8] sm:$0xf]
                %446 = vst [vmem:[%s206 + $0x1dc] sm:$0xf] %v445
                %v447 = vld [vmem:[%s205 + $0x3c0] sm:$0xf]
                %448 = vst [vmem:[%s206 + $0x1e0] sm:$0xf] %v447
                %v449 = vld [vmem:[%s205 + $0x3c8] sm:$0xf]
                %450 = vst [vmem:[%s206 + $0x1e4] sm:$0xf] %v449
                %v451 = vld [vmem:[%s205 + $0x3d0] sm:$0xf]
                %452 = vst [vmem:[%s206 + $0x1e8] sm:$0xf] %v451
                %v453 = vld [vmem:[%s205 + $0x3d8] sm:$0xf]
                %454 = vst [vmem:[%s206 + $0x1ec] sm:$0xf] %v453
                %v455 = vld [vmem:[%s205 + $0x3e0] sm:$0xf]
                %456 = vst [vmem:[%s206 + $0x1f0] sm:$0xf] %v455
                %v457 = vld [vmem:[%s205 + $0x3e8] sm:$0xf]
                %458 = vst [vmem:[%s206 + $0x1f4] sm:$0xf] %v457
                %v459 = vld [vmem:[%s205 + $0x3f0] sm:$0xf]
                %460 = vst [vmem:[%s206 + $0x1f8] sm:$0xf] %v459
                %v461 = vld [vmem:[%s205 + $0x3f8] sm:$0xf]
                %462 = vst [vmem:[%s206 + $0x1fc] sm:$0xf] %v461
              $region45: #{embedding_net_forward.6} parent=39 // loop_footer
                %s204 = sadd.s32 1, %s200
              $region46: #{embedding_net_forward.6} parent=39 // loop_footer_branch
                %199 = sbr.rel target = $region42
              $region47: #{embedding_net_forward.6} parent=39 // loop_exit
                _
            $region40: #{embedding_net_forward.6} parent=31 // pred_fallthru
              _
          $region32: #{embedding_net_forward.6} parent=27 // pred_fallthru
            _
          %738 = vnop
        $region28: #{embedding_net_forward.6} parent=23 // pred_fallthru
          _
        // Predicated region
        $region66: #{embedding_net_forward.6} parent=23 // pred_check
          %p739 = pneg %p97
        $region67: #{embedding_net_forward.6} parent=23 // pred_check_branch
          %741 = sbr.rel (%p739) target = $region69
        $region68: #{embedding_net_forward.6} parent=23 // pred_region
          %p742 = scmp.lt.s32.totalorder %s18, 1
          %s743 = scalar_select %p742, %s18, 1
          %s744 = scalar_lea.vmem %s2, %s743
        $region69: #{embedding_net_forward.6} parent=23 // pred_fallthru
          _
      $region24: #{embedding_net_forward.6} parent=5 // pred_fallthru
        _
      %p745 = scmp.le.s32.totalorder 1, %s11
      %p746 = scmp.lt.s32.totalorder %s11, 3
      %p747 = pnand %p745, %p746
      %p748 = pneg %p747
      // Predicated region
      $region70: #{embedding_net_forward.6} parent=5 // pred_check
        _
      $region71: #{embedding_net_forward.6} parent=5 // pred_check_branch
        %750 = sbr.rel (%p747) target = $region73
      $region72: #{embedding_net_forward.6} parent=5 // pred_region
        %s751 = ssub.s32 %s11, 1
        %s752 = sand.u32 %s64, 1
        %s753 = sand.u32 %s64, 1
        %s754 = smul.addr %s753, 512
        %s755 = scalar_lea.vmem [#allocation4], %s754
        // Predicated region
        $region74: #{embedding_net_forward.6} parent=72 // pred_check
          %p756 = pneg %p77
        $region75: #{embedding_net_forward.6} parent=72 // pred_check_branch
          %758 = sbr.rel (%p756) target = $region77
        $region76: #{embedding_net_forward.6} parent=72 // pred_region
          _
        $region77: #{embedding_net_forward.6} parent=72 // pred_fallthru
          _
        %s759 = smul.u32 8, %s21
        %p760 = scmp.lt.s32.totalorder %s759, 7
        %s761 = scalar_select %p760, %s759, 7
        %s762 = scalar_lea.vmem %s0, %s761
        %p763 = pneg %p49
        %p764 = pneg %p46
        %s765 = sand.u32 %s64, 1
        %s766 = sand.u32 %s64, 1
        %s767 = smul.addr %s766, 512
        %s768 = scalar_lea.vmem [#allocation4], %s767
        %p769 = pneg %p77
        %p770 = pneg %p74
        %p771 = scmp.lt.s32.totalorder %s20, 1
        %s772 = scalar_select %p771, %s20, 1
        %s773 = scalar_lea.vmem %s2, %s772
        %p774 = pneg %p103
        %p775 = pneg %p100
        %p776 = pneg %p124
        %p777 = pneg %p121
        %p778 = pneg %p150
        %p779 = pneg %p147
        %p780 = scmp.lt.s32.totalorder %s20, 1
        %s781 = scalar_select %p780, %s20, 1
        %s782 = scalar_lea.vmem %s4, %s781
        %s783 = smul.u32 8, %s21
        %p784 = scmp.lt.s32.totalorder %s783, 7
        %s785 = scalar_select %p784, %s783, 7
        %s786 = scalar_lea.vmem %s0, %s785
        %s787 = smul.u32 8, %s21
        %s788 = smul.u32 128, %s21
        %p789 = scmp.lt.s32.totalorder %s20, 1
        %s790 = scalar_select %p789, %s20, 1
        %s791 = scalar_lea.vmem %s2, %s790
        %p792 = scmp.lt.s32.totalorder %s20, 1
        %s793 = scalar_select %p792, %s20, 1
        %s794 = scalar_lea.vmem %s4, %s793
        %p796 = scmp.eq.s32.totalorder %s21, 0
        // Predicated region
        $region78: #{embedding_net_forward.6} parent=72 // pred_check
          %p797 = pneg %p796
        $region79: #{embedding_net_forward.6} parent=72 // pred_check_branch
          %799 = sbr.rel (%p797) target = $region81
        $region80: #{embedding_net_forward.6} parent=72 // pred_region
          %800 = vst [vmem:[#allocation2] sm:$0x3] 0.0
        $region81: #{embedding_net_forward.6} parent=72 // pred_fallthru
          _
        %v801 = vld [vmem:[#allocation2] sm:$0x3]
        %v802 = vld [vmem:[%s786] sm:$0xff]
        %v803 = vld [vmem:[%s755] sm:$0xf]
        %v804 = vld [vmem:[%s755 + $0x4] sm:$0xf]
        %v805 = vld [vmem:[%s755 + $0x8] sm:$0xf]
        %v806 = vld [vmem:[%s755 + $0xc] sm:$0xf]
        %v807 = vld [vmem:[%s755 + $0x10] sm:$0xf]
        %v808 = vld [vmem:[%s755 + $0x14] sm:$0xf]
        %v809 = vld [vmem:[%s755 + $0x18] sm:$0xf]
        %v810 = vld [vmem:[%s755 + $0x1c] sm:$0xf]
        %v811 = vld [vmem:[%s755 + $0x20] sm:$0xf]
        %v812 = vld [vmem:[%s755 + $0x24] sm:$0xf]
        %v813 = vld [vmem:[%s755 + $0x28] sm:$0xf]
        %v814 = vld [vmem:[%s755 + $0x2c] sm:$0xf]
        %v815 = vld [vmem:[%s755 + $0x30] sm:$0xf]
        %v816 = vld [vmem:[%s755 + $0x34] sm:$0xf]
        %v817 = vld [vmem:[%s755 + $0x38] sm:$0xf]
        %v818 = vld [vmem:[%s755 + $0x3c] sm:$0xf]
        %v819 = vld [vmem:[%s755 + $0x40] sm:$0xf]
        %v820 = vld [vmem:[%s755 + $0x44] sm:$0xf]
        %v821 = vld [vmem:[%s755 + $0x48] sm:$0xf]
        %v822 = vld [vmem:[%s755 + $0x4c] sm:$0xf]
        %v823 = vld [vmem:[%s755 + $0x50] sm:$0xf]
        %v824 = vld [vmem:[%s755 + $0x54] sm:$0xf]
        %v825 = vld [vmem:[%s755 + $0x58] sm:$0xf]
        %v826 = vld [vmem:[%s755 + $0x5c] sm:$0xf]
        %v827 = vld [vmem:[%s755 + $0x60] sm:$0xf]
        %v828 = vld [vmem:[%s755 + $0x64] sm:$0xf]
        %v829 = vld [vmem:[%s755 + $0x68] sm:$0xf]
        %v830 = vld [vmem:[%s755 + $0x6c] sm:$0xf]
        %v831 = vld [vmem:[%s755 + $0x70] sm:$0xf]
        %v832 = vld [vmem:[%s755 + $0x74] sm:$0xf]
        %v833 = vld [vmem:[%s755 + $0x78] sm:$0xf]
        %v834 = vld [vmem:[%s755 + $0x7c] sm:$0xf]
        %v835 = vld [vmem:[%s755 + $0x80] sm:$0xf]
        %v836 = vld [vmem:[%s755 + $0x84] sm:$0xf]
        %v837 = vld [vmem:[%s755 + $0x88] sm:$0xf]
        %v838 = vld [vmem:[%s755 + $0x8c] sm:$0xf]
        %v839 = vld [vmem:[%s755 + $0x90] sm:$0xf]
        %v840 = vld [vmem:[%s755 + $0x94] sm:$0xf]
        %v841 = vld [vmem:[%s755 + $0x98] sm:$0xf]
        %v842 = vld [vmem:[%s755 + $0x9c] sm:$0xf]
        %v843 = vld [vmem:[%s755 + $0xa0] sm:$0xf]
        %v844 = vld [vmem:[%s755 + $0xa4] sm:$0xf]
        %v845 = vld [vmem:[%s755 + $0xa8] sm:$0xf]
        %v846 = vld [vmem:[%s755 + $0xac] sm:$0xf]
        %v847 = vld [vmem:[%s755 + $0xb0] sm:$0xf]
        %v848 = vld [vmem:[%s755 + $0xb4] sm:$0xf]
        %v849 = vld [vmem:[%s755 + $0xb8] sm:$0xf]
        %v850 = vld [vmem:[%s755 + $0xbc] sm:$0xf]
        %v851 = vld [vmem:[%s755 + $0xc0] sm:$0xf]
        %v852 = vld [vmem:[%s755 + $0xc4] sm:$0xf]
        %v853 = vld [vmem:[%s755 + $0xc8] sm:$0xf]
        %v854 = vld [vmem:[%s755 + $0xcc] sm:$0xf]
        %v855 = vld [vmem:[%s755 + $0xd0] sm:$0xf]
        %v856 = vld [vmem:[%s755 + $0xd4] sm:$0xf]
        %v857 = vld [vmem:[%s755 + $0xd8] sm:$0xf]
        %v858 = vld [vmem:[%s755 + $0xdc] sm:$0xf]
        %v859 = vld [vmem:[%s755 + $0xe0] sm:$0xf]
        %v860 = vld [vmem:[%s755 + $0xe4] sm:$0xf]
        %v861 = vld [vmem:[%s755 + $0xe8] sm:$0xf]
        %v862 = vld [vmem:[%s755 + $0xec] sm:$0xf]
        %v863 = vld [vmem:[%s755 + $0xf0] sm:$0xf]
        %v864 = vld [vmem:[%s755 + $0xf4] sm:$0xf]
        %v865 = vld [vmem:[%s755 + $0xf8] sm:$0xf]
        %v866 = vld [vmem:[%s755 + $0xfc] sm:$0xf]
        %v867 = vld [vmem:[%s755 + $0x100] sm:$0xf]
        %v868 = vld [vmem:[%s755 + $0x104] sm:$0xf]
        %v869 = vld [vmem:[%s755 + $0x108] sm:$0xf]
        %v870 = vld [vmem:[%s755 + $0x10c] sm:$0xf]
        %v871 = vld [vmem:[%s755 + $0x110] sm:$0xf]
        %v872 = vld [vmem:[%s755 + $0x114] sm:$0xf]
        %v873 = vld [vmem:[%s755 + $0x118] sm:$0xf]
        %v874 = vld [vmem:[%s755 + $0x11c] sm:$0xf]
        %v875 = vld [vmem:[%s755 + $0x120] sm:$0xf]
        %v876 = vld [vmem:[%s755 + $0x124] sm:$0xf]
        %v877 = vld [vmem:[%s755 + $0x128] sm:$0xf]
        %v878 = vld [vmem:[%s755 + $0x12c] sm:$0xf]
        %v879 = vld [vmem:[%s755 + $0x130] sm:$0xf]
        %v880 = vld [vmem:[%s755 + $0x134] sm:$0xf]
        %v881 = vld [vmem:[%s755 + $0x138] sm:$0xf]
        %v882 = vld [vmem:[%s755 + $0x13c] sm:$0xf]
        %v883 = vld [vmem:[%s755 + $0x140] sm:$0xf]
        %v884 = vld [vmem:[%s755 + $0x144] sm:$0xf]
        %v885 = vld [vmem:[%s755 + $0x148] sm:$0xf]
        %v886 = vld [vmem:[%s755 + $0x14c] sm:$0xf]
        %v887 = vld [vmem:[%s755 + $0x150] sm:$0xf]
        %v888 = vld [vmem:[%s755 + $0x154] sm:$0xf]
        %v889 = vld [vmem:[%s755 + $0x158] sm:$0xf]
        %v890 = vld [vmem:[%s755 + $0x15c] sm:$0xf]
        %v891 = vld [vmem:[%s755 + $0x160] sm:$0xf]
        %v892 = vld [vmem:[%s755 + $0x164] sm:$0xf]
        %v893 = vld [vmem:[%s755 + $0x168] sm:$0xf]
        %v894 = vld [vmem:[%s755 + $0x16c] sm:$0xf]
        %v895 = vld [vmem:[%s755 + $0x170] sm:$0xf]
        %v896 = vld [vmem:[%s755 + $0x174] sm:$0xf]
        %v897 = vld [vmem:[%s755 + $0x178] sm:$0xf]
        %v898 = vld [vmem:[%s755 + $0x17c] sm:$0xf]
        %v899 = vld [vmem:[%s755 + $0x180] sm:$0xf]
        %v900 = vld [vmem:[%s755 + $0x184] sm:$0xf]
        %v901 = vld [vmem:[%s755 + $0x188] sm:$0xf]
        %v902 = vld [vmem:[%s755 + $0x18c] sm:$0xf]
        %v903 = vld [vmem:[%s755 + $0x190] sm:$0xf]
        %v904 = vld [vmem:[%s755 + $0x194] sm:$0xf]
        %v905 = vld [vmem:[%s755 + $0x198] sm:$0xf]
        %v906 = vld [vmem:[%s755 + $0x19c] sm:$0xf]
        %v907 = vld [vmem:[%s755 + $0x1a0] sm:$0xf]
        %v908 = vld [vmem:[%s755 + $0x1a4] sm:$0xf]
        %v909 = vld [vmem:[%s755 + $0x1a8] sm:$0xf]
        %v910 = vld [vmem:[%s755 + $0x1ac] sm:$0xf]
        %v911 = vld [vmem:[%s755 + $0x1b0] sm:$0xf]
        %v912 = vld [vmem:[%s755 + $0x1b4] sm:$0xf]
        %v913 = vld [vmem:[%s755 + $0x1b8] sm:$0xf]
        %v914 = vld [vmem:[%s755 + $0x1bc] sm:$0xf]
        %v915 = vld [vmem:[%s755 + $0x1c0] sm:$0xf]
        %v916 = vld [vmem:[%s755 + $0x1c4] sm:$0xf]
        %v917 = vld [vmem:[%s755 + $0x1c8] sm:$0xf]
        %v918 = vld [vmem:[%s755 + $0x1cc] sm:$0xf]
        %v919 = vld [vmem:[%s755 + $0x1d0] sm:$0xf]
        %v920 = vld [vmem:[%s755 + $0x1d4] sm:$0xf]
        %v921 = vld [vmem:[%s755 + $0x1d8] sm:$0xf]
        %v922 = vld [vmem:[%s755 + $0x1dc] sm:$0xf]
        %v923 = vld [vmem:[%s755 + $0x1e0] sm:$0xf]
        %v924 = vld [vmem:[%s755 + $0x1e4] sm:$0xf]
        %v925 = vld [vmem:[%s755 + $0x1e8] sm:$0xf]
        %v926 = vld [vmem:[%s755 + $0x1ec] sm:$0xf]
        %v927 = vld [vmem:[%s755 + $0x1f0] sm:$0xf]
        %v928 = vld [vmem:[%s755 + $0x1f4] sm:$0xf]
        %v929 = vld [vmem:[%s755 + $0x1f8] sm:$0xf]
        %v930 = vld [vmem:[%s755 + $0x1fc] sm:$0xf]
        %v932 = vcombine.high %v802, %v802
        %v934 = vunpack.c.l.s4 1966171168
        %v935 = vunpack.c.0.s8 %v934
        %v936 = vlaneseq
        %v937 = vshrl.u32 %v936, 7
        %v938 = vsub.s32 %v935, %v937
        %v939 = vrot.slane %v802, %v938
        %v941 = vunpack.c.l.s4 1966171168
        %v942 = vunpack.c.0.s8 %v941
        %v943 = vlaneseq
        %v944 = vshrl.u32 %v943, 7
        %v945 = vsub.s32 %v942, %v944
        %v946 = vrot.slane %v932, %v945
        %v947 = vcombine.high %v939, %v939
        %v948 = vcombine.high %v946, %v946
        %v950 = vunpack.c.l.s4 1966171168
        %v951 = vunpack.c.0.s8 %v950
        %v952 = vlaneseq
        %v953 = vshrl.u32 %v952, 7
        %v954 = vsub.s32 %v951, %v953
        %v955 = vrot.slane %v939, %v954
        %v957 = vunpack.c.l.s4 1966171168
        %v958 = vunpack.c.0.s8 %v957
        %v959 = vlaneseq
        %v960 = vshrl.u32 %v959, 7
        %v961 = vsub.s32 %v958, %v960
        %v962 = vrot.slane %v946, %v961
        %v964 = vunpack.c.l.s4 1966171168
        %v965 = vunpack.c.0.s8 %v964
        %v966 = vlaneseq
        %v967 = vshrl.u32 %v966, 7
        %v968 = vsub.s32 %v965, %v967
        %v969 = vrot.slane %v947, %v968
        %v971 = vunpack.c.l.s4 1966171168
        %v972 = vunpack.c.0.s8 %v971
        %v973 = vlaneseq
        %v974 = vshrl.u32 %v973, 7
        %v975 = vsub.s32 %v972, %v974
        %v976 = vrot.slane %v948, %v975
        %v977 = vcombine.high %v955, %v955
        %v978 = vcombine.high %v962, %v962
        %v979 = vcombine.high %v969, %v969
        %v980 = vcombine.high %v976, %v976
        %v1117 = vunpack.c.l.b16 %v803
        %v1118 = vunpack.c.l.b16 %v804
        %v1119 = vunpack.c.l.b16 %v805
        %v1120 = vunpack.c.l.b16 %v806
        %v1121 = vunpack.c.l.b16 %v807
        %v1122 = vunpack.c.l.b16 %v808
        %v1123 = vunpack.c.l.b16 %v809
        %v1124 = vunpack.c.l.b16 %v810
        %v1125 = vunpack.c.l.b16 %v811
        %v1126 = vunpack.c.l.b16 %v812
        %v1127 = vunpack.c.l.b16 %v813
        %v1128 = vunpack.c.l.b16 %v814
        %v1129 = vunpack.c.l.b16 %v815
        %v1130 = vunpack.c.l.b16 %v816
        %v1131 = vunpack.c.l.b16 %v817
        %v1132 = vunpack.c.l.b16 %v818
        %v1133 = vunpack.c.l.b16 %v819
        %v1134 = vunpack.c.l.b16 %v820
        %v1135 = vunpack.c.l.b16 %v821
        %v1136 = vunpack.c.l.b16 %v822
        %v1137 = vunpack.c.l.b16 %v823
        %v1138 = vunpack.c.l.b16 %v824
        %v1139 = vunpack.c.l.b16 %v825
        %v1140 = vunpack.c.l.b16 %v826
        %v1141 = vunpack.c.l.b16 %v827
        %v1142 = vunpack.c.l.b16 %v828
        %v1143 = vunpack.c.l.b16 %v829
        %v1144 = vunpack.c.l.b16 %v830
        %v1145 = vunpack.c.l.b16 %v831
        %v1146 = vunpack.c.l.b16 %v832
        %v1147 = vunpack.c.l.b16 %v833
        %v1148 = vunpack.c.l.b16 %v834
        %v1149 = vunpack.c.l.b16 %v835
        %v1150 = vunpack.c.l.b16 %v836
        %v1151 = vunpack.c.l.b16 %v837
        %v1152 = vunpack.c.l.b16 %v838
        %v1153 = vunpack.c.l.b16 %v839
        %v1154 = vunpack.c.l.b16 %v840
        %v1155 = vunpack.c.l.b16 %v841
        %v1156 = vunpack.c.l.b16 %v842
        %v1157 = vunpack.c.l.b16 %v843
        %v1158 = vunpack.c.l.b16 %v844
        %v1159 = vunpack.c.l.b16 %v845
        %v1160 = vunpack.c.l.b16 %v846
        %v1161 = vunpack.c.l.b16 %v847
        %v1162 = vunpack.c.l.b16 %v848
        %v1163 = vunpack.c.l.b16 %v849
        %v1164 = vunpack.c.l.b16 %v850
        %v1165 = vunpack.c.l.b16 %v851
        %v1166 = vunpack.c.l.b16 %v852
        %v1167 = vunpack.c.l.b16 %v853
        %v1168 = vunpack.c.l.b16 %v854
        %v1169 = vunpack.c.l.b16 %v855
        %v1170 = vunpack.c.l.b16 %v856
        %v1171 = vunpack.c.l.b16 %v857
        %v1172 = vunpack.c.l.b16 %v858
        %v1173 = vunpack.c.l.b16 %v859
        %v1174 = vunpack.c.l.b16 %v860
        %v1175 = vunpack.c.l.b16 %v861
        %v1176 = vunpack.c.l.b16 %v862
        %v1177 = vunpack.c.l.b16 %v863
        %v1178 = vunpack.c.l.b16 %v864
        %v1179 = vunpack.c.l.b16 %v865
        %v1180 = vunpack.c.l.b16 %v866
        %v1181 = vunpack.c.l.b16 %v867
        %v1182 = vunpack.c.l.b16 %v868
        %v1183 = vunpack.c.l.b16 %v869
        %v1184 = vunpack.c.l.b16 %v870
        %v1185 = vunpack.c.l.b16 %v871
        %v1186 = vunpack.c.l.b16 %v872
        %v1187 = vunpack.c.l.b16 %v873
        %v1188 = vunpack.c.l.b16 %v874
        %v1189 = vunpack.c.l.b16 %v875
        %v1190 = vunpack.c.l.b16 %v876
        %v1191 = vunpack.c.l.b16 %v877
        %v1192 = vunpack.c.l.b16 %v878
        %v1193 = vunpack.c.l.b16 %v879
        %v1194 = vunpack.c.l.b16 %v880
        %v1195 = vunpack.c.l.b16 %v881
        %v1196 = vunpack.c.l.b16 %v882
        %v1197 = vunpack.c.l.b16 %v883
        %v1198 = vunpack.c.l.b16 %v884
        %v1199 = vunpack.c.l.b16 %v885
        %v1200 = vunpack.c.l.b16 %v886
        %v1201 = vunpack.c.l.b16 %v887
        %v1202 = vunpack.c.l.b16 %v888
        %v1203 = vunpack.c.l.b16 %v889
        %v1204 = vunpack.c.l.b16 %v890
        %v1205 = vunpack.c.l.b16 %v891
        %v1206 = vunpack.c.l.b16 %v892
        %v1207 = vunpack.c.l.b16 %v893
        %v1208 = vunpack.c.l.b16 %v894
        %v1209 = vunpack.c.l.b16 %v895
        %v1210 = vunpack.c.l.b16 %v896
        %v1211 = vunpack.c.l.b16 %v897
        %v1212 = vunpack.c.l.b16 %v898
        %v1213 = vunpack.c.l.b16 %v899
        %v1214 = vunpack.c.l.b16 %v900
        %v1215 = vunpack.c.l.b16 %v901
        %v1216 = vunpack.c.l.b16 %v902
        %v1217 = vunpack.c.l.b16 %v903
        %v1218 = vunpack.c.l.b16 %v904
        %v1219 = vunpack.c.l.b16 %v905
        %v1220 = vunpack.c.l.b16 %v906
        %v1221 = vunpack.c.l.b16 %v907
        %v1222 = vunpack.c.l.b16 %v908
        %v1223 = vunpack.c.l.b16 %v909
        %v1224 = vunpack.c.l.b16 %v910
        %v1225 = vunpack.c.l.b16 %v911
        %v1226 = vunpack.c.l.b16 %v912
        %v1227 = vunpack.c.l.b16 %v913
        %v1228 = vunpack.c.l.b16 %v914
        %v1229 = vunpack.c.l.b16 %v915
        %v1230 = vunpack.c.l.b16 %v916
        %v1231 = vunpack.c.l.b16 %v917
        %v1232 = vunpack.c.l.b16 %v918
        %v1233 = vunpack.c.l.b16 %v919
        %v1234 = vunpack.c.l.b16 %v920
        %v1235 = vunpack.c.l.b16 %v921
        %v1236 = vunpack.c.l.b16 %v922
        %v1237 = vunpack.c.l.b16 %v923
        %v1238 = vunpack.c.l.b16 %v924
        %v1239 = vunpack.c.l.b16 %v925
        %v1240 = vunpack.c.l.b16 %v926
        %v1241 = vunpack.c.l.b16 %v927
        %v1242 = vunpack.c.l.b16 %v928
        %v1243 = vunpack.c.l.b16 %v929
        %v1244 = vunpack.c.l.b16 %v930
        %v1245 = vpack.c.b16 %v1118, %v1117
        %v1246 = vpack.c.b16 %v1120, %v1119
        %v1247 = vpack.c.b16 %v1122, %v1121
        %v1248 = vpack.c.b16 %v1124, %v1123
        %v1249 = vpack.c.b16 %v1126, %v1125
        %v1250 = vpack.c.b16 %v1128, %v1127
        %v1251 = vpack.c.b16 %v1130, %v1129
        %v1252 = vpack.c.b16 %v1132, %v1131
        %v1253 = vpack.c.b16 %v1134, %v1133
        %v1254 = vpack.c.b16 %v1136, %v1135
        %v1255 = vpack.c.b16 %v1138, %v1137
        %v1256 = vpack.c.b16 %v1140, %v1139
        %v1257 = vpack.c.b16 %v1142, %v1141
        %v1258 = vpack.c.b16 %v1144, %v1143
        %v1259 = vpack.c.b16 %v1146, %v1145
        %v1260 = vpack.c.b16 %v1148, %v1147
        %v1261 = vpack.c.b16 %v1150, %v1149
        %v1262 = vpack.c.b16 %v1152, %v1151
        %v1263 = vpack.c.b16 %v1154, %v1153
        %v1264 = vpack.c.b16 %v1156, %v1155
        %v1265 = vpack.c.b16 %v1158, %v1157
        %v1266 = vpack.c.b16 %v1160, %v1159
        %v1267 = vpack.c.b16 %v1162, %v1161
        %v1268 = vpack.c.b16 %v1164, %v1163
        %v1269 = vpack.c.b16 %v1166, %v1165
        %v1270 = vpack.c.b16 %v1168, %v1167
        %v1271 = vpack.c.b16 %v1170, %v1169
        %v1272 = vpack.c.b16 %v1172, %v1171
        %v1273 = vpack.c.b16 %v1174, %v1173
        %v1274 = vpack.c.b16 %v1176, %v1175
        %v1275 = vpack.c.b16 %v1178, %v1177
        %v1276 = vpack.c.b16 %v1180, %v1179
        %v1277 = vpack.c.b16 %v1182, %v1181
        %v1278 = vpack.c.b16 %v1184, %v1183
        %v1279 = vpack.c.b16 %v1186, %v1185
        %v1280 = vpack.c.b16 %v1188, %v1187
        %v1281 = vpack.c.b16 %v1190, %v1189
        %v1282 = vpack.c.b16 %v1192, %v1191
        %v1283 = vpack.c.b16 %v1194, %v1193
        %v1284 = vpack.c.b16 %v1196, %v1195
        %v1285 = vpack.c.b16 %v1198, %v1197
        %v1286 = vpack.c.b16 %v1200, %v1199
        %v1287 = vpack.c.b16 %v1202, %v1201
        %v1288 = vpack.c.b16 %v1204, %v1203
        %v1289 = vpack.c.b16 %v1206, %v1205
        %v1290 = vpack.c.b16 %v1208, %v1207
        %v1291 = vpack.c.b16 %v1210, %v1209
        %v1292 = vpack.c.b16 %v1212, %v1211
        %v1293 = vpack.c.b16 %v1214, %v1213
        %v1294 = vpack.c.b16 %v1216, %v1215
        %v1295 = vpack.c.b16 %v1218, %v1217
        %v1296 = vpack.c.b16 %v1220, %v1219
        %v1297 = vpack.c.b16 %v1222, %v1221
        %v1298 = vpack.c.b16 %v1224, %v1223
        %v1299 = vpack.c.b16 %v1226, %v1225
        %v1300 = vpack.c.b16 %v1228, %v1227
        %v1301 = vpack.c.b16 %v1230, %v1229
        %v1302 = vpack.c.b16 %v1232, %v1231
        %v1303 = vpack.c.b16 %v1234, %v1233
        %v1304 = vpack.c.b16 %v1236, %v1235
        %v1305 = vpack.c.b16 %v1238, %v1237
        %v1306 = vpack.c.b16 %v1240, %v1239
        %v1307 = vpack.c.b16 %v1242, %v1241
        %v1308 = vpack.c.b16 %v1244, %v1243
        %1373 = vmatprep.subr.bf16.mxu0 0
        %1374 = vmatpush1.bf16.msra.mxu0 %v1245
        %1375 = vmatprep.subr.bf16.mxu0 0
        %1376 = vmatpush1.bf16.msra.mxu0 %v1246
        %1377 = vmatprep.subr.bf16.mxu0 0
        %1378 = vmatpush1.bf16.msra.mxu0 %v1247
        %1379 = vmatprep.subr.bf16.mxu0 0
        %1380 = vmatpush1.bf16.msra.mxu0 %v1248
        %1381 = vmatprep.subr.bf16.mxu0 0
        %1382 = vmatpush1.bf16.msra.mxu0 %v1249
        %1383 = vmatprep.subr.bf16.mxu0 0
        %1384 = vmatpush1.bf16.msra.mxu0 %v1250
        %1385 = vmatprep.subr.bf16.mxu0 0
        %1386 = vmatpush1.bf16.msra.mxu0 %v1251
        %1387 = vmatprep.subr.bf16.mxu0 0
        %1388 = vmatpush1.bf16.msra.mxu0 %v1252
        %1389 = vmatprep.subr.bf16.mxu0 0
        %1390 = vmatpush1.bf16.msra.mxu0 %v1253
        %1391 = vmatprep.subr.bf16.mxu0 0
        %1392 = vmatpush1.bf16.msra.mxu0 %v1254
        %1393 = vmatprep.subr.bf16.mxu0 0
        %1394 = vmatpush1.bf16.msra.mxu0 %v1255
        %1395 = vmatprep.subr.bf16.mxu0 0
        %1396 = vmatpush1.bf16.msra.mxu0 %v1256
        %1397 = vmatprep.subr.bf16.mxu0 0
        %1398 = vmatpush1.bf16.msra.mxu0 %v1257
        %1399 = vmatprep.subr.bf16.mxu0 0
        %1400 = vmatpush1.bf16.msra.mxu0 %v1258
        %1401 = vmatprep.subr.bf16.mxu0 0
        %1402 = vmatpush1.bf16.msra.mxu0 %v1259
        %1403 = vmatprep.subr.bf16.mxu0 0
        %1404 = vmatpush1.bf16.msra.mxu0 %v1260
        %1405 = vmatprep.mubr.bf16.mxu0 %v969
        %1406 = vmatmul.mubr.bf16.gmra.mrb[0].mxu0 %v955
        %v1407 = vpop.f32.mrb[0].mxu0
        %v1408 = vadd.f32 0.0, %v1407
        %v1409 = vpop.f32.mrb[0].mxu0
        %v1410 = vpop.f32.mrb[0].mxu0
        %v1411 = vpop.f32.mrb[0].mxu0
        %1412 = vdwg.mxu0
        %1413 = vmatprep.subr.bf16.mxu0 0
        %1414 = vmatpush1.bf16.msra.mxu0 %v1261
        %1415 = vmatprep.subr.bf16.mxu0 0
        %1416 = vmatpush1.bf16.msra.mxu0 %v1262
        %1417 = vmatprep.subr.bf16.mxu0 0
        %1418 = vmatpush1.bf16.msra.mxu0 %v1263
        %1419 = vmatprep.subr.bf16.mxu0 0
        %1420 = vmatpush1.bf16.msra.mxu0 %v1264
        %1421 = vmatprep.subr.bf16.mxu0 0
        %1422 = vmatpush1.bf16.msra.mxu0 %v1265
        %1423 = vmatprep.subr.bf16.mxu0 0
        %1424 = vmatpush1.bf16.msra.mxu0 %v1266
        %1425 = vmatprep.subr.bf16.mxu0 0
        %1426 = vmatpush1.bf16.msra.mxu0 %v1267
        %1427 = vmatprep.subr.bf16.mxu0 0
        %1428 = vmatpush1.bf16.msra.mxu0 %v1268
        %1429 = vmatprep.subr.bf16.mxu0 0
        %1430 = vmatpush1.bf16.msra.mxu0 %v1269
        %1431 = vmatprep.subr.bf16.mxu0 0
        %1432 = vmatpush1.bf16.msra.mxu0 %v1270
        %1433 = vmatprep.subr.bf16.mxu0 0
        %1434 = vmatpush1.bf16.msra.mxu0 %v1271
        %1435 = vmatprep.subr.bf16.mxu0 0
        %1436 = vmatpush1.bf16.msra.mxu0 %v1272
        %1437 = vmatprep.subr.bf16.mxu0 0
        %1438 = vmatpush1.bf16.msra.mxu0 %v1273
        %1439 = vmatprep.subr.bf16.mxu0 0
        %1440 = vmatpush1.bf16.msra.mxu0 %v1274
        %1441 = vmatprep.subr.bf16.mxu0 0
        %1442 = vmatpush1.bf16.msra.mxu0 %v1275
        %1443 = vmatprep.subr.bf16.mxu0 0
        %1444 = vmatpush1.bf16.msra.mxu0 %v1276
        %1445 = vmatprep.mubr.bf16.mxu0 %v979
        %1446 = vmatmul.mubr.bf16.gmra.mrb[0].mxu0 %v977
        %v1447 = vpop.f32.mrb[0].mxu0
        %v1448 = vadd.f32 %v1408, %v1447
        %v1449 = vpop.f32.mrb[0].mxu0
        %v1450 = vpop.f32.mrb[0].mxu0
        %v1451 = vpop.f32.mrb[0].mxu0
        %1452 = vdwg.mxu0
        %1453 = vmatprep.subr.bf16.mxu0 0
        %1454 = vmatpush1.bf16.msra.mxu0 %v1277
        %1455 = vmatprep.subr.bf16.mxu0 0
        %1456 = vmatpush1.bf16.msra.mxu0 %v1278
        %1457 = vmatprep.subr.bf16.mxu0 0
        %1458 = vmatpush1.bf16.msra.mxu0 %v1279
        %1459 = vmatprep.subr.bf16.mxu0 0
        %1460 = vmatpush1.bf16.msra.mxu0 %v1280
        %1461 = vmatprep.subr.bf16.mxu0 0
        %1462 = vmatpush1.bf16.msra.mxu0 %v1281
        %1463 = vmatprep.subr.bf16.mxu0 0
        %1464 = vmatpush1.bf16.msra.mxu0 %v1282
        %1465 = vmatprep.subr.bf16.mxu0 0
        %1466 = vmatpush1.bf16.msra.mxu0 %v1283
        %1467 = vmatprep.subr.bf16.mxu0 0
        %1468 = vmatpush1.bf16.msra.mxu0 %v1284
        %1469 = vmatprep.subr.bf16.mxu0 0
        %1470 = vmatpush1.bf16.msra.mxu0 %v1285
        %1471 = vmatprep.subr.bf16.mxu0 0
        %1472 = vmatpush1.bf16.msra.mxu0 %v1286
        %1473 = vmatprep.subr.bf16.mxu0 0
        %1474 = vmatpush1.bf16.msra.mxu0 %v1287
        %1475 = vmatprep.subr.bf16.mxu0 0
        %1476 = vmatpush1.bf16.msra.mxu0 %v1288
        %1477 = vmatprep.subr.bf16.mxu0 0
        %1478 = vmatpush1.bf16.msra.mxu0 %v1289
        %1479 = vmatprep.subr.bf16.mxu0 0
        %1480 = vmatpush1.bf16.msra.mxu0 %v1290
        %1481 = vmatprep.subr.bf16.mxu0 0
        %1482 = vmatpush1.bf16.msra.mxu0 %v1291
        %1483 = vmatprep.subr.bf16.mxu0 0
        %1484 = vmatpush1.bf16.msra.mxu0 %v1292
        %1485 = vmatprep.mubr.bf16.mxu0 %v976
        %1486 = vmatmul.mubr.bf16.gmra.mrb[0].mxu0 %v962
        %v1487 = vpop.f32.mrb[0].mxu0
        %v1488 = vadd.f32 %v1448, %v1487
        %v1489 = vpop.f32.mrb[0].mxu0
        %v1490 = vpop.f32.mrb[0].mxu0
        %v1491 = vpop.f32.mrb[0].mxu0
        %1492 = vdwg.mxu0
        %1493 = vmatprep.subr.bf16.mxu0 0
        %1494 = vmatpush1.bf16.msra.mxu0 %v1293
        %1495 = vmatprep.subr.bf16.mxu0 0
        %1496 = vmatpush1.bf16.msra.mxu0 %v1294
        %1497 = vmatprep.subr.bf16.mxu0 0
        %1498 = vmatpush1.bf16.msra.mxu0 %v1295
        %1499 = vmatprep.subr.bf16.mxu0 0
        %1500 = vmatpush1.bf16.msra.mxu0 %v1296
        %1501 = vmatprep.subr.bf16.mxu0 0
        %1502 = vmatpush1.bf16.msra.mxu0 %v1297
        %1503 = vmatprep.subr.bf16.mxu0 0
        %1504 = vmatpush1.bf16.msra.mxu0 %v1298
        %1505 = vmatprep.subr.bf16.mxu0 0
        %1506 = vmatpush1.bf16.msra.mxu0 %v1299
        %1507 = vmatprep.subr.bf16.mxu0 0
        %1508 = vmatpush1.bf16.msra.mxu0 %v1300
        %1509 = vmatprep.subr.bf16.mxu0 0
        %1510 = vmatpush1.bf16.msra.mxu0 %v1301
        %1511 = vmatprep.subr.bf16.mxu0 0
        %1512 = vmatpush1.bf16.msra.mxu0 %v1302
        %1513 = vmatprep.subr.bf16.mxu0 0
        %1514 = vmatpush1.bf16.msra.mxu0 %v1303
        %1515 = vmatprep.subr.bf16.mxu0 0
        %1516 = vmatpush1.bf16.msra.mxu0 %v1304
        %1517 = vmatprep.subr.bf16.mxu0 0
        %1518 = vmatpush1.bf16.msra.mxu0 %v1305
        %1519 = vmatprep.subr.bf16.mxu0 0
        %1520 = vmatpush1.bf16.msra.mxu0 %v1306
        %1521 = vmatprep.subr.bf16.mxu0 0
        %1522 = vmatpush1.bf16.msra.mxu0 %v1307
        %1523 = vmatprep.subr.bf16.mxu0 0
        %1524 = vmatpush1.bf16.msra.mxu0 %v1308
        %1525 = vmatprep.mubr.bf16.mxu0 %v980
        %1526 = vmatmul.mubr.bf16.gmra.mrb[0].mxu0 %v978
        %v1527 = vpop.f32.mrb[0].mxu0
        %v1528 = vadd.f32 %v1488, %v1527
        %v1529 = vpop.f32.mrb[0].mxu0
        %v1530 = vpop.f32.mrb[0].mxu0
        %v1531 = vpop.f32.mrb[0].mxu0
        %1532 = vdwg.mxu0
        %v1533 = vadd.f32 %v801, %v1528
        %1534 = vst [vmem:[#allocation2] sm:$0x3] %v1533
        // Predicated region
        $region82: #{embedding_net_forward.6} parent=72 // pred_check
          %p1535 = pneg %p796
        $region83: #{embedding_net_forward.6} parent=72 // pred_check_branch
          %1537 = sbr.rel (%p1535) target = $region85
        $region84: #{embedding_net_forward.6} parent=72 // pred_region
          %v1538 = vld [vmem:[#allocation2] sm:$0x3]
          %v1539 = vld [vmem:[%s791] sm:$0x1]
          %v1541 = vlaneseq
          %v1542 = vshrl.u32 %v1541, 7
          %v1543 = vsub.s32 0, %v1542
          %v1544 = vrot.slane %v1539, %v1543
          %v1546 = vadd.f32 %v1538, %v1544
          %vm1547 = vcmp.gt.f32.partialorder %v1546, 0.0
          %s1548 = sld [smem:[#allocation3]]
          %v1549 = vstv %s1548
          %v1550 = vmul.f32 %v1549, %v1546
          %v1551 = vsel %vm1547, %v1546, %v1550
          %v1552 = vpack.c.bf16 %v1551, %v1551
          %1553 = vst [vmem:[%s794] sm:$0x1] %v1552
        $region85: #{embedding_net_forward.6} parent=72 // pred_fallthru
          _
        %p1554 = scmp.lt.s32.totalorder %s20, 1
        %s1555 = scalar_select %p1554, %s20, 1
        %s1556 = scalar_lea.vmem %s4, %s1555
        // Predicated region
        $region86: #{embedding_net_forward.6} parent=72 // pred_check
          %p1557 = pneg %p147
        $region87: #{embedding_net_forward.6} parent=72 // pred_check_branch
          %1559 = sbr.rel (%p1557) target = $region89
        $region88: #{embedding_net_forward.6} parent=72 // pred_region
          _
        $region89: #{embedding_net_forward.6} parent=72 // pred_fallthru
          _
      $region73: #{embedding_net_forward.6} parent=5 // pred_fallthru
        _
      %p1560 = scmp.le.s32.totalorder 2, %s11
      // Predicated region
      $region90: #{embedding_net_forward.6} parent=5 // pred_check
        %p1561 = pneg %p1560
      $region91: #{embedding_net_forward.6} parent=5 // pred_check_branch
        %1563 = sbr.rel (%p1561) target = $region93
      $region92: #{embedding_net_forward.6} parent=5 // pred_region
        %s1564 = ssub.s32 %s11, 2
        // Predicated region
        $region94: #{embedding_net_forward.6} parent=92 // pred_check
          %p1565 = pneg %p153
        $region95: #{embedding_net_forward.6} parent=92 // pred_check_branch
          %1567 = sbr.rel (%p1565) target = $region97
        $region96: #{embedding_net_forward.6} parent=92 // pred_region
          %p1568 = scmp.lt.s32.totalorder %s22, 1
          %s1569 = scalar_select %p1568, %s22, 1
          %s1570 = scalar_lea.vmem %s4, %s1569
        $region97: #{embedding_net_forward.6} parent=92 // pred_fallthru
          _
      $region93: #{embedding_net_forward.6} parent=5 // pred_fallthru
        _
    $region6: #{embedding_net_forward.6} parent=1 // loop_footer
      %s15 = sadd.s32 1, %s11
    $region7: #{embedding_net_forward.6} parent=1 // loop_footer_branch
      %10 = sbr.rel target = $region3
    $region8: #{embedding_net_forward.6} parent=1 // loop_exit
      _

// kernel: embedding_net_forward.7
$region0: #{embedding_net_forward.7}
  #allocation0 [shape = 'u32[]', space=smem, size = 0x4, offset = 0x4, fixed_abs, tag = 'smem constant byte address 0x4 - core index']
  #allocation1 [shape = 'u32[144,128]{1,0:T(1,128)}', space=vmem, size = 0x12000, scoped, tag = 'internal scratch']
  #allocation2 [shape = 'f32[1]{0:T(128)S(6)}', space=smem, size = 0x200, scoped, tag = 'scoped memory for embedding_net_forward.7']
  %s0 = inlined_call_operand.vmem [shape: bf16[2,256], index: 0, kind: input, shape index: {}]
  %s1 = inlined_call_operand.vmem [shape: bf16[256,256], index: 1, kind: input, shape index: {}]
  %s2 = inlined_call_operand.vmem [shape: f32[1,256], index: 2, kind: input, shape index: {}]
  %s3 = inlined_call_operand.vmem [shape: bf16[256,128], index: 3, kind: input, shape index: {}]
  %s4 = inlined_call_operand.vmem [shape: f32[1,128], index: 4, kind: input, shape index: {}]
  %s5 = inlined_call_operand.<no memory space> [shape: f32[1], index: 5, kind: input, shape index: {}]
  %s6 = inlined_call_operand.hbm [shape: f32[2,128], index: 6, kind: output, shape index: {}]
  %s7 = sld [smem:[#allocation0]]
  $region34: #{embedding_net_forward.7} parent=0
    _
  %s9 = ssub.s32 1, %s7
  %s10 = scalar_select 0, %s9, %s7
  %11 = sst [smem:[#allocation2]] %s5
  $region1: #{embedding_net_forward.7} parent=0
    #allocation3 [shape = 'u8[1024]{0}', space=vmem, size = 0x400, scoped, tag = 'output window, operand 0, single buffered']
    #allocation4 [shape = 's32[1]{0}', space=sflag, size = 0x4, scoped, tag = 'scoped memory for embedding_net_forward.7']
    %12 = vsyncpa [#allocation4], 0
    // Predicated region
    $region2: #{embedding_net_forward.7} parent=1 // pred_check
      _
    $region3: #{embedding_net_forward.7} parent=1 // pred_check_branch
      %14 = sbr.rel (0) target = $region5
    $region4: #{embedding_net_forward.7} parent=1 // pred_region
      _
    $region5: #{embedding_net_forward.7} parent=1 // pred_fallthru
      _
    // Predicated region
    $region6: #{embedding_net_forward.7} parent=1 // pred_check
      _
    $region7: #{embedding_net_forward.7} parent=1 // pred_check_branch
      %16 = sbr.rel (0) target = $region9
    $region8: #{embedding_net_forward.7} parent=1 // pred_region
      _
    $region9: #{embedding_net_forward.7} parent=1 // pred_fallthru
      _
    // Predicated region
    $region10: #{embedding_net_forward.7} parent=1 // pred_check
      _
    $region11: #{embedding_net_forward.7} parent=1 // pred_check_branch
      %18 = sbr.rel (0) target = $region13
    $region12: #{embedding_net_forward.7} parent=1 // pred_region
      _
    $region13: #{embedding_net_forward.7} parent=1 // pred_fallthru
      _
    // Predicated region
    $region14: #{embedding_net_forward.7} parent=1 // pred_check
      _
    $region15: #{embedding_net_forward.7} parent=1 // pred_check_branch
      %20 = sbr.rel (0) target = $region17
    $region16: #{embedding_net_forward.7} parent=1 // pred_region
      _
    $region17: #{embedding_net_forward.7} parent=1 // pred_fallthru
      _
    // Predicated region
    $region18: #{embedding_net_forward.7} parent=1 // pred_check
      _
    $region19: #{embedding_net_forward.7} parent=1 // pred_check_branch
      %22 = sbr.rel (0) target = $region21
    $region20: #{embedding_net_forward.7} parent=1 // pred_region
      _
    $region21: #{embedding_net_forward.7} parent=1 // pred_fallthru
      _
    // Predicated region
    $region22: #{embedding_net_forward.7} parent=1 // pred_check
      _
    $region23: #{embedding_net_forward.7} parent=1 // pred_check_branch
      %24 = sbr.rel (0) target = $region25
    $region24: #{embedding_net_forward.7} parent=1 // pred_region
      _
    $region25: #{embedding_net_forward.7} parent=1 // pred_fallthru
      _
    %v26 = vld [vmem:[%s0] sm:$0x3]
    %v27 = vld [vmem:[%s1] sm:$0xff]
    %v28 = vld [vmem:[%s1 + $0x8] sm:$0xff]
    %v29 = vld [vmem:[%s1 + $0x10] sm:$0xff]
    %v30 = vld [vmem:[%s1 + $0x18] sm:$0xff]
    %v31 = vld [vmem:[%s1 + $0x20] sm:$0xff]
    %v32 = vld [vmem:[%s1 + $0x28] sm:$0xff]
    %v33 = vld [vmem:[%s1 + $0x30] sm:$0xff]
    %v34 = vld [vmem:[%s1 + $0x38] sm:$0xff]
    %v35 = vld [vmem:[%s1 + $0x40] sm:$0xff]
    %v36 = vld [vmem:[%s1 + $0x48] sm:$0xff]
    %v37 = vld [vmem:[%s1 + $0x50] sm:$0xff]
    %v38 = vld [vmem:[%s1 + $0x58] sm:$0xff]
    %v39 = vld [vmem:[%s1 + $0x60] sm:$0xff]
    %v40 = vld [vmem:[%s1 + $0x68] sm:$0xff]
    %v41 = vld [vmem:[%s1 + $0x70] sm:$0xff]
    %v42 = vld [vmem:[%s1 + $0x78] sm:$0xff]
    %v43 = vld [vmem:[%s1 + $0x80] sm:$0xff]
    %v44 = vld [vmem:[%s1 + $0x88] sm:$0xff]
    %v45 = vld [vmem:[%s1 + $0x90] sm:$0xff]
    %v46 = vld [vmem:[%s1 + $0x98] sm:$0xff]
    %v47 = vld [vmem:[%s1 + $0xa0] sm:$0xff]
    %v48 = vld [vmem:[%s1 + $0xa8] sm:$0xff]
    %v49 = vld [vmem:[%s1 + $0xb0] sm:$0xff]
    %v50 = vld [vmem:[%s1 + $0xb8] sm:$0xff]
    %v51 = vld [vmem:[%s1 + $0xc0] sm:$0xff]
    %v52 = vld [vmem:[%s1 + $0xc8] sm:$0xff]
    %v53 = vld [vmem:[%s1 + $0xd0] sm:$0xff]
    %v54 = vld [vmem:[%s1 + $0xd8] sm:$0xff]
    %v55 = vld [vmem:[%s1 + $0xe0] sm:$0xff]
    %v56 = vld [vmem:[%s1 + $0xe8] sm:$0xff]
    %v57 = vld [vmem:[%s1 + $0xf0] sm:$0xff]
    %v58 = vld [vmem:[%s1 + $0xf8] sm:$0xff]
    %v59 = vld [vmem:[%s2] sm:$0x3]
    %v61 = vlaneseq
    %v62 = vshrl.u32 %v61, 7
    %v63 = vsub.s32 0, %v62
    %v64 = vrot.slane %v59, %v63
    %v65 = vlaneseq
    %v66 = vshrl.u32 %v65, 7
    %v67 = vsub.s32 1, %v66
    %v68 = vrot.slane %v59, %v67
    %v73 = vunpack.c.l.s4 1966171168
    %v74 = vunpack.c.0.s8 %v73
    %v75 = vlaneseq
    %v76 = vshrl.u32 %v75, 7
    %v77 = vsub.s32 %v74, %v76
    %v78 = vrot.slane %v26, %v77
    %v79 = vcombine.high %v78, %v78
    %v81 = vunpack.c.l.s4 1966171168
    %v82 = vunpack.c.0.s8 %v81
    %v83 = vlaneseq
    %v84 = vshrl.u32 %v83, 7
    %v85 = vsub.s32 %v82, %v84
    %v86 = vrot.slane %v78, %v85
    %v88 = vunpack.c.l.s4 1966171168
    %v89 = vunpack.c.0.s8 %v88
    %v90 = vlaneseq
    %v91 = vshrl.u32 %v90, 7
    %v92 = vsub.s32 %v89, %v91
    %v93 = vrot.slane %v79, %v92
    %v128 = vunpack.c.l.b16 %v27
    %v129 = vunpack.c.h.b16 %v27
    %v130 = vunpack.c.l.b16 %v28
    %v131 = vunpack.c.h.b16 %v28
    %v132 = vunpack.c.l.b16 %v29
    %v133 = vunpack.c.h.b16 %v29
    %v134 = vunpack.c.l.b16 %v30
    %v135 = vunpack.c.h.b16 %v30
    %v136 = vunpack.c.l.b16 %v31
    %v137 = vunpack.c.h.b16 %v31
    %v138 = vunpack.c.l.b16 %v32
    %v139 = vunpack.c.h.b16 %v32
    %v140 = vunpack.c.l.b16 %v33
    %v141 = vunpack.c.h.b16 %v33
    %v142 = vunpack.c.l.b16 %v34
    %v143 = vunpack.c.h.b16 %v34
    %v144 = vunpack.c.l.b16 %v35
    %v145 = vunpack.c.h.b16 %v35
    %v146 = vunpack.c.l.b16 %v36
    %v147 = vunpack.c.h.b16 %v36
    %v148 = vunpack.c.l.b16 %v37
    %v149 = vunpack.c.h.b16 %v37
    %v150 = vunpack.c.l.b16 %v38
    %v151 = vunpack.c.h.b16 %v38
    %v152 = vunpack.c.l.b16 %v39
    %v153 = vunpack.c.h.b16 %v39
    %v154 = vunpack.c.l.b16 %v40
    %v155 = vunpack.c.h.b16 %v40
    %v156 = vunpack.c.l.b16 %v41
    %v157 = vunpack.c.h.b16 %v41
    %v158 = vunpack.c.l.b16 %v42
    %v159 = vunpack.c.h.b16 %v42
    %v160 = vunpack.c.l.b16 %v43
    %v161 = vunpack.c.h.b16 %v43
    %v162 = vunpack.c.l.b16 %v44
    %v163 = vunpack.c.h.b16 %v44
    %v164 = vunpack.c.l.b16 %v45
    %v165 = vunpack.c.h.b16 %v45
    %v166 = vunpack.c.l.b16 %v46
    %v167 = vunpack.c.h.b16 %v46
    %v168 = vunpack.c.l.b16 %v47
    %v169 = vunpack.c.h.b16 %v47
    %v170 = vunpack.c.l.b16 %v48
    %v171 = vunpack.c.h.b16 %v48
    %v172 = vunpack.c.l.b16 %v49
    %v173 = vunpack.c.h.b16 %v49
    %v174 = vunpack.c.l.b16 %v50
    %v175 = vunpack.c.h.b16 %v50
    %v176 = vunpack.c.l.b16 %v51
    %v177 = vunpack.c.h.b16 %v51
    %v178 = vunpack.c.l.b16 %v52
    %v179 = vunpack.c.h.b16 %v52
    %v180 = vunpack.c.l.b16 %v53
    %v181 = vunpack.c.h.b16 %v53
    %v182 = vunpack.c.l.b16 %v54
    %v183 = vunpack.c.h.b16 %v54
    %v184 = vunpack.c.l.b16 %v55
    %v185 = vunpack.c.h.b16 %v55
    %v186 = vunpack.c.l.b16 %v56
    %v187 = vunpack.c.h.b16 %v56
    %v188 = vunpack.c.l.b16 %v57
    %v189 = vunpack.c.h.b16 %v57
    %v190 = vunpack.c.l.b16 %v58
    %v191 = vunpack.c.h.b16 %v58
    %v192 = vpack.c.b16 %v130, %v128
    %v193 = vpack.c.b16 %v131, %v129
    %v194 = vpack.c.b16 %v134, %v132
    %v195 = vpack.c.b16 %v135, %v133
    %v196 = vpack.c.b16 %v138, %v136
    %v197 = vpack.c.b16 %v139, %v137
    %v198 = vpack.c.b16 %v142, %v140
    %v199 = vpack.c.b16 %v143, %v141
    %v200 = vpack.c.b16 %v146, %v144
    %v201 = vpack.c.b16 %v147, %v145
    %v202 = vpack.c.b16 %v150, %v148
    %v203 = vpack.c.b16 %v151, %v149
    %v204 = vpack.c.b16 %v154, %v152
    %v205 = vpack.c.b16 %v155, %v153
    %v206 = vpack.c.b16 %v158, %v156
    %v207 = vpack.c.b16 %v159, %v157
    %v208 = vpack.c.b16 %v162, %v160
    %v209 = vpack.c.b16 %v163, %v161
    %v210 = vpack.c.b16 %v166, %v164
    %v211 = vpack.c.b16 %v167, %v165
    %v212 = vpack.c.b16 %v170, %v168
    %v213 = vpack.c.b16 %v171, %v169
    %v214 = vpack.c.b16 %v174, %v172
    %v215 = vpack.c.b16 %v175, %v173
    %v216 = vpack.c.b16 %v178, %v176
    %v217 = vpack.c.b16 %v179, %v177
    %v218 = vpack.c.b16 %v182, %v180
    %v219 = vpack.c.b16 %v183, %v181
    %v220 = vpack.c.b16 %v186, %v184
    %v221 = vpack.c.b16 %v187, %v185
    %v222 = vpack.c.b16 %v190, %v188
    %v223 = vpack.c.b16 %v191, %v189
    %256 = vmatprep.subr.bf16.mxu0 %v193
    %257 = vmatpush1.bf16.msra.mxu0 %v192
    %258 = vmatprep.subr.bf16.mxu0 %v195
    %259 = vmatpush1.bf16.msra.mxu0 %v194
    %260 = vmatprep.subr.bf16.mxu0 %v197
    %261 = vmatpush1.bf16.msra.mxu0 %v196
    %262 = vmatprep.subr.bf16.mxu0 %v199
    %263 = vmatpush1.bf16.msra.mxu0 %v198
    %264 = vmatprep.subr.bf16.mxu0 %v201
    %265 = vmatpush1.bf16.msra.mxu0 %v200
    %266 = vmatprep.subr.bf16.mxu0 %v203
    %267 = vmatpush1.bf16.msra.mxu0 %v202
    %268 = vmatprep.subr.bf16.mxu0 %v205
    %269 = vmatpush1.bf16.msra.mxu0 %v204
    %270 = vmatprep.subr.bf16.mxu0 %v207
    %271 = vmatpush1.bf16.msra.mxu0 %v206
    %272 = vmatprep.subr.bf16.mxu0 %v209
    %273 = vmatpush1.bf16.msra.mxu0 %v208
    %274 = vmatprep.subr.bf16.mxu0 %v211
    %275 = vmatpush1.bf16.msra.mxu0 %v210
    %276 = vmatprep.subr.bf16.mxu0 %v213
    %277 = vmatpush1.bf16.msra.mxu0 %v212
    %278 = vmatprep.subr.bf16.mxu0 %v215
    %279 = vmatpush1.bf16.msra.mxu0 %v214
    %280 = vmatprep.subr.bf16.mxu0 %v217
    %281 = vmatpush1.bf16.msra.mxu0 %v216
    %282 = vmatprep.subr.bf16.mxu0 %v219
    %283 = vmatpush1.bf16.msra.mxu0 %v218
    %284 = vmatprep.subr.bf16.mxu0 %v221
    %285 = vmatpush1.bf16.msra.mxu0 %v220
    %286 = vmatprep.subr.bf16.mxu0 %v223
    %287 = vmatpush1.bf16.msra.mxu0 %v222
    %288 = vmatprep.mubr.bf16.mxu0 %v93
    %289 = vmatmul.mubr.bf16.gmra.mrb[0].mxu0 %v86
    %v290 = vpop.f32.mrb[0].mxu0
    %v291 = vadd.f32 %v64, %v290
    %v292 = vpop.f32.mrb[0].mxu0
    %v293 = vadd.f32 %v68, %v292
    %v294 = vpop.f32.mrb[0].mxu0
    %v295 = vpop.f32.mrb[0].mxu0
    %296 = vdwg.mxu0
    %vm297 = vcmp.gt.f32.partialorder %v291, 0.0
    %vm298 = vcmp.gt.f32.partialorder %v293, 0.0
    %s299 = sld [smem:[#allocation2]]
    %v300 = vstv %s299
    %v301 = vmul.f32 %v300, %v291
    %v302 = vmul.f32 %v300, %v293
    %v303 = vsel %vm297, %v291, %v301
    %v304 = vsel %vm298, %v293, %v302
    %v305 = vpack.c.bf16 %v303, %v303
    %v306 = vpack.c.bf16 %v304, %v304
    %v307 = vld [vmem:[%s3] sm:$0xf]
    %v308 = vld [vmem:[%s3 + $0x4] sm:$0xf]
    %v309 = vld [vmem:[%s3 + $0x8] sm:$0xf]
    %v310 = vld [vmem:[%s3 + $0xc] sm:$0xf]
    %v311 = vld [vmem:[%s3 + $0x10] sm:$0xf]
    %v312 = vld [vmem:[%s3 + $0x14] sm:$0xf]
    %v313 = vld [vmem:[%s3 + $0x18] sm:$0xf]
    %v314 = vld [vmem:[%s3 + $0x1c] sm:$0xf]
    %v315 = vld [vmem:[%s3 + $0x20] sm:$0xf]
    %v316 = vld [vmem:[%s3 + $0x24] sm:$0xf]
    %v317 = vld [vmem:[%s3 + $0x28] sm:$0xf]
    %v318 = vld [vmem:[%s3 + $0x2c] sm:$0xf]
    %v319 = vld [vmem:[%s3 + $0x30] sm:$0xf]
    %v320 = vld [vmem:[%s3 + $0x34] sm:$0xf]
    %v321 = vld [vmem:[%s3 + $0x38] sm:$0xf]
    %v322 = vld [vmem:[%s3 + $0x3c] sm:$0xf]
    %v323 = vld [vmem:[%s3 + $0x40] sm:$0xf]
    %v324 = vld [vmem:[%s3 + $0x44] sm:$0xf]
    %v325 = vld [vmem:[%s3 + $0x48] sm:$0xf]
    %v326 = vld [vmem:[%s3 + $0x4c] sm:$0xf]
    %v327 = vld [vmem:[%s3 + $0x50] sm:$0xf]
    %v328 = vld [vmem:[%s3 + $0x54] sm:$0xf]
    %v329 = vld [vmem:[%s3 + $0x58] sm:$0xf]
    %v330 = vld [vmem:[%s3 + $0x5c] sm:$0xf]
    %v331 = vld [vmem:[%s3 + $0x60] sm:$0xf]
    %v332 = vld [vmem:[%s3 + $0x64] sm:$0xf]
    %v333 = vld [vmem:[%s3 + $0x68] sm:$0xf]
    %v334 = vld [vmem:[%s3 + $0x6c] sm:$0xf]
    %v335 = vld [vmem:[%s3 + $0x70] sm:$0xf]
    %v336 = vld [vmem:[%s3 + $0x74] sm:$0xf]
    %v337 = vld [vmem:[%s3 + $0x78] sm:$0xf]
    %v338 = vld [vmem:[%s3 + $0x7c] sm:$0xf]
    %v339 = vld [vmem:[%s4] sm:$0x1]
    %v341 = vlaneseq
    %v342 = vshrl.u32 %v341, 7
    %v343 = vsub.s32 0, %v342
    %v344 = vrot.slane %v339, %v343
    %v378 = vunpack.c.l.b16 %v307
    %v379 = vunpack.c.l.b16 %v308
    %v380 = vunpack.c.l.b16 %v309
    %v381 = vunpack.c.l.b16 %v310
    %v382 = vunpack.c.l.b16 %v311
    %v383 = vunpack.c.l.b16 %v312
    %v384 = vunpack.c.l.b16 %v313
    %v385 = vunpack.c.l.b16 %v314
    %v386 = vunpack.c.l.b16 %v315
    %v387 = vunpack.c.l.b16 %v316
    %v388 = vunpack.c.l.b16 %v317
    %v389 = vunpack.c.l.b16 %v318
    %v390 = vunpack.c.l.b16 %v319
    %v391 = vunpack.c.l.b16 %v320
    %v392 = vunpack.c.l.b16 %v321
    %v393 = vunpack.c.l.b16 %v322
    %v394 = vunpack.c.l.b16 %v323
    %v395 = vunpack.c.l.b16 %v324
    %v396 = vunpack.c.l.b16 %v325
    %v397 = vunpack.c.l.b16 %v326
    %v398 = vunpack.c.l.b16 %v327
    %v399 = vunpack.c.l.b16 %v328
    %v400 = vunpack.c.l.b16 %v329
    %v401 = vunpack.c.l.b16 %v330
    %v402 = vunpack.c.l.b16 %v331
    %v403 = vunpack.c.l.b16 %v332
    %v404 = vunpack.c.l.b16 %v333
    %v405 = vunpack.c.l.b16 %v334
    %v406 = vunpack.c.l.b16 %v335
    %v407 = vunpack.c.l.b16 %v336
    %v408 = vunpack.c.l.b16 %v337
    %v409 = vunpack.c.l.b16 %v338
    %v410 = vpack.c.b16 %v379, %v378
    %v411 = vpack.c.b16 %v381, %v380
    %v412 = vpack.c.b16 %v383, %v382
    %v413 = vpack.c.b16 %v385, %v384
    %v414 = vpack.c.b16 %v387, %v386
    %v415 = vpack.c.b16 %v389, %v388
    %v416 = vpack.c.b16 %v391, %v390
    %v417 = vpack.c.b16 %v393, %v392
    %v418 = vpack.c.b16 %v395, %v394
    %v419 = vpack.c.b16 %v397, %v396
    %v420 = vpack.c.b16 %v399, %v398
    %v421 = vpack.c.b16 %v401, %v400
    %v422 = vpack.c.b16 %v403, %v402
    %v423 = vpack.c.b16 %v405, %v404
    %v424 = vpack.c.b16 %v407, %v406
    %v425 = vpack.c.b16 %v409, %v408
    %442 = vmatprep.subr.bf16.mxu0 0
    %443 = vmatpush1.bf16.msra.mxu0 %v410
    %444 = vmatprep.subr.bf16.mxu0 0
    %445 = vmatpush1.bf16.msra.mxu0 %v411
    %446 = vmatprep.subr.bf16.mxu0 0
    %447 = vmatpush1.bf16.msra.mxu0 %v412
    %448 = vmatprep.subr.bf16.mxu0 0
    %449 = vmatpush1.bf16.msra.mxu0 %v413
    %450 = vmatprep.subr.bf16.mxu0 0
    %451 = vmatpush1.bf16.msra.mxu0 %v414
    %452 = vmatprep.subr.bf16.mxu0 0
    %453 = vmatpush1.bf16.msra.mxu0 %v415
    %454 = vmatprep.subr.bf16.mxu0 0
    %455 = vmatpush1.bf16.msra.mxu0 %v416
    %456 = vmatprep.subr.bf16.mxu0 0
    %457 = vmatpush1.bf16.msra.mxu0 %v417
    %458 = vmatprep.subr.bf16.mxu0 0
    %459 = vmatpush1.bf16.msra.mxu0 %v418
    %460 = vmatprep.subr.bf16.mxu0 0
    %461 = vmatpush1.bf16.msra.mxu0 %v419
    %462 = vmatprep.subr.bf16.mxu0 0
    %463 = vmatpush1.bf16.msra.mxu0 %v420
    %464 = vmatprep.subr.bf16.mxu0 0
    %465 = vmatpush1.bf16.msra.mxu0 %v421
    %466 = vmatprep.subr.bf16.mxu0 0
    %467 = vmatpush1.bf16.msra.mxu0 %v422
    %468 = vmatprep.subr.bf16.mxu0 0
    %469 = vmatpush1.bf16.msra.mxu0 %v423
    %470 = vmatprep.subr.bf16.mxu0 0
    %471 = vmatpush1.bf16.msra.mxu0 %v424
    %472 = vmatprep.subr.bf16.mxu0 0
    %473 = vmatpush1.bf16.msra.mxu0 %v425
    %474 = vmatprep.mubr.bf16.mxu0 %v306
    %475 = vmatmul.mubr.bf16.gmra.mrb[0].mxu0 %v305
    %v476 = vpop.f32.mrb[0].mxu0
    %v477 = vadd.f32 %v344, %v476
    %v478 = vpop.f32.mrb[0].mxu0
    %v479 = vpop.f32.mrb[0].mxu0
    %v480 = vpop.f32.mrb[0].mxu0
    %481 = vdwg.mxu0
    %482 = vst [vmem:[#allocation3] sm:$0x3] %v477
    // Predicated region
    $region26: #{embedding_net_forward.7} parent=1 // pred_check
      _
    $region27: #{embedding_net_forward.7} parent=1 // pred_check_branch
      %484 = sbr.rel (0) target = $region29
    $region28: #{embedding_net_forward.7} parent=1 // pred_region
      %s486 = ssub.s32 32, 32
      %487 = vsyncadd [#allocation4], %s486
      %s489 = sshll.u32 [#allocation3], 4
      %s490 = int_to_ptr.vmem [resolvable:$true] %s489
      %492 = dma.vmem_to_hbm [thread:$0]  %s490, 32, %s6, [#allocation4]
    $region29: #{embedding_net_forward.7} parent=1 // pred_fallthru
      _
    // Predicated region
    $region30: #{embedding_net_forward.7} parent=1 // pred_check
      _
    $region31: #{embedding_net_forward.7} parent=1 // pred_check_branch
      %494 = sbr.rel (0) target = $region33
    $region32: #{embedding_net_forward.7} parent=1 // pred_region
      %495 = dma.done [#allocation4], 32
    $region33: #{embedding_net_forward.7} parent=1 // pred_fallthru
      _
    %496 = vsyncpa [#allocation4], 1

// kernel: embedding_net_forward.4
$region0: #{embedding_net_forward.4}
  #allocation0 [shape = 'u32[]', space=smem, size = 0x4, offset = 0x4, fixed_abs, tag = 'smem constant byte address 0x4 - core index']
  #allocation1 [shape = 'u32[144,128]{1,0:T(1,128)}', space=vmem, size = 0x12000, scoped, tag = 'internal scratch']
  #allocation2 [shape = 'f32[1]{0:T(128)S(6)}', space=smem, size = 0x200, scoped, tag = 'scoped memory for embedding_net_forward.4']
  %s0 = inlined_call_operand.vmem [shape: bf16[288,25], index: 0, kind: input, shape index: {}]
  %s1 = inlined_call_operand.vmem [shape: bf16[288,25], index: 1, kind: input, shape index: {}]
  %s2 = inlined_call_operand.vmem [shape: bf16[288,25], index: 2, kind: input, shape index: {}]
  %s3 = inlined_call_operand.vmem [shape: bf16[288,25], index: 3, kind: input, shape index: {}]
  %s4 = inlined_call_operand.vmem [shape: bf16[25,32], index: 4, kind: input, shape index: {}]
  %s5 = inlined_call_operand.vmem [shape: f32[1,32], index: 5, kind: input, shape index: {}]
  %s6 = inlined_call_operand.<no memory space> [shape: f32[1], index: 6, kind: input, shape index: {}]
  %s7 = inlined_call_operand.vmem [shape: bf16[288,32], index: 7, kind: output, shape index: {}]
  %s8 = sld [smem:[#allocation0]]
  $region38: #{embedding_net_forward.4} parent=0
    _
  %s10 = ssub.s32 1, %s8
  %s11 = scalar_select 0, %s10, %s8
  %12 = sst [smem:[#allocation2]] %s6
  // Predicated region
  $region2: #{embedding_net_forward.4} parent=0 // pred_check
    _
  $region3: #{embedding_net_forward.4} parent=0 // pred_check_branch
    %14 = sbr.rel (0) target = $region5
  $region4: #{embedding_net_forward.4} parent=0 // pred_region
    _
  $region5: #{embedding_net_forward.4} parent=0 // pred_fallthru
    _
  // Predicated region
  $region6: #{embedding_net_forward.4} parent=0 // pred_check
    _
  $region7: #{embedding_net_forward.4} parent=0 // pred_check_branch
    %16 = sbr.rel (0) target = $region9
  $region8: #{embedding_net_forward.4} parent=0 // pred_region
    _
  $region9: #{embedding_net_forward.4} parent=0 // pred_fallthru
    _
  // Predicated region
  $region10: #{embedding_net_forward.4} parent=0 // pred_check
    _
  $region11: #{embedding_net_forward.4} parent=0 // pred_check_branch
    %18 = sbr.rel (0) target = $region13
  $region12: #{embedding_net_forward.4} parent=0 // pred_region
    _
  $region13: #{embedding_net_forward.4} parent=0 // pred_fallthru
    _
  // Predicated region
  $region14: #{embedding_net_forward.4} parent=0 // pred_check
    _
  $region15: #{embedding_net_forward.4} parent=0 // pred_check_branch
    %20 = sbr.rel (0) target = $region17
  $region16: #{embedding_net_forward.4} parent=0 // pred_region
    _
  $region17: #{embedding_net_forward.4} parent=0 // pred_fallthru
    _
  // Predicated region
  $region18: #{embedding_net_forward.4} parent=0 // pred_check
    _
  $region19: #{embedding_net_forward.4} parent=0 // pred_check_branch
    %22 = sbr.rel (0) target = $region21
  $region20: #{embedding_net_forward.4} parent=0 // pred_region
    _
  $region21: #{embedding_net_forward.4} parent=0 // pred_fallthru
    _
  // Predicated region
  $region22: #{embedding_net_forward.4} parent=0 // pred_check
    _
  $region23: #{embedding_net_forward.4} parent=0 // pred_check_branch
    %24 = sbr.rel (0) target = $region25
  $region24: #{embedding_net_forward.4} parent=0 // pred_region
    _
  $region25: #{embedding_net_forward.4} parent=0 // pred_fallthru
    _
  // Predicated region
  $region26: #{embedding_net_forward.4} parent=0 // pred_check
    _
  $region27: #{embedding_net_forward.4} parent=0 // pred_check_branch
    %26 = sbr.rel (0) target = $region29
  $region28: #{embedding_net_forward.4} parent=0 // pred_region
    _
  $region29: #{embedding_net_forward.4} parent=0 // pred_fallthru
    _
  %v28 = vld [vmem:[%s4] sm:$0xf]
  %v29 = vld [vmem:[%s4 + $0x4] sm:$0xf]
  %v30 = vld [vmem:[%s4 + $0x8] sm:$0xf]
  %v31 = vld [vmem:[%s4 + $0xc] sm:$0x1]
  %v32 = vld [vmem:[%s5] sm:$0x1]
  %s33 = sld [smem:[#allocation2]]
  %v34 = vld [vmem:[%s0] sm:$0xf]
  %v35 = vld [vmem:[%s0 + $0x4] sm:$0xf]
  %v36 = vld [vmem:[%s0 + $0x8] sm:$0xf]
  %v37 = vld [vmem:[%s0 + $0xc] sm:$0xf]
  %v38 = vld [vmem:[%s0 + $0x10] sm:$0xf]
  %v39 = vld [vmem:[%s0 + $0x14] sm:$0xf]
  %v40 = vld [vmem:[%s0 + $0x18] sm:$0xf]
  %v41 = vld [vmem:[%s0 + $0x1c] sm:$0xf]
  %v42 = vld [vmem:[%s0 + $0x20] sm:$0xf]
  %v43 = vld [vmem:[%s0 + $0x24] sm:$0xf]
  %v44 = vld [vmem:[%s0 + $0x28] sm:$0xf]
  %v45 = vld [vmem:[%s0 + $0x2c] sm:$0xf]
  %v46 = vld [vmem:[%s0 + $0x30] sm:$0xf]
  %v47 = vld [vmem:[%s0 + $0x34] sm:$0xf]
  %v48 = vld [vmem:[%s0 + $0x38] sm:$0xf]
  %v49 = vld [vmem:[%s0 + $0x3c] sm:$0xf]
  %v50 = vld [vmem:[%s0 + $0x40] sm:$0xf]
  %v51 = vld [vmem:[%s0 + $0x44] sm:$0xf]
  %v52 = vld [vmem:[%s0 + $0x48] sm:$0xf]
  %v53 = vld [vmem:[%s0 + $0x4c] sm:$0xf]
  %v54 = vld [vmem:[%s0 + $0x50] sm:$0xf]
  %v55 = vld [vmem:[%s0 + $0x54] sm:$0xf]
  %v56 = vld [vmem:[%s0 + $0x58] sm:$0xf]
  %v57 = vld [vmem:[%s0 + $0x5c] sm:$0xf]
  %v58 = vld [vmem:[%s0 + $0x60] sm:$0xf]
  %v59 = vld [vmem:[%s0 + $0x64] sm:$0xf]
  %v60 = vld [vmem:[%s0 + $0x68] sm:$0xf]
  %v61 = vld [vmem:[%s0 + $0x6c] sm:$0xf]
  %v62 = vld [vmem:[%s0 + $0x70] sm:$0xf]
  %v63 = vld [vmem:[%s0 + $0x74] sm:$0xf]
  %v64 = vld [vmem:[%s0 + $0x78] sm:$0xf]
  %v65 = vld [vmem:[%s0 + $0x7c] sm:$0xf]
  %v66 = vld [vmem:[%s0 + $0x80] sm:$0xf]
  %v67 = vld [vmem:[%s0 + $0x84] sm:$0xf]
  %v68 = vld [vmem:[%s0 + $0x88] sm:$0xf]
  %v69 = vld [vmem:[%s0 + $0x8c] sm:$0xf]
  %v71 = vlaneseq
  %v72 = vshrl.u32 %v71, 7
  %v73 = vsub.s32 0, %v72
  %v74 = vrot.slane %v32, %v73
  %v112 = vunpack.c.l.b16 %v34
  %v113 = vunpack.c.l.b16 %v35
  %v114 = vunpack.c.l.b16 %v36
  %v115 = vunpack.c.l.b16 %v37
  %v116 = vunpack.c.l.b16 %v38
  %v117 = vunpack.c.l.b16 %v39
  %v118 = vunpack.c.l.b16 %v40
  %v119 = vunpack.c.l.b16 %v41
  %v120 = vunpack.c.l.b16 %v42
  %v121 = vunpack.c.l.b16 %v43
  %v122 = vunpack.c.l.b16 %v44
  %v123 = vunpack.c.l.b16 %v45
  %v124 = vunpack.c.l.b16 %v46
  %v125 = vunpack.c.l.b16 %v47
  %v126 = vunpack.c.l.b16 %v48
  %v127 = vunpack.c.l.b16 %v49
  %v128 = vunpack.c.l.b16 %v50
  %v129 = vunpack.c.l.b16 %v51
  %v130 = vunpack.c.l.b16 %v52
  %v131 = vunpack.c.l.b16 %v53
  %v132 = vunpack.c.l.b16 %v54
  %v133 = vunpack.c.l.b16 %v55
  %v134 = vunpack.c.l.b16 %v56
  %v135 = vunpack.c.l.b16 %v57
  %v136 = vunpack.c.l.b16 %v58
  %v137 = vunpack.c.l.b16 %v59
  %v138 = vunpack.c.l.b16 %v60
  %v139 = vunpack.c.l.b16 %v61
  %v140 = vunpack.c.l.b16 %v62
  %v141 = vunpack.c.l.b16 %v63
  %v142 = vunpack.c.l.b16 %v64
  %v143 = vunpack.c.l.b16 %v65
  %v144 = vunpack.c.l.b16 %v66
  %v145 = vunpack.c.l.b16 %v67
  %v146 = vunpack.c.l.b16 %v68
  %v147 = vunpack.c.l.b16 %v69
  %v148 = vpack.c.b16 %v113, %v112
  %v149 = vpack.c.b16 %v115, %v114
  %v150 = vpack.c.b16 %v117, %v116
  %v151 = vpack.c.b16 %v119, %v118
  %v152 = vpack.c.b16 %v121, %v120
  %v153 = vpack.c.b16 %v123, %v122
  %v154 = vpack.c.b16 %v125, %v124
  %v155 = vpack.c.b16 %v127, %v126
  %v156 = vpack.c.b16 %v129, %v128
  %v157 = vpack.c.b16 %v131, %v130
  %v158 = vpack.c.b16 %v133, %v132
  %v159 = vpack.c.b16 %v135, %v134
  %v160 = vpack.c.b16 %v137, %v136
  %v161 = vpack.c.b16 %v139, %v138
  %v162 = vpack.c.b16 %v141, %v140
  %v163 = vpack.c.b16 %v143, %v142
  %v164 = vpack.c.b16 %v145, %v144
  %v165 = vpack.c.b16 %v147, %v146
  %v170 = vunpack.c.l.b16 %v28
  %v171 = vunpack.c.l.b16 %v29
  %v172 = vunpack.c.l.b16 %v30
  %v173 = vunpack.c.l.b16 %v31
  %v174 = vpack.c.b16 %v171, %v170
  %v175 = vpack.c.b16 %v173, %v172
  %vm177 = vcmask 203776
  %v179 = vsel %vm177, %v148, 0
  %v182 = vsel %vm177, %v149, 0
  %v185 = vsel %vm177, %v150, 0
  %v188 = vsel %vm177, %v151, 0
  %v191 = vsel %vm177, %v152, 0
  %v194 = vsel %vm177, %v153, 0
  %v197 = vsel %vm177, %v154, 0
  %v200 = vsel %vm177, %v155, 0
  %v203 = vsel %vm177, %v156, 0
  %v206 = vsel %vm177, %v157, 0
  %v209 = vsel %vm177, %v158, 0
  %v212 = vsel %vm177, %v159, 0
  %v215 = vsel %vm177, %v160, 0
  %v218 = vsel %vm177, %v161, 0
  %v221 = vsel %vm177, %v162, 0
  %v224 = vsel %vm177, %v163, 0
  %v227 = vsel %vm177, %v164, 0
  %v230 = vsel %vm177, %v165, 0
  %vm232 = vcmask 1043456
  %vm233 = vcmask 1044480
  %v234 = vsel %vm232, 4294967295, 65535
  %v235 = vsel %vm233, %v234, 0
  %v237 = vand.u32 %v175, %v235
  %239 = vmatprep.subr.bf16.mxu0 0
  %240 = vmatpush1.bf16.msra.mxu0 %v174
  %241 = vmatprep.subr.bf16.mxu0 0
  %242 = vmatpush1.bf16.msra.mxu0 %v237
  %243 = vmatprep.subr.bf16.mxu0 0
  %244 = vmatpush1.bf16.msra.mxu0 0
  %245 = vmatprep.subr.bf16.mxu0 0
  %246 = vmatpush1.bf16.msra.mxu0 0
  %247 = vmatprep.subr.bf16.mxu0 0
  %248 = vmatpush1.bf16.msra.mxu0 0
  %249 = vmatprep.subr.bf16.mxu0 0
  %250 = vmatpush1.bf16.msra.mxu0 0
  %251 = vmatprep.subr.bf16.mxu0 0
  %252 = vmatpush1.bf16.msra.mxu0 0
  %253 = vmatprep.subr.bf16.mxu0 0
  %254 = vmatpush1.bf16.msra.mxu0 0
  %255 = vmatprep.subr.bf16.mxu0 0
  %256 = vmatpush1.bf16.msra.mxu0 0
  %257 = vmatprep.subr.bf16.mxu0 0
  %258 = vmatpush1.bf16.msra.mxu0 0
  %259 = vmatprep.subr.bf16.mxu0 0
  %260 = vmatpush1.bf16.msra.mxu0 0
  %261 = vmatprep.subr.bf16.mxu0 0
  %262 = vmatpush1.bf16.msra.mxu0 0
  %263 = vmatprep.subr.bf16.mxu0 0
  %264 = vmatpush1.bf16.msra.mxu0 0
  %265 = vmatprep.subr.bf16.mxu0 0
  %266 = vmatpush1.bf16.msra.mxu0 0
  %267 = vmatprep.subr.bf16.mxu0 0
  %268 = vmatpush1.bf16.msra.mxu0 0
  %269 = vmatprep.subr.bf16.mxu0 0
  %270 = vmatpush1.bf16.msra.mxu0 0
  %271 = vmatprep.mubr.bf16.mxu0 0
  %272 = vmatmul.mubr.bf16.gmra.mrb[0].mxu0 %v179
  %v273 = vpop.f32.mrb[0].mxu0
  %v274 = vadd.f32 %v74, %v273
  %v275 = vpop.f32.mrb[0].mxu0
  %v276 = vpop.f32.mrb[0].mxu0
  %v277 = vadd.f32 %v74, %v276
  %v278 = vpop.f32.mrb[0].mxu0
  %279 = vmatprep.mubr.bf16.mxu0 0
  %280 = vmatmul.mubr.bf16.gmra.mrb[0].mxu0 %v182
  %v281 = vpop.f32.mrb[0].mxu0
  %v282 = vadd.f32 %v74, %v281
  %v283 = vpop.f32.mrb[0].mxu0
  %v284 = vpop.f32.mrb[0].mxu0
  %v285 = vadd.f32 %v74, %v284
  %v286 = vpop.f32.mrb[0].mxu0
  %287 = vmatprep.mubr.bf16.mxu0 0
  %288 = vmatmul.mubr.bf16.gmra.mrb[0].mxu0 %v185
  %v289 = vpop.f32.mrb[0].mxu0
  %v290 = vadd.f32 %v74, %v289
  %v291 = vpop.f32.mrb[0].mxu0
  %v292 = vpop.f32.mrb[0].mxu0
  %v293 = vadd.f32 %v74, %v292
  %v294 = vpop.f32.mrb[0].mxu0
  %295 = vmatprep.mubr.bf16.mxu0 0
  %296 = vmatmul.mubr.bf16.gmra.mrb[0].mxu0 %v188
  %v297 = vpop.f32.mrb[0].mxu0
  %v298 = vadd.f32 %v74, %v297
  %v299 = vpop.f32.mrb[0].mxu0
  %v300 = vpop.f32.mrb[0].mxu0
  %v301 = vadd.f32 %v74, %v300
  %v302 = vpop.f32.mrb[0].mxu0
  %303 = vmatprep.mubr.bf16.mxu0 0
  %304 = vmatmul.mubr.bf16.gmra.mrb[0].mxu0 %v191
  %v305 = vpop.f32.mrb[0].mxu0
  %v306 = vadd.f32 %v74, %v305
  %v307 = vpop.f32.mrb[0].mxu0
  %v308 = vpop.f32.mrb[0].mxu0
  %v309 = vadd.f32 %v74, %v308
  %v310 = vpop.f32.mrb[0].mxu0
  %311 = vmatprep.mubr.bf16.mxu0 0
  %312 = vmatmul.mubr.bf16.gmra.mrb[0].mxu0 %v194
  %v313 = vpop.f32.mrb[0].mxu0
  %v314 = vadd.f32 %v74, %v313
  %v315 = vpop.f32.mrb[0].mxu0
  %v316 = vpop.f32.mrb[0].mxu0
  %v317 = vadd.f32 %v74, %v316
  %v318 = vpop.f32.mrb[0].mxu0
  %319 = vmatprep.mubr.bf16.mxu0 0
  %320 = vmatmul.mubr.bf16.gmra.mrb[0].mxu0 %v197
  %v321 = vpop.f32.mrb[0].mxu0
  %v322 = vadd.f32 %v74, %v321
  %v323 = vpop.f32.mrb[0].mxu0
  %v324 = vpop.f32.mrb[0].mxu0
  %v325 = vadd.f32 %v74, %v324
  %v326 = vpop.f32.mrb[0].mxu0
  %327 = vmatprep.mubr.bf16.mxu0 0
  %328 = vmatmul.mubr.bf16.gmra.mrb[0].mxu0 %v200
  %v329 = vpop.f32.mrb[0].mxu0
  %v330 = vadd.f32 %v74, %v329
  %v331 = vpop.f32.mrb[0].mxu0
  %v332 = vpop.f32.mrb[0].mxu0
  %v333 = vadd.f32 %v74, %v332
  %v334 = vpop.f32.mrb[0].mxu0
  %335 = vmatprep.mubr.bf16.mxu0 0
  %336 = vmatmul.mubr.bf16.gmra.mrb[0].mxu0 %v203
  %v337 = vpop.f32.mrb[0].mxu0
  %v338 = vadd.f32 %v74, %v337
  %v339 = vpop.f32.mrb[0].mxu0
  %v340 = vpop.f32.mrb[0].mxu0
  %v341 = vadd.f32 %v74, %v340
  %v342 = vpop.f32.mrb[0].mxu0
  %343 = vmatprep.mubr.bf16.mxu0 0
  %344 = vmatmul.mubr.bf16.gmra.mrb[0].mxu0 %v206
  %v345 = vpop.f32.mrb[0].mxu0
  %v346 = vadd.f32 %v74, %v345
  %v347 = vpop.f32.mrb[0].mxu0
  %v348 = vpop.f32.mrb[0].mxu0
  %v349 = vadd.f32 %v74, %v348
  %v350 = vpop.f32.mrb[0].mxu0
  %351 = vmatprep.mubr.bf16.mxu0 0
  %352 = vmatmul.mubr.bf16.gmra.mrb[0].mxu0 %v209
  %v353 = vpop.f32.mrb[0].mxu0
  %v354 = vadd.f32 %v74, %v353
  %v355 = vpop.f32.mrb[0].mxu0
  %v356 = vpop.f32.mrb[0].mxu0
  %v357 = vadd.f32 %v74, %v356
  %v358 = vpop.f32.mrb[0].mxu0
  %359 = vmatprep.mubr.bf16.mxu0 0
  %360 = vmatmul.mubr.bf16.gmra.mrb[0].mxu0 %v212
  %v361 = vpop.f32.mrb[0].mxu0
  %v362 = vadd.f32 %v74, %v361
  %v363 = vpop.f32.mrb[0].mxu0
  %v364 = vpop.f32.mrb[0].mxu0
  %v365 = vadd.f32 %v74, %v364
  %v366 = vpop.f32.mrb[0].mxu0
  %367 = vmatprep.mubr.bf16.mxu0 0
  %368 = vmatmul.mubr.bf16.gmra.mrb[0].mxu0 %v215
  %v369 = vpop.f32.mrb[0].mxu0
  %v370 = vadd.f32 %v74, %v369
  %v371 = vpop.f32.mrb[0].mxu0
  %v372 = vpop.f32.mrb[0].mxu0
  %v373 = vadd.f32 %v74, %v372
  %v374 = vpop.f32.mrb[0].mxu0
  %375 = vmatprep.mubr.bf16.mxu0 0
  %376 = vmatmul.mubr.bf16.gmra.mrb[0].mxu0 %v218
  %v377 = vpop.f32.mrb[0].mxu0
  %v378 = vadd.f32 %v74, %v377
  %v379 = vpop.f32.mrb[0].mxu0
  %v380 = vpop.f32.mrb[0].mxu0
  %v381 = vadd.f32 %v74, %v380
  %v382 = vpop.f32.mrb[0].mxu0
  %383 = vmatprep.mubr.bf16.mxu0 0
  %384 = vmatmul.mubr.bf16.gmra.mrb[0].mxu0 %v221
  %v385 = vpop.f32.mrb[0].mxu0
  %v386 = vadd.f32 %v74, %v385
  %v387 = vpop.f32.mrb[0].mxu0
  %v388 = vpop.f32.mrb[0].mxu0
  %v389 = vadd.f32 %v74, %v388
  %v390 = vpop.f32.mrb[0].mxu0
  %391 = vmatprep.mubr.bf16.mxu0 0
  %392 = vmatmul.mubr.bf16.gmra.mrb[0].mxu0 %v224
  %v393 = vpop.f32.mrb[0].mxu0
  %v394 = vadd.f32 %v74, %v393
  %v395 = vpop.f32.mrb[0].mxu0
  %v396 = vpop.f32.mrb[0].mxu0
  %v397 = vadd.f32 %v74, %v396
  %v398 = vpop.f32.mrb[0].mxu0
  %399 = vmatprep.mubr.bf16.mxu0 0
  %400 = vmatmul.mubr.bf16.gmra.mrb[0].mxu0 %v227
  %v401 = vpop.f32.mrb[0].mxu0
  %v402 = vadd.f32 %v74, %v401
  %v403 = vpop.f32.mrb[0].mxu0
  %v404 = vpop.f32.mrb[0].mxu0
  %v405 = vadd.f32 %v74, %v404
  %v406 = vpop.f32.mrb[0].mxu0
  %407 = vmatprep.mubr.bf16.mxu0 0
  %408 = vmatmul.mubr.bf16.gmra.mrb[0].mxu0 %v230
  %v409 = vpop.f32.mrb[0].mxu0
  %v410 = vadd.f32 %v74, %v409
  %v411 = vpop.f32.mrb[0].mxu0
  %v412 = vpop.f32.mrb[0].mxu0
  %v413 = vadd.f32 %v74, %v412
  %v414 = vpop.f32.mrb[0].mxu0
  %415 = vdwg.mxu0
  %vm416 = vcmp.gt.f32.partialorder %v274, 0.0
  %vm417 = vcmp.gt.f32.partialorder %v277, 0.0
  %vm418 = vcmp.gt.f32.partialorder %v282, 0.0
  %vm419 = vcmp.gt.f32.partialorder %v285, 0.0
  %vm420 = vcmp.gt.f32.partialorder %v290, 0.0
  %vm421 = vcmp.gt.f32.partialorder %v293, 0.0
  %vm422 = vcmp.gt.f32.partialorder %v298, 0.0
  %vm423 = vcmp.gt.f32.partialorder %v301, 0.0
  %vm424 = vcmp.gt.f32.partialorder %v306, 0.0
  %vm425 = vcmp.gt.f32.partialorder %v309, 0.0
  %vm426 = vcmp.gt.f32.partialorder %v314, 0.0
  %vm427 = vcmp.gt.f32.partialorder %v317, 0.0
  %vm428 = vcmp.gt.f32.partialorder %v322, 0.0
  %vm429 = vcmp.gt.f32.partialorder %v325, 0.0
  %vm430 = vcmp.gt.f32.partialorder %v330, 0.0
  %vm431 = vcmp.gt.f32.partialorder %v333, 0.0
  %vm432 = vcmp.gt.f32.partialorder %v338, 0.0
  %vm433 = vcmp.gt.f32.partialorder %v341, 0.0
  %vm434 = vcmp.gt.f32.partialorder %v346, 0.0
  %vm435 = vcmp.gt.f32.partialorder %v349, 0.0
  %vm436 = vcmp.gt.f32.partialorder %v354, 0.0
  %vm437 = vcmp.gt.f32.partialorder %v357, 0.0
  %vm438 = vcmp.gt.f32.partialorder %v362, 0.0
  %vm439 = vcmp.gt.f32.partialorder %v365, 0.0
  %vm440 = vcmp.gt.f32.partialorder %v370, 0.0
  %vm441 = vcmp.gt.f32.partialorder %v373, 0.0
  %vm442 = vcmp.gt.f32.partialorder %v378, 0.0
  %vm443 = vcmp.gt.f32.partialorder %v381, 0.0
  %vm444 = vcmp.gt.f32.partialorder %v386, 0.0
  %vm445 = vcmp.gt.f32.partialorder %v389, 0.0
  %vm446 = vcmp.gt.f32.partialorder %v394, 0.0
  %vm447 = vcmp.gt.f32.partialorder %v397, 0.0
  %vm448 = vcmp.gt.f32.partialorder %v402, 0.0
  %vm449 = vcmp.gt.f32.partialorder %v405, 0.0
  %vm450 = vcmp.gt.f32.partialorder %v410, 0.0
  %vm451 = vcmp.gt.f32.partialorder %v413, 0.0
  %v452 = vstv %s33
  %v453 = vmul.f32 %v452, %v274
  %v454 = vmul.f32 %v452, %v277
  %v455 = vmul.f32 %v452, %v282
  %v456 = vmul.f32 %v452, %v285
  %v457 = vmul.f32 %v452, %v290
  %v458 = vmul.f32 %v452, %v293
  %v459 = vmul.f32 %v452, %v298
  %v460 = vmul.f32 %v452, %v301
  %v461 = vmul.f32 %v452, %v306
  %v462 = vmul.f32 %v452, %v309
  %v463 = vmul.f32 %v452, %v314
  %v464 = vmul.f32 %v452, %v317
  %v465 = vmul.f32 %v452, %v322
  %v466 = vmul.f32 %v452, %v325
  %v467 = vmul.f32 %v452, %v330
  %v468 = vmul.f32 %v452, %v333
  %v469 = vmul.f32 %v452, %v338
  %v470 = vmul.f32 %v452, %v341
  %v471 = vmul.f32 %v452, %v346
  %v472 = vmul.f32 %v452, %v349
  %v473 = vmul.f32 %v452, %v354
  %v474 = vmul.f32 %v452, %v357
  %v475 = vmul.f32 %v452, %v362
  %v476 = vmul.f32 %v452, %v365
  %v477 = vmul.f32 %v452, %v370
  %v478 = vmul.f32 %v452, %v373
  %v479 = vmul.f32 %v452, %v378
  %v480 = vmul.f32 %v452, %v381
  %v481 = vmul.f32 %v452, %v386
  %v482 = vmul.f32 %v452, %v389
  %v483 = vmul.f32 %v452, %v394
  %v484 = vmul.f32 %v452, %v397
  %v485 = vmul.f32 %v452, %v402
  %v486 = vmul.f32 %v452, %v405
  %v487 = vmul.f32 %v452, %v410
  %v488 = vmul.f32 %v452, %v413
  %v489 = vsel %vm416, %v274, %v453
  %v490 = vsel %vm417, %v277, %v454
  %v491 = vsel %vm418, %v282, %v455
  %v492 = vsel %vm419, %v285, %v456
  %v493 = vsel %vm420, %v290, %v457
  %v494 = vsel %vm421, %v293, %v458
  %v495 = vsel %vm422, %v298, %v459
  %v496 = vsel %vm423, %v301, %v460
  %v497 = vsel %vm424, %v306, %v461
  %v498 = vsel %vm425, %v309, %v462
  %v499 = vsel %vm426, %v314, %v463
  %v500 = vsel %vm427, %v317, %v464
  %v501 = vsel %vm428, %v322, %v465
  %v502 = vsel %vm429, %v325, %v466
  %v503 = vsel %vm430, %v330, %v467
  %v504 = vsel %vm431, %v333, %v468
  %v505 = vsel %vm432, %v338, %v469
  %v506 = vsel %vm433, %v341, %v470
  %v507 = vsel %vm434, %v346, %v471
  %v508 = vsel %vm435, %v349, %v472
  %v509 = vsel %vm436, %v354, %v473
  %v510 = vsel %vm437, %v357, %v474
  %v511 = vsel %vm438, %v362, %v475
  %v512 = vsel %vm439, %v365, %v476
  %v513 = vsel %vm440, %v370, %v477
  %v514 = vsel %vm441, %v373, %v478
  %v515 = vsel %vm442, %v378, %v479
  %v516 = vsel %vm443, %v381, %v480
  %v517 = vsel %vm444, %v386, %v481
  %v518 = vsel %vm445, %v389, %v482
  %v519 = vsel %vm446, %v394, %v483
  %v520 = vsel %vm447, %v397, %v484
  %v521 = vsel %vm448, %v402, %v485
  %v522 = vsel %vm449, %v405, %v486
  %v523 = vsel %vm450, %v410, %v487
  %v524 = vsel %vm451, %v413, %v488
  %v525 = vld [vmem:[%s1] sm:$0xf]
  %v526 = vld [vmem:[%s1 + $0x4] sm:$0xf]
  %v527 = vld [vmem:[%s1 + $0x8] sm:$0xf]
  %v528 = vld [vmem:[%s1 + $0xc] sm:$0xf]
  %v529 = vld [vmem:[%s1 + $0x10] sm:$0xf]
  %v530 = vld [vmem:[%s1 + $0x14] sm:$0xf]
  %v531 = vld [vmem:[%s1 + $0x18] sm:$0xf]
  %v532 = vld [vmem:[%s1 + $0x1c] sm:$0xf]
  %v533 = vld [vmem:[%s1 + $0x20] sm:$0xf]
  %v534 = vld [vmem:[%s1 + $0x24] sm:$0xf]
  %v535 = vld [vmem:[%s1 + $0x28] sm:$0xf]
  %v536 = vld [vmem:[%s1 + $0x2c] sm:$0xf]
  %v537 = vld [vmem:[%s1 + $0x30] sm:$0xf]
  %v538 = vld [vmem:[%s1 + $0x34] sm:$0xf]
  %v539 = vld [vmem:[%s1 + $0x38] sm:$0xf]
  %v540 = vld [vmem:[%s1 + $0x3c] sm:$0xf]
  %v541 = vld [vmem:[%s1 + $0x40] sm:$0xf]
  %v542 = vld [vmem:[%s1 + $0x44] sm:$0xf]
  %v543 = vld [vmem:[%s1 + $0x48] sm:$0xf]
  %v544 = vld [vmem:[%s1 + $0x4c] sm:$0xf]
  %v545 = vld [vmem:[%s1 + $0x50] sm:$0xf]
  %v546 = vld [vmem:[%s1 + $0x54] sm:$0xf]
  %v547 = vld [vmem:[%s1 + $0x58] sm:$0xf]
  %v548 = vld [vmem:[%s1 + $0x5c] sm:$0xf]
  %v549 = vld [vmem:[%s1 + $0x60] sm:$0xf]
  %v550 = vld [vmem:[%s1 + $0x64] sm:$0xf]
  %v551 = vld [vmem:[%s1 + $0x68] sm:$0xf]
  %v552 = vld [vmem:[%s1 + $0x6c] sm:$0xf]
  %v553 = vld [vmem:[%s1 + $0x70] sm:$0xf]
  %v554 = vld [vmem:[%s1 + $0x74] sm:$0xf]
  %v555 = vld [vmem:[%s1 + $0x78] sm:$0xf]
  %v556 = vld [vmem:[%s1 + $0x7c] sm:$0xf]
  %v557 = vld [vmem:[%s1 + $0x80] sm:$0xf]
  %v558 = vld [vmem:[%s1 + $0x84] sm:$0xf]
  %v559 = vld [vmem:[%s1 + $0x88] sm:$0xf]
  %v560 = vld [vmem:[%s1 + $0x8c] sm:$0xf]
  %v597 = vunpack.c.l.b16 %v525
  %v598 = vunpack.c.l.b16 %v526
  %v599 = vunpack.c.l.b16 %v527
  %v600 = vunpack.c.l.b16 %v528
  %v601 = vunpack.c.l.b16 %v529
  %v602 = vunpack.c.l.b16 %v530
  %v603 = vunpack.c.l.b16 %v531
  %v604 = vunpack.c.l.b16 %v532
  %v605 = vunpack.c.l.b16 %v533
  %v606 = vunpack.c.l.b16 %v534
  %v607 = vunpack.c.l.b16 %v535
  %v608 = vunpack.c.l.b16 %v536
  %v609 = vunpack.c.l.b16 %v537
  %v610 = vunpack.c.l.b16 %v538
  %v611 = vunpack.c.l.b16 %v539
  %v612 = vunpack.c.l.b16 %v540
  %v613 = vunpack.c.l.b16 %v541
  %v614 = vunpack.c.l.b16 %v542
  %v615 = vunpack.c.l.b16 %v543
  %v616 = vunpack.c.l.b16 %v544
  %v617 = vunpack.c.l.b16 %v545
  %v618 = vunpack.c.l.b16 %v546
  %v619 = vunpack.c.l.b16 %v547
  %v620 = vunpack.c.l.b16 %v548
  %v621 = vunpack.c.l.b16 %v549
  %v622 = vunpack.c.l.b16 %v550
  %v623 = vunpack.c.l.b16 %v551
  %v624 = vunpack.c.l.b16 %v552
  %v625 = vunpack.c.l.b16 %v553
  %v626 = vunpack.c.l.b16 %v554
  %v627 = vunpack.c.l.b16 %v555
  %v628 = vunpack.c.l.b16 %v556
  %v629 = vunpack.c.l.b16 %v557
  %v630 = vunpack.c.l.b16 %v558
  %v631 = vunpack.c.l.b16 %v559
  %v632 = vunpack.c.l.b16 %v560
  %v633 = vpack.c.b16 %v598, %v597
  %v634 = vpack.c.b16 %v600, %v599
  %v635 = vpack.c.b16 %v602, %v601
  %v636 = vpack.c.b16 %v604, %v603
  %v637 = vpack.c.b16 %v606, %v605
  %v638 = vpack.c.b16 %v608, %v607
  %v639 = vpack.c.b16 %v610, %v609
  %v640 = vpack.c.b16 %v612, %v611
  %v641 = vpack.c.b16 %v614, %v613
  %v642 = vpack.c.b16 %v616, %v615
  %v643 = vpack.c.b16 %v618, %v617
  %v644 = vpack.c.b16 %v620, %v619
  %v645 = vpack.c.b16 %v622, %v621
  %v646 = vpack.c.b16 %v624, %v623
  %v647 = vpack.c.b16 %v626, %v625
  %v648 = vpack.c.b16 %v628, %v627
  %v649 = vpack.c.b16 %v630, %v629
  %v650 = vpack.c.b16 %v632, %v631
  %v652 = vsel %vm177, %v633, 0
  %v655 = vsel %vm177, %v634, 0
  %v658 = vsel %vm177, %v635, 0
  %v661 = vsel %vm177, %v636, 0
  %v664 = vsel %vm177, %v637, 0
  %v667 = vsel %vm177, %v638, 0
  %v670 = vsel %vm177, %v639, 0
  %v673 = vsel %vm177, %v640, 0
  %v676 = vsel %vm177, %v641, 0
  %v679 = vsel %vm177, %v642, 0
  %v682 = vsel %vm177, %v643, 0
  %v685 = vsel %vm177, %v644, 0
  %v688 = vsel %vm177, %v645, 0
  %v691 = vsel %vm177, %v646, 0
  %v694 = vsel %vm177, %v647, 0
  %v697 = vsel %vm177, %v648, 0
  %v700 = vsel %vm177, %v649, 0
  %v703 = vsel %vm177, %v650, 0
  %705 = vmatprep.subr.bf16.mxu0 0
  %706 = vmatpush1.bf16.msra.mxu0 %v174
  %707 = vmatprep.subr.bf16.mxu0 0
  %708 = vmatpush1.bf16.msra.mxu0 %v237
  %709 = vmatprep.subr.bf16.mxu0 0
  %710 = vmatpush1.bf16.msra.mxu0 0
  %711 = vmatprep.subr.bf16.mxu0 0
  %712 = vmatpush1.bf16.msra.mxu0 0
  %713 = vmatprep.subr.bf16.mxu0 0
  %714 = vmatpush1.bf16.msra.mxu0 0
  %715 = vmatprep.subr.bf16.mxu0 0
  %716 = vmatpush1.bf16.msra.mxu0 0
  %717 = vmatprep.subr.bf16.mxu0 0
  %718 = vmatpush1.bf16.msra.mxu0 0
  %719 = vmatprep.subr.bf16.mxu0 0
  %720 = vmatpush1.bf16.msra.mxu0 0
  %721 = vmatprep.subr.bf16.mxu0 0
  %722 = vmatpush1.bf16.msra.mxu0 0
  %723 = vmatprep.subr.bf16.mxu0 0
  %724 = vmatpush1.bf16.msra.mxu0 0
  %725 = vmatprep.subr.bf16.mxu0 0
  %726 = vmatpush1.bf16.msra.mxu0 0
  %727 = vmatprep.subr.bf16.mxu0 0
  %728 = vmatpush1.bf16.msra.mxu0 0
  %729 = vmatprep.subr.bf16.mxu0 0
  %730 = vmatpush1.bf16.msra.mxu0 0
  %731 = vmatprep.subr.bf16.mxu0 0
  %732 = vmatpush1.bf16.msra.mxu0 0
  %733 = vmatprep.subr.bf16.mxu0 0
  %734 = vmatpush1.bf16.msra.mxu0 0
  %735 = vmatprep.subr.bf16.mxu0 0
  %736 = vmatpush1.bf16.msra.mxu0 0
  %737 = vmatprep.mubr.bf16.mxu0 0
  %738 = vmatmul.mubr.bf16.gmra.mrb[0].mxu0 %v652
  %v739 = vpop.f32.mrb[0].mxu0
  %v740 = vadd.f32 %v74, %v739
  %v741 = vpop.f32.mrb[0].mxu0
  %v742 = vpop.f32.mrb[0].mxu0
  %v743 = vadd.f32 %v74, %v742
  %v744 = vpop.f32.mrb[0].mxu0
  %745 = vmatprep.mubr.bf16.mxu0 0
  %746 = vmatmul.mubr.bf16.gmra.mrb[0].mxu0 %v655
  %v747 = vpop.f32.mrb[0].mxu0
  %v748 = vadd.f32 %v74, %v747
  %v749 = vpop.f32.mrb[0].mxu0
  %v750 = vpop.f32.mrb[0].mxu0
  %v751 = vadd.f32 %v74, %v750
  %v752 = vpop.f32.mrb[0].mxu0
  %753 = vmatprep.mubr.bf16.mxu0 0
  %754 = vmatmul.mubr.bf16.gmra.mrb[0].mxu0 %v658
  %v755 = vpop.f32.mrb[0].mxu0
  %v756 = vadd.f32 %v74, %v755
  %v757 = vpop.f32.mrb[0].mxu0
  %v758 = vpop.f32.mrb[0].mxu0
  %v759 = vadd.f32 %v74, %v758
  %v760 = vpop.f32.mrb[0].mxu0
  %761 = vmatprep.mubr.bf16.mxu0 0
  %762 = vmatmul.mubr.bf16.gmra.mrb[0].mxu0 %v661
  %v763 = vpop.f32.mrb[0].mxu0
  %v764 = vadd.f32 %v74, %v763
  %v765 = vpop.f32.mrb[0].mxu0
  %v766 = vpop.f32.mrb[0].mxu0
  %v767 = vadd.f32 %v74, %v766
  %v768 = vpop.f32.mrb[0].mxu0
  %769 = vmatprep.mubr.bf16.mxu0 0
  %770 = vmatmul.mubr.bf16.gmra.mrb[0].mxu0 %v664
  %v771 = vpop.f32.mrb[0].mxu0
  %v772 = vadd.f32 %v74, %v771
  %v773 = vpop.f32.mrb[0].mxu0
  %v774 = vpop.f32.mrb[0].mxu0
  %v775 = vadd.f32 %v74, %v774
  %v776 = vpop.f32.mrb[0].mxu0
  %777 = vmatprep.mubr.bf16.mxu0 0
  %778 = vmatmul.mubr.bf16.gmra.mrb[0].mxu0 %v667
  %v779 = vpop.f32.mrb[0].mxu0
  %v780 = vadd.f32 %v74, %v779
  %v781 = vpop.f32.mrb[0].mxu0
  %v782 = vpop.f32.mrb[0].mxu0
  %v783 = vadd.f32 %v74, %v782
  %v784 = vpop.f32.mrb[0].mxu0
  %785 = vmatprep.mubr.bf16.mxu0 0
  %786 = vmatmul.mubr.bf16.gmra.mrb[0].mxu0 %v670
  %v787 = vpop.f32.mrb[0].mxu0
  %v788 = vadd.f32 %v74, %v787
  %v789 = vpop.f32.mrb[0].mxu0
  %v790 = vpop.f32.mrb[0].mxu0
  %v791 = vadd.f32 %v74, %v790
  %v792 = vpop.f32.mrb[0].mxu0
  %793 = vmatprep.mubr.bf16.mxu0 0
  %794 = vmatmul.mubr.bf16.gmra.mrb[0].mxu0 %v673
  %v795 = vpop.f32.mrb[0].mxu0
  %v796 = vadd.f32 %v74, %v795
  %v797 = vpop.f32.mrb[0].mxu0
  %v798 = vpop.f32.mrb[0].mxu0
  %v799 = vadd.f32 %v74, %v798
  %v800 = vpop.f32.mrb[0].mxu0
  %801 = vmatprep.mubr.bf16.mxu0 0
  %802 = vmatmul.mubr.bf16.gmra.mrb[0].mxu0 %v676
  %v803 = vpop.f32.mrb[0].mxu0
  %v804 = vadd.f32 %v74, %v803
  %v805 = vpop.f32.mrb[0].mxu0
  %v806 = vpop.f32.mrb[0].mxu0
  %v807 = vadd.f32 %v74, %v806
  %v808 = vpop.f32.mrb[0].mxu0
  %809 = vmatprep.mubr.bf16.mxu0 0
  %810 = vmatmul.mubr.bf16.gmra.mrb[0].mxu0 %v679
  %v811 = vpop.f32.mrb[0].mxu0
  %v812 = vadd.f32 %v74, %v811
  %v813 = vpop.f32.mrb[0].mxu0
  %v814 = vpop.f32.mrb[0].mxu0
  %v815 = vadd.f32 %v74, %v814
  %v816 = vpop.f32.mrb[0].mxu0
  %817 = vmatprep.mubr.bf16.mxu0 0
  %818 = vmatmul.mubr.bf16.gmra.mrb[0].mxu0 %v682
  %v819 = vpop.f32.mrb[0].mxu0
  %v820 = vadd.f32 %v74, %v819
  %v821 = vpop.f32.mrb[0].mxu0
  %v822 = vpop.f32.mrb[0].mxu0
  %v823 = vadd.f32 %v74, %v822
  %v824 = vpop.f32.mrb[0].mxu0
  %825 = vmatprep.mubr.bf16.mxu0 0
  %826 = vmatmul.mubr.bf16.gmra.mrb[0].mxu0 %v685
  %v827 = vpop.f32.mrb[0].mxu0
  %v828 = vadd.f32 %v74, %v827
  %v829 = vpop.f32.mrb[0].mxu0
  %v830 = vpop.f32.mrb[0].mxu0
  %v831 = vadd.f32 %v74, %v830
  %v832 = vpop.f32.mrb[0].mxu0
  %833 = vmatprep.mubr.bf16.mxu0 0
  %834 = vmatmul.mubr.bf16.gmra.mrb[0].mxu0 %v688
  %v835 = vpop.f32.mrb[0].mxu0
  %v836 = vadd.f32 %v74, %v835
  %v837 = vpop.f32.mrb[0].mxu0
  %v838 = vpop.f32.mrb[0].mxu0
  %v839 = vadd.f32 %v74, %v838
  %v840 = vpop.f32.mrb[0].mxu0
  %841 = vmatprep.mubr.bf16.mxu0 0
  %842 = vmatmul.mubr.bf16.gmra.mrb[0].mxu0 %v691
  %v843 = vpop.f32.mrb[0].mxu0
  %v844 = vadd.f32 %v74, %v843
  %v845 = vpop.f32.mrb[0].mxu0
  %v846 = vpop.f32.mrb[0].mxu0
  %v847 = vadd.f32 %v74, %v846
  %v848 = vpop.f32.mrb[0].mxu0
  %849 = vmatprep.mubr.bf16.mxu0 0
  %850 = vmatmul.mubr.bf16.gmra.mrb[0].mxu0 %v694
  %v851 = vpop.f32.mrb[0].mxu0
  %v852 = vadd.f32 %v74, %v851
  %v853 = vpop.f32.mrb[0].mxu0
  %v854 = vpop.f32.mrb[0].mxu0
  %v855 = vadd.f32 %v74, %v854
  %v856 = vpop.f32.mrb[0].mxu0
  %857 = vmatprep.mubr.bf16.mxu0 0
  %858 = vmatmul.mubr.bf16.gmra.mrb[0].mxu0 %v697
  %v859 = vpop.f32.mrb[0].mxu0
  %v860 = vadd.f32 %v74, %v859
  %v861 = vpop.f32.mrb[0].mxu0
  %v862 = vpop.f32.mrb[0].mxu0
  %v863 = vadd.f32 %v74, %v862
  %v864 = vpop.f32.mrb[0].mxu0
  %865 = vmatprep.mubr.bf16.mxu0 0
  %866 = vmatmul.mubr.bf16.gmra.mrb[0].mxu0 %v700
  %v867 = vpop.f32.mrb[0].mxu0
  %v868 = vadd.f32 %v74, %v867
  %v869 = vpop.f32.mrb[0].mxu0
  %v870 = vpop.f32.mrb[0].mxu0
  %v871 = vadd.f32 %v74, %v870
  %v872 = vpop.f32.mrb[0].mxu0
  %873 = vmatprep.mubr.bf16.mxu0 0
  %874 = vmatmul.mubr.bf16.gmra.mrb[0].mxu0 %v703
  %v875 = vpop.f32.mrb[0].mxu0
  %v876 = vadd.f32 %v74, %v875
  %v877 = vpop.f32.mrb[0].mxu0
  %v878 = vpop.f32.mrb[0].mxu0
  %v879 = vadd.f32 %v74, %v878
  %v880 = vpop.f32.mrb[0].mxu0
  %881 = vdwg.mxu0
  %vm882 = vcmp.gt.f32.partialorder %v740, 0.0
  %vm883 = vcmp.gt.f32.partialorder %v743, 0.0
  %vm884 = vcmp.gt.f32.partialorder %v748, 0.0
  %vm885 = vcmp.gt.f32.partialorder %v751, 0.0
  %vm886 = vcmp.gt.f32.partialorder %v756, 0.0
  %vm887 = vcmp.gt.f32.partialorder %v759, 0.0
  %vm888 = vcmp.gt.f32.partialorder %v764, 0.0
  %vm889 = vcmp.gt.f32.partialorder %v767, 0.0
  %vm890 = vcmp.gt.f32.partialorder %v772, 0.0
  %vm891 = vcmp.gt.f32.partialorder %v775, 0.0
  %vm892 = vcmp.gt.f32.partialorder %v780, 0.0
  %vm893 = vcmp.gt.f32.partialorder %v783, 0.0
  %vm894 = vcmp.gt.f32.partialorder %v788, 0.0
  %vm895 = vcmp.gt.f32.partialorder %v791, 0.0
  %vm896 = vcmp.gt.f32.partialorder %v796, 0.0
  %vm897 = vcmp.gt.f32.partialorder %v799, 0.0
  %vm898 = vcmp.gt.f32.partialorder %v804, 0.0
  %vm899 = vcmp.gt.f32.partialorder %v807, 0.0
  %vm900 = vcmp.gt.f32.partialorder %v812, 0.0
  %vm901 = vcmp.gt.f32.partialorder %v815, 0.0
  %vm902 = vcmp.gt.f32.partialorder %v820, 0.0
  %vm903 = vcmp.gt.f32.partialorder %v823, 0.0
  %vm904 = vcmp.gt.f32.partialorder %v828, 0.0
  %vm905 = vcmp.gt.f32.partialorder %v831, 0.0
  %vm906 = vcmp.gt.f32.partialorder %v836, 0.0
  %vm907 = vcmp.gt.f32.partialorder %v839, 0.0
  %vm908 = vcmp.gt.f32.partialorder %v844, 0.0
  %vm909 = vcmp.gt.f32.partialorder %v847, 0.0
  %vm910 = vcmp.gt.f32.partialorder %v852, 0.0
  %vm911 = vcmp.gt.f32.partialorder %v855, 0.0
  %vm912 = vcmp.gt.f32.partialorder %v860, 0.0
  %vm913 = vcmp.gt.f32.partialorder %v863, 0.0
  %vm914 = vcmp.gt.f32.partialorder %v868, 0.0
  %vm915 = vcmp.gt.f32.partialorder %v871, 0.0
  %vm916 = vcmp.gt.f32.partialorder %v876, 0.0
  %vm917 = vcmp.gt.f32.partialorder %v879, 0.0
  %v918 = vmul.f32 %v452, %v740
  %v919 = vmul.f32 %v452, %v743
  %v920 = vmul.f32 %v452, %v748
  %v921 = vmul.f32 %v452, %v751
  %v922 = vmul.f32 %v452, %v756
  %v923 = vmul.f32 %v452, %v759
  %v924 = vmul.f32 %v452, %v764
  %v925 = vmul.f32 %v452, %v767
  %v926 = vmul.f32 %v452, %v772
  %v927 = vmul.f32 %v452, %v775
  %v928 = vmul.f32 %v452, %v780
  %v929 = vmul.f32 %v452, %v783
  %v930 = vmul.f32 %v452, %v788
  %v931 = vmul.f32 %v452, %v791
  %v932 = vmul.f32 %v452, %v796
  %v933 = vmul.f32 %v452, %v799
  %v934 = vmul.f32 %v452, %v804
  %v935 = vmul.f32 %v452, %v807
  %v936 = vmul.f32 %v452, %v812
  %v937 = vmul.f32 %v452, %v815
  %v938 = vmul.f32 %v452, %v820
  %v939 = vmul.f32 %v452, %v823
  %v940 = vmul.f32 %v452, %v828
  %v941 = vmul.f32 %v452, %v831
  %v942 = vmul.f32 %v452, %v836
  %v943 = vmul.f32 %v452, %v839
  %v944 = vmul.f32 %v452, %v844
  %v945 = vmul.f32 %v452, %v847
  %v946 = vmul.f32 %v452, %v852
  %v947 = vmul.f32 %v452, %v855
  %v948 = vmul.f32 %v452, %v860
  %v949 = vmul.f32 %v452, %v863
  %v950 = vmul.f32 %v452, %v868
  %v951 = vmul.f32 %v452, %v871
  %v952 = vmul.f32 %v452, %v876
  %v953 = vmul.f32 %v452, %v879
  %v954 = vsel %vm882, %v740, %v918
  %v955 = vsel %vm883, %v743, %v919
  %v956 = vsel %vm884, %v748, %v920
  %v957 = vsel %vm885, %v751, %v921
  %v958 = vsel %vm886, %v756, %v922
  %v959 = vsel %vm887, %v759, %v923
  %v960 = vsel %vm888, %v764, %v924
  %v961 = vsel %vm889, %v767, %v925
  %v962 = vsel %vm890, %v772, %v926
  %v963 = vsel %vm891, %v775, %v927
  %v964 = vsel %vm892, %v780, %v928
  %v965 = vsel %vm893, %v783, %v929
  %v966 = vsel %vm894, %v788, %v930
  %v967 = vsel %vm895, %v791, %v931
  %v968 = vsel %vm896, %v796, %v932
  %v969 = vsel %vm897, %v799, %v933
  %v970 = vsel %vm898, %v804, %v934
  %v971 = vsel %vm899, %v807, %v935
  %v972 = vsel %vm900, %v812, %v936
  %v973 = vsel %vm901, %v815, %v937
  %v974 = vsel %vm902, %v820, %v938
  %v975 = vsel %vm903, %v823, %v939
  %v976 = vsel %vm904, %v828, %v940
  %v977 = vsel %vm905, %v831, %v941
  %v978 = vsel %vm906, %v836, %v942
  %v979 = vsel %vm907, %v839, %v943
  %v980 = vsel %vm908, %v844, %v944
  %v981 = vsel %vm909, %v847, %v945
  %v982 = vsel %vm910, %v852, %v946
  %v983 = vsel %vm911, %v855, %v947
  %v984 = vsel %vm912, %v860, %v948
  %v985 = vsel %vm913, %v863, %v949
  %v986 = vsel %vm914, %v868, %v950
  %v987 = vsel %vm915, %v871, %v951
  %v988 = vsel %vm916, %v876, %v952
  %v989 = vsel %vm917, %v879, %v953
  %v990 = vmax.f32 %v489, %v954
  %v991 = vmax.f32 %v490, %v955
  %v992 = vmax.f32 %v491, %v956
  %v993 = vmax.f32 %v492, %v957
  %v994 = vmax.f32 %v493, %v958
  %v995 = vmax.f32 %v494, %v959
  %v996 = vmax.f32 %v495, %v960
  %v997 = vmax.f32 %v496, %v961
  %v998 = vmax.f32 %v497, %v962
  %v999 = vmax.f32 %v498, %v963
  %v1000 = vmax.f32 %v499, %v964
  %v1001 = vmax.f32 %v500, %v965
  %v1002 = vmax.f32 %v501, %v966
  %v1003 = vmax.f32 %v502, %v967
  %v1004 = vmax.f32 %v503, %v968
  %v1005 = vmax.f32 %v504, %v969
  %v1006 = vmax.f32 %v505, %v970
  %v1007 = vmax.f32 %v506, %v971
  %v1008 = vmax.f32 %v507, %v972
  %v1009 = vmax.f32 %v508, %v973
  %v1010 = vmax.f32 %v509, %v974
  %v1011 = vmax.f32 %v510, %v975
  %v1012 = vmax.f32 %v511, %v976
  %v1013 = vmax.f32 %v512, %v977
  %v1014 = vmax.f32 %v513, %v978
  %v1015 = vmax.f32 %v514, %v979
  %v1016 = vmax.f32 %v515, %v980
  %v1017 = vmax.f32 %v516, %v981
  %v1018 = vmax.f32 %v517, %v982
  %v1019 = vmax.f32 %v518, %v983
  %v1020 = vmax.f32 %v519, %v984
  %v1021 = vmax.f32 %v520, %v985
  %v1022 = vmax.f32 %v521, %v986
  %v1023 = vmax.f32 %v522, %v987
  %v1024 = vmax.f32 %v523, %v988
  %v1025 = vmax.f32 %v524, %v989
  %v1026 = vld [vmem:[%s2] sm:$0xf]
  %v1027 = vld [vmem:[%s2 + $0x4] sm:$0xf]
  %v1028 = vld [vmem:[%s2 + $0x8] sm:$0xf]
  %v1029 = vld [vmem:[%s2 + $0xc] sm:$0xf]
  %v1030 = vld [vmem:[%s2 + $0x10] sm:$0xf]
  %v1031 = vld [vmem:[%s2 + $0x14] sm:$0xf]
  %v1032 = vld [vmem:[%s2 + $0x18] sm:$0xf]
  %v1033 = vld [vmem:[%s2 + $0x1c] sm:$0xf]
  %v1034 = vld [vmem:[%s2 + $0x20] sm:$0xf]
  %v1035 = vld [vmem:[%s2 + $0x24] sm:$0xf]
  %v1036 = vld [vmem:[%s2 + $0x28] sm:$0xf]
  %v1037 = vld [vmem:[%s2 + $0x2c] sm:$0xf]
  %v1038 = vld [vmem:[%s2 + $0x30] sm:$0xf]
  %v1039 = vld [vmem:[%s2 + $0x34] sm:$0xf]
  %v1040 = vld [vmem:[%s2 + $0x38] sm:$0xf]
  %v1041 = vld [vmem:[%s2 + $0x3c] sm:$0xf]
  %v1042 = vld [vmem:[%s2 + $0x40] sm:$0xf]
  %v1043 = vld [vmem:[%s2 + $0x44] sm:$0xf]
  %v1044 = vld [vmem:[%s2 + $0x48] sm:$0xf]
  %v1045 = vld [vmem:[%s2 + $0x4c] sm:$0xf]
  %v1046 = vld [vmem:[%s2 + $0x50] sm:$0xf]
  %v1047 = vld [vmem:[%s2 + $0x54] sm:$0xf]
  %v1048 = vld [vmem:[%s2 + $0x58] sm:$0xf]
  %v1049 = vld [vmem:[%s2 + $0x5c] sm:$0xf]
  %v1050 = vld [vmem:[%s2 + $0x60] sm:$0xf]
  %v1051 = vld [vmem:[%s2 + $0x64] sm:$0xf]
  %v1052 = vld [vmem:[%s2 + $0x68] sm:$0xf]
  %v1053 = vld [vmem:[%s2 + $0x6c] sm:$0xf]
  %v1054 = vld [vmem:[%s2 + $0x70] sm:$0xf]
  %v1055 = vld [vmem:[%s2 + $0x74] sm:$0xf]
  %v1056 = vld [vmem:[%s2 + $0x78] sm:$0xf]
  %v1057 = vld [vmem:[%s2 + $0x7c] sm:$0xf]
  %v1058 = vld [vmem:[%s2 + $0x80] sm:$0xf]
  %v1059 = vld [vmem:[%s2 + $0x84] sm:$0xf]
  %v1060 = vld [vmem:[%s2 + $0x88] sm:$0xf]
  %v1061 = vld [vmem:[%s2 + $0x8c] sm:$0xf]
  %v1098 = vunpack.c.l.b16 %v1026
  %v1099 = vunpack.c.l.b16 %v1027
  %v1100 = vunpack.c.l.b16 %v1028
  %v1101 = vunpack.c.l.b16 %v1029
  %v1102 = vunpack.c.l.b16 %v1030
  %v1103 = vunpack.c.l.b16 %v1031
  %v1104 = vunpack.c.l.b16 %v1032
  %v1105 = vunpack.c.l.b16 %v1033
  %v1106 = vunpack.c.l.b16 %v1034
  %v1107 = vunpack.c.l.b16 %v1035
  %v1108 = vunpack.c.l.b16 %v1036
  %v1109 = vunpack.c.l.b16 %v1037
  %v1110 = vunpack.c.l.b16 %v1038
  %v1111 = vunpack.c.l.b16 %v1039
  %v1112 = vunpack.c.l.b16 %v1040
  %v1113 = vunpack.c.l.b16 %v1041
  %v1114 = vunpack.c.l.b16 %v1042
  %v1115 = vunpack.c.l.b16 %v1043
  %v1116 = vunpack.c.l.b16 %v1044
  %v1117 = vunpack.c.l.b16 %v1045
  %v1118 = vunpack.c.l.b16 %v1046
  %v1119 = vunpack.c.l.b16 %v1047
  %v1120 = vunpack.c.l.b16 %v1048
  %v1121 = vunpack.c.l.b16 %v1049
  %v1122 = vunpack.c.l.b16 %v1050
  %v1123 = vunpack.c.l.b16 %v1051
  %v1124 = vunpack.c.l.b16 %v1052
  %v1125 = vunpack.c.l.b16 %v1053
  %v1126 = vunpack.c.l.b16 %v1054
  %v1127 = vunpack.c.l.b16 %v1055
  %v1128 = vunpack.c.l.b16 %v1056
  %v1129 = vunpack.c.l.b16 %v1057
  %v1130 = vunpack.c.l.b16 %v1058
  %v1131 = vunpack.c.l.b16 %v1059
  %v1132 = vunpack.c.l.b16 %v1060
  %v1133 = vunpack.c.l.b16 %v1061
  %v1134 = vpack.c.b16 %v1099, %v1098
  %v1135 = vpack.c.b16 %v1101, %v1100
  %v1136 = vpack.c.b16 %v1103, %v1102
  %v1137 = vpack.c.b16 %v1105, %v1104
  %v1138 = vpack.c.b16 %v1107, %v1106
  %v1139 = vpack.c.b16 %v1109, %v1108
  %v1140 = vpack.c.b16 %v1111, %v1110
  %v1141 = vpack.c.b16 %v1113, %v1112
  %v1142 = vpack.c.b16 %v1115, %v1114
  %v1143 = vpack.c.b16 %v1117, %v1116
  %v1144 = vpack.c.b16 %v1119, %v1118
  %v1145 = vpack.c.b16 %v1121, %v1120
  %v1146 = vpack.c.b16 %v1123, %v1122
  %v1147 = vpack.c.b16 %v1125, %v1124
  %v1148 = vpack.c.b16 %v1127, %v1126
  %v1149 = vpack.c.b16 %v1129, %v1128
  %v1150 = vpack.c.b16 %v1131, %v1130
  %v1151 = vpack.c.b16 %v1133, %v1132
  %v1153 = vsel %vm177, %v1134, 0
  %v1156 = vsel %vm177, %v1135, 0
  %v1159 = vsel %vm177, %v1136, 0
  %v1162 = vsel %vm177, %v1137, 0
  %v1165 = vsel %vm177, %v1138, 0
  %v1168 = vsel %vm177, %v1139, 0
  %v1171 = vsel %vm177, %v1140, 0
  %v1174 = vsel %vm177, %v1141, 0
  %v1177 = vsel %vm177, %v1142, 0
  %v1180 = vsel %vm177, %v1143, 0
  %v1183 = vsel %vm177, %v1144, 0
  %v1186 = vsel %vm177, %v1145, 0
  %v1189 = vsel %vm177, %v1146, 0
  %v1192 = vsel %vm177, %v1147, 0
  %v1195 = vsel %vm177, %v1148, 0
  %v1198 = vsel %vm177, %v1149, 0
  %v1201 = vsel %vm177, %v1150, 0
  %v1204 = vsel %vm177, %v1151, 0
  %1206 = vmatprep.subr.bf16.mxu0 0
  %1207 = vmatpush1.bf16.msra.mxu0 %v174
  %1208 = vmatprep.subr.bf16.mxu0 0
  %1209 = vmatpush1.bf16.msra.mxu0 %v237
  %1210 = vmatprep.subr.bf16.mxu0 0
  %1211 = vmatpush1.bf16.msra.mxu0 0
  %1212 = vmatprep.subr.bf16.mxu0 0
  %1213 = vmatpush1.bf16.msra.mxu0 0
  %1214 = vmatprep.subr.bf16.mxu0 0
  %1215 = vmatpush1.bf16.msra.mxu0 0
  %1216 = vmatprep.subr.bf16.mxu0 0
  %1217 = vmatpush1.bf16.msra.mxu0 0
  %1218 = vmatprep.subr.bf16.mxu0 0
  %1219 = vmatpush1.bf16.msra.mxu0 0
  %1220 = vmatprep.subr.bf16.mxu0 0
  %1221 = vmatpush1.bf16.msra.mxu0 0
  %1222 = vmatprep.subr.bf16.mxu0 0
  %1223 = vmatpush1.bf16.msra.mxu0 0
  %1224 = vmatprep.subr.bf16.mxu0 0
  %1225 = vmatpush1.bf16.msra.mxu0 0
  %1226 = vmatprep.subr.bf16.mxu0 0
  %1227 = vmatpush1.bf16.msra.mxu0 0
  %1228 = vmatprep.subr.bf16.mxu0 0
  %1229 = vmatpush1.bf16.msra.mxu0 0
  %1230 = vmatprep.subr.bf16.mxu0 0
  %1231 = vmatpush1.bf16.msra.mxu0 0
  %1232 = vmatprep.subr.bf16.mxu0 0
  %1233 = vmatpush1.bf16.msra.mxu0 0
  %1234 = vmatprep.subr.bf16.mxu0 0
  %1235 = vmatpush1.bf16.msra.mxu0 0
  %1236 = vmatprep.subr.bf16.mxu0 0
  %1237 = vmatpush1.bf16.msra.mxu0 0
  %1238 = vmatprep.mubr.bf16.mxu0 0
  %1239 = vmatmul.mubr.bf16.gmra.mrb[0].mxu0 %v1153
  %v1240 = vpop.f32.mrb[0].mxu0
  %v1241 = vadd.f32 %v74, %v1240
  %v1242 = vpop.f32.mrb[0].mxu0
  %v1243 = vpop.f32.mrb[0].mxu0
  %v1244 = vadd.f32 %v74, %v1243
  %v1245 = vpop.f32.mrb[0].mxu0
  %1246 = vmatprep.mubr.bf16.mxu0 0
  %1247 = vmatmul.mubr.bf16.gmra.mrb[0].mxu0 %v1156
  %v1248 = vpop.f32.mrb[0].mxu0
  %v1249 = vadd.f32 %v74, %v1248
  %v1250 = vpop.f32.mrb[0].mxu0
  %v1251 = vpop.f32.mrb[0].mxu0
  %v1252 = vadd.f32 %v74, %v1251
  %v1253 = vpop.f32.mrb[0].mxu0
  %1254 = vmatprep.mubr.bf16.mxu0 0
  %1255 = vmatmul.mubr.bf16.gmra.mrb[0].mxu0 %v1159
  %v1256 = vpop.f32.mrb[0].mxu0
  %v1257 = vadd.f32 %v74, %v1256
  %v1258 = vpop.f32.mrb[0].mxu0
  %v1259 = vpop.f32.mrb[0].mxu0
  %v1260 = vadd.f32 %v74, %v1259
  %v1261 = vpop.f32.mrb[0].mxu0
  %1262 = vmatprep.mubr.bf16.mxu0 0
  %1263 = vmatmul.mubr.bf16.gmra.mrb[0].mxu0 %v1162
  %v1264 = vpop.f32.mrb[0].mxu0
  %v1265 = vadd.f32 %v74, %v1264
  %v1266 = vpop.f32.mrb[0].mxu0
  %v1267 = vpop.f32.mrb[0].mxu0
  %v1268 = vadd.f32 %v74, %v1267
  %v1269 = vpop.f32.mrb[0].mxu0
  %1270 = vmatprep.mubr.bf16.mxu0 0
  %1271 = vmatmul.mubr.bf16.gmra.mrb[0].mxu0 %v1165
  %v1272 = vpop.f32.mrb[0].mxu0
  %v1273 = vadd.f32 %v74, %v1272
  %v1274 = vpop.f32.mrb[0].mxu0
  %v1275 = vpop.f32.mrb[0].mxu0
  %v1276 = vadd.f32 %v74, %v1275
  %v1277 = vpop.f32.mrb[0].mxu0
  %1278 = vmatprep.mubr.bf16.mxu0 0
  %1279 = vmatmul.mubr.bf16.gmra.mrb[0].mxu0 %v1168
  %v1280 = vpop.f32.mrb[0].mxu0
  %v1281 = vadd.f32 %v74, %v1280
  %v1282 = vpop.f32.mrb[0].mxu0
  %v1283 = vpop.f32.mrb[0].mxu0
  %v1284 = vadd.f32 %v74, %v1283
  %v1285 = vpop.f32.mrb[0].mxu0
  %1286 = vmatprep.mubr.bf16.mxu0 0
  %1287 = vmatmul.mubr.bf16.gmra.mrb[0].mxu0 %v1171
  %v1288 = vpop.f32.mrb[0].mxu0
  %v1289 = vadd.f32 %v74, %v1288
  %v1290 = vpop.f32.mrb[0].mxu0
  %v1291 = vpop.f32.mrb[0].mxu0
  %v1292 = vadd.f32 %v74, %v1291
  %v1293 = vpop.f32.mrb[0].mxu0
  %1294 = vmatprep.mubr.bf16.mxu0 0
  %1295 = vmatmul.mubr.bf16.gmra.mrb[0].mxu0 %v1174
  %v1296 = vpop.f32.mrb[0].mxu0
  %v1297 = vadd.f32 %v74, %v1296
  %v1298 = vpop.f32.mrb[0].mxu0
  %v1299 = vpop.f32.mrb[0].mxu0
  %v1300 = vadd.f32 %v74, %v1299
  %v1301 = vpop.f32.mrb[0].mxu0
  %1302 = vmatprep.mubr.bf16.mxu0 0
  %1303 = vmatmul.mubr.bf16.gmra.mrb[0].mxu0 %v1177
  %v1304 = vpop.f32.mrb[0].mxu0
  %v1305 = vadd.f32 %v74, %v1304
  %v1306 = vpop.f32.mrb[0].mxu0
  %v1307 = vpop.f32.mrb[0].mxu0
  %v1308 = vadd.f32 %v74, %v1307
  %v1309 = vpop.f32.mrb[0].mxu0
  %1310 = vmatprep.mubr.bf16.mxu0 0
  %1311 = vmatmul.mubr.bf16.gmra.mrb[0].mxu0 %v1180
  %v1312 = vpop.f32.mrb[0].mxu0
  %v1313 = vadd.f32 %v74, %v1312
  %v1314 = vpop.f32.mrb[0].mxu0
  %v1315 = vpop.f32.mrb[0].mxu0
  %v1316 = vadd.f32 %v74, %v1315
  %v1317 = vpop.f32.mrb[0].mxu0
  %1318 = vmatprep.mubr.bf16.mxu0 0
  %1319 = vmatmul.mubr.bf16.gmra.mrb[0].mxu0 %v1183
  %v1320 = vpop.f32.mrb[0].mxu0
  %v1321 = vadd.f32 %v74, %v1320
  %v1322 = vpop.f32.mrb[0].mxu0
  %v1323 = vpop.f32.mrb[0].mxu0
  %v1324 = vadd.f32 %v74, %v1323
  %v1325 = vpop.f32.mrb[0].mxu0
  %1326 = vmatprep.mubr.bf16.mxu0 0
  %1327 = vmatmul.mubr.bf16.gmra.mrb[0].mxu0 %v1186
  %v1328 = vpop.f32.mrb[0].mxu0
  %v1329 = vadd.f32 %v74, %v1328
  %v1330 = vpop.f32.mrb[0].mxu0
  %v1331 = vpop.f32.mrb[0].mxu0
  %v1332 = vadd.f32 %v74, %v1331
  %v1333 = vpop.f32.mrb[0].mxu0
  %1334 = vmatprep.mubr.bf16.mxu0 0
  %1335 = vmatmul.mubr.bf16.gmra.mrb[0].mxu0 %v1189
  %v1336 = vpop.f32.mrb[0].mxu0
  %v1337 = vadd.f32 %v74, %v1336
  %v1338 = vpop.f32.mrb[0].mxu0
  %v1339 = vpop.f32.mrb[0].mxu0
  %v1340 = vadd.f32 %v74, %v1339
  %v1341 = vpop.f32.mrb[0].mxu0
  %1342 = vmatprep.mubr.bf16.mxu0 0
  %1343 = vmatmul.mubr.bf16.gmra.mrb[0].mxu0 %v1192
  %v1344 = vpop.f32.mrb[0].mxu0
  %v1345 = vadd.f32 %v74, %v1344
  %v1346 = vpop.f32.mrb[0].mxu0
  %v1347 = vpop.f32.mrb[0].mxu0
  %v1348 = vadd.f32 %v74, %v1347
  %v1349 = vpop.f32.mrb[0].mxu0
  %1350 = vmatprep.mubr.bf16.mxu0 0
  %1351 = vmatmul.mubr.bf16.gmra.mrb[0].mxu0 %v1195
  %v1352 = vpop.f32.mrb[0].mxu0
  %v1353 = vadd.f32 %v74, %v1352
  %v1354 = vpop.f32.mrb[0].mxu0
  %v1355 = vpop.f32.mrb[0].mxu0
  %v1356 = vadd.f32 %v74, %v1355
  %v1357 = vpop.f32.mrb[0].mxu0
  %1358 = vmatprep.mubr.bf16.mxu0 0
  %1359 = vmatmul.mubr.bf16.gmra.mrb[0].mxu0 %v1198
  %v1360 = vpop.f32.mrb[0].mxu0
  %v1361 = vadd.f32 %v74, %v1360
  %v1362 = vpop.f32.mrb[0].mxu0
  %v1363 = vpop.f32.mrb[0].mxu0
  %v1364 = vadd.f32 %v74, %v1363
  %v1365 = vpop.f32.mrb[0].mxu0
  %1366 = vmatprep.mubr.bf16.mxu0 0
  %1367 = vmatmul.mubr.bf16.gmra.mrb[0].mxu0 %v1201
  %v1368 = vpop.f32.mrb[0].mxu0
  %v1369 = vadd.f32 %v74, %v1368
  %v1370 = vpop.f32.mrb[0].mxu0
  %v1371 = vpop.f32.mrb[0].mxu0
  %v1372 = vadd.f32 %v74, %v1371
  %v1373 = vpop.f32.mrb[0].mxu0
  %1374 = vmatprep.mubr.bf16.mxu0 0
  %1375 = vmatmul.mubr.bf16.gmra.mrb[0].mxu0 %v1204
  %v1376 = vpop.f32.mrb[0].mxu0
  %v1377 = vadd.f32 %v74, %v1376
  %v1378 = vpop.f32.mrb[0].mxu0
  %v1379 = vpop.f32.mrb[0].mxu0
  %v1380 = vadd.f32 %v74, %v1379
  %v1381 = vpop.f32.mrb[0].mxu0
  %1382 = vdwg.mxu0
  %vm1383 = vcmp.gt.f32.partialorder %v1241, 0.0
  %vm1384 = vcmp.gt.f32.partialorder %v1244, 0.0
  %vm1385 = vcmp.gt.f32.partialorder %v1249, 0.0
  %vm1386 = vcmp.gt.f32.partialorder %v1252, 0.0
  %vm1387 = vcmp.gt.f32.partialorder %v1257, 0.0
  %vm1388 = vcmp.gt.f32.partialorder %v1260, 0.0
  %vm1389 = vcmp.gt.f32.partialorder %v1265, 0.0
  %vm1390 = vcmp.gt.f32.partialorder %v1268, 0.0
  %vm1391 = vcmp.gt.f32.partialorder %v1273, 0.0
  %vm1392 = vcmp.gt.f32.partialorder %v1276, 0.0
  %vm1393 = vcmp.gt.f32.partialorder %v1281, 0.0
  %vm1394 = vcmp.gt.f32.partialorder %v1284, 0.0
  %vm1395 = vcmp.gt.f32.partialorder %v1289, 0.0
  %vm1396 = vcmp.gt.f32.partialorder %v1292, 0.0
  %vm1397 = vcmp.gt.f32.partialorder %v1297, 0.0
  %vm1398 = vcmp.gt.f32.partialorder %v1300, 0.0
  %vm1399 = vcmp.gt.f32.partialorder %v1305, 0.0
  %vm1400 = vcmp.gt.f32.partialorder %v1308, 0.0
  %vm1401 = vcmp.gt.f32.partialorder %v1313, 0.0
  %vm1402 = vcmp.gt.f32.partialorder %v1316, 0.0
  %vm1403 = vcmp.gt.f32.partialorder %v1321, 0.0
  %vm1404 = vcmp.gt.f32.partialorder %v1324, 0.0
  %vm1405 = vcmp.gt.f32.partialorder %v1329, 0.0
  %vm1406 = vcmp.gt.f32.partialorder %v1332, 0.0
  %vm1407 = vcmp.gt.f32.partialorder %v1337, 0.0
  %vm1408 = vcmp.gt.f32.partialorder %v1340, 0.0
  %vm1409 = vcmp.gt.f32.partialorder %v1345, 0.0
  %vm1410 = vcmp.gt.f32.partialorder %v1348, 0.0
  %vm1411 = vcmp.gt.f32.partialorder %v1353, 0.0
  %vm1412 = vcmp.gt.f32.partialorder %v1356, 0.0
  %vm1413 = vcmp.gt.f32.partialorder %v1361, 0.0
  %vm1414 = vcmp.gt.f32.partialorder %v1364, 0.0
  %vm1415 = vcmp.gt.f32.partialorder %v1369, 0.0
  %vm1416 = vcmp.gt.f32.partialorder %v1372, 0.0
  %vm1417 = vcmp.gt.f32.partialorder %v1377, 0.0
  %vm1418 = vcmp.gt.f32.partialorder %v1380, 0.0
  %v1419 = vmul.f32 %v452, %v1241
  %v1420 = vmul.f32 %v452, %v1244
  %v1421 = vmul.f32 %v452, %v1249
  %v1422 = vmul.f32 %v452, %v1252
  %v1423 = vmul.f32 %v452, %v1257
  %v1424 = vmul.f32 %v452, %v1260
  %v1425 = vmul.f32 %v452, %v1265
  %v1426 = vmul.f32 %v452, %v1268
  %v1427 = vmul.f32 %v452, %v1273
  %v1428 = vmul.f32 %v452, %v1276
  %v1429 = vmul.f32 %v452, %v1281
  %v1430 = vmul.f32 %v452, %v1284
  %v1431 = vmul.f32 %v452, %v1289
  %v1432 = vmul.f32 %v452, %v1292
  %v1433 = vmul.f32 %v452, %v1297
  %v1434 = vmul.f32 %v452, %v1300
  %v1435 = vmul.f32 %v452, %v1305
  %v1436 = vmul.f32 %v452, %v1308
  %v1437 = vmul.f32 %v452, %v1313
  %v1438 = vmul.f32 %v452, %v1316
  %v1439 = vmul.f32 %v452, %v1321
  %v1440 = vmul.f32 %v452, %v1324
  %v1441 = vmul.f32 %v452, %v1329
  %v1442 = vmul.f32 %v452, %v1332
  %v1443 = vmul.f32 %v452, %v1337
  %v1444 = vmul.f32 %v452, %v1340
  %v1445 = vmul.f32 %v452, %v1345
  %v1446 = vmul.f32 %v452, %v1348
  %v1447 = vmul.f32 %v452, %v1353
  %v1448 = vmul.f32 %v452, %v1356
  %v1449 = vmul.f32 %v452, %v1361
  %v1450 = vmul.f32 %v452, %v1364
  %v1451 = vmul.f32 %v452, %v1369
  %v1452 = vmul.f32 %v452, %v1372
  %v1453 = vmul.f32 %v452, %v1377
  %v1454 = vmul.f32 %v452, %v1380
  %v1455 = vsel %vm1383, %v1241, %v1419
  %v1456 = vsel %vm1384, %v1244, %v1420
  %v1457 = vsel %vm1385, %v1249, %v1421
  %v1458 = vsel %vm1386, %v1252, %v1422
  %v1459 = vsel %vm1387, %v1257, %v1423
  %v1460 = vsel %vm1388, %v1260, %v1424
  %v1461 = vsel %vm1389, %v1265, %v1425
  %v1462 = vsel %vm1390, %v1268, %v1426
  %v1463 = vsel %vm1391, %v1273, %v1427
  %v1464 = vsel %vm1392, %v1276, %v1428
  %v1465 = vsel %vm1393, %v1281, %v1429
  %v1466 = vsel %vm1394, %v1284, %v1430
  %v1467 = vsel %vm1395, %v1289, %v1431
  %v1468 = vsel %vm1396, %v1292, %v1432
  %v1469 = vsel %vm1397, %v1297, %v1433
  %v1470 = vsel %vm1398, %v1300, %v1434
  %v1471 = vsel %vm1399, %v1305, %v1435
  %v1472 = vsel %vm1400, %v1308, %v1436
  %v1473 = vsel %vm1401, %v1313, %v1437
  %v1474 = vsel %vm1402, %v1316, %v1438
  %v1475 = vsel %vm1403, %v1321, %v1439
  %v1476 = vsel %vm1404, %v1324, %v1440
  %v1477 = vsel %vm1405, %v1329, %v1441
  %v1478 = vsel %vm1406, %v1332, %v1442
  %v1479 = vsel %vm1407, %v1337, %v1443
  %v1480 = vsel %vm1408, %v1340, %v1444
  %v1481 = vsel %vm1409, %v1345, %v1445
  %v1482 = vsel %vm1410, %v1348, %v1446
  %v1483 = vsel %vm1411, %v1353, %v1447
  %v1484 = vsel %vm1412, %v1356, %v1448
  %v1485 = vsel %vm1413, %v1361, %v1449
  %v1486 = vsel %vm1414, %v1364, %v1450
  %v1487 = vsel %vm1415, %v1369, %v1451
  %v1488 = vsel %vm1416, %v1372, %v1452
  %v1489 = vsel %vm1417, %v1377, %v1453
  %v1490 = vsel %vm1418, %v1380, %v1454
  %v1491 = vld [vmem:[%s3] sm:$0xf]
  %v1492 = vld [vmem:[%s3 + $0x4] sm:$0xf]
  %v1493 = vld [vmem:[%s3 + $0x8] sm:$0xf]
  %v1494 = vld [vmem:[%s3 + $0xc] sm:$0xf]
  %v1495 = vld [vmem:[%s3 + $0x10] sm:$0xf]
  %v1496 = vld [vmem:[%s3 + $0x14] sm:$0xf]
  %v1497 = vld [vmem:[%s3 + $0x18] sm:$0xf]
  %v1498 = vld [vmem:[%s3 + $0x1c] sm:$0xf]
  %v1499 = vld [vmem:[%s3 + $0x20] sm:$0xf]
  %v1500 = vld [vmem:[%s3 + $0x24] sm:$0xf]
  %v1501 = vld [vmem:[%s3 + $0x28] sm:$0xf]
  %v1502 = vld [vmem:[%s3 + $0x2c] sm:$0xf]
  %v1503 = vld [vmem:[%s3 + $0x30] sm:$0xf]
  %v1504 = vld [vmem:[%s3 + $0x34] sm:$0xf]
  %v1505 = vld [vmem:[%s3 + $0x38] sm:$0xf]
  %v1506 = vld [vmem:[%s3 + $0x3c] sm:$0xf]
  %v1507 = vld [vmem:[%s3 + $0x40] sm:$0xf]
  %v1508 = vld [vmem:[%s3 + $0x44] sm:$0xf]
  %v1509 = vld [vmem:[%s3 + $0x48] sm:$0xf]
  %v1510 = vld [vmem:[%s3 + $0x4c] sm:$0xf]
  %v1511 = vld [vmem:[%s3 + $0x50] sm:$0xf]
  %v1512 = vld [vmem:[%s3 + $0x54] sm:$0xf]
  %v1513 = vld [vmem:[%s3 + $0x58] sm:$0xf]
  %v1514 = vld [vmem:[%s3 + $0x5c] sm:$0xf]
  %v1515 = vld [vmem:[%s3 + $0x60] sm:$0xf]
  %v1516 = vld [vmem:[%s3 + $0x64] sm:$0xf]
  %v1517 = vld [vmem:[%s3 + $0x68] sm:$0xf]
  %v1518 = vld [vmem:[%s3 + $0x6c] sm:$0xf]
  %v1519 = vld [vmem:[%s3 + $0x70] sm:$0xf]
  %v1520 = vld [vmem:[%s3 + $0x74] sm:$0xf]
  %v1521 = vld [vmem:[%s3 + $0x78] sm:$0xf]
  %v1522 = vld [vmem:[%s3 + $0x7c] sm:$0xf]
  %v1523 = vld [vmem:[%s3 + $0x80] sm:$0xf]
  %v1524 = vld [vmem:[%s3 + $0x84] sm:$0xf]
  %v1525 = vld [vmem:[%s3 + $0x88] sm:$0xf]
  %v1526 = vld [vmem:[%s3 + $0x8c] sm:$0xf]
  %v1563 = vunpack.c.l.b16 %v1491
  %v1564 = vunpack.c.l.b16 %v1492
  %v1565 = vunpack.c.l.b16 %v1493
  %v1566 = vunpack.c.l.b16 %v1494
  %v1567 = vunpack.c.l.b16 %v1495
  %v1568 = vunpack.c.l.b16 %v1496
  %v1569 = vunpack.c.l.b16 %v1497
  %v1570 = vunpack.c.l.b16 %v1498
  %v1571 = vunpack.c.l.b16 %v1499
  %v1572 = vunpack.c.l.b16 %v1500
  %v1573 = vunpack.c.l.b16 %v1501
  %v1574 = vunpack.c.l.b16 %v1502
  %v1575 = vunpack.c.l.b16 %v1503
  %v1576 = vunpack.c.l.b16 %v1504
  %v1577 = vunpack.c.l.b16 %v1505
  %v1578 = vunpack.c.l.b16 %v1506
  %v1579 = vunpack.c.l.b16 %v1507
  %v1580 = vunpack.c.l.b16 %v1508
  %v1581 = vunpack.c.l.b16 %v1509
  %v1582 = vunpack.c.l.b16 %v1510
  %v1583 = vunpack.c.l.b16 %v1511
  %v1584 = vunpack.c.l.b16 %v1512
  %v1585 = vunpack.c.l.b16 %v1513
  %v1586 = vunpack.c.l.b16 %v1514
  %v1587 = vunpack.c.l.b16 %v1515
  %v1588 = vunpack.c.l.b16 %v1516
  %v1589 = vunpack.c.l.b16 %v1517
  %v1590 = vunpack.c.l.b16 %v1518
  %v1591 = vunpack.c.l.b16 %v1519
  %v1592 = vunpack.c.l.b16 %v1520
  %v1593 = vunpack.c.l.b16 %v1521
  %v1594 = vunpack.c.l.b16 %v1522
  %v1595 = vunpack.c.l.b16 %v1523
  %v1596 = vunpack.c.l.b16 %v1524
  %v1597 = vunpack.c.l.b16 %v1525
  %v1598 = vunpack.c.l.b16 %v1526
  %v1599 = vpack.c.b16 %v1564, %v1563
  %v1600 = vpack.c.b16 %v1566, %v1565
  %v1601 = vpack.c.b16 %v1568, %v1567
  %v1602 = vpack.c.b16 %v1570, %v1569
  %v1603 = vpack.c.b16 %v1572, %v1571
  %v1604 = vpack.c.b16 %v1574, %v1573
  %v1605 = vpack.c.b16 %v1576, %v1575
  %v1606 = vpack.c.b16 %v1578, %v1577
  %v1607 = vpack.c.b16 %v1580, %v1579
  %v1608 = vpack.c.b16 %v1582, %v1581
  %v1609 = vpack.c.b16 %v1584, %v1583
  %v1610 = vpack.c.b16 %v1586, %v1585
  %v1611 = vpack.c.b16 %v1588, %v1587
  %v1612 = vpack.c.b16 %v1590, %v1589
  %v1613 = vpack.c.b16 %v1592, %v1591
  %v1614 = vpack.c.b16 %v1594, %v1593
  %v1615 = vpack.c.b16 %v1596, %v1595
  %v1616 = vpack.c.b16 %v1598, %v1597
  %v1618 = vsel %vm177, %v1599, 0
  %v1621 = vsel %vm177, %v1600, 0
  %v1624 = vsel %vm177, %v1601, 0
  %v1627 = vsel %vm177, %v1602, 0
  %v1630 = vsel %vm177, %v1603, 0
  %v1633 = vsel %vm177, %v1604, 0
  %v1636 = vsel %vm177, %v1605, 0
  %v1639 = vsel %vm177, %v1606, 0
  %v1642 = vsel %vm177, %v1607, 0
  %v1645 = vsel %vm177, %v1608, 0
  %v1648 = vsel %vm177, %v1609, 0
  %v1651 = vsel %vm177, %v1610, 0
  %v1654 = vsel %vm177, %v1611, 0
  %v1657 = vsel %vm177, %v1612, 0
  %v1660 = vsel %vm177, %v1613, 0
  %v1663 = vsel %vm177, %v1614, 0
  %v1666 = vsel %vm177, %v1615, 0
  %v1669 = vsel %vm177, %v1616, 0
  %1671 = vmatprep.subr.bf16.mxu0 0
  %1672 = vmatpush1.bf16.msra.mxu0 %v174
  %1673 = vmatprep.subr.bf16.mxu0 0
  %1674 = vmatpush1.bf16.msra.mxu0 %v237
  %1675 = vmatprep.subr.bf16.mxu0 0
  %1676 = vmatpush1.bf16.msra.mxu0 0
  %1677 = vmatprep.subr.bf16.mxu0 0
  %1678 = vmatpush1.bf16.msra.mxu0 0
  %1679 = vmatprep.subr.bf16.mxu0 0
  %1680 = vmatpush1.bf16.msra.mxu0 0
  %1681 = vmatprep.subr.bf16.mxu0 0
  %1682 = vmatpush1.bf16.msra.mxu0 0
  %1683 = vmatprep.subr.bf16.mxu0 0
  %1684 = vmatpush1.bf16.msra.mxu0 0
  %1685 = vmatprep.subr.bf16.mxu0 0
  %1686 = vmatpush1.bf16.msra.mxu0 0
  %1687 = vmatprep.subr.bf16.mxu0 0
  %1688 = vmatpush1.bf16.msra.mxu0 0
  %1689 = vmatprep.subr.bf16.mxu0 0
  %1690 = vmatpush1.bf16.msra.mxu0 0
  %1691 = vmatprep.subr.bf16.mxu0 0
  %1692 = vmatpush1.bf16.msra.mxu0 0
  %1693 = vmatprep.subr.bf16.mxu0 0
  %1694 = vmatpush1.bf16.msra.mxu0 0
  %1695 = vmatprep.subr.bf16.mxu0 0
  %1696 = vmatpush1.bf16.msra.mxu0 0
  %1697 = vmatprep.subr.bf16.mxu0 0
  %1698 = vmatpush1.bf16.msra.mxu0 0
  %1699 = vmatprep.subr.bf16.mxu0 0
  %1700 = vmatpush1.bf16.msra.mxu0 0
  %1701 = vmatprep.subr.bf16.mxu0 0
  %1702 = vmatpush1.bf16.msra.mxu0 0
  %1703 = vmatprep.mubr.bf16.mxu0 0
  %1704 = vmatmul.mubr.bf16.gmra.mrb[0].mxu0 %v1618
  %v1705 = vpop.f32.mrb[0].mxu0
  %v1706 = vadd.f32 %v74, %v1705
  %v1707 = vpop.f32.mrb[0].mxu0
  %v1708 = vpop.f32.mrb[0].mxu0
  %v1709 = vadd.f32 %v74, %v1708
  %v1710 = vpop.f32.mrb[0].mxu0
  %1711 = vmatprep.mubr.bf16.mxu0 0
  %1712 = vmatmul.mubr.bf16.gmra.mrb[0].mxu0 %v1621
  %v1713 = vpop.f32.mrb[0].mxu0
  %v1714 = vadd.f32 %v74, %v1713
  %v1715 = vpop.f32.mrb[0].mxu0
  %v1716 = vpop.f32.mrb[0].mxu0
  %v1717 = vadd.f32 %v74, %v1716
  %v1718 = vpop.f32.mrb[0].mxu0
  %1719 = vmatprep.mubr.bf16.mxu0 0
  %1720 = vmatmul.mubr.bf16.gmra.mrb[0].mxu0 %v1624
  %v1721 = vpop.f32.mrb[0].mxu0
  %v1722 = vadd.f32 %v74, %v1721
  %v1723 = vpop.f32.mrb[0].mxu0
  %v1724 = vpop.f32.mrb[0].mxu0
  %v1725 = vadd.f32 %v74, %v1724
  %v1726 = vpop.f32.mrb[0].mxu0
  %1727 = vmatprep.mubr.bf16.mxu0 0
  %1728 = vmatmul.mubr.bf16.gmra.mrb[0].mxu0 %v1627
  %v1729 = vpop.f32.mrb[0].mxu0
  %v1730 = vadd.f32 %v74, %v1729
  %v1731 = vpop.f32.mrb[0].mxu0
  %v1732 = vpop.f32.mrb[0].mxu0
  %v1733 = vadd.f32 %v74, %v1732
  %v1734 = vpop.f32.mrb[0].mxu0
  %1735 = vmatprep.mubr.bf16.mxu0 0
  %1736 = vmatmul.mubr.bf16.gmra.mrb[0].mxu0 %v1630
  %v1737 = vpop.f32.mrb[0].mxu0
  %v1738 = vadd.f32 %v74, %v1737
  %v1739 = vpop.f32.mrb[0].mxu0
  %v1740 = vpop.f32.mrb[0].mxu0
  %v1741 = vadd.f32 %v74, %v1740
  %v1742 = vpop.f32.mrb[0].mxu0
  %1743 = vmatprep.mubr.bf16.mxu0 0
  %1744 = vmatmul.mubr.bf16.gmra.mrb[0].mxu0 %v1633
  %v1745 = vpop.f32.mrb[0].mxu0
  %v1746 = vadd.f32 %v74, %v1745
  %v1747 = vpop.f32.mrb[0].mxu0
  %v1748 = vpop.f32.mrb[0].mxu0
  %v1749 = vadd.f32 %v74, %v1748
  %v1750 = vpop.f32.mrb[0].mxu0
  %1751 = vmatprep.mubr.bf16.mxu0 0
  %1752 = vmatmul.mubr.bf16.gmra.mrb[0].mxu0 %v1636
  %v1753 = vpop.f32.mrb[0].mxu0
  %v1754 = vadd.f32 %v74, %v1753
  %v1755 = vpop.f32.mrb[0].mxu0
  %v1756 = vpop.f32.mrb[0].mxu0
  %v1757 = vadd.f32 %v74, %v1756
  %v1758 = vpop.f32.mrb[0].mxu0
  %1759 = vmatprep.mubr.bf16.mxu0 0
  %1760 = vmatmul.mubr.bf16.gmra.mrb[0].mxu0 %v1639
  %v1761 = vpop.f32.mrb[0].mxu0
  %v1762 = vadd.f32 %v74, %v1761
  %v1763 = vpop.f32.mrb[0].mxu0
  %v1764 = vpop.f32.mrb[0].mxu0
  %v1765 = vadd.f32 %v74, %v1764
  %v1766 = vpop.f32.mrb[0].mxu0
  %1767 = vmatprep.mubr.bf16.mxu0 0
  %1768 = vmatmul.mubr.bf16.gmra.mrb[0].mxu0 %v1642
  %v1769 = vpop.f32.mrb[0].mxu0
  %v1770 = vadd.f32 %v74, %v1769
  %v1771 = vpop.f32.mrb[0].mxu0
  %v1772 = vpop.f32.mrb[0].mxu0
  %v1773 = vadd.f32 %v74, %v1772
  %v1774 = vpop.f32.mrb[0].mxu0
  %1775 = vmatprep.mubr.bf16.mxu0 0
  %1776 = vmatmul.mubr.bf16.gmra.mrb[0].mxu0 %v1645
  %v1777 = vpop.f32.mrb[0].mxu0
  %v1778 = vadd.f32 %v74, %v1777
  %v1779 = vpop.f32.mrb[0].mxu0
  %v1780 = vpop.f32.mrb[0].mxu0
  %v1781 = vadd.f32 %v74, %v1780
  %v1782 = vpop.f32.mrb[0].mxu0
  %1783 = vmatprep.mubr.bf16.mxu0 0
  %1784 = vmatmul.mubr.bf16.gmra.mrb[0].mxu0 %v1648
  %v1785 = vpop.f32.mrb[0].mxu0
  %v1786 = vadd.f32 %v74, %v1785
  %v1787 = vpop.f32.mrb[0].mxu0
  %v1788 = vpop.f32.mrb[0].mxu0
  %v1789 = vadd.f32 %v74, %v1788
  %v1790 = vpop.f32.mrb[0].mxu0
  %1791 = vmatprep.mubr.bf16.mxu0 0
  %1792 = vmatmul.mubr.bf16.gmra.mrb[0].mxu0 %v1651
  %v1793 = vpop.f32.mrb[0].mxu0
  %v1794 = vadd.f32 %v74, %v1793
  %v1795 = vpop.f32.mrb[0].mxu0
  %v1796 = vpop.f32.mrb[0].mxu0
  %v1797 = vadd.f32 %v74, %v1796
  %v1798 = vpop.f32.mrb[0].mxu0
  %1799 = vmatprep.mubr.bf16.mxu0 0
  %1800 = vmatmul.mubr.bf16.gmra.mrb[0].mxu0 %v1654
  %v1801 = vpop.f32.mrb[0].mxu0
  %v1802 = vadd.f32 %v74, %v1801
  %v1803 = vpop.f32.mrb[0].mxu0
  %v1804 = vpop.f32.mrb[0].mxu0
  %v1805 = vadd.f32 %v74, %v1804
  %v1806 = vpop.f32.mrb[0].mxu0
  %1807 = vmatprep.mubr.bf16.mxu0 0
  %1808 = vmatmul.mubr.bf16.gmra.mrb[0].mxu0 %v1657
  %v1809 = vpop.f32.mrb[0].mxu0
  %v1810 = vadd.f32 %v74, %v1809
  %v1811 = vpop.f32.mrb[0].mxu0
  %v1812 = vpop.f32.mrb[0].mxu0
  %v1813 = vadd.f32 %v74, %v1812
  %v1814 = vpop.f32.mrb[0].mxu0
  %1815 = vmatprep.mubr.bf16.mxu0 0
  %1816 = vmatmul.mubr.bf16.gmra.mrb[0].mxu0 %v1660
  %v1817 = vpop.f32.mrb[0].mxu0
  %v1818 = vadd.f32 %v74, %v1817
  %v1819 = vpop.f32.mrb[0].mxu0
  %v1820 = vpop.f32.mrb[0].mxu0
  %v1821 = vadd.f32 %v74, %v1820
  %v1822 = vpop.f32.mrb[0].mxu0
  %1823 = vmatprep.mubr.bf16.mxu0 0
  %1824 = vmatmul.mubr.bf16.gmra.mrb[0].mxu0 %v1663
  %v1825 = vpop.f32.mrb[0].mxu0
  %v1826 = vadd.f32 %v74, %v1825
  %v1827 = vpop.f32.mrb[0].mxu0
  %v1828 = vpop.f32.mrb[0].mxu0
  %v1829 = vadd.f32 %v74, %v1828
  %v1830 = vpop.f32.mrb[0].mxu0
  %1831 = vmatprep.mubr.bf16.mxu0 0
  %1832 = vmatmul.mubr.bf16.gmra.mrb[0].mxu0 %v1666
  %v1833 = vpop.f32.mrb[0].mxu0
  %v1834 = vadd.f32 %v74, %v1833
  %v1835 = vpop.f32.mrb[0].mxu0
  %v1836 = vpop.f32.mrb[0].mxu0
  %v1837 = vadd.f32 %v74, %v1836
  %v1838 = vpop.f32.mrb[0].mxu0
  %1839 = vmatprep.mubr.bf16.mxu0 0
  %1840 = vmatmul.mubr.bf16.gmra.mrb[0].mxu0 %v1669
  %v1841 = vpop.f32.mrb[0].mxu0
  %v1842 = vadd.f32 %v74, %v1841
  %v1843 = vpop.f32.mrb[0].mxu0
  %v1844 = vpop.f32.mrb[0].mxu0
  %v1845 = vadd.f32 %v74, %v1844
  %v1846 = vpop.f32.mrb[0].mxu0
  %1847 = vdwg.mxu0
  %vm1848 = vcmp.gt.f32.partialorder %v1706, 0.0
  %vm1849 = vcmp.gt.f32.partialorder %v1709, 0.0
  %vm1850 = vcmp.gt.f32.partialorder %v1714, 0.0
  %vm1851 = vcmp.gt.f32.partialorder %v1717, 0.0
  %vm1852 = vcmp.gt.f32.partialorder %v1722, 0.0
  %vm1853 = vcmp.gt.f32.partialorder %v1725, 0.0
  %vm1854 = vcmp.gt.f32.partialorder %v1730, 0.0
  %vm1855 = vcmp.gt.f32.partialorder %v1733, 0.0
  %vm1856 = vcmp.gt.f32.partialorder %v1738, 0.0
  %vm1857 = vcmp.gt.f32.partialorder %v1741, 0.0
  %vm1858 = vcmp.gt.f32.partialorder %v1746, 0.0
  %vm1859 = vcmp.gt.f32.partialorder %v1749, 0.0
  %vm1860 = vcmp.gt.f32.partialorder %v1754, 0.0
  %vm1861 = vcmp.gt.f32.partialorder %v1757, 0.0
  %vm1862 = vcmp.gt.f32.partialorder %v1762, 0.0
  %vm1863 = vcmp.gt.f32.partialorder %v1765, 0.0
  %vm1864 = vcmp.gt.f32.partialorder %v1770, 0.0
  %vm1865 = vcmp.gt.f32.partialorder %v1773, 0.0
  %vm1866 = vcmp.gt.f32.partialorder %v1778, 0.0
  %vm1867 = vcmp.gt.f32.partialorder %v1781, 0.0
  %vm1868 = vcmp.gt.f32.partialorder %v1786, 0.0
  %vm1869 = vcmp.gt.f32.partialorder %v1789, 0.0
  %vm1870 = vcmp.gt.f32.partialorder %v1794, 0.0
  %vm1871 = vcmp.gt.f32.partialorder %v1797, 0.0
  %vm1872 = vcmp.gt.f32.partialorder %v1802, 0.0
  %vm1873 = vcmp.gt.f32.partialorder %v1805, 0.0
  %vm1874 = vcmp.gt.f32.partialorder %v1810, 0.0
  %vm1875 = vcmp.gt.f32.partialorder %v1813, 0.0
  %vm1876 = vcmp.gt.f32.partialorder %v1818, 0.0
  %vm1877 = vcmp.gt.f32.partialorder %v1821, 0.0
  %vm1878 = vcmp.gt.f32.partialorder %v1826, 0.0
  %vm1879 = vcmp.gt.f32.partialorder %v1829, 0.0
  %vm1880 = vcmp.gt.f32.partialorder %v1834, 0.0
  %vm1881 = vcmp.gt.f32.partialorder %v1837, 0.0
  %vm1882 = vcmp.gt.f32.partialorder %v1842, 0.0
  %vm1883 = vcmp.gt.f32.partialorder %v1845, 0.0
  %v1884 = vmul.f32 %v452, %v1706
  %v1885 = vmul.f32 %v452, %v1709
  %v1886 = vmul.f32 %v452, %v1714
  %v1887 = vmul.f32 %v452, %v1717
  %v1888 = vmul.f32 %v452, %v1722
  %v1889 = vmul.f32 %v452, %v1725
  %v1890 = vmul.f32 %v452, %v1730
  %v1891 = vmul.f32 %v452, %v1733
  %v1892 = vmul.f32 %v452, %v1738
  %v1893 = vmul.f32 %v452, %v1741
  %v1894 = vmul.f32 %v452, %v1746
  %v1895 = vmul.f32 %v452, %v1749
  %v1896 = vmul.f32 %v452, %v1754
  %v1897 = vmul.f32 %v452, %v1757
  %v1898 = vmul.f32 %v452, %v1762
  %v1899 = vmul.f32 %v452, %v1765
  %v1900 = vmul.f32 %v452, %v1770
  %v1901 = vmul.f32 %v452, %v1773
  %v1902 = vmul.f32 %v452, %v1778
  %v1903 = vmul.f32 %v452, %v1781
  %v1904 = vmul.f32 %v452, %v1786
  %v1905 = vmul.f32 %v452, %v1789
  %v1906 = vmul.f32 %v452, %v1794
  %v1907 = vmul.f32 %v452, %v1797
  %v1908 = vmul.f32 %v452, %v1802
  %v1909 = vmul.f32 %v452, %v1805
  %v1910 = vmul.f32 %v452, %v1810
  %v1911 = vmul.f32 %v452, %v1813
  %v1912 = vmul.f32 %v452, %v1818
  %v1913 = vmul.f32 %v452, %v1821
  %v1914 = vmul.f32 %v452, %v1826
  %v1915 = vmul.f32 %v452, %v1829
  %v1916 = vmul.f32 %v452, %v1834
  %v1917 = vmul.f32 %v452, %v1837
  %v1918 = vmul.f32 %v452, %v1842
  %v1919 = vmul.f32 %v452, %v1845
  %v1920 = vsel %vm1848, %v1706, %v1884
  %v1921 = vsel %vm1849, %v1709, %v1885
  %v1922 = vsel %vm1850, %v1714, %v1886
  %v1923 = vsel %vm1851, %v1717, %v1887
  %v1924 = vsel %vm1852, %v1722, %v1888
  %v1925 = vsel %vm1853, %v1725, %v1889
  %v1926 = vsel %vm1854, %v1730, %v1890
  %v1927 = vsel %vm1855, %v1733, %v1891
  %v1928 = vsel %vm1856, %v1738, %v1892
  %v1929 = vsel %vm1857, %v1741, %v1893
  %v1930 = vsel %vm1858, %v1746, %v1894
  %v1931 = vsel %vm1859, %v1749, %v1895
  %v1932 = vsel %vm1860, %v1754, %v1896
  %v1933 = vsel %vm1861, %v1757, %v1897
  %v1934 = vsel %vm1862, %v1762, %v1898
  %v1935 = vsel %vm1863, %v1765, %v1899
  %v1936 = vsel %vm1864, %v1770, %v1900
  %v1937 = vsel %vm1865, %v1773, %v1901
  %v1938 = vsel %vm1866, %v1778, %v1902
  %v1939 = vsel %vm1867, %v1781, %v1903
  %v1940 = vsel %vm1868, %v1786, %v1904
  %v1941 = vsel %vm1869, %v1789, %v1905
  %v1942 = vsel %vm1870, %v1794, %v1906
  %v1943 = vsel %vm1871, %v1797, %v1907
  %v1944 = vsel %vm1872, %v1802, %v1908
  %v1945 = vsel %vm1873, %v1805, %v1909
  %v1946 = vsel %vm1874, %v1810, %v1910
  %v1947 = vsel %vm1875, %v1813, %v1911
  %v1948 = vsel %vm1876, %v1818, %v1912
  %v1949 = vsel %vm1877, %v1821, %v1913
  %v1950 = vsel %vm1878, %v1826, %v1914
  %v1951 = vsel %vm1879, %v1829, %v1915
  %v1952 = vsel %vm1880, %v1834, %v1916
  %v1953 = vsel %vm1881, %v1837, %v1917
  %v1954 = vsel %vm1882, %v1842, %v1918
  %v1955 = vsel %vm1883, %v1845, %v1919
  %v1956 = vmax.f32 %v1455, %v1920
  %v1957 = vmax.f32 %v1456, %v1921
  %v1958 = vmax.f32 %v1457, %v1922
  %v1959 = vmax.f32 %v1458, %v1923
  %v1960 = vmax.f32 %v1459, %v1924
  %v1961 = vmax.f32 %v1460, %v1925
  %v1962 = vmax.f32 %v1461, %v1926
  %v1963 = vmax.f32 %v1462, %v1927
  %v1964 = vmax.f32 %v1463, %v1928
  %v1965 = vmax.f32 %v1464, %v1929
  %v1966 = vmax.f32 %v1465, %v1930
  %v1967 = vmax.f32 %v1466, %v1931
  %v1968 = vmax.f32 %v1467, %v1932
  %v1969 = vmax.f32 %v1468, %v1933
  %v1970 = vmax.f32 %v1469, %v1934
  %v1971 = vmax.f32 %v1470, %v1935
  %v1972 = vmax.f32 %v1471, %v1936
  %v1973 = vmax.f32 %v1472, %v1937
  %v1974 = vmax.f32 %v1473, %v1938
  %v1975 = vmax.f32 %v1474, %v1939
  %v1976 = vmax.f32 %v1475, %v1940
  %v1977 = vmax.f32 %v1476, %v1941
  %v1978 = vmax.f32 %v1477, %v1942
  %v1979 = vmax.f32 %v1478, %v1943
  %v1980 = vmax.f32 %v1479, %v1944
  %v1981 = vmax.f32 %v1480, %v1945
  %v1982 = vmax.f32 %v1481, %v1946
  %v1983 = vmax.f32 %v1482, %v1947
  %v1984 = vmax.f32 %v1483, %v1948
  %v1985 = vmax.f32 %v1484, %v1949
  %v1986 = vmax.f32 %v1485, %v1950
  %v1987 = vmax.f32 %v1486, %v1951
  %v1988 = vmax.f32 %v1487, %v1952
  %v1989 = vmax.f32 %v1488, %v1953
  %v1990 = vmax.f32 %v1489, %v1954
  %v1991 = vmax.f32 %v1490, %v1955
  %v1992 = vmax.f32 %v990, %v1956
  %v1993 = vmax.f32 %v991, %v1957
  %v1994 = vmax.f32 %v992, %v1958
  %v1995 = vmax.f32 %v993, %v1959
  %v1996 = vmax.f32 %v994, %v1960
  %v1997 = vmax.f32 %v995, %v1961
  %v1998 = vmax.f32 %v996, %v1962
  %v1999 = vmax.f32 %v997, %v1963
  %v2000 = vmax.f32 %v998, %v1964
  %v2001 = vmax.f32 %v999, %v1965
  %v2002 = vmax.f32 %v1000, %v1966
  %v2003 = vmax.f32 %v1001, %v1967
  %v2004 = vmax.f32 %v1002, %v1968
  %v2005 = vmax.f32 %v1003, %v1969
  %v2006 = vmax.f32 %v1004, %v1970
  %v2007 = vmax.f32 %v1005, %v1971
  %v2008 = vmax.f32 %v1006, %v1972
  %v2009 = vmax.f32 %v1007, %v1973
  %v2010 = vmax.f32 %v1008, %v1974
  %v2011 = vmax.f32 %v1009, %v1975
  %v2012 = vmax.f32 %v1010, %v1976
  %v2013 = vmax.f32 %v1011, %v1977
  %v2014 = vmax.f32 %v1012, %v1978
  %v2015 = vmax.f32 %v1013, %v1979
  %v2016 = vmax.f32 %v1014, %v1980
  %v2017 = vmax.f32 %v1015, %v1981
  %v2018 = vmax.f32 %v1016, %v1982
  %v2019 = vmax.f32 %v1017, %v1983
  %v2020 = vmax.f32 %v1018, %v1984
  %v2021 = vmax.f32 %v1019, %v1985
  %v2022 = vmax.f32 %v1020, %v1986
  %v2023 = vmax.f32 %v1021, %v1987
  %v2024 = vmax.f32 %v1022, %v1988
  %v2025 = vmax.f32 %v1023, %v1989
  %v2026 = vmax.f32 %v1024, %v1990
  %v2027 = vmax.f32 %v1025, %v1991
  %v2028 = vpack.c.bf16 %v1993, %v1992
  %v2029 = vpack.c.bf16 %v1995, %v1994
  %v2030 = vpack.c.bf16 %v1997, %v1996
  %v2031 = vpack.c.bf16 %v1999, %v1998
  %v2032 = vpack.c.bf16 %v2001, %v2000
  %v2033 = vpack.c.bf16 %v2003, %v2002
  %v2034 = vpack.c.bf16 %v2005, %v2004
  %v2035 = vpack.c.bf16 %v2007, %v2006
  %v2036 = vpack.c.bf16 %v2009, %v2008
  %v2037 = vpack.c.bf16 %v2011, %v2010
  %v2038 = vpack.c.bf16 %v2013, %v2012
  %v2039 = vpack.c.bf16 %v2015, %v2014
  %v2040 = vpack.c.bf16 %v2017, %v2016
  %v2041 = vpack.c.bf16 %v2019, %v2018
  %v2042 = vpack.c.bf16 %v2021, %v2020
  %v2043 = vpack.c.bf16 %v2023, %v2022
  %v2044 = vpack.c.bf16 %v2025, %v2024
  %v2045 = vpack.c.bf16 %v2027, %v2026
  %v2064 = vunpack.c.l.b16 %v2028
  %v2065 = vunpack.c.h.b16 %v2028
  %v2066 = vunpack.c.l.b16 %v2029
  %v2067 = vunpack.c.h.b16 %v2029
  %v2068 = vunpack.c.l.b16 %v2030
  %v2069 = vunpack.c.h.b16 %v2030
  %v2070 = vunpack.c.l.b16 %v2031
  %v2071 = vunpack.c.h.b16 %v2031
  %v2072 = vunpack.c.l.b16 %v2032
  %v2073 = vunpack.c.h.b16 %v2032
  %v2074 = vunpack.c.l.b16 %v2033
  %v2075 = vunpack.c.h.b16 %v2033
  %v2076 = vunpack.c.l.b16 %v2034
  %v2077 = vunpack.c.h.b16 %v2034
  %v2078 = vunpack.c.l.b16 %v2035
  %v2079 = vunpack.c.h.b16 %v2035
  %v2080 = vunpack.c.l.b16 %v2036
  %v2081 = vunpack.c.h.b16 %v2036
  %v2082 = vunpack.c.l.b16 %v2037
  %v2083 = vunpack.c.h.b16 %v2037
  %v2084 = vunpack.c.l.b16 %v2038
  %v2085 = vunpack.c.h.b16 %v2038
  %v2086 = vunpack.c.l.b16 %v2039
  %v2087 = vunpack.c.h.b16 %v2039
  %v2088 = vunpack.c.l.b16 %v2040
  %v2089 = vunpack.c.h.b16 %v2040
  %v2090 = vunpack.c.l.b16 %v2041
  %v2091 = vunpack.c.h.b16 %v2041
  %v2092 = vunpack.c.l.b16 %v2042
  %v2093 = vunpack.c.h.b16 %v2042
  %v2094 = vunpack.c.l.b16 %v2043
  %v2095 = vunpack.c.h.b16 %v2043
  %v2096 = vunpack.c.l.b16 %v2044
  %v2097 = vunpack.c.h.b16 %v2044
  %v2098 = vunpack.c.l.b16 %v2045
  %v2099 = vunpack.c.h.b16 %v2045
  %v2100 = vpack.c.b16 %v2064, %v2064
  %v2101 = vpack.c.b16 %v2065, %v2065
  %v2102 = vpack.c.b16 %v2066, %v2066
  %v2103 = vpack.c.b16 %v2067, %v2067
  %v2104 = vpack.c.b16 %v2068, %v2068
  %v2105 = vpack.c.b16 %v2069, %v2069
  %v2106 = vpack.c.b16 %v2070, %v2070
  %v2107 = vpack.c.b16 %v2071, %v2071
  %v2108 = vpack.c.b16 %v2072, %v2072
  %v2109 = vpack.c.b16 %v2073, %v2073
  %v2110 = vpack.c.b16 %v2074, %v2074
  %v2111 = vpack.c.b16 %v2075, %v2075
  %v2112 = vpack.c.b16 %v2076, %v2076
  %v2113 = vpack.c.b16 %v2077, %v2077
  %v2114 = vpack.c.b16 %v2078, %v2078
  %v2115 = vpack.c.b16 %v2079, %v2079
  %v2116 = vpack.c.b16 %v2080, %v2080
  %v2117 = vpack.c.b16 %v2081, %v2081
  %v2118 = vpack.c.b16 %v2082, %v2082
  %v2119 = vpack.c.b16 %v2083, %v2083
  %v2120 = vpack.c.b16 %v2084, %v2084
  %v2121 = vpack.c.b16 %v2085, %v2085
  %v2122 = vpack.c.b16 %v2086, %v2086
  %v2123 = vpack.c.b16 %v2087, %v2087
  %v2124 = vpack.c.b16 %v2088, %v2088
  %v2125 = vpack.c.b16 %v2089, %v2089
  %v2126 = vpack.c.b16 %v2090, %v2090
  %v2127 = vpack.c.b16 %v2091, %v2091
  %v2128 = vpack.c.b16 %v2092, %v2092
  %v2129 = vpack.c.b16 %v2093, %v2093
  %v2130 = vpack.c.b16 %v2094, %v2094
  %v2131 = vpack.c.b16 %v2095, %v2095
  %v2132 = vpack.c.b16 %v2096, %v2096
  %v2133 = vpack.c.b16 %v2097, %v2097
  %v2134 = vpack.c.b16 %v2098, %v2098
  %v2135 = vpack.c.b16 %v2099, %v2099
  %vm2172 = vcmask 257024
  %2173 = vst.msk [vmem:[%s7] sm:$0xf] %vm2172, %v2100
  %2174 = vst.msk [vmem:[%s7 + $0x4] sm:$0xf] %vm2172, %v2101
  %2175 = vst.msk [vmem:[%s7 + $0x8] sm:$0xf] %vm2172, %v2102
  %2176 = vst.msk [vmem:[%s7 + $0xc] sm:$0xf] %vm2172, %v2103
  %2177 = vst.msk [vmem:[%s7 + $0x10] sm:$0xf] %vm2172, %v2104
  %2178 = vst.msk [vmem:[%s7 + $0x14] sm:$0xf] %vm2172, %v2105
  %2179 = vst.msk [vmem:[%s7 + $0x18] sm:$0xf] %vm2172, %v2106
  %2180 = vst.msk [vmem:[%s7 + $0x1c] sm:$0xf] %vm2172, %v2107
  %2181 = vst.msk [vmem:[%s7 + $0x20] sm:$0xf] %vm2172, %v2108
  %2182 = vst.msk [vmem:[%s7 + $0x24] sm:$0xf] %vm2172, %v2109
  %2183 = vst.msk [vmem:[%s7 + $0x28] sm:$0xf] %vm2172, %v2110
  %2184 = vst.msk [vmem:[%s7 + $0x2c] sm:$0xf] %vm2172, %v2111
  %2185 = vst.msk [vmem:[%s7 + $0x30] sm:$0xf] %vm2172, %v2112
  %2186 = vst.msk [vmem:[%s7 + $0x34] sm:$0xf] %vm2172, %v2113
  %2187 = vst.msk [vmem:[%s7 + $0x38] sm:$0xf] %vm2172, %v2114
  %2188 = vst.msk [vmem:[%s7 + $0x3c] sm:$0xf] %vm2172, %v2115
  %2189 = vst.msk [vmem:[%s7 + $0x40] sm:$0xf] %vm2172, %v2116
  %2190 = vst.msk [vmem:[%s7 + $0x44] sm:$0xf] %vm2172, %v2117
  %2191 = vst.msk [vmem:[%s7 + $0x48] sm:$0xf] %vm2172, %v2118
  %2192 = vst.msk [vmem:[%s7 + $0x4c] sm:$0xf] %vm2172, %v2119
  %2193 = vst.msk [vmem:[%s7 + $0x50] sm:$0xf] %vm2172, %v2120
  %2194 = vst.msk [vmem:[%s7 + $0x54] sm:$0xf] %vm2172, %v2121
  %2195 = vst.msk [vmem:[%s7 + $0x58] sm:$0xf] %vm2172, %v2122
  %2196 = vst.msk [vmem:[%s7 + $0x5c] sm:$0xf] %vm2172, %v2123
  %2197 = vst.msk [vmem:[%s7 + $0x60] sm:$0xf] %vm2172, %v2124
  %2198 = vst.msk [vmem:[%s7 + $0x64] sm:$0xf] %vm2172, %v2125
  %2199 = vst.msk [vmem:[%s7 + $0x68] sm:$0xf] %vm2172, %v2126
  %2200 = vst.msk [vmem:[%s7 + $0x6c] sm:$0xf] %vm2172, %v2127
  %2201 = vst.msk [vmem:[%s7 + $0x70] sm:$0xf] %vm2172, %v2128
  %2202 = vst.msk [vmem:[%s7 + $0x74] sm:$0xf] %vm2172, %v2129
  %2203 = vst.msk [vmem:[%s7 + $0x78] sm:$0xf] %vm2172, %v2130
  %2204 = vst.msk [vmem:[%s7 + $0x7c] sm:$0xf] %vm2172, %v2131
  %2205 = vst.msk [vmem:[%s7 + $0x80] sm:$0xf] %vm2172, %v2132
  %2206 = vst.msk [vmem:[%s7 + $0x84] sm:$0xf] %vm2172, %v2133
  %2207 = vst.msk [vmem:[%s7 + $0x88] sm:$0xf] %vm2172, %v2134
  %2208 = vst.msk [vmem:[%s7 + $0x8c] sm:$0xf] %vm2172, %v2135
  // Predicated region
  $region30: #{embedding_net_forward.4} parent=0 // pred_check
    _
  $region31: #{embedding_net_forward.4} parent=0 // pred_check_branch
    %2210 = sbr.rel (0) target = $region33
  $region32: #{embedding_net_forward.4} parent=0 // pred_region
    _
  $region33: #{embedding_net_forward.4} parent=0 // pred_fallthru
    _
  // Predicated region
  $region34: #{embedding_net_forward.4} parent=0 // pred_check
    _
  $region35: #{embedding_net_forward.4} parent=0 // pred_check_branch
    %2212 = sbr.rel (0) target = $region37
  $region36: #{embedding_net_forward.4} parent=0 // pred_region
    _
  $region37: #{embedding_net_forward.4} parent=0 // pred_fallthru
    _

// kernel: embedding_net_forward.5
$region0: #{embedding_net_forward.5}
  #allocation0 [shape = 'u32[]', space=smem, size = 0x4, offset = 0x4, fixed_abs, tag = 'smem constant byte address 0x4 - core index']
  #allocation1 [shape = 'u32[144,128]{1,0:T(1,128)}', space=vmem, size = 0x12000, scoped, tag = 'internal scratch']
  #allocation2 [shape = 'f32[8,64]{1,0:T(8,128)}', space=vmem, size = 0x1000, scoped, tag = 'scratch operand']
  #allocation3 [shape = 'f32[1]{0:T(128)S(6)}', space=smem, size = 0x200, scoped, tag = 'scoped memory for embedding_net_forward.5']
  %s0 = inlined_call_operand.vmem [shape: bf16[2,12,12,32], index: 0, kind: input, shape index: {}]
  %s1 = inlined_call_operand.vmem [shape: bf16[800,64], index: 1, kind: input, shape index: {}]
  %s2 = inlined_call_operand.vmem [shape: f32[1,64], index: 2, kind: input, shape index: {}]
  %s3 = inlined_call_operand.<no memory space> [shape: f32[1], index: 3, kind: input, shape index: {}]
  %s4 = inlined_call_operand.vmem [shape: bf16[2,4,4,64], index: 4, kind: output, shape index: {}]
  %s5 = sld [smem:[#allocation0]]
  $region56: #{embedding_net_forward.5} parent=0
    _
  %s7 = ssub.s32 1, %s5
  %s8 = scalar_select 0, %s7, %s5
  %9 = sst [smem:[#allocation3]] %s3
  loop: start=0, step=1, limit=4
  $region2: #{embedding_net_forward.5} parent=0 // loop_pre_header
    _
  $region3: #{embedding_net_forward.5} parent=0 // loop_header
    %s11 = sphi 0, %s15
    %p12 = scmp.ge.s32.totalorder %s11, 4
    %s18 = sphi 0, %s30
    %s19 = sphi 0, %s26
    %s20 = sphi 0, %s18
    %s21 = sphi 0, %s19
    %s22 = sphi 0, %s20
    %s23 = sphi 0, %s21
    %s33 = sphi 0, %s35
    %s36 = sphi 0, %s33
    %s37 = sphi 0, %s36
    %s53 = sphi 0, %s37
    %s57 = sphi 0, %s57
    %s59 = sphi 0, %s57
    %s60 = sphi 0, %s59
    %s74 = sphi 0, %s60
    %s78 = sphi 0, %s78
    %s80 = sphi 0, %s78
    %s81 = sphi 0, %s80
    %s95 = sphi 0, %s81
    %s99 = sphi 0, %s99
    %s101 = sphi 0, %s99
    %s102 = sphi 0, %s101
    %s116 = sphi 0, %s102
    %s124 = sphi 0, %s126
    %s127 = sphi 0, %s124
    %s128 = sphi 0, %s127
    %s144 = sphi 0, %s128
  $region4: #{embedding_net_forward.5} parent=0 // loop_header_branch
    %14 = sbr.rel (%p12) target = $region8
  $region5: #{embedding_net_forward.5} parent=0 // loop_body
    %s16 = ssub.s32 %s11, 1
    %s17 = ssub.s32 %s11, 2
    %s24 = sadd.s32 1, %s19
    %p25 = scmp.ge.s32.totalorder %s24, 1
    %s26 = scalar_select %p25, 0, %s24
    %s27 = sadd.s32 1, %s18
    %s28 = scalar_select %p25, %s27, %s18
    %p29 = scmp.ge.s32.totalorder %s28, 2
    %s30 = scalar_select %p29, 0, %s28
    %s31 = ssub.s32 %s18, %s30
    %p32 = scmp.eq.s32.totalorder %s31, 0
    %s34 = sadd.s32 %s33, 1
    %s35 = scalar_select %p32, %s33, %s34
    %p38 = pneg %p32
    %p39 = scmp.eq.s32.totalorder %s11, 1
    %p40 = por %p38, %p39
    %p41 = scmp.ne.s32.totalorder %s33, %s36
    %p42 = scmp.eq.s32.totalorder %s11, 0
    %p43 = por %p41, %p42
    %p44 = scmp.ne.s32.totalorder %s33, %s36
    %p45 = scmp.eq.s32.totalorder %s16, 1
    %p46 = por %p44, %p45
    %p47 = scmp.ne.s32.totalorder %s36, %s37
    %p48 = scmp.eq.s32.totalorder %s16, 0
    %p49 = por %p47, %p48
    %p50 = scmp.ne.s32.totalorder %s36, %s37
    %p51 = scmp.eq.s32.totalorder %s17, 1
    %p52 = por %p50, %p51
    %p54 = scmp.ne.s32.totalorder %s37, %s53
    %p55 = scmp.eq.s32.totalorder %s17, 0
    %p56 = por %p54, %p55
    %s58 = sadd.s32 %s57, 1
    %p61 = scmp.eq.s32.totalorder %s11, 1
    %p62 = scmp.ne.s32.totalorder %s57, %s59
    %p63 = scmp.eq.s32.totalorder %s11, 0
    %p64 = por %p62, %p63
    %p65 = scmp.ne.s32.totalorder %s57, %s59
    %p66 = scmp.eq.s32.totalorder %s16, 1
    %p67 = por %p65, %p66
    %p68 = scmp.ne.s32.totalorder %s59, %s60
    %p69 = scmp.eq.s32.totalorder %s16, 0
    %p70 = por %p68, %p69
    %p71 = scmp.ne.s32.totalorder %s59, %s60
    %p72 = scmp.eq.s32.totalorder %s17, 1
    %p73 = por %p71, %p72
    %p75 = scmp.ne.s32.totalorder %s60, %s74
    %p76 = scmp.eq.s32.totalorder %s17, 0
    %p77 = por %p75, %p76
    %s79 = sadd.s32 %s78, 1
    %p82 = scmp.eq.s32.totalorder %s11, 1
    %p83 = scmp.ne.s32.totalorder %s78, %s80
    %p84 = scmp.eq.s32.totalorder %s11, 0
    %p85 = por %p83, %p84
    %p86 = scmp.ne.s32.totalorder %s78, %s80
    %p87 = scmp.eq.s32.totalorder %s16, 1
    %p88 = por %p86, %p87
    %p89 = scmp.ne.s32.totalorder %s80, %s81
    %p90 = scmp.eq.s32.totalorder %s16, 0
    %p91 = por %p89, %p90
    %p92 = scmp.ne.s32.totalorder %s80, %s81
    %p93 = scmp.eq.s32.totalorder %s17, 1
    %p94 = por %p92, %p93
    %p96 = scmp.ne.s32.totalorder %s81, %s95
    %p97 = scmp.eq.s32.totalorder %s17, 0
    %p98 = por %p96, %p97
    %s100 = sadd.s32 %s99, 1
    %p103 = scmp.eq.s32.totalorder %s11, 1
    %p104 = scmp.ne.s32.totalorder %s99, %s101
    %p105 = scmp.eq.s32.totalorder %s11, 0
    %p106 = por %p104, %p105
    %p107 = scmp.ne.s32.totalorder %s99, %s101
    %p108 = scmp.eq.s32.totalorder %s16, 1
    %p109 = por %p107, %p108
    %p110 = scmp.ne.s32.totalorder %s101, %s102
    %p111 = scmp.eq.s32.totalorder %s16, 0
    %p112 = por %p110, %p111
    %p113 = scmp.ne.s32.totalorder %s101, %s102
    %p114 = scmp.eq.s32.totalorder %s17, 1
    %p115 = por %p113, %p114
    %p117 = scmp.ne.s32.totalorder %s102, %s116
    %p118 = scmp.eq.s32.totalorder %s17, 0
    %p119 = por %p117, %p118
    %s120 = ssub.s32 %s18, %s30
    %s121 = ssub.s32 %s19, %s26
    %s122 = sor.u32 %s120, %s121
    %p123 = scmp.eq.s32.totalorder %s122, 0
    %s125 = sadd.s32 %s124, 1
    %s126 = scalar_select %p123, %s124, %s125
    %p129 = pneg %p123
    %p130 = scmp.eq.s32.totalorder %s11, 1
    %p131 = por %p129, %p130
    %p132 = scmp.ne.s32.totalorder %s124, %s127
    %p133 = scmp.eq.s32.totalorder %s11, 0
    %p134 = por %p132, %p133
    %p135 = scmp.ne.s32.totalorder %s124, %s127
    %p136 = scmp.eq.s32.totalorder %s16, 1
    %p137 = por %p135, %p136
    %p138 = scmp.ne.s32.totalorder %s127, %s128
    %p139 = scmp.eq.s32.totalorder %s16, 0
    %p140 = por %p138, %p139
    %p141 = scmp.ne.s32.totalorder %s127, %s128
    %p142 = scmp.eq.s32.totalorder %s17, 1
    %p143 = por %p141, %p142
    %p145 = scmp.ne.s32.totalorder %s128, %s144
    %p146 = scmp.eq.s32.totalorder %s17, 0
    %p147 = por %p145, %p146
    %p148 = scmp.le.s32.totalorder 1, %s11
    %p149 = scmp.lt.s32.totalorder %s11, 3
    %p150 = pnand %p148, %p149
    %p151 = pneg %p150
    // Predicated region
    $region9: #{embedding_net_forward.5} parent=5 // pred_check
      _
    $region10: #{embedding_net_forward.5} parent=5 // pred_check_branch
      %153 = sbr.rel (%p150) target = $region12
    $region11: #{embedding_net_forward.5} parent=5 // pred_region
      %s154 = ssub.s32 %s11, 1
      // Predicated region
      $region13: #{embedding_net_forward.5} parent=11 // pred_check
        %p155 = pneg %p70
      $region14: #{embedding_net_forward.5} parent=11 // pred_check_branch
        %157 = sbr.rel (%p155) target = $region16
      $region15: #{embedding_net_forward.5} parent=11 // pred_region
        _
      $region16: #{embedding_net_forward.5} parent=11 // pred_fallthru
        _
      // Predicated region
      $region17: #{embedding_net_forward.5} parent=11 // pred_check
        %p158 = pneg %p91
      $region18: #{embedding_net_forward.5} parent=11 // pred_check_branch
        %160 = sbr.rel (%p158) target = $region20
      $region19: #{embedding_net_forward.5} parent=11 // pred_region
        _
      $region20: #{embedding_net_forward.5} parent=11 // pred_fallthru
        _
      // Predicated region
      $region21: #{embedding_net_forward.5} parent=11 // pred_check
        %p161 = pneg %p112
      $region22: #{embedding_net_forward.5} parent=11 // pred_check_branch
        %163 = sbr.rel (%p161) target = $region24
      $region23: #{embedding_net_forward.5} parent=11 // pred_region
        _
      $region24: #{embedding_net_forward.5} parent=11 // pred_fallthru
        _
    $region12: #{embedding_net_forward.5} parent=5 // pred_fallthru
      _
    %p164 = scmp.lt.s32.totalorder %s11, 2
    // Predicated region
    $region25: #{embedding_net_forward.5} parent=5 // pred_check
      %p165 = pneg %p164
    $region26: #{embedding_net_forward.5} parent=5 // pred_check_branch
      %167 = sbr.rel (%p165) target = $region28
    $region27: #{embedding_net_forward.5} parent=5 // pred_region
      // Predicated region
      $region29: #{embedding_net_forward.5} parent=27 // pred_check
        %p168 = pneg %p43
      $region30: #{embedding_net_forward.5} parent=27 // pred_check_branch
        %170 = sbr.rel (%p168) target = $region32
      $region31: #{embedding_net_forward.5} parent=27 // pred_region
        %p171 = scmp.lt.s32.totalorder %s18, 1
        %s172 = scalar_select %p171, %s18, 1
        %s173 = smul.addr %s172, 24
        %s174 = smul.addr %s173, 4
        %s175 = scalar_lea.vmem %s0, %s174
      $region32: #{embedding_net_forward.5} parent=27 // pred_fallthru
        _
    $region28: #{embedding_net_forward.5} parent=5 // pred_fallthru
      _
    %p176 = scmp.le.s32.totalorder 1, %s11
    %p177 = scmp.lt.s32.totalorder %s11, 3
    %p178 = pnand %p176, %p177
    %p179 = pneg %p178
    // Predicated region
    $region33: #{embedding_net_forward.5} parent=5 // pred_check
      _
    $region34: #{embedding_net_forward.5} parent=5 // pred_check_branch
      %181 = sbr.rel (%p178) target = $region36
    $region35: #{embedding_net_forward.5} parent=5 // pred_region
      %s182 = ssub.s32 %s11, 1
      %p183 = scmp.lt.s32.totalorder %s20, 1
      %s184 = scalar_select %p183, %s20, 1
      %s185 = smul.addr %s184, 24
      %s186 = smul.addr %s185, 4
      %s187 = scalar_lea.vmem %s0, %s186
      %p188 = pneg %p49
      %p189 = pneg %p46
      %p190 = pneg %p70
      %p191 = pneg %p67
      %p192 = pneg %p91
      %p193 = pneg %p88
      %p194 = pneg %p112
      %p195 = pneg %p109
      %p196 = pneg %p140
      %p197 = pneg %p137
      %s198 = smul.u32 4, %s21
      %p199 = scmp.lt.s32.totalorder %s20, 1
      %s200 = scalar_select %p199, %s20, 1
      %p201 = scmp.lt.s32.totalorder %s198, 3
      %s202 = scalar_select %p201, %s198, 3
      %s203 = smul.addr %s200, 4
      %s204 = sadd.s32 %s202, %s203
      %s205 = smul.addr %s204, 2
      %s206 = scalar_lea.vmem %s4, %s205
      %p207 = scmp.lt.s32.totalorder %s20, 1
      %s208 = scalar_select %p207, %s20, 1
      %s209 = smul.addr %s208, 24
      %s210 = smul.addr %s209, 4
      %s211 = scalar_lea.vmem %s0, %s210
      %s212 = smul.u32 4, %s21
      %p213 = scmp.lt.s32.totalorder %s20, 1
      %s214 = scalar_select %p213, %s20, 1
      %p215 = scmp.lt.s32.totalorder %s212, 3
      %s216 = scalar_select %p215, %s212, 3
      %s217 = smul.addr %s214, 4
      %s218 = sadd.s32 %s216, %s217
      %s219 = smul.addr %s218, 2
      %s220 = scalar_lea.vmem %s4, %s219
      %s221 = smul.u32 4, %s21
      %v223 = vld [vmem:[%s2] sm:$0x1]
      %s224 = sld [smem:[#allocation3]]
      %v225 = vld [vmem:[%s1] sm:$0xf]
      %v226 = vld [vmem:[%s1 + $0x4] sm:$0xf]
      %v227 = vld [vmem:[%s1 + $0x8] sm:$0xf]
      %v228 = vld [vmem:[%s1 + $0xc] sm:$0xf]
      %v229 = vld [vmem:[%s1 + $0x10] sm:$0xf]
      %v230 = vld [vmem:[%s1 + $0x14] sm:$0xf]
      %v231 = vld [vmem:[%s1 + $0x18] sm:$0xf]
      %v232 = vld [vmem:[%s1 + $0x1c] sm:$0xf]
      %v233 = vld [vmem:[%s1 + $0x20] sm:$0xf]
      %v234 = vld [vmem:[%s1 + $0x24] sm:$0xf]
      %v235 = vld [vmem:[%s1 + $0x28] sm:$0xf]
      %v236 = vld [vmem:[%s1 + $0x2c] sm:$0xf]
      %v237 = vld [vmem:[%s1 + $0x30] sm:$0xf]
      %v238 = vld [vmem:[%s1 + $0x34] sm:$0xf]
      %v239 = vld [vmem:[%s1 + $0x38] sm:$0xf]
      %v240 = vld [vmem:[%s1 + $0x3c] sm:$0xf]
      %v241 = vld [vmem:[%s1 + $0x40] sm:$0xf]
      %v242 = vld [vmem:[%s1 + $0x44] sm:$0xf]
      %v243 = vld [vmem:[%s1 + $0x48] sm:$0xf]
      %v244 = vld [vmem:[%s1 + $0x4c] sm:$0xf]
      %v245 = vld [vmem:[%s1 + $0x50] sm:$0xf]
      %v246 = vld [vmem:[%s1 + $0x54] sm:$0xf]
      %v247 = vld [vmem:[%s1 + $0x58] sm:$0xf]
      %v248 = vld [vmem:[%s1 + $0x5c] sm:$0xf]
      %v249 = vld [vmem:[%s1 + $0x60] sm:$0xf]
      %v250 = vld [vmem:[%s1 + $0x64] sm:$0xf]
      %v251 = vld [vmem:[%s1 + $0x68] sm:$0xf]
      %v252 = vld [vmem:[%s1 + $0x6c] sm:$0xf]
      %v253 = vld [vmem:[%s1 + $0x70] sm:$0xf]
      %v254 = vld [vmem:[%s1 + $0x74] sm:$0xf]
      %v255 = vld [vmem:[%s1 + $0x78] sm:$0xf]
      %v256 = vld [vmem:[%s1 + $0x7c] sm:$0xf]
      %v257 = vld [vmem:[%s1 + $0x80] sm:$0xf]
      %v258 = vld [vmem:[%s1 + $0x84] sm:$0xf]
      %v259 = vld [vmem:[%s1 + $0x88] sm:$0xf]
      %v260 = vld [vmem:[%s1 + $0x8c] sm:$0xf]
      %v261 = vld [vmem:[%s1 + $0x90] sm:$0xf]
      %v262 = vld [vmem:[%s1 + $0x94] sm:$0xf]
      %v263 = vld [vmem:[%s1 + $0x98] sm:$0xf]
      %v264 = vld [vmem:[%s1 + $0x9c] sm:$0xf]
      %v265 = vld [vmem:[%s1 + $0xa0] sm:$0xf]
      %v266 = vld [vmem:[%s1 + $0xa4] sm:$0xf]
      %v267 = vld [vmem:[%s1 + $0xa8] sm:$0xf]
      %v268 = vld [vmem:[%s1 + $0xac] sm:$0xf]
      %v269 = vld [vmem:[%s1 + $0xb0] sm:$0xf]
      %v270 = vld [vmem:[%s1 + $0xb4] sm:$0xf]
      %v271 = vld [vmem:[%s1 + $0xb8] sm:$0xf]
      %v272 = vld [vmem:[%s1 + $0xbc] sm:$0xf]
      %v273 = vld [vmem:[%s1 + $0xc0] sm:$0xf]
      %v274 = vld [vmem:[%s1 + $0xc4] sm:$0xf]
      %v275 = vld [vmem:[%s1 + $0xc8] sm:$0xf]
      %v276 = vld [vmem:[%s1 + $0xcc] sm:$0xf]
      %v277 = vld [vmem:[%s1 + $0xd0] sm:$0xf]
      %v278 = vld [vmem:[%s1 + $0xd4] sm:$0xf]
      %v279 = vld [vmem:[%s1 + $0xd8] sm:$0xf]
      %v280 = vld [vmem:[%s1 + $0xdc] sm:$0xf]
      %v281 = vld [vmem:[%s1 + $0xe0] sm:$0xf]
      %v282 = vld [vmem:[%s1 + $0xe4] sm:$0xf]
      %v283 = vld [vmem:[%s1 + $0xe8] sm:$0xf]
      %v284 = vld [vmem:[%s1 + $0xec] sm:$0xf]
      %v285 = vld [vmem:[%s1 + $0xf0] sm:$0xf]
      %v286 = vld [vmem:[%s1 + $0xf4] sm:$0xf]
      %v287 = vld [vmem:[%s1 + $0xf8] sm:$0xf]
      %v288 = vld [vmem:[%s1 + $0xfc] sm:$0xf]
      %v289 = vld [vmem:[%s1 + $0x100] sm:$0xf]
      %v290 = vld [vmem:[%s1 + $0x104] sm:$0xf]
      %v291 = vld [vmem:[%s1 + $0x108] sm:$0xf]
      %v292 = vld [vmem:[%s1 + $0x10c] sm:$0xf]
      %v293 = vld [vmem:[%s1 + $0x110] sm:$0xf]
      %v294 = vld [vmem:[%s1 + $0x114] sm:$0xf]
      %v295 = vld [vmem:[%s1 + $0x118] sm:$0xf]
      %v296 = vld [vmem:[%s1 + $0x11c] sm:$0xf]
      %v297 = vld [vmem:[%s1 + $0x120] sm:$0xf]
      %v298 = vld [vmem:[%s1 + $0x124] sm:$0xf]
      %v299 = vld [vmem:[%s1 + $0x128] sm:$0xf]
      %v300 = vld [vmem:[%s1 + $0x12c] sm:$0xf]
      %v301 = vld [vmem:[%s1 + $0x130] sm:$0xf]
      %v302 = vld [vmem:[%s1 + $0x134] sm:$0xf]
      %v303 = vld [vmem:[%s1 + $0x138] sm:$0xf]
      %v304 = vld [vmem:[%s1 + $0x13c] sm:$0xf]
      %v305 = vld [vmem:[%s1 + $0x140] sm:$0xf]
      %v306 = vld [vmem:[%s1 + $0x144] sm:$0xf]
      %v307 = vld [vmem:[%s1 + $0x148] sm:$0xf]
      %v308 = vld [vmem:[%s1 + $0x14c] sm:$0xf]
      %v309 = vld [vmem:[%s1 + $0x150] sm:$0xf]
      %v310 = vld [vmem:[%s1 + $0x154] sm:$0xf]
      %v311 = vld [vmem:[%s1 + $0x158] sm:$0xf]
      %v312 = vld [vmem:[%s1 + $0x15c] sm:$0xf]
      %v313 = vld [vmem:[%s1 + $0x160] sm:$0xf]
      %v314 = vld [vmem:[%s1 + $0x164] sm:$0xf]
      %v315 = vld [vmem:[%s1 + $0x168] sm:$0xf]
      %v316 = vld [vmem:[%s1 + $0x16c] sm:$0xf]
      %v317 = vld [vmem:[%s1 + $0x170] sm:$0xf]
      %v318 = vld [vmem:[%s1 + $0x174] sm:$0xf]
      %v319 = vld [vmem:[%s1 + $0x178] sm:$0xf]
      %v320 = vld [vmem:[%s1 + $0x17c] sm:$0xf]
      %v321 = vld [vmem:[%s1 + $0x180] sm:$0xf]
      %v322 = vld [vmem:[%s1 + $0x184] sm:$0xf]
      %v323 = vld [vmem:[%s1 + $0x188] sm:$0xf]
      %v324 = vld [vmem:[%s1 + $0x18c] sm:$0xf]
      loop: start=0, step=1, limit=4
      $region37: #{embedding_net_forward.5} parent=35 // loop_pre_header
        _
      $region38: #{embedding_net_forward.5} parent=35 // loop_header
        %s326 = sphi 0, %s330
        %p327 = scmp.ge.s32.totalorder %s326, 4
      $region39: #{embedding_net_forward.5} parent=35 // loop_header_branch
        %329 = sbr.rel (%p327) target = $region43
      $region40: #{embedding_net_forward.5} parent=35 // loop_body
        %s331 = smul.u32 %s21, 4
        %s332 = sadd.s32 %s331, %s326
        %p333 = scmp.lt.s32.totalorder %s332, 3
        %s334 = scalar_select %p333, %s332, 3
        %s335 = smul.u32 %s334, 2
        %s336 = smul.u32 %s335, 2
        %s337 = smul.addr %s336, 4
        %s338 = scalar_lea.vmem %s211, %s337
        %v339 = vld [vmem:[%s338] sm:$0xf]
        %v340 = vld [vmem:[%s338 + $0x4] sm:$0x1]
        %v341 = vld [vmem:[%s338] sm:$0xe]
        %v342 = vld [vmem:[%s338 + $0x4] sm:$0x3]
        %v343 = vld [vmem:[%s338] sm:$0xc]
        %v346 = vunpack.c.l.b16 %v339
        %v347 = vunpack.c.l.b16 %v340
        %v348 = vpack.c.b16 %v347, %v346
        %v350 = vshrl.u32 %v348, 16
        %v352 = vshll.u32 %v348, 16
        %v354 = vrot.slane %v352, 1
        %v355 = vor.u32 %v350, %v354
        %356 = vrot.lane.b32.xlu0 %v355, 32
        %v357 = vpop.permute.xlu0 %356
        %v359 = vunpack.c.l.b16 %v341
        %v360 = vpack.c.b16 %v347, %v359
        %v361 = vrot.slane %v360, 1
        %362 = vrot.lane.b32.xlu0 %v361, 64
        %v363 = vpop.permute.xlu0 %362
        %v365 = vunpack.c.l.b16 %v342
        %v366 = vpack.c.b16 %v365, %v359
        %v368 = vshrl.u32 %v366, 16
        %v370 = vrot.slane %v368, 1
        %v371 = vshll.u32 %v366, 16
        %v373 = vrot.slane %v371, 2
        %v374 = vor.u32 %v370, %v373
        %375 = vrot.lane.b32.xlu0 %v374, 96
        %v376 = vpop.permute.xlu0 %375
        %v378 = vunpack.c.l.b16 %v343
        %v379 = vpack.c.b16 %v365, %v378
        %v380 = vrot.slane %v379, 2
        %vm381 = vcmask 261120
        %v384 = vsel %vm381, %v339, %v357
        %vm385 = vcmask 523264
        %v387 = vsel %vm385, %v384, %v363
        %vm388 = vcmask 785408
        %v390 = vsel %vm388, %v387, %v376
        %s392 = sadd.s32 %s335, 1
        %s393 = smul.u32 %s392, 2
        %s394 = smul.addr %s393, 4
        %s395 = scalar_lea.vmem %s211, %s394
        %v396 = vld [vmem:[%s395] sm:$0xf]
        %v397 = vld [vmem:[%s395 + $0x4] sm:$0x1]
        %v398 = vld [vmem:[%s395] sm:$0xe]
        %v399 = vld [vmem:[%s395 + $0x4] sm:$0x3]
        %v400 = vld [vmem:[%s395] sm:$0xc]
        %v403 = vunpack.c.l.b16 %v396
        %v404 = vunpack.c.l.b16 %v397
        %v405 = vpack.c.b16 %v404, %v403
        %v407 = vshrl.u32 %v405, 16
        %v409 = vshll.u32 %v405, 16
        %v411 = vrot.slane %v409, 1
        %v412 = vor.u32 %v407, %v411
        %413 = vrot.lane.b32.xlu0 %v412, 32
        %v414 = vpop.permute.xlu0 %413
        %v416 = vunpack.c.l.b16 %v398
        %v417 = vpack.c.b16 %v404, %v416
        %v418 = vrot.slane %v417, 1
        %419 = vrot.lane.b32.xlu0 %v418, 64
        %v420 = vpop.permute.xlu0 %419
        %v422 = vunpack.c.l.b16 %v399
        %v423 = vpack.c.b16 %v422, %v416
        %v425 = vshrl.u32 %v423, 16
        %v427 = vrot.slane %v425, 1
        %v428 = vshll.u32 %v423, 16
        %v430 = vrot.slane %v428, 2
        %v431 = vor.u32 %v427, %v430
        %432 = vrot.lane.b32.xlu0 %v431, 96
        %v433 = vpop.permute.xlu0 %432
        %v435 = vunpack.c.l.b16 %v400
        %v436 = vpack.c.b16 %v422, %v435
        %v437 = vrot.slane %v436, 2
        %v440 = vsel %vm381, %v396, %v414
        %v442 = vsel %vm385, %v440, %v420
        %v444 = vsel %vm388, %v442, %v433
        %v466 = vunpack.c.l.b16 %v245
        %v467 = vunpack.c.l.b16 %v246
        %v468 = vunpack.c.l.b16 %v247
        %v469 = vunpack.c.l.b16 %v248
        %v470 = vunpack.c.l.b16 %v249
        %v471 = vunpack.c.l.b16 %v250
        %v472 = vunpack.c.l.b16 %v251
        %v473 = vunpack.c.l.b16 %v252
        %v474 = vunpack.c.l.b16 %v253
        %v475 = vunpack.c.l.b16 %v254
        %v476 = vunpack.c.l.b16 %v255
        %v477 = vunpack.c.l.b16 %v256
        %v478 = vunpack.c.l.b16 %v257
        %v479 = vunpack.c.l.b16 %v258
        %v480 = vunpack.c.l.b16 %v259
        %v481 = vunpack.c.l.b16 %v260
        %v482 = vunpack.c.l.b16 %v261
        %v483 = vunpack.c.l.b16 %v262
        %v484 = vunpack.c.l.b16 %v263
        %v485 = vunpack.c.l.b16 %v264
        %v486 = vpack.c.b16 %v467, %v466
        %v487 = vpack.c.b16 %v469, %v468
        %v488 = vpack.c.b16 %v471, %v470
        %v489 = vpack.c.b16 %v473, %v472
        %v490 = vpack.c.b16 %v475, %v474
        %v491 = vpack.c.b16 %v477, %v476
        %v492 = vpack.c.b16 %v479, %v478
        %v493 = vpack.c.b16 %v481, %v480
        %v494 = vpack.c.b16 %v483, %v482
        %v495 = vpack.c.b16 %v485, %v484
        %v507 = vsel %vm381, %v437, 0
        %509 = vmatprep.subr.bf16.mxu0 0
        %510 = vmatpush1.bf16.msra.mxu0 %v486
        %511 = vmatprep.subr.bf16.mxu0 0
        %512 = vmatpush1.bf16.msra.mxu0 %v487
        %513 = vmatprep.subr.bf16.mxu0 0
        %514 = vmatpush1.bf16.msra.mxu0 %v488
        %515 = vmatprep.subr.bf16.mxu0 0
        %516 = vmatpush1.bf16.msra.mxu0 %v489
        %517 = vmatprep.subr.bf16.mxu0 0
        %518 = vmatpush1.bf16.msra.mxu0 %v490
        %519 = vmatprep.subr.bf16.mxu0 0
        %520 = vmatpush1.bf16.msra.mxu0 %v491
        %521 = vmatprep.subr.bf16.mxu0 0
        %522 = vmatpush1.bf16.msra.mxu0 %v492
        %523 = vmatprep.subr.bf16.mxu0 0
        %524 = vmatpush1.bf16.msra.mxu0 %v493
        %525 = vmatprep.subr.bf16.mxu0 0
        %526 = vmatpush1.bf16.msra.mxu0 %v494
        %527 = vmatprep.subr.bf16.mxu0 0
        %528 = vmatpush1.bf16.msra.mxu0 %v495
        %529 = vmatprep.subr.bf16.mxu0 0
        %530 = vmatpush1.bf16.msra.mxu0 0
        %531 = vmatprep.subr.bf16.mxu0 0
        %532 = vmatpush1.bf16.msra.mxu0 0
        %533 = vmatprep.subr.bf16.mxu0 0
        %534 = vmatpush1.bf16.msra.mxu0 0
        %535 = vmatprep.subr.bf16.mxu0 0
        %536 = vmatpush1.bf16.msra.mxu0 0
        %537 = vmatprep.subr.bf16.mxu0 0
        %538 = vmatpush1.bf16.msra.mxu0 0
        %539 = vmatprep.subr.bf16.mxu0 0
        %540 = vmatpush1.bf16.msra.mxu0 0
        %541 = vmatprep.mubr.bf16.mxu0 %v507
        %542 = vmatmul.mubr.bf16.gmra.mrb[0].mxu0 %v444
        %v543 = vpop.f32.mrb[0].mxu0
        %v544 = vadd.f32 0.0, %v543
        %v545 = vpop.f32.mrb[0].mxu0
        %v546 = vpop.f32.mrb[0].mxu0
        %v547 = vpop.f32.mrb[0].mxu0
        %548 = vdwg.mxu0
        %v569 = vunpack.c.l.b16 %v225
        %v570 = vunpack.c.l.b16 %v226
        %v571 = vunpack.c.l.b16 %v227
        %v572 = vunpack.c.l.b16 %v228
        %v573 = vunpack.c.l.b16 %v229
        %v574 = vunpack.c.l.b16 %v230
        %v575 = vunpack.c.l.b16 %v231
        %v576 = vunpack.c.l.b16 %v232
        %v577 = vunpack.c.l.b16 %v233
        %v578 = vunpack.c.l.b16 %v234
        %v579 = vunpack.c.l.b16 %v235
        %v580 = vunpack.c.l.b16 %v236
        %v581 = vunpack.c.l.b16 %v237
        %v582 = vunpack.c.l.b16 %v238
        %v583 = vunpack.c.l.b16 %v239
        %v584 = vunpack.c.l.b16 %v240
        %v585 = vunpack.c.l.b16 %v241
        %v586 = vunpack.c.l.b16 %v242
        %v587 = vunpack.c.l.b16 %v243
        %v588 = vunpack.c.l.b16 %v244
        %v589 = vpack.c.b16 %v570, %v569
        %v590 = vpack.c.b16 %v572, %v571
        %v591 = vpack.c.b16 %v574, %v573
        %v592 = vpack.c.b16 %v576, %v575
        %v593 = vpack.c.b16 %v578, %v577
        %v594 = vpack.c.b16 %v580, %v579
        %v595 = vpack.c.b16 %v582, %v581
        %v596 = vpack.c.b16 %v584, %v583
        %v597 = vpack.c.b16 %v586, %v585
        %v598 = vpack.c.b16 %v588, %v587
        %v610 = vsel %vm381, %v380, 0
        %612 = vmatprep.subr.bf16.mxu0 0
        %613 = vmatpush1.bf16.msra.mxu0 %v589
        %614 = vmatprep.subr.bf16.mxu0 0
        %615 = vmatpush1.bf16.msra.mxu0 %v590
        %616 = vmatprep.subr.bf16.mxu0 0
        %617 = vmatpush1.bf16.msra.mxu0 %v591
        %618 = vmatprep.subr.bf16.mxu0 0
        %619 = vmatpush1.bf16.msra.mxu0 %v592
        %620 = vmatprep.subr.bf16.mxu0 0
        %621 = vmatpush1.bf16.msra.mxu0 %v593
        %622 = vmatprep.subr.bf16.mxu0 0
        %623 = vmatpush1.bf16.msra.mxu0 %v594
        %624 = vmatprep.subr.bf16.mxu0 0
        %625 = vmatpush1.bf16.msra.mxu0 %v595
        %626 = vmatprep.subr.bf16.mxu0 0
        %627 = vmatpush1.bf16.msra.mxu0 %v596
        %628 = vmatprep.subr.bf16.mxu0 0
        %629 = vmatpush1.bf16.msra.mxu0 %v597
        %630 = vmatprep.subr.bf16.mxu0 0
        %631 = vmatpush1.bf16.msra.mxu0 %v598
        %632 = vmatprep.subr.bf16.mxu0 0
        %633 = vmatpush1.bf16.msra.mxu0 0
        %634 = vmatprep.subr.bf16.mxu0 0
        %635 = vmatpush1.bf16.msra.mxu0 0
        %636 = vmatprep.subr.bf16.mxu0 0
        %637 = vmatpush1.bf16.msra.mxu0 0
        %638 = vmatprep.subr.bf16.mxu0 0
        %639 = vmatpush1.bf16.msra.mxu0 0
        %640 = vmatprep.subr.bf16.mxu0 0
        %641 = vmatpush1.bf16.msra.mxu0 0
        %642 = vmatprep.subr.bf16.mxu0 0
        %643 = vmatpush1.bf16.msra.mxu0 0
        %644 = vmatprep.mubr.bf16.mxu0 %v610
        %645 = vmatmul.mubr.bf16.gmra.mrb[0].mxu0 %v390
        %v646 = vpop.f32.mrb[0].mxu0
        %v647 = vadd.f32 %v544, %v646
        %v648 = vpop.f32.mrb[0].mxu0
        %v649 = vpop.f32.mrb[0].mxu0
        %v650 = vpop.f32.mrb[0].mxu0
        %651 = vdwg.mxu0
        %s652 = sadd.s32 %s335, 2
        %s653 = smul.u32 %s652, 2
        %s654 = smul.addr %s653, 4
        %s655 = scalar_lea.vmem %s211, %s654
        %v656 = vld [vmem:[%s655] sm:$0xf]
        %v657 = vld [vmem:[%s655 + $0x4] sm:$0x1]
        %v658 = vld [vmem:[%s655] sm:$0xe]
        %v659 = vld [vmem:[%s655 + $0x4] sm:$0x3]
        %v660 = vld [vmem:[%s655] sm:$0xc]
        %v663 = vunpack.c.l.b16 %v656
        %v664 = vunpack.c.l.b16 %v657
        %v665 = vpack.c.b16 %v664, %v663
        %v667 = vshrl.u32 %v665, 16
        %v669 = vshll.u32 %v665, 16
        %v671 = vrot.slane %v669, 1
        %v672 = vor.u32 %v667, %v671
        %673 = vrot.lane.b32.xlu0 %v672, 32
        %v674 = vpop.permute.xlu0 %673
        %v676 = vunpack.c.l.b16 %v658
        %v677 = vpack.c.b16 %v664, %v676
        %v678 = vrot.slane %v677, 1
        %679 = vrot.lane.b32.xlu0 %v678, 64
        %v680 = vpop.permute.xlu0 %679
        %v682 = vunpack.c.l.b16 %v659
        %v683 = vpack.c.b16 %v682, %v676
        %v685 = vshrl.u32 %v683, 16
        %v687 = vrot.slane %v685, 1
        %v688 = vshll.u32 %v683, 16
        %v690 = vrot.slane %v688, 2
        %v691 = vor.u32 %v687, %v690
        %692 = vrot.lane.b32.xlu0 %v691, 96
        %v693 = vpop.permute.xlu0 %692
        %v695 = vunpack.c.l.b16 %v660
        %v696 = vpack.c.b16 %v682, %v695
        %v697 = vrot.slane %v696, 2
        %v700 = vsel %vm381, %v656, %v674
        %v702 = vsel %vm385, %v700, %v680
        %v704 = vsel %vm388, %v702, %v693
        %v726 = vunpack.c.l.b16 %v265
        %v727 = vunpack.c.l.b16 %v266
        %v728 = vunpack.c.l.b16 %v267
        %v729 = vunpack.c.l.b16 %v268
        %v730 = vunpack.c.l.b16 %v269
        %v731 = vunpack.c.l.b16 %v270
        %v732 = vunpack.c.l.b16 %v271
        %v733 = vunpack.c.l.b16 %v272
        %v734 = vunpack.c.l.b16 %v273
        %v735 = vunpack.c.l.b16 %v274
        %v736 = vunpack.c.l.b16 %v275
        %v737 = vunpack.c.l.b16 %v276
        %v738 = vunpack.c.l.b16 %v277
        %v739 = vunpack.c.l.b16 %v278
        %v740 = vunpack.c.l.b16 %v279
        %v741 = vunpack.c.l.b16 %v280
        %v742 = vunpack.c.l.b16 %v281
        %v743 = vunpack.c.l.b16 %v282
        %v744 = vunpack.c.l.b16 %v283
        %v745 = vunpack.c.l.b16 %v284
        %v746 = vpack.c.b16 %v727, %v726
        %v747 = vpack.c.b16 %v729, %v728
        %v748 = vpack.c.b16 %v731, %v730
        %v749 = vpack.c.b16 %v733, %v732
        %v750 = vpack.c.b16 %v735, %v734
        %v751 = vpack.c.b16 %v737, %v736
        %v752 = vpack.c.b16 %v739, %v738
        %v753 = vpack.c.b16 %v741, %v740
        %v754 = vpack.c.b16 %v743, %v742
        %v755 = vpack.c.b16 %v745, %v744
        %v767 = vsel %vm381, %v697, 0
        %769 = vmatprep.subr.bf16.mxu0 0
        %770 = vmatpush1.bf16.msra.mxu0 %v746
        %771 = vmatprep.subr.bf16.mxu0 0
        %772 = vmatpush1.bf16.msra.mxu0 %v747
        %773 = vmatprep.subr.bf16.mxu0 0
        %774 = vmatpush1.bf16.msra.mxu0 %v748
        %775 = vmatprep.subr.bf16.mxu0 0
        %776 = vmatpush1.bf16.msra.mxu0 %v749
        %777 = vmatprep.subr.bf16.mxu0 0
        %778 = vmatpush1.bf16.msra.mxu0 %v750
        %779 = vmatprep.subr.bf16.mxu0 0
        %780 = vmatpush1.bf16.msra.mxu0 %v751
        %781 = vmatprep.subr.bf16.mxu0 0
        %782 = vmatpush1.bf16.msra.mxu0 %v752
        %783 = vmatprep.subr.bf16.mxu0 0
        %784 = vmatpush1.bf16.msra.mxu0 %v753
        %785 = vmatprep.subr.bf16.mxu0 0
        %786 = vmatpush1.bf16.msra.mxu0 %v754
        %787 = vmatprep.subr.bf16.mxu0 0
        %788 = vmatpush1.bf16.msra.mxu0 %v755
        %789 = vmatprep.subr.bf16.mxu0 0
        %790 = vmatpush1.bf16.msra.mxu0 0
        %791 = vmatprep.subr.bf16.mxu0 0
        %792 = vmatpush1.bf16.msra.mxu0 0
        %793 = vmatprep.subr.bf16.mxu0 0
        %794 = vmatpush1.bf16.msra.mxu0 0
        %795 = vmatprep.subr.bf16.mxu0 0
        %796 = vmatpush1.bf16.msra.mxu0 0
        %797 = vmatprep.subr.bf16.mxu0 0
        %798 = vmatpush1.bf16.msra.mxu0 0
        %799 = vmatprep.subr.bf16.mxu0 0
        %800 = vmatpush1.bf16.msra.mxu0 0
        %801 = vmatprep.mubr.bf16.mxu0 %v767
        %802 = vmatmul.mubr.bf16.gmra.mrb[0].mxu0 %v704
        %v803 = vpop.f32.mrb[0].mxu0
        %v804 = vadd.f32 0.0, %v803
        %v805 = vpop.f32.mrb[0].mxu0
        %v806 = vpop.f32.mrb[0].mxu0
        %v807 = vpop.f32.mrb[0].mxu0
        %808 = vdwg.mxu0
        %v809 = vadd.f32 %v647, %v804
        %s810 = sadd.s32 %s335, 3
        %s811 = smul.u32 %s810, 2
        %s812 = smul.addr %s811, 4
        %s813 = scalar_lea.vmem %s211, %s812
        %v814 = vld [vmem:[%s813] sm:$0xf]
        %v815 = vld [vmem:[%s813 + $0x4] sm:$0x1]
        %v816 = vld [vmem:[%s813] sm:$0xe]
        %v817 = vld [vmem:[%s813 + $0x4] sm:$0x3]
        %v818 = vld [vmem:[%s813] sm:$0xc]
        %v821 = vunpack.c.l.b16 %v814
        %v822 = vunpack.c.l.b16 %v815
        %v823 = vpack.c.b16 %v822, %v821
        %v825 = vshrl.u32 %v823, 16
        %v827 = vshll.u32 %v823, 16
        %v829 = vrot.slane %v827, 1
        %v830 = vor.u32 %v825, %v829
        %831 = vrot.lane.b32.xlu0 %v830, 32
        %v832 = vpop.permute.xlu0 %831
        %v834 = vunpack.c.l.b16 %v816
        %v835 = vpack.c.b16 %v822, %v834
        %v836 = vrot.slane %v835, 1
        %837 = vrot.lane.b32.xlu0 %v836, 64
        %v838 = vpop.permute.xlu0 %837
        %v840 = vunpack.c.l.b16 %v817
        %v841 = vpack.c.b16 %v840, %v834
        %v843 = vshrl.u32 %v841, 16
        %v845 = vrot.slane %v843, 1
        %v846 = vshll.u32 %v841, 16
        %v848 = vrot.slane %v846, 2
        %v849 = vor.u32 %v845, %v848
        %850 = vrot.lane.b32.xlu0 %v849, 96
        %v851 = vpop.permute.xlu0 %850
        %v853 = vunpack.c.l.b16 %v818
        %v854 = vpack.c.b16 %v840, %v853
        %v855 = vrot.slane %v854, 2
        %v858 = vsel %vm381, %v814, %v832
        %v860 = vsel %vm385, %v858, %v838
        %v862 = vsel %vm388, %v860, %v851
        %v884 = vunpack.c.l.b16 %v285
        %v885 = vunpack.c.l.b16 %v286
        %v886 = vunpack.c.l.b16 %v287
        %v887 = vunpack.c.l.b16 %v288
        %v888 = vunpack.c.l.b16 %v289
        %v889 = vunpack.c.l.b16 %v290
        %v890 = vunpack.c.l.b16 %v291
        %v891 = vunpack.c.l.b16 %v292
        %v892 = vunpack.c.l.b16 %v293
        %v893 = vunpack.c.l.b16 %v294
        %v894 = vunpack.c.l.b16 %v295
        %v895 = vunpack.c.l.b16 %v296
        %v896 = vunpack.c.l.b16 %v297
        %v897 = vunpack.c.l.b16 %v298
        %v898 = vunpack.c.l.b16 %v299
        %v899 = vunpack.c.l.b16 %v300
        %v900 = vunpack.c.l.b16 %v301
        %v901 = vunpack.c.l.b16 %v302
        %v902 = vunpack.c.l.b16 %v303
        %v903 = vunpack.c.l.b16 %v304
        %v904 = vpack.c.b16 %v885, %v884
        %v905 = vpack.c.b16 %v887, %v886
        %v906 = vpack.c.b16 %v889, %v888
        %v907 = vpack.c.b16 %v891, %v890
        %v908 = vpack.c.b16 %v893, %v892
        %v909 = vpack.c.b16 %v895, %v894
        %v910 = vpack.c.b16 %v897, %v896
        %v911 = vpack.c.b16 %v899, %v898
        %v912 = vpack.c.b16 %v901, %v900
        %v913 = vpack.c.b16 %v903, %v902
        %v925 = vsel %vm381, %v855, 0
        %927 = vmatprep.subr.bf16.mxu0 0
        %928 = vmatpush1.bf16.msra.mxu0 %v904
        %929 = vmatprep.subr.bf16.mxu0 0
        %930 = vmatpush1.bf16.msra.mxu0 %v905
        %931 = vmatprep.subr.bf16.mxu0 0
        %932 = vmatpush1.bf16.msra.mxu0 %v906
        %933 = vmatprep.subr.bf16.mxu0 0
        %934 = vmatpush1.bf16.msra.mxu0 %v907
        %935 = vmatprep.subr.bf16.mxu0 0
        %936 = vmatpush1.bf16.msra.mxu0 %v908
        %937 = vmatprep.subr.bf16.mxu0 0
        %938 = vmatpush1.bf16.msra.mxu0 %v909
        %939 = vmatprep.subr.bf16.mxu0 0
        %940 = vmatpush1.bf16.msra.mxu0 %v910
        %941 = vmatprep.subr.bf16.mxu0 0
        %942 = vmatpush1.bf16.msra.mxu0 %v911
        %943 = vmatprep.subr.bf16.mxu0 0
        %944 = vmatpush1.bf16.msra.mxu0 %v912
        %945 = vmatprep.subr.bf16.mxu0 0
        %946 = vmatpush1.bf16.msra.mxu0 %v913
        %947 = vmatprep.subr.bf16.mxu0 0
        %948 = vmatpush1.bf16.msra.mxu0 0
        %949 = vmatprep.subr.bf16.mxu0 0
        %950 = vmatpush1.bf16.msra.mxu0 0
        %951 = vmatprep.subr.bf16.mxu0 0
        %952 = vmatpush1.bf16.msra.mxu0 0
        %953 = vmatprep.subr.bf16.mxu0 0
        %954 = vmatpush1.bf16.msra.mxu0 0
        %955 = vmatprep.subr.bf16.mxu0 0
        %956 = vmatpush1.bf16.msra.mxu0 0
        %957 = vmatprep.subr.bf16.mxu0 0
        %958 = vmatpush1.bf16.msra.mxu0 0
        %959 = vmatprep.mubr.bf16.mxu0 %v925
        %960 = vmatmul.mubr.bf16.gmra.mrb[0].mxu0 %v862
        %v961 = vpop.f32.mrb[0].mxu0
        %v962 = vadd.f32 0.0, %v961
        %v963 = vpop.f32.mrb[0].mxu0
        %v964 = vpop.f32.mrb[0].mxu0
        %v965 = vpop.f32.mrb[0].mxu0
        %966 = vdwg.mxu0
        %v967 = vadd.f32 %v809, %v962
        %s968 = sadd.s32 %s335, 4
        %s969 = smul.u32 %s968, 2
        %s970 = smul.addr %s969, 4
        %s971 = scalar_lea.vmem %s211, %s970
        %v972 = vld [vmem:[%s971] sm:$0xf]
        %v973 = vld [vmem:[%s971 + $0x4] sm:$0x1]
        %v974 = vld [vmem:[%s971] sm:$0xe]
        %v975 = vld [vmem:[%s971 + $0x4] sm:$0x3]
        %v976 = vld [vmem:[%s971] sm:$0xc]
        %v979 = vunpack.c.l.b16 %v972
        %v980 = vunpack.c.l.b16 %v973
        %v981 = vpack.c.b16 %v980, %v979
        %v983 = vshrl.u32 %v981, 16
        %v985 = vshll.u32 %v981, 16
        %v987 = vrot.slane %v985, 1
        %v988 = vor.u32 %v983, %v987
        %989 = vrot.lane.b32.xlu0 %v988, 32
        %v990 = vpop.permute.xlu0 %989
        %v992 = vunpack.c.l.b16 %v974
        %v993 = vpack.c.b16 %v980, %v992
        %v994 = vrot.slane %v993, 1
        %995 = vrot.lane.b32.xlu0 %v994, 64
        %v996 = vpop.permute.xlu0 %995
        %v998 = vunpack.c.l.b16 %v975
        %v999 = vpack.c.b16 %v998, %v992
        %v1001 = vshrl.u32 %v999, 16
        %v1003 = vrot.slane %v1001, 1
        %v1004 = vshll.u32 %v999, 16
        %v1006 = vrot.slane %v1004, 2
        %v1007 = vor.u32 %v1003, %v1006
        %1008 = vrot.lane.b32.xlu0 %v1007, 96
        %v1009 = vpop.permute.xlu0 %1008
        %v1011 = vunpack.c.l.b16 %v976
        %v1012 = vpack.c.b16 %v998, %v1011
        %v1013 = vrot.slane %v1012, 2
        %v1016 = vsel %vm381, %v972, %v990
        %v1018 = vsel %vm385, %v1016, %v996
        %v1020 = vsel %vm388, %v1018, %v1009
        %v1042 = vunpack.c.l.b16 %v305
        %v1043 = vunpack.c.l.b16 %v306
        %v1044 = vunpack.c.l.b16 %v307
        %v1045 = vunpack.c.l.b16 %v308
        %v1046 = vunpack.c.l.b16 %v309
        %v1047 = vunpack.c.l.b16 %v310
        %v1048 = vunpack.c.l.b16 %v311
        %v1049 = vunpack.c.l.b16 %v312
        %v1050 = vunpack.c.l.b16 %v313
        %v1051 = vunpack.c.l.b16 %v314
        %v1052 = vunpack.c.l.b16 %v315
        %v1053 = vunpack.c.l.b16 %v316
        %v1054 = vunpack.c.l.b16 %v317
        %v1055 = vunpack.c.l.b16 %v318
        %v1056 = vunpack.c.l.b16 %v319
        %v1057 = vunpack.c.l.b16 %v320
        %v1058 = vunpack.c.l.b16 %v321
        %v1059 = vunpack.c.l.b16 %v322
        %v1060 = vunpack.c.l.b16 %v323
        %v1061 = vunpack.c.l.b16 %v324
        %v1062 = vpack.c.b16 %v1043, %v1042
        %v1063 = vpack.c.b16 %v1045, %v1044
        %v1064 = vpack.c.b16 %v1047, %v1046
        %v1065 = vpack.c.b16 %v1049, %v1048
        %v1066 = vpack.c.b16 %v1051, %v1050
        %v1067 = vpack.c.b16 %v1053, %v1052
        %v1068 = vpack.c.b16 %v1055, %v1054
        %v1069 = vpack.c.b16 %v1057, %v1056
        %v1070 = vpack.c.b16 %v1059, %v1058
        %v1071 = vpack.c.b16 %v1061, %v1060
        %v1083 = vsel %vm381, %v1013, 0
        %1085 = vmatprep.subr.bf16.mxu0 0
        %1086 = vmatpush1.bf16.msra.mxu0 %v1062
        %1087 = vmatprep.subr.bf16.mxu0 0
        %1088 = vmatpush1.bf16.msra.mxu0 %v1063
        %1089 = vmatprep.subr.bf16.mxu0 0
        %1090 = vmatpush1.bf16.msra.mxu0 %v1064
        %1091 = vmatprep.subr.bf16.mxu0 0
        %1092 = vmatpush1.bf16.msra.mxu0 %v1065
        %1093 = vmatprep.subr.bf16.mxu0 0
        %1094 = vmatpush1.bf16.msra.mxu0 %v1066
        %1095 = vmatprep.subr.bf16.mxu0 0
        %1096 = vmatpush1.bf16.msra.mxu0 %v1067
        %1097 = vmatprep.subr.bf16.mxu0 0
        %1098 = vmatpush1.bf16.msra.mxu0 %v1068
        %1099 = vmatprep.subr.bf16.mxu0 0
        %1100 = vmatpush1.bf16.msra.mxu0 %v1069
        %1101 = vmatprep.subr.bf16.mxu0 0
        %1102 = vmatpush1.bf16.msra.mxu0 %v1070
        %1103 = vmatprep.subr.bf16.mxu0 0
        %1104 = vmatpush1.bf16.msra.mxu0 %v1071
        %1105 = vmatprep.subr.bf16.mxu0 0
        %1106 = vmatpush1.bf16.msra.mxu0 0
        %1107 = vmatprep.subr.bf16.mxu0 0
        %1108 = vmatpush1.bf16.msra.mxu0 0
        %1109 = vmatprep.subr.bf16.mxu0 0
        %1110 = vmatpush1.bf16.msra.mxu0 0
        %1111 = vmatprep.subr.bf16.mxu0 0
        %1112 = vmatpush1.bf16.msra.mxu0 0
        %1113 = vmatprep.subr.bf16.mxu0 0
        %1114 = vmatpush1.bf16.msra.mxu0 0
        %1115 = vmatprep.subr.bf16.mxu0 0
        %1116 = vmatpush1.bf16.msra.mxu0 0
        %1117 = vmatprep.mubr.bf16.mxu0 %v1083
        %1118 = vmatmul.mubr.bf16.gmra.mrb[0].mxu0 %v1020
        %v1119 = vpop.f32.mrb[0].mxu0
        %v1120 = vadd.f32 0.0, %v1119
        %v1121 = vpop.f32.mrb[0].mxu0
        %v1122 = vpop.f32.mrb[0].mxu0
        %v1123 = vpop.f32.mrb[0].mxu0
        %1124 = vdwg.mxu0
        %v1125 = vadd.f32 %v967, %v1120
        %v1127 = vlaneseq
        %v1128 = vshrl.u32 %v1127, 7
        %v1129 = vsub.s32 0, %v1128
        %v1130 = vrot.slane %v223, %v1129
        %v1132 = vadd.f32 %v1125, %v1130
        %vm1133 = vcmp.gt.f32.partialorder %v1132, 0.0
        %v1134 = vstv %s224
        %v1135 = vmul.f32 %v1134, %v1132
        %v1136 = vsel %vm1133, %v1132, %v1135
        %1137 = vmatprep.subr.bf16.mxu0 0
        %1138 = vmatpush1.bf16.msra.mxu0 %v486
        %1139 = vmatprep.subr.bf16.mxu0 0
        %1140 = vmatpush1.bf16.msra.mxu0 %v487
        %1141 = vmatprep.subr.bf16.mxu0 0
        %1142 = vmatpush1.bf16.msra.mxu0 %v488
        %1143 = vmatprep.subr.bf16.mxu0 0
        %1144 = vmatpush1.bf16.msra.mxu0 %v489
        %1145 = vmatprep.subr.bf16.mxu0 0
        %1146 = vmatpush1.bf16.msra.mxu0 %v490
        %1147 = vmatprep.subr.bf16.mxu0 0
        %1148 = vmatpush1.bf16.msra.mxu0 %v491
        %1149 = vmatprep.subr.bf16.mxu0 0
        %1150 = vmatpush1.bf16.msra.mxu0 %v492
        %1151 = vmatprep.subr.bf16.mxu0 0
        %1152 = vmatpush1.bf16.msra.mxu0 %v493
        %1153 = vmatprep.subr.bf16.mxu0 0
        %1154 = vmatpush1.bf16.msra.mxu0 %v494
        %1155 = vmatprep.subr.bf16.mxu0 0
        %1156 = vmatpush1.bf16.msra.mxu0 %v495
        %1157 = vmatprep.subr.bf16.mxu0 0
        %1158 = vmatpush1.bf16.msra.mxu0 0
        %1159 = vmatprep.subr.bf16.mxu0 0
        %1160 = vmatpush1.bf16.msra.mxu0 0
        %1161 = vmatprep.subr.bf16.mxu0 0
        %1162 = vmatpush1.bf16.msra.mxu0 0
        %1163 = vmatprep.subr.bf16.mxu0 0
        %1164 = vmatpush1.bf16.msra.mxu0 0
        %1165 = vmatprep.subr.bf16.mxu0 0
        %1166 = vmatpush1.bf16.msra.mxu0 0
        %1167 = vmatprep.subr.bf16.mxu0 0
        %1168 = vmatpush1.bf16.msra.mxu0 0
        %1169 = vmatprep.mubr.bf16.mxu0 %v767
        %1170 = vmatmul.mubr.bf16.gmra.mrb[0].mxu0 %v704
        %v1171 = vpop.f32.mrb[0].mxu0
        %v1172 = vadd.f32 0.0, %v1171
        %v1173 = vpop.f32.mrb[0].mxu0
        %v1174 = vpop.f32.mrb[0].mxu0
        %v1175 = vpop.f32.mrb[0].mxu0
        %1176 = vdwg.mxu0
        %1177 = vmatprep.subr.bf16.mxu0 0
        %1178 = vmatpush1.bf16.msra.mxu0 %v589
        %1179 = vmatprep.subr.bf16.mxu0 0
        %1180 = vmatpush1.bf16.msra.mxu0 %v590
        %1181 = vmatprep.subr.bf16.mxu0 0
        %1182 = vmatpush1.bf16.msra.mxu0 %v591
        %1183 = vmatprep.subr.bf16.mxu0 0
        %1184 = vmatpush1.bf16.msra.mxu0 %v592
        %1185 = vmatprep.subr.bf16.mxu0 0
        %1186 = vmatpush1.bf16.msra.mxu0 %v593
        %1187 = vmatprep.subr.bf16.mxu0 0
        %1188 = vmatpush1.bf16.msra.mxu0 %v594
        %1189 = vmatprep.subr.bf16.mxu0 0
        %1190 = vmatpush1.bf16.msra.mxu0 %v595
        %1191 = vmatprep.subr.bf16.mxu0 0
        %1192 = vmatpush1.bf16.msra.mxu0 %v596
        %1193 = vmatprep.subr.bf16.mxu0 0
        %1194 = vmatpush1.bf16.msra.mxu0 %v597
        %1195 = vmatprep.subr.bf16.mxu0 0
        %1196 = vmatpush1.bf16.msra.mxu0 %v598
        %1197 = vmatprep.subr.bf16.mxu0 0
        %1198 = vmatpush1.bf16.msra.mxu0 0
        %1199 = vmatprep.subr.bf16.mxu0 0
        %1200 = vmatpush1.bf16.msra.mxu0 0
        %1201 = vmatprep.subr.bf16.mxu0 0
        %1202 = vmatpush1.bf16.msra.mxu0 0
        %1203 = vmatprep.subr.bf16.mxu0 0
        %1204 = vmatpush1.bf16.msra.mxu0 0
        %1205 = vmatprep.subr.bf16.mxu0 0
        %1206 = vmatpush1.bf16.msra.mxu0 0
        %1207 = vmatprep.subr.bf16.mxu0 0
        %1208 = vmatpush1.bf16.msra.mxu0 0
        %1209 = vmatprep.mubr.bf16.mxu0 %v507
        %1210 = vmatmul.mubr.bf16.gmra.mrb[0].mxu0 %v444
        %v1211 = vpop.f32.mrb[0].mxu0
        %v1212 = vadd.f32 %v1172, %v1211
        %v1213 = vpop.f32.mrb[0].mxu0
        %v1214 = vpop.f32.mrb[0].mxu0
        %v1215 = vpop.f32.mrb[0].mxu0
        %1216 = vdwg.mxu0
        %1217 = vmatprep.subr.bf16.mxu0 0
        %1218 = vmatpush1.bf16.msra.mxu0 %v746
        %1219 = vmatprep.subr.bf16.mxu0 0
        %1220 = vmatpush1.bf16.msra.mxu0 %v747
        %1221 = vmatprep.subr.bf16.mxu0 0
        %1222 = vmatpush1.bf16.msra.mxu0 %v748
        %1223 = vmatprep.subr.bf16.mxu0 0
        %1224 = vmatpush1.bf16.msra.mxu0 %v749
        %1225 = vmatprep.subr.bf16.mxu0 0
        %1226 = vmatpush1.bf16.msra.mxu0 %v750
        %1227 = vmatprep.subr.bf16.mxu0 0
        %1228 = vmatpush1.bf16.msra.mxu0 %v751
        %1229 = vmatprep.subr.bf16.mxu0 0
        %1230 = vmatpush1.bf16.msra.mxu0 %v752
        %1231 = vmatprep.subr.bf16.mxu0 0
        %1232 = vmatpush1.bf16.msra.mxu0 %v753
        %1233 = vmatprep.subr.bf16.mxu0 0
        %1234 = vmatpush1.bf16.msra.mxu0 %v754
        %1235 = vmatprep.subr.bf16.mxu0 0
        %1236 = vmatpush1.bf16.msra.mxu0 %v755
        %1237 = vmatprep.subr.bf16.mxu0 0
        %1238 = vmatpush1.bf16.msra.mxu0 0
        %1239 = vmatprep.subr.bf16.mxu0 0
        %1240 = vmatpush1.bf16.msra.mxu0 0
        %1241 = vmatprep.subr.bf16.mxu0 0
        %1242 = vmatpush1.bf16.msra.mxu0 0
        %1243 = vmatprep.subr.bf16.mxu0 0
        %1244 = vmatpush1.bf16.msra.mxu0 0
        %1245 = vmatprep.subr.bf16.mxu0 0
        %1246 = vmatpush1.bf16.msra.mxu0 0
        %1247 = vmatprep.subr.bf16.mxu0 0
        %1248 = vmatpush1.bf16.msra.mxu0 0
        %1249 = vmatprep.mubr.bf16.mxu0 %v925
        %1250 = vmatmul.mubr.bf16.gmra.mrb[0].mxu0 %v862
        %v1251 = vpop.f32.mrb[0].mxu0
        %v1252 = vadd.f32 0.0, %v1251
        %v1253 = vpop.f32.mrb[0].mxu0
        %v1254 = vpop.f32.mrb[0].mxu0
        %v1255 = vpop.f32.mrb[0].mxu0
        %1256 = vdwg.mxu0
        %v1257 = vadd.f32 %v1212, %v1252
        %1258 = vmatprep.subr.bf16.mxu0 0
        %1259 = vmatpush1.bf16.msra.mxu0 %v904
        %1260 = vmatprep.subr.bf16.mxu0 0
        %1261 = vmatpush1.bf16.msra.mxu0 %v905
        %1262 = vmatprep.subr.bf16.mxu0 0
        %1263 = vmatpush1.bf16.msra.mxu0 %v906
        %1264 = vmatprep.subr.bf16.mxu0 0
        %1265 = vmatpush1.bf16.msra.mxu0 %v907
        %1266 = vmatprep.subr.bf16.mxu0 0
        %1267 = vmatpush1.bf16.msra.mxu0 %v908
        %1268 = vmatprep.subr.bf16.mxu0 0
        %1269 = vmatpush1.bf16.msra.mxu0 %v909
        %1270 = vmatprep.subr.bf16.mxu0 0
        %1271 = vmatpush1.bf16.msra.mxu0 %v910
        %1272 = vmatprep.subr.bf16.mxu0 0
        %1273 = vmatpush1.bf16.msra.mxu0 %v911
        %1274 = vmatprep.subr.bf16.mxu0 0
        %1275 = vmatpush1.bf16.msra.mxu0 %v912
        %1276 = vmatprep.subr.bf16.mxu0 0
        %1277 = vmatpush1.bf16.msra.mxu0 %v913
        %1278 = vmatprep.subr.bf16.mxu0 0
        %1279 = vmatpush1.bf16.msra.mxu0 0
        %1280 = vmatprep.subr.bf16.mxu0 0
        %1281 = vmatpush1.bf16.msra.mxu0 0
        %1282 = vmatprep.subr.bf16.mxu0 0
        %1283 = vmatpush1.bf16.msra.mxu0 0
        %1284 = vmatprep.subr.bf16.mxu0 0
        %1285 = vmatpush1.bf16.msra.mxu0 0
        %1286 = vmatprep.subr.bf16.mxu0 0
        %1287 = vmatpush1.bf16.msra.mxu0 0
        %1288 = vmatprep.subr.bf16.mxu0 0
        %1289 = vmatpush1.bf16.msra.mxu0 0
        %1290 = vmatprep.mubr.bf16.mxu0 %v1083
        %1291 = vmatmul.mubr.bf16.gmra.mrb[0].mxu0 %v1020
        %v1292 = vpop.f32.mrb[0].mxu0
        %v1293 = vadd.f32 0.0, %v1292
        %v1294 = vpop.f32.mrb[0].mxu0
        %v1295 = vpop.f32.mrb[0].mxu0
        %v1296 = vpop.f32.mrb[0].mxu0
        %1297 = vdwg.mxu0
        %v1298 = vadd.f32 %v1257, %v1293
        %s1299 = sadd.s32 %s335, 5
        %s1300 = smul.u32 %s1299, 2
        %s1301 = smul.addr %s1300, 4
        %s1302 = scalar_lea.vmem %s211, %s1301
        %v1303 = vld [vmem:[%s1302] sm:$0xf]
        %v1304 = vld [vmem:[%s1302 + $0x4] sm:$0x1]
        %v1305 = vld [vmem:[%s1302] sm:$0xe]
        %v1306 = vld [vmem:[%s1302 + $0x4] sm:$0x3]
        %v1307 = vld [vmem:[%s1302] sm:$0xc]
        %v1310 = vunpack.c.l.b16 %v1303
        %v1311 = vunpack.c.l.b16 %v1304
        %v1312 = vpack.c.b16 %v1311, %v1310
        %v1314 = vshrl.u32 %v1312, 16
        %v1316 = vshll.u32 %v1312, 16
        %v1318 = vrot.slane %v1316, 1
        %v1319 = vor.u32 %v1314, %v1318
        %1320 = vrot.lane.b32.xlu0 %v1319, 32
        %v1321 = vpop.permute.xlu0 %1320
        %v1323 = vunpack.c.l.b16 %v1305
        %v1324 = vpack.c.b16 %v1311, %v1323
        %v1325 = vrot.slane %v1324, 1
        %1326 = vrot.lane.b32.xlu0 %v1325, 64
        %v1327 = vpop.permute.xlu0 %1326
        %v1329 = vunpack.c.l.b16 %v1306
        %v1330 = vpack.c.b16 %v1329, %v1323
        %v1332 = vshrl.u32 %v1330, 16
        %v1334 = vrot.slane %v1332, 1
        %v1335 = vshll.u32 %v1330, 16
        %v1337 = vrot.slane %v1335, 2
        %v1338 = vor.u32 %v1334, %v1337
        %1339 = vrot.lane.b32.xlu0 %v1338, 96
        %v1340 = vpop.permute.xlu0 %1339
        %v1342 = vunpack.c.l.b16 %v1307
        %v1343 = vpack.c.b16 %v1329, %v1342
        %v1344 = vrot.slane %v1343, 2
        %v1347 = vsel %vm381, %v1303, %v1321
        %v1349 = vsel %vm385, %v1347, %v1327
        %v1351 = vsel %vm388, %v1349, %v1340
        %v1354 = vsel %vm381, %v1344, 0
        %1356 = vmatprep.subr.bf16.mxu0 0
        %1357 = vmatpush1.bf16.msra.mxu0 %v1062
        %1358 = vmatprep.subr.bf16.mxu0 0
        %1359 = vmatpush1.bf16.msra.mxu0 %v1063
        %1360 = vmatprep.subr.bf16.mxu0 0
        %1361 = vmatpush1.bf16.msra.mxu0 %v1064
        %1362 = vmatprep.subr.bf16.mxu0 0
        %1363 = vmatpush1.bf16.msra.mxu0 %v1065
        %1364 = vmatprep.subr.bf16.mxu0 0
        %1365 = vmatpush1.bf16.msra.mxu0 %v1066
        %1366 = vmatprep.subr.bf16.mxu0 0
        %1367 = vmatpush1.bf16.msra.mxu0 %v1067
        %1368 = vmatprep.subr.bf16.mxu0 0
        %1369 = vmatpush1.bf16.msra.mxu0 %v1068
        %1370 = vmatprep.subr.bf16.mxu0 0
        %1371 = vmatpush1.bf16.msra.mxu0 %v1069
        %1372 = vmatprep.subr.bf16.mxu0 0
        %1373 = vmatpush1.bf16.msra.mxu0 %v1070
        %1374 = vmatprep.subr.bf16.mxu0 0
        %1375 = vmatpush1.bf16.msra.mxu0 %v1071
        %1376 = vmatprep.subr.bf16.mxu0 0
        %1377 = vmatpush1.bf16.msra.mxu0 0
        %1378 = vmatprep.subr.bf16.mxu0 0
        %1379 = vmatpush1.bf16.msra.mxu0 0
        %1380 = vmatprep.subr.bf16.mxu0 0
        %1381 = vmatpush1.bf16.msra.mxu0 0
        %1382 = vmatprep.subr.bf16.mxu0 0
        %1383 = vmatpush1.bf16.msra.mxu0 0
        %1384 = vmatprep.subr.bf16.mxu0 0
        %1385 = vmatpush1.bf16.msra.mxu0 0
        %1386 = vmatprep.subr.bf16.mxu0 0
        %1387 = vmatpush1.bf16.msra.mxu0 0
        %1388 = vmatprep.mubr.bf16.mxu0 %v1354
        %1389 = vmatmul.mubr.bf16.gmra.mrb[0].mxu0 %v1351
        %v1390 = vpop.f32.mrb[0].mxu0
        %v1391 = vadd.f32 0.0, %v1390
        %v1392 = vpop.f32.mrb[0].mxu0
        %v1393 = vpop.f32.mrb[0].mxu0
        %v1394 = vpop.f32.mrb[0].mxu0
        %1395 = vdwg.mxu0
        %v1396 = vadd.f32 %v1298, %v1391
        %v1397 = vadd.f32 %v1396, %v1130
        %vm1398 = vcmp.gt.f32.partialorder %v1397, 0.0
        %v1399 = vmul.f32 %v1134, %v1397
        %v1400 = vsel %vm1398, %v1397, %v1399
        %v1401 = vmax.f32 %v1136, %v1400
        %1402 = vst.msk [vmem:[#allocation2] sm:$0xff] %vm385, %v1401
        %v1403 = vld [vmem:[#allocation2] ss:$2 sm:$0xf]
        %s1404 = scalar_lea.vmem [#allocation2], 1
        %v1405 = vld [vmem:[%s1404] ss:$2 sm:$0xf]
        %v1406 = vmax.f32 %v1403, %v1405
        %v1407 = vpack.c.bf16 %v1406, %v1406
        %s1408 = smul.addr %s326, 2
        %s1409 = scalar_lea.vmem %s220, %s1408
        %vm1410 = vcmask 517120
        %1411 = vst.msk [vmem:[%s1409] sm:$0x3] %vm1410, %v1407
      $region41: #{embedding_net_forward.5} parent=35 // loop_footer
        %s330 = sadd.s32 1, %s326
      $region42: #{embedding_net_forward.5} parent=35 // loop_footer_branch
        %325 = sbr.rel target = $region38
      $region43: #{embedding_net_forward.5} parent=35 // loop_exit
        _
      %s1412 = smul.u32 4, %s21
      %p1413 = scmp.lt.s32.totalorder %s20, 1
      %s1414 = scalar_select %p1413, %s20, 1
      %p1415 = scmp.lt.s32.totalorder %s1412, 3
      %s1416 = scalar_select %p1415, %s1412, 3
      %s1417 = smul.addr %s1414, 4
      %s1418 = sadd.s32 %s1416, %s1417
      %s1419 = smul.addr %s1418, 2
      %s1420 = scalar_lea.vmem %s4, %s1419
      // Predicated region
      $region44: #{embedding_net_forward.5} parent=35 // pred_check
        %p1421 = pneg %p137
      $region45: #{embedding_net_forward.5} parent=35 // pred_check_branch
        %1423 = sbr.rel (%p1421) target = $region47
      $region46: #{embedding_net_forward.5} parent=35 // pred_region
        %s1424 = smul.u32 4, %s21
      $region47: #{embedding_net_forward.5} parent=35 // pred_fallthru
        _
    $region36: #{embedding_net_forward.5} parent=5 // pred_fallthru
      _
    %p1425 = scmp.le.s32.totalorder 2, %s11
    // Predicated region
    $region48: #{embedding_net_forward.5} parent=5 // pred_check
      %p1426 = pneg %p1425
    $region49: #{embedding_net_forward.5} parent=5 // pred_check_branch
      %1428 = sbr.rel (%p1426) target = $region51
    $region50: #{embedding_net_forward.5} parent=5 // pred_region
      %s1429 = ssub.s32 %s11, 2
      // Predicated region
      $region52: #{embedding_net_forward.5} parent=50 // pred_check
        %p1430 = pneg %p143
      $region53: #{embedding_net_forward.5} parent=50 // pred_check_branch
        %1432 = sbr.rel (%p1430) target = $region55
      $region54: #{embedding_net_forward.5} parent=50 // pred_region
        %s1433 = smul.u32 4, %s23
        %p1434 = scmp.lt.s32.totalorder %s22, 1
        %s1435 = scalar_select %p1434, %s22, 1
        %p1436 = scmp.lt.s32.totalorder %s1433, 3
        %s1437 = scalar_select %p1436, %s1433, 3
        %s1438 = smul.addr %s1435, 4
        %s1439 = sadd.s32 %s1437, %s1438
        %s1440 = smul.addr %s1439, 2
        %s1441 = scalar_lea.vmem %s4, %s1440
      $region55: #{embedding_net_forward.5} parent=50 // pred_fallthru
        _
    $region51: #{embedding_net_forward.5} parent=5 // pred_fallthru
      _
  $region6: #{embedding_net_forward.5} parent=0 // loop_footer
    %s15 = sadd.s32 1, %s11
  $region7: #{embedding_net_forward.5} parent=0 // loop_footer_branch
    %10 = sbr.rel target = $region3
  $region8: #{embedding_net_forward.5} parent=0 // loop_exit
    _

</llo_original>
